<compile_context>
chip_gen: v7x
topology: tpu7x:2x2x1
jax: 0.10.0
libtpu: 0.0.40
codegen_flags: <defaults>
</compile_context>

<pallas_src>
import functools

import jax
import jax.numpy as jnp
from jax import lax
from jax.experimental import pallas as pl
from jax.experimental.pallas import tpu as pltpu


def _maxpool_kernel(x_ref, o_ref, *, kernel_size, stride):
    """Max-pool every plane in the block.

    x_ref: (P, h_blk, W) input block.  o_ref: (P, ho_blk, Wo) output block.
    """
    k, s = kernel_size, stride
    p = x_ref.shape[0]
    _, ho_blk, wo = o_ref.shape
    hm = (ho_blk - 1) * s + 1      # dense sliding-max positions needed (rows)
    wm = (wo - 1) * s + 1          # dense sliding-max positions needed (cols)

    def window(a, b):
        # Unit-stride static slice of the VMEM block (no strided indexing).
        return x_ref[:, pl.ds(a, hm), pl.ds(b, wm)].astype(jnp.float32)

    # Dense (stride-1) sliding max over the k x k window: k*k shifted slabs
    # combined with jnp.maximum on the VPU.
    acc = window(0, 0)
    for a in range(k):
        for b in range(k):
            if a == 0 and b == 0:
                continue
            acc = jnp.maximum(acc, window(a, b))

    if s == 1:
        pooled = acc
    else:
        # Keep every s-th sliding-max position along rows and cols via 0/1
        # selection matmuls on the MXU (free slot for this mem-bound kernel);
        # avoids lane-strided slicing which Mosaic lowers poorly.
        ri = lax.broadcasted_iota(jnp.int32, (ho_blk, hm), 0)
        rh = lax.broadcasted_iota(jnp.int32, (ho_blk, hm), 1)
        row_sel = jnp.where(rh == ri * s, 1.0, 0.0).astype(jnp.float32)
        cw = lax.broadcasted_iota(jnp.int32, (wm, wo), 0)
        cj = lax.broadcasted_iota(jnp.int32, (wm, wo), 1)
        col_sel = jnp.where(cw == cj * s, 1.0, 0.0).astype(jnp.float32)

        row_sel_b = jnp.broadcast_to(row_sel[None], (p, ho_blk, hm))
        col_sel_b = jnp.broadcast_to(col_sel[None], (p, wm, wo))
        tmp = jnp.einsum(
            "pih,phw->piw", row_sel_b, acc,
            precision=lax.Precision.HIGHEST,
            preferred_element_type=jnp.float32)            # (P, ho_blk, wm)
        pooled = jnp.einsum(
            "piw,pwj->pij", tmp, col_sel_b,
            precision=lax.Precision.HIGHEST,
            preferred_element_type=jnp.float32)            # (P, ho_blk, wo)

    o_ref[...] = pooled.astype(o_ref.dtype)


def _largest_divisor_leq(n, cap):
    cap = max(1, min(n, cap))
    for d in range(cap, 0, -1):
        if n % d == 0:
            return d
    return 1


def stereo_max_pool2d(x, kernel_size: int = 2, stride: int = 2):
    """Equivalent of StereoMaxPool2d.forward for x of shape (N, C, 2, H, W)."""
    N, C, S, H, W = x.shape
    assert S == 2, "stereo dim must be 2"
    k, s = int(kernel_size), int(stride)
    Ho = (H - k) // s + 1
    Wo = (W - k) // s + 1
    assert Ho >= 1 and Wo >= 1
    G = N * C * S
    xf = x.reshape(G, H, W)
    itemsize = x.dtype.itemsize

    budget = 2 * 1024 * 1024  # per-block target; the pipeline double-buffers it

    # Optional row tiling for very large planes (only valid without halo, k<=s).
    tile_ho, h_blk = Ho, H
    if k <= s and H * W * itemsize > budget:
        rows_cap = max(1, (budget // max(W * itemsize, 1)) // s)
        for t in range(min(rows_cap, Ho), 0, -1):
            if t < Ho and Ho % t == 0 and t % 8 == 0:
                tile_ho, h_blk = t, t * s
                break

    # Batch as many independent (n, c, side) planes per grid step as fits the
    # budget, while keeping >= 2 grid steps (shards across TensorCores).
    blk_plane_bytes = (h_blk * W + tile_ho * Wo) * itemsize
    cap = max(1, budget // max(blk_plane_bytes, 1))
    if G >= 2:
        cap = min(cap, G // 2)
    P = _largest_divisor_leq(G, cap)

    grid = (G // P, Ho // tile_ho)

    kern = functools.partial(_maxpool_kernel, kernel_size=k, stride=s)

    hm_f = (Ho - 1) * s + 1
    wm_f = (Wo - 1) * s + 1
    flops = G * (hm_f * wm_f * max(k * k - 1, 1)
                 + 2 * Ho * hm_f * wm_f + 2 * Ho * wm_f * Wo)
    bytes_accessed = (G * H * W + G * Ho * Wo) * itemsize
    cost = pl.CostEstimate(flops=flops, transcendentals=0,
                           bytes_accessed=bytes_accessed)

    out = pl.pallas_call(
        kern,
        out_shape=jax.ShapeDtypeStruct((G, Ho, Wo), x.dtype),
        grid=grid,
        in_specs=[pl.BlockSpec((P, h_blk, W), lambda g, r: (g, r, 0))],
        out_specs=pl.BlockSpec((P, tile_ho, Wo), lambda g, r: (g, r, 0)),
        compiler_params=pltpu.CompilerParams(
            dimension_semantics=("parallel", "parallel"),
            vmem_limit_bytes=32 * 1024 * 1024,
        ),
        cost_estimate=cost,
    )(xf)

    return out.reshape(N, C, S, Ho, Wo)


def _reference_pool(x, k, s):
    # Pure-JAX reference: valid-padded max pooling over the last two dims.
    return lax.reduce_window(
        x, -jnp.inf, lax.max,
        window_dimensions=(1, 1, 1, k, k),
        window_strides=(1, 1, 1, s, s),
        padding="VALID")


if __name__ == "__main__":
    key = jax.random.PRNGKey(0)
    # (batch=2, channels=4, stereo=2, H=16, W=16)
    x = jax.random.normal(key, (2, 4, 2, 16, 16), dtype=jnp.float32)

    y = stereo_max_pool2d(x, kernel_size=2, stride=2)
    y = jax.block_until_ready(y)
    assert y.shape == (2, 4, 2, 8, 8), y.shape

    y_ref = _reference_pool(x, 2, 2)
    assert jnp.allclose(y, y_ref, rtol=1e-5, atol=1e-5), (
        "Pallas output mismatch vs reference")

    # Second config exercising a different plane-batch / grid split.
    x2 = jax.random.normal(jax.random.PRNGKey(0), (1, 3, 2, 16, 16),
                           dtype=jnp.float32)
    y2 = jax.block_until_ready(stereo_max_pool2d(x2, 2, 2))
    assert y2.shape == (1, 3, 2, 8, 8)
    assert jnp.allclose(y2, _reference_pool(x2, 2, 2), rtol=1e-5, atol=1e-5)

    print("KERNEL_OK")
</pallas_src>

<mosaic_0001>
module attributes {stable_mosaic.version = 11 : i64} {
  func.func @_maxpool_kernel(%arg0: i32, %arg1: i32, %arg2: memref<8x16x16xf32, #tpu.memory_space<vmem>>, %arg3: memref<8x8x8xf32, #tpu.memory_space<vmem>>) attributes {dimension_semantics = [#tpu.dimension_semantics<parallel>, #tpu.dimension_semantics<parallel>], iteration_bounds = array<i64: 2, 1>, scalar_prefetch = 0 : i64, scratch_operands = 0 : i64, tpu.core_type = #tpu.core_type<tc>, window_params = [{transform_indices = @transform_0, window_bounds = array<i64: 8, 16, 16>}, {transform_indices = @transform_1, window_bounds = array<i64: 8, 8, 8>}]} {
    %c0 = arith.constant 0 : index
    %c0_0 = arith.constant 0 : index
    %c0_1 = arith.constant 0 : index
    %0 = vector.load %arg2[%c0, %c0_0, %c0_1] : memref<8x16x16xf32, #tpu.memory_space<vmem>>, vector<8x15x15xf32>
    %c0_2 = arith.constant 0 : index
    %c0_3 = arith.constant 0 : index
    %c1 = arith.constant 1 : index
    %1 = vector.load %arg2[%c0_2, %c0_3, %c1] : memref<8x16x16xf32, #tpu.memory_space<vmem>>, vector<8x15x15xf32>
    %2 = arith.maximumf %0, %1 : vector<8x15x15xf32>
    %c0_4 = arith.constant 0 : index
    %c1_5 = arith.constant 1 : index
    %c0_6 = arith.constant 0 : index
    %3 = vector.load %arg2[%c0_4, %c1_5, %c0_6] : memref<8x16x16xf32, #tpu.memory_space<vmem>>, vector<8x15x15xf32>
    %4 = arith.maximumf %2, %3 : vector<8x15x15xf32>
    %c0_7 = arith.constant 0 : index
    %c1_8 = arith.constant 1 : index
    %c1_9 = arith.constant 1 : index
    %5 = vector.load %arg2[%c0_7, %c1_8, %c1_9] : memref<8x16x16xf32, #tpu.memory_space<vmem>>, vector<8x15x15xf32>
    %6 = arith.maximumf %4, %5 : vector<8x15x15xf32>
    %7 = tpu.iota {dimensions = array<i32: 0>} : vector<8x15xi32>
    %8 = tpu.iota {dimensions = array<i32: 1>} : vector<8x15xi32>
    %c2_i32 = arith.constant 2 : i32
    %9 = vector.broadcast %c2_i32 : i32 to vector<8x15xi32>
    %10 = arith.muli %7, %9 : vector<8x15xi32>
    %11 = arith.cmpi eq, %8, %10 : vector<8x15xi32>
    %cst = arith.constant 1.000000e+00 : f32
    %cst_10 = arith.constant 0.000000e+00 : f32
    %12 = vector.broadcast %cst : f32 to vector<8x15xf32>
    %13 = vector.broadcast %cst_10 : f32 to vector<8x15xf32>
    %14 = arith.select %11, %12, %13 : vector<8x15xi1>, vector<8x15xf32>
    %15 = tpu.iota {dimensions = array<i32: 0>} : vector<15x8xi32>
    %16 = tpu.iota {dimensions = array<i32: 1>} : vector<15x8xi32>
    %c2_i32_11 = arith.constant 2 : i32
    %17 = vector.broadcast %c2_i32_11 : i32 to vector<15x8xi32>
    %18 = arith.muli %16, %17 : vector<15x8xi32>
    %19 = arith.cmpi eq, %15, %18 : vector<15x8xi32>
    %cst_12 = arith.constant 1.000000e+00 : f32
    %cst_13 = arith.constant 0.000000e+00 : f32
    %20 = vector.broadcast %cst_12 : f32 to vector<15x8xf32>
    %21 = vector.broadcast %cst_13 : f32 to vector<15x8xf32>
    %22 = arith.select %19, %20, %21 : vector<15x8xi1>, vector<15x8xf32>
    %23 = vector.shape_cast %14 : vector<8x15xf32> to vector<1x8x15xf32>
    %24 = vector.shape_cast %23 : vector<1x8x15xf32> to vector<1x8x15xf32>
    %25 = vector.broadcast %24 : vector<1x8x15xf32> to vector<8x8x15xf32>
    %26 = vector.shape_cast %22 : vector<15x8xf32> to vector<1x15x8xf32>
    %27 = vector.shape_cast %26 : vector<1x15x8xf32> to vector<1x15x8xf32>
    %28 = vector.broadcast %27 : vector<1x15x8xf32> to vector<8x15x8xf32>
    "tpu.trace_start"() <{level = 10 : i32, message = "pih,phw->piw"}> : () -> ()
    %cst_14 = arith.constant dense<0.000000e+00> : vector<8x8x15xf32>
    %29 = tpu.matmul %25, %6, %cst_14 {dimension_numbers = #tpu.dot_dimension_numbers<[2], [1], [1], [2], [0, 0, 0, 1, 1, 2], [0], [0]>, precision = #tpu.contract_precision<fp32>} : vector<8x8x15xf32>, vector<8x15x15xf32>, vector<8x8x15xf32> -> vector<8x8x15xf32>
    "tpu.trace_stop"() : () -> ()
    "tpu.trace_start"() <{level = 10 : i32, message = "piw,pwj->pij"}> : () -> ()
    %cst_15 = arith.constant dense<0.000000e+00> : vector<8x8x8xf32>
    %30 = tpu.matmul %29, %28, %cst_15 {dimension_numbers = #tpu.dot_dimension_numbers<[2], [1], [1], [2], [0, 0, 0, 1, 1, 2], [0], [0]>, precision = #tpu.contract_precision<fp32>} : vector<8x8x15xf32>, vector<8x15x8xf32>, vector<8x8x8xf32> -> vector<8x8x8xf32>
    "tpu.trace_stop"() : () -> ()
    %c0_16 = arith.constant 0 : index
    %c0_17 = arith.constant 0 : index
    %c0_18 = arith.constant 0 : index
    %31 = vector.load %arg3[%c0_16, %c0_17, %c0_18] : memref<8x8x8xf32, #tpu.memory_space<vmem>>, vector<8x8x8xf32>
    tpu.vector_store %arg3[%c0_16, %c0_17, %c0_18], %30 {strides = array<i32>} : memref<8x8x8xf32, #tpu.memory_space<vmem>>, vector<8x8x8xf32>,
    return
  }
  func.func @transform_0(%arg0: i32, %arg1: i32) -> (i32, i32, i32) {
    %c0_i32 = arith.constant 0 : i32
    %c0_i32_0 = arith.constant 0 : i32
    return %arg0, %arg1, %c0_i32 : i32, i32, i32
  }
  func.func @transform_1(%arg0: i32, %arg1: i32) -> (i32, i32, i32) {
    %c0_i32 = arith.constant 0 : i32
    %c0_i32_0 = arith.constant 0 : i32
    return %arg0, %arg1, %c0_i32 : i32, i32, i32
  }
}

</mosaic_0001>

<llo_original>
// kernel: tpu_custom_call.1
$region0: #{tpu_custom_call.1}
  #allocation0 [shape = 'u32[]', space=smem, size = 0x4, offset = 0x4, fixed_abs, tag = 'smem constant byte address 0x4 - core index']
  #allocation1 [shape = 'u32[144,128]{1,0:T(1,128)}', space=vmem, size = 0x12000, scoped, tag = 'internal scratch']
  %s0 = inlined_call_operand.hbm [shape: f32[16,16,16], index: 0, kind: input, shape index: {}]
  %s1 = inlined_call_operand.vmem [shape: f32[16,8,8], index: 1, kind: output, shape index: {}]
  %s2 = sld [smem:[#allocation0]]
  $region41: #{tpu_custom_call.1} parent=0
    _
  %s4 = ssub.s32 1, %s2
  %s5 = scalar_select 0, %s4, %s2
  $region1: #{tpu_custom_call.1} parent=0
    #allocation2 [shape = 'u8[131072]{0}', space=vmem, size = 0x20000, scoped, tag = 'input window, operand 0']
    #allocation3 [shape = 's32[2]{0}', space=sflag, size = 0x8, scoped, tag = 'scoped memory for tpu_custom_call.1']
    %6 = vsyncpa [#allocation3], 0
    %s7 = scalar_lea.sflag [#allocation3], 1
    %8 = vsyncpa %s7, 0
    loop: start=0, step=1, limit=4
    $region2: #{tpu_custom_call.1} parent=1 // loop_pre_header
      _
    $region3: #{tpu_custom_call.1} parent=1 // loop_header
      %s10 = sphi 0, %s14
      %p11 = scmp.ge.s32.totalorder %s10, 4
      %s17 = sphi 0, %s29
      %s18 = sphi 0, %s25
      %s19 = sphi 0, %s17
      %s20 = sphi 0, %s18
      %s21 = sphi 0, %s19
      %s22 = sphi 0, %s20
      %s34 = sphi 0, %s36
      %s37 = sphi 0, %s34
      %s38 = sphi 0, %s37
      %s54 = sphi 0, %s38
      %s62 = sphi 0, %s64
      %s65 = sphi 0, %s62
      %s66 = sphi 0, %s65
      %s82 = sphi 0, %s66
    $region4: #{tpu_custom_call.1} parent=1 // loop_header_branch
      %13 = sbr.rel (%p11) target = $region8
    $region5: #{tpu_custom_call.1} parent=1 // loop_body
      %s15 = ssub.s32 %s10, 1
      %s16 = ssub.s32 %s10, 2
      %s23 = sadd.s32 1, %s18
      %p24 = scmp.ge.s32.totalorder %s23, 1
      %s25 = scalar_select %p24, 0, %s23
      %s26 = sadd.s32 1, %s17
      %s27 = scalar_select %p24, %s26, %s17
      %p28 = scmp.ge.s32.totalorder %s27, 2
      %s29 = scalar_select %p28, 0, %s27
      %s30 = ssub.s32 %s17, %s29
      %s31 = ssub.s32 %s18, %s25
      %s32 = sor.u32 %s30, %s31
      %p33 = scmp.eq.s32.totalorder %s32, 0
      %s35 = sadd.s32 %s34, 1
      %s36 = scalar_select %p33, %s34, %s35
      %p39 = pneg %p33
      %p40 = scmp.eq.s32.totalorder %s10, 1
      %p41 = por %p39, %p40
      %p42 = scmp.ne.s32.totalorder %s34, %s37
      %p43 = scmp.eq.s32.totalorder %s10, 0
      %p44 = por %p42, %p43
      %p45 = scmp.ne.s32.totalorder %s34, %s37
      %p46 = scmp.eq.s32.totalorder %s15, 1
      %p47 = por %p45, %p46
      %p48 = scmp.ne.s32.totalorder %s37, %s38
      %p49 = scmp.eq.s32.totalorder %s15, 0
      %p50 = por %p48, %p49
      %p51 = scmp.ne.s32.totalorder %s37, %s38
      %p52 = scmp.eq.s32.totalorder %s16, 1
      %p53 = por %p51, %p52
      %p55 = scmp.ne.s32.totalorder %s38, %s54
      %p56 = scmp.eq.s32.totalorder %s16, 0
      %p57 = por %p55, %p56
      %s58 = ssub.s32 %s17, %s29
      %s59 = ssub.s32 %s18, %s25
      %s60 = sor.u32 %s58, %s59
      %p61 = scmp.eq.s32.totalorder %s60, 0
      %s63 = sadd.s32 %s62, 1
      %s64 = scalar_select %p61, %s62, %s63
      %p67 = pneg %p61
      %p68 = scmp.eq.s32.totalorder %s10, 1
      %p69 = por %p67, %p68
      %p70 = scmp.ne.s32.totalorder %s62, %s65
      %p71 = scmp.eq.s32.totalorder %s10, 0
      %p72 = por %p70, %p71
      %p73 = scmp.ne.s32.totalorder %s62, %s65
      %p74 = scmp.eq.s32.totalorder %s15, 1
      %p75 = por %p73, %p74
      %p76 = scmp.ne.s32.totalorder %s65, %s66
      %p77 = scmp.eq.s32.totalorder %s15, 0
      %p78 = por %p76, %p77
      %p79 = scmp.ne.s32.totalorder %s65, %s66
      %p80 = scmp.eq.s32.totalorder %s16, 1
      %p81 = por %p79, %p80
      %p83 = scmp.ne.s32.totalorder %s66, %s82
      %p84 = scmp.eq.s32.totalorder %s16, 0
      %p85 = por %p83, %p84
      %p86 = scmp.le.s32.totalorder 1, %s10
      %p87 = scmp.lt.s32.totalorder %s10, 3
      %p88 = pnand %p86, %p87
      %p89 = pneg %p88
      // Predicated region
      $region9: #{tpu_custom_call.1} parent=5 // pred_check
        _
      $region10: #{tpu_custom_call.1} parent=5 // pred_check_branch
        %91 = sbr.rel (%p88) target = $region12
      $region11: #{tpu_custom_call.1} parent=5 // pred_region
        %s92 = ssub.s32 %s10, 1
      $region12: #{tpu_custom_call.1} parent=5 // pred_fallthru
        _
      %p93 = scmp.lt.s32.totalorder %s10, 2
      // Predicated region
      $region13: #{tpu_custom_call.1} parent=5 // pred_check
        %p94 = pneg %p93
      $region14: #{tpu_custom_call.1} parent=5 // pred_check_branch
        %96 = sbr.rel (%p94) target = $region16
      $region15: #{tpu_custom_call.1} parent=5 // pred_region
        // Predicated region
        $region17: #{tpu_custom_call.1} parent=15 // pred_check
          %p97 = pneg %p44
        $region18: #{tpu_custom_call.1} parent=15 // pred_check_branch
          %99 = sbr.rel (%p97) target = $region20
        $region19: #{tpu_custom_call.1} parent=15 // pred_region
          %s100 = sand.u32 %s34, 1
          %s101 = scalar_lea.sflag [#allocation3], %s100
          %s102 = sand.u32 %s34, 1
          %s103 = smul.addr %s102, 128
          %s104 = scalar_lea.vmem [#allocation2], %s103
          %s105 = smul.u32 8, %s17
          %s106 = smul.u32 2, %s18
          %s108 = ssub.s32 2048, 2048
          %109 = vsyncadd %s101, %s108
          %s110 = smul.addr %s105, 2
          %s111 = sadd.s32 %s106, %s110
          %s112 = smul.addr %s111, 128
          %s113 = scalar_lea.hbm %s0, %s112
          %s114 = sshll.u32 %s104, 4
          %s115 = int_to_ptr.vmem [resolvable:$true] %s114
          %120 = dma.hbm_to_vmem [thread:$0]  %s113, 2048, %s115, %s101, 128, 128, 8
        $region20: #{tpu_custom_call.1} parent=15 // pred_fallthru
          _
      $region16: #{tpu_custom_call.1} parent=5 // pred_fallthru
        _
      %p121 = scmp.le.s32.totalorder 1, %s10
      %p122 = scmp.lt.s32.totalorder %s10, 3
      %p123 = pnand %p121, %p122
      %p124 = pneg %p123
      // Predicated region
      $region21: #{tpu_custom_call.1} parent=5 // pred_check
        _
      $region22: #{tpu_custom_call.1} parent=5 // pred_check_branch
        %126 = sbr.rel (%p123) target = $region24
      $region23: #{tpu_custom_call.1} parent=5 // pred_region
        %s127 = ssub.s32 %s10, 1
        %s128 = sand.u32 %s37, 1
        %s129 = scalar_lea.sflag [#allocation3], %s128
        %s130 = sand.u32 %s37, 1
        %s131 = smul.addr %s130, 128
        %s132 = scalar_lea.vmem [#allocation2], %s131
        // Predicated region
        $region25: #{tpu_custom_call.1} parent=23 // pred_check
          %p133 = pneg %p50
        $region26: #{tpu_custom_call.1} parent=23 // pred_check_branch
          %135 = sbr.rel (%p133) target = $region28
        $region27: #{tpu_custom_call.1} parent=23 // pred_region
          %136 = dma.done %s129, 2048
        $region28: #{tpu_custom_call.1} parent=23 // pred_fallthru
          _
        %s137 = sand.u32 %s37, 1
        %s138 = scalar_lea.sflag [#allocation3], %s137
        %s139 = sand.u32 %s37, 1
        %s140 = smul.addr %s139, 128
        %s141 = scalar_lea.vmem [#allocation2], %s140
        %p142 = pneg %p50
        %p143 = pneg %p47
        %p144 = pneg %p78
        %p145 = pneg %p75
        %s146 = smul.u32 8, %s19
        %p147 = scmp.lt.s32.totalorder %s146, 15
        %s148 = scalar_select %p147, %s146, 15
        %p149 = scmp.lt.s32.totalorder %s20, 0
        %s150 = scalar_select %p149, %s20, 0
        %s151 = sadd.s32 %s150, %s148
        %s152 = smul.addr %s151, 8
        %s153 = scalar_lea.vmem %s1, %s152
        %s154 = smul.u32 8, %s19
        %s155 = smul.u32 2, %s20
        %s156 = smul.u32 8, %s19
        %p157 = scmp.lt.s32.totalorder %s156, 15
        %s158 = scalar_select %p157, %s156, 15
        %p159 = scmp.lt.s32.totalorder %s20, 0
        %s160 = scalar_select %p159, %s20, 0
        %s161 = sadd.s32 %s160, %s158
        %s162 = smul.addr %s161, 8
        %s163 = scalar_lea.vmem %s1, %s162
        %s164 = smul.u32 8, %s19
        %v165 = vld [vmem:[%s132] sm:$0xff]
        %v166 = vld [vmem:[%s132 + $0x8] sm:$0x7f]
        %v167 = vld [vmem:[%s132 + $0x10] sm:$0xff]
        %v168 = vld [vmem:[%s132 + $0x18] sm:$0x7f]
        %v169 = vld [vmem:[%s132 + $0x20] sm:$0xff]
        %v170 = vld [vmem:[%s132 + $0x28] sm:$0x7f]
        %v171 = vld [vmem:[%s132 + $0x30] sm:$0xff]
        %v172 = vld [vmem:[%s132 + $0x38] sm:$0x7f]
        %v173 = vld [vmem:[%s132 + $0x40] sm:$0xff]
        %v174 = vld [vmem:[%s132 + $0x48] sm:$0x7f]
        %v175 = vld [vmem:[%s132 + $0x50] sm:$0xff]
        %v176 = vld [vmem:[%s132 + $0x58] sm:$0x7f]
        %v177 = vld [vmem:[%s132 + $0x60] sm:$0xff]
        %v178 = vld [vmem:[%s132 + $0x68] sm:$0x7f]
        %v179 = vld [vmem:[%s132 + $0x70] sm:$0xff]
        %v180 = vld [vmem:[%s132 + $0x78] sm:$0x7f]
        %197 = vrot.lane.b32.xlu0 %v165, 127
        %v198 = vpop.permute.xlu0 %197
        %199 = vrot.lane.b32.xlu0 %v166, 127
        %v200 = vpop.permute.xlu0 %199
        %201 = vrot.lane.b32.xlu0 %v167, 127
        %v202 = vpop.permute.xlu0 %201
        %203 = vrot.lane.b32.xlu0 %v168, 127
        %v204 = vpop.permute.xlu0 %203
        %205 = vrot.lane.b32.xlu0 %v169, 127
        %v206 = vpop.permute.xlu0 %205
        %207 = vrot.lane.b32.xlu0 %v170, 127
        %v208 = vpop.permute.xlu0 %207
        %209 = vrot.lane.b32.xlu0 %v171, 127
        %v210 = vpop.permute.xlu0 %209
        %211 = vrot.lane.b32.xlu0 %v172, 127
        %v212 = vpop.permute.xlu0 %211
        %213 = vrot.lane.b32.xlu0 %v173, 127
        %v214 = vpop.permute.xlu0 %213
        %215 = vrot.lane.b32.xlu0 %v174, 127
        %v216 = vpop.permute.xlu0 %215
        %217 = vrot.lane.b32.xlu0 %v175, 127
        %v218 = vpop.permute.xlu0 %217
        %219 = vrot.lane.b32.xlu0 %v176, 127
        %v220 = vpop.permute.xlu0 %219
        %221 = vrot.lane.b32.xlu0 %v177, 127
        %v222 = vpop.permute.xlu0 %221
        %223 = vrot.lane.b32.xlu0 %v178, 127
        %v224 = vpop.permute.xlu0 %223
        %225 = vrot.lane.b32.xlu0 %v179, 127
        %v226 = vpop.permute.xlu0 %225
        %227 = vrot.lane.b32.xlu0 %v180, 127
        %v228 = vpop.permute.xlu0 %227
        %v245 = vmax.f32 %v165, %v198
        %v246 = vmax.f32 %v166, %v200
        %v247 = vmax.f32 %v167, %v202
        %v248 = vmax.f32 %v168, %v204
        %v249 = vmax.f32 %v169, %v206
        %v250 = vmax.f32 %v170, %v208
        %v251 = vmax.f32 %v171, %v210
        %v252 = vmax.f32 %v172, %v212
        %v253 = vmax.f32 %v173, %v214
        %v254 = vmax.f32 %v174, %v216
        %v255 = vmax.f32 %v175, %v218
        %v256 = vmax.f32 %v176, %v220
        %v257 = vmax.f32 %v177, %v222
        %v258 = vmax.f32 %v178, %v224
        %v259 = vmax.f32 %v179, %v226
        %v260 = vmax.f32 %v180, %v228
        %v261 = vld [vmem:[%s132 + $0x1] sm:$0xff]
        %v262 = vld [vmem:[%s132 + $0x9] sm:$0x7f]
        %v263 = vld [vmem:[%s132 + $0x11] sm:$0xff]
        %v264 = vld [vmem:[%s132 + $0x19] sm:$0x7f]
        %v265 = vld [vmem:[%s132 + $0x21] sm:$0xff]
        %v266 = vld [vmem:[%s132 + $0x29] sm:$0x7f]
        %v267 = vld [vmem:[%s132 + $0x31] sm:$0xff]
        %v268 = vld [vmem:[%s132 + $0x39] sm:$0x7f]
        %v269 = vld [vmem:[%s132 + $0x41] sm:$0xff]
        %v270 = vld [vmem:[%s132 + $0x49] sm:$0x7f]
        %v271 = vld [vmem:[%s132 + $0x51] sm:$0xff]
        %v272 = vld [vmem:[%s132 + $0x59] sm:$0x7f]
        %v273 = vld [vmem:[%s132 + $0x61] sm:$0xff]
        %v274 = vld [vmem:[%s132 + $0x69] sm:$0x7f]
        %v275 = vld [vmem:[%s132 + $0x71] sm:$0xff]
        %v276 = vld [vmem:[%s132 + $0x79] sm:$0x7f]
        %v277 = vmax.f32 %v245, %v261
        %v278 = vmax.f32 %v246, %v262
        %v279 = vmax.f32 %v247, %v263
        %v280 = vmax.f32 %v248, %v264
        %v281 = vmax.f32 %v249, %v265
        %v282 = vmax.f32 %v250, %v266
        %v283 = vmax.f32 %v251, %v267
        %v284 = vmax.f32 %v252, %v268
        %v285 = vmax.f32 %v253, %v269
        %v286 = vmax.f32 %v254, %v270
        %v287 = vmax.f32 %v255, %v271
        %v288 = vmax.f32 %v256, %v272
        %v289 = vmax.f32 %v257, %v273
        %v290 = vmax.f32 %v258, %v274
        %v291 = vmax.f32 %v259, %v275
        %v292 = vmax.f32 %v260, %v276
        %309 = vrot.lane.b32.xlu0 %v261, 127
        %v310 = vpop.permute.xlu0 %309
        %311 = vrot.lane.b32.xlu0 %v262, 127
        %v312 = vpop.permute.xlu0 %311
        %313 = vrot.lane.b32.xlu0 %v263, 127
        %v314 = vpop.permute.xlu0 %313
        %315 = vrot.lane.b32.xlu0 %v264, 127
        %v316 = vpop.permute.xlu0 %315
        %317 = vrot.lane.b32.xlu0 %v265, 127
        %v318 = vpop.permute.xlu0 %317
        %319 = vrot.lane.b32.xlu0 %v266, 127
        %v320 = vpop.permute.xlu0 %319
        %321 = vrot.lane.b32.xlu0 %v267, 127
        %v322 = vpop.permute.xlu0 %321
        %323 = vrot.lane.b32.xlu0 %v268, 127
        %v324 = vpop.permute.xlu0 %323
        %325 = vrot.lane.b32.xlu0 %v269, 127
        %v326 = vpop.permute.xlu0 %325
        %327 = vrot.lane.b32.xlu0 %v270, 127
        %v328 = vpop.permute.xlu0 %327
        %329 = vrot.lane.b32.xlu0 %v271, 127
        %v330 = vpop.permute.xlu0 %329
        %331 = vrot.lane.b32.xlu0 %v272, 127
        %v332 = vpop.permute.xlu0 %331
        %333 = vrot.lane.b32.xlu0 %v273, 127
        %v334 = vpop.permute.xlu0 %333
        %335 = vrot.lane.b32.xlu0 %v274, 127
        %v336 = vpop.permute.xlu0 %335
        %337 = vrot.lane.b32.xlu0 %v275, 127
        %v338 = vpop.permute.xlu0 %337
        %339 = vrot.lane.b32.xlu0 %v276, 127
        %v340 = vpop.permute.xlu0 %339
        %v357 = vmax.f32 %v277, %v310
        %v358 = vmax.f32 %v278, %v312
        %v359 = vmax.f32 %v279, %v314
        %v360 = vmax.f32 %v280, %v316
        %v361 = vmax.f32 %v281, %v318
        %v362 = vmax.f32 %v282, %v320
        %v363 = vmax.f32 %v283, %v322
        %v364 = vmax.f32 %v284, %v324
        %v365 = vmax.f32 %v285, %v326
        %v366 = vmax.f32 %v286, %v328
        %v367 = vmax.f32 %v287, %v330
        %v368 = vmax.f32 %v288, %v332
        %v369 = vmax.f32 %v289, %v334
        %v370 = vmax.f32 %v290, %v336
        %v371 = vmax.f32 %v291, %v338
        %v372 = vmax.f32 %v292, %v340
        %v373 = vlaneseq
        %v374 = vshrl.u32 %v373, 7
        %v375 = vlaneseq
        %v376 = vand.u32 %v375, 127
        %v377 = vmul.u32 %v374, 2
        %vm378 = vcmp.eq.s32.totalorder %v376, %v377
        %v379 = vsel %vm378, 1.0, 0.0
        %v380 = vadd.s32 %v374, 8
        %v381 = vmul.u32 %v376, 2
        %vm382 = vcmp.eq.s32.totalorder %v374, %v381
        %vm383 = vcmp.eq.s32.totalorder %v380, %v381
        %v384 = vsel %vm382, 1.0, 0.0
        %v385 = vsel %vm383, 1.0, 0.0
        %vm386 = vcmask 121856
        %v388 = vsel %vm386, %v379, 0
        %vm390 = vcmask 1046528
        %v392 = vsel %vm390, %v358, 0
        %394 = vmatprep.subr.mxu0 0.0
        %v395 = vand.u32 %v357, 4294901760
        %396 = vmatpush1.msra.mxu0 %v395
        %397 = vmatprep.subr.mxu0 0.0
        %v398 = vand.u32 %v392, 4294901760
        %399 = vmatpush1.msra.mxu0 %v398
        %400 = vmatprep.subr.mxu0 0.0
        %401 = vmatpush1.msra.mxu0 0.0
        %402 = vmatprep.subr.mxu0 0.0
        %403 = vmatpush1.msra.mxu0 0.0
        %404 = vmatprep.subr.mxu0 0.0
        %405 = vmatpush1.msra.mxu0 0.0
        %406 = vmatprep.subr.mxu0 0.0
        %407 = vmatpush1.msra.mxu0 0.0
        %408 = vmatprep.subr.mxu0 0.0
        %409 = vmatpush1.msra.mxu0 0.0
        %410 = vmatprep.subr.mxu0 0.0
        %411 = vmatpush1.msra.mxu0 0.0
        %412 = vmatprep.subr.mxu0 0.0
        %413 = vmatpush1.msra.mxu0 0.0
        %414 = vmatprep.subr.mxu0 0.0
        %415 = vmatpush1.msra.mxu0 0.0
        %416 = vmatprep.subr.mxu0 0.0
        %417 = vmatpush1.msra.mxu0 0.0
        %418 = vmatprep.subr.mxu0 0.0
        %419 = vmatpush1.msra.mxu0 0.0
        %420 = vmatprep.subr.mxu0 0.0
        %421 = vmatpush1.msra.mxu0 0.0
        %422 = vmatprep.subr.mxu0 0.0
        %423 = vmatpush1.msra.mxu0 0.0
        %424 = vmatprep.subr.mxu0 0.0
        %425 = vmatpush1.msra.mxu0 0.0
        %426 = vmatprep.subr.mxu0 0.0
        %427 = vmatpush1.msra.mxu0 0.0
        %428 = vmatprep.subr.mxu0 0.0
        %429 = vmatpush1.msra.mxu0 0.0
        %430 = vmatprep.subr.mxu0 0.0
        %431 = vmatpush1.msra.mxu0 0.0
        %432 = vmatprep.subr.mxu0 0.0
        %433 = vmatpush1.msra.mxu0 0.0
        %434 = vmatprep.subr.mxu0 0.0
        %435 = vmatpush1.msra.mxu0 0.0
        %436 = vmatprep.subr.mxu0 0.0
        %437 = vmatpush1.msra.mxu0 0.0
        %438 = vmatprep.subr.mxu0 0.0
        %439 = vmatpush1.msra.mxu0 0.0
        %440 = vmatprep.subr.mxu0 0.0
        %441 = vmatpush1.msra.mxu0 0.0
        %442 = vmatprep.subr.mxu0 0.0
        %443 = vmatpush1.msra.mxu0 0.0
        %444 = vmatprep.subr.mxu0 0.0
        %445 = vmatpush1.msra.mxu0 0.0
        %446 = vmatprep.subr.mxu0 0.0
        %447 = vmatpush1.msra.mxu0 0.0
        %448 = vmatprep.subr.mxu0 0.0
        %449 = vmatpush1.msra.mxu0 0.0
        %450 = vmatprep.subr.mxu0 0.0
        %451 = vmatpush1.msra.mxu0 0.0
        %452 = vmatprep.subr.mxu0 0.0
        %453 = vmatpush1.msra.mxu0 0.0
        %454 = vmatprep.subr.mxu0 0.0
        %455 = vmatpush1.msra.mxu0 0.0
        %456 = vmatprep.subr.mxu0 0.0
        %457 = vmatpush1.msra.mxu0 0.0
        %458 = vmatprep.subr.mxu0 0.0
        %459 = vmatpush1.msra.mxu0 0.0
        %460 = vmatprep.mubr.f32.mxu0 0.0
        %v461 = vand.u32 %v388, 4294901760
        %v462 = vsub.f32 %v388, %v461
        %v463 = vand.u32 %v462, 4294901760
        %v464 = vsub.f32 %v462, %v463
        %v465 = vand.u32 %v464, 4294901760
        %466 = vmatmul.mubr.f32.gmra.mrb[0].mxu0 %v465
        %v467 = vpop.f32.mrb[0].mxu0
        %v468 = vadd.f32 0.0, %v467
        %v469 = vpop.f32.mrb[0].mxu0
        %470 = vdwg.mxu0
        %471 = vmatprep.subr.mxu0 0.0
        %v472 = vand.u32 %v357, 4294901760
        %v473 = vsub.f32 %v357, %v472
        %v474 = vand.u32 %v473, 4294901760
        %v475 = vsub.f32 %v473, %v474
        %v476 = vand.u32 %v475, 4294901760
        %477 = vmatpush1.msra.mxu0 %v476
        %478 = vmatprep.subr.mxu0 0.0
        %v479 = vand.u32 %v392, 4294901760
        %v480 = vsub.f32 %v392, %v479
        %v481 = vand.u32 %v480, 4294901760
        %v482 = vsub.f32 %v480, %v481
        %v483 = vand.u32 %v482, 4294901760
        %484 = vmatpush1.msra.mxu0 %v483
        %485 = vmatprep.subr.mxu0 0.0
        %486 = vmatpush1.msra.mxu0 0.0
        %487 = vmatprep.subr.mxu0 0.0
        %488 = vmatpush1.msra.mxu0 0.0
        %489 = vmatprep.subr.mxu0 0.0
        %490 = vmatpush1.msra.mxu0 0.0
        %491 = vmatprep.subr.mxu0 0.0
        %492 = vmatpush1.msra.mxu0 0.0
        %493 = vmatprep.subr.mxu0 0.0
        %494 = vmatpush1.msra.mxu0 0.0
        %495 = vmatprep.subr.mxu0 0.0
        %496 = vmatpush1.msra.mxu0 0.0
        %497 = vmatprep.subr.mxu0 0.0
        %498 = vmatpush1.msra.mxu0 0.0
        %499 = vmatprep.subr.mxu0 0.0
        %500 = vmatpush1.msra.mxu0 0.0
        %501 = vmatprep.subr.mxu0 0.0
        %502 = vmatpush1.msra.mxu0 0.0
        %503 = vmatprep.subr.mxu0 0.0
        %504 = vmatpush1.msra.mxu0 0.0
        %505 = vmatprep.subr.mxu0 0.0
        %506 = vmatpush1.msra.mxu0 0.0
        %507 = vmatprep.subr.mxu0 0.0
        %508 = vmatpush1.msra.mxu0 0.0
        %509 = vmatprep.subr.mxu0 0.0
        %510 = vmatpush1.msra.mxu0 0.0
        %511 = vmatprep.subr.mxu0 0.0
        %512 = vmatpush1.msra.mxu0 0.0
        %513 = vmatprep.subr.mxu0 0.0
        %514 = vmatpush1.msra.mxu0 0.0
        %515 = vmatprep.subr.mxu0 0.0
        %516 = vmatpush1.msra.mxu0 0.0
        %517 = vmatprep.subr.mxu0 0.0
        %518 = vmatpush1.msra.mxu0 0.0
        %519 = vmatprep.subr.mxu0 0.0
        %520 = vmatpush1.msra.mxu0 0.0
        %521 = vmatprep.subr.mxu0 0.0
        %522 = vmatpush1.msra.mxu0 0.0
        %523 = vmatprep.subr.mxu0 0.0
        %524 = vmatpush1.msra.mxu0 0.0
        %525 = vmatprep.subr.mxu0 0.0
        %526 = vmatpush1.msra.mxu0 0.0
        %527 = vmatprep.subr.mxu0 0.0
        %528 = vmatpush1.msra.mxu0 0.0
        %529 = vmatprep.subr.mxu0 0.0
        %530 = vmatpush1.msra.mxu0 0.0
        %531 = vmatprep.subr.mxu0 0.0
        %532 = vmatpush1.msra.mxu0 0.0
        %533 = vmatprep.subr.mxu0 0.0
        %534 = vmatpush1.msra.mxu0 0.0
        %535 = vmatprep.subr.mxu0 0.0
        %536 = vmatpush1.msra.mxu0 0.0
        %537 = vmatprep.subr.mxu0 0.0
        %538 = vmatpush1.msra.mxu0 0.0
        %539 = vmatprep.subr.mxu0 0.0
        %540 = vmatpush1.msra.mxu0 0.0
        %541 = vmatprep.subr.mxu0 0.0
        %542 = vmatpush1.msra.mxu0 0.0
        %543 = vmatprep.subr.mxu0 0.0
        %544 = vmatpush1.msra.mxu0 0.0
        %545 = vmatprep.mubr.f32.mxu0 0.0
        %v546 = vand.u32 %v388, 4294901760
        %547 = vmatmul.mubr.f32.gmra.mrb[0].mxu0 %v546
        %v548 = vpop.f32.mrb[0].mxu0
        %v549 = vadd.f32 %v468, %v548
        %v550 = vpop.f32.mrb[0].mxu0
        %551 = vdwg.mxu0
        %552 = vmatprep.subr.mxu0 0.0
        %v553 = vand.u32 %v357, 4294901760
        %v554 = vsub.f32 %v357, %v553
        %555 = vmatpush1.msra.mxu0 %v554
        %556 = vmatprep.subr.mxu0 0.0
        %v557 = vand.u32 %v392, 4294901760
        %v558 = vsub.f32 %v392, %v557
        %559 = vmatpush1.msra.mxu0 %v558
        %560 = vmatprep.subr.mxu0 0.0
        %561 = vmatpush1.msra.mxu0 0.0
        %562 = vmatprep.subr.mxu0 0.0
        %563 = vmatpush1.msra.mxu0 0.0
        %564 = vmatprep.subr.mxu0 0.0
        %565 = vmatpush1.msra.mxu0 0.0
        %566 = vmatprep.subr.mxu0 0.0
        %567 = vmatpush1.msra.mxu0 0.0
        %568 = vmatprep.subr.mxu0 0.0
        %569 = vmatpush1.msra.mxu0 0.0
        %570 = vmatprep.subr.mxu0 0.0
        %571 = vmatpush1.msra.mxu0 0.0
        %572 = vmatprep.subr.mxu0 0.0
        %573 = vmatpush1.msra.mxu0 0.0
        %574 = vmatprep.subr.mxu0 0.0
        %575 = vmatpush1.msra.mxu0 0.0
        %576 = vmatprep.subr.mxu0 0.0
        %577 = vmatpush1.msra.mxu0 0.0
        %578 = vmatprep.subr.mxu0 0.0
        %579 = vmatpush1.msra.mxu0 0.0
        %580 = vmatprep.subr.mxu0 0.0
        %581 = vmatpush1.msra.mxu0 0.0
        %582 = vmatprep.subr.mxu0 0.0
        %583 = vmatpush1.msra.mxu0 0.0
        %584 = vmatprep.subr.mxu0 0.0
        %585 = vmatpush1.msra.mxu0 0.0
        %586 = vmatprep.subr.mxu0 0.0
        %587 = vmatpush1.msra.mxu0 0.0
        %588 = vmatprep.subr.mxu0 0.0
        %589 = vmatpush1.msra.mxu0 0.0
        %590 = vmatprep.subr.mxu0 0.0
        %591 = vmatpush1.msra.mxu0 0.0
        %592 = vmatprep.subr.mxu0 0.0
        %593 = vmatpush1.msra.mxu0 0.0
        %594 = vmatprep.subr.mxu0 0.0
        %595 = vmatpush1.msra.mxu0 0.0
        %596 = vmatprep.subr.mxu0 0.0
        %597 = vmatpush1.msra.mxu0 0.0
        %598 = vmatprep.subr.mxu0 0.0
        %599 = vmatpush1.msra.mxu0 0.0
        %600 = vmatprep.subr.mxu0 0.0
        %601 = vmatpush1.msra.mxu0 0.0
        %602 = vmatprep.subr.mxu0 0.0
        %603 = vmatpush1.msra.mxu0 0.0
        %604 = vmatprep.subr.mxu0 0.0
        %605 = vmatpush1.msra.mxu0 0.0
        %606 = vmatprep.subr.mxu0 0.0
        %607 = vmatpush1.msra.mxu0 0.0
        %608 = vmatprep.subr.mxu0 0.0
        %609 = vmatpush1.msra.mxu0 0.0
        %610 = vmatprep.subr.mxu0 0.0
        %611 = vmatpush1.msra.mxu0 0.0
        %612 = vmatprep.subr.mxu0 0.0
        %613 = vmatpush1.msra.mxu0 0.0
        %614 = vmatprep.subr.mxu0 0.0
        %615 = vmatpush1.msra.mxu0 0.0
        %616 = vmatprep.subr.mxu0 0.0
        %617 = vmatpush1.msra.mxu0 0.0
        %618 = vmatprep.subr.mxu0 0.0
        %619 = vmatpush1.msra.mxu0 0.0
        %620 = vmatprep.mubr.f32.mxu0 0.0
        %v621 = vand.u32 %v388, 4294901760
        %v622 = vsub.f32 %v388, %v621
        %623 = vmatmul.mubr.f32.gmra.mrb[0].mxu0 %v622
        %v624 = vpop.f32.mrb[0].mxu0
        %v625 = vadd.f32 %v549, %v624
        %v626 = vpop.f32.mrb[0].mxu0
        %627 = vdwg.mxu0
        %628 = vmatprep.subr.mxu0 0.0
        %v629 = vand.u32 %v357, 4294901760
        %630 = vmatpush1.msra.mxu0 %v629
        %631 = vmatprep.subr.mxu0 0.0
        %v632 = vand.u32 %v392, 4294901760
        %633 = vmatpush1.msra.mxu0 %v632
        %634 = vmatprep.subr.mxu0 0.0
        %635 = vmatpush1.msra.mxu0 0.0
        %636 = vmatprep.subr.mxu0 0.0
        %637 = vmatpush1.msra.mxu0 0.0
        %638 = vmatprep.subr.mxu0 0.0
        %639 = vmatpush1.msra.mxu0 0.0
        %640 = vmatprep.subr.mxu0 0.0
        %641 = vmatpush1.msra.mxu0 0.0
        %642 = vmatprep.subr.mxu0 0.0
        %643 = vmatpush1.msra.mxu0 0.0
        %644 = vmatprep.subr.mxu0 0.0
        %645 = vmatpush1.msra.mxu0 0.0
        %646 = vmatprep.subr.mxu0 0.0
        %647 = vmatpush1.msra.mxu0 0.0
        %648 = vmatprep.subr.mxu0 0.0
        %649 = vmatpush1.msra.mxu0 0.0
        %650 = vmatprep.subr.mxu0 0.0
        %651 = vmatpush1.msra.mxu0 0.0
        %652 = vmatprep.subr.mxu0 0.0
        %653 = vmatpush1.msra.mxu0 0.0
        %654 = vmatprep.subr.mxu0 0.0
        %655 = vmatpush1.msra.mxu0 0.0
        %656 = vmatprep.subr.mxu0 0.0
        %657 = vmatpush1.msra.mxu0 0.0
        %658 = vmatprep.subr.mxu0 0.0
        %659 = vmatpush1.msra.mxu0 0.0
        %660 = vmatprep.subr.mxu0 0.0
        %661 = vmatpush1.msra.mxu0 0.0
        %662 = vmatprep.subr.mxu0 0.0
        %663 = vmatpush1.msra.mxu0 0.0
        %664 = vmatprep.subr.mxu0 0.0
        %665 = vmatpush1.msra.mxu0 0.0
        %666 = vmatprep.subr.mxu0 0.0
        %667 = vmatpush1.msra.mxu0 0.0
        %668 = vmatprep.subr.mxu0 0.0
        %669 = vmatpush1.msra.mxu0 0.0
        %670 = vmatprep.subr.mxu0 0.0
        %671 = vmatpush1.msra.mxu0 0.0
        %672 = vmatprep.subr.mxu0 0.0
        %673 = vmatpush1.msra.mxu0 0.0
        %674 = vmatprep.subr.mxu0 0.0
        %675 = vmatpush1.msra.mxu0 0.0
        %676 = vmatprep.subr.mxu0 0.0
        %677 = vmatpush1.msra.mxu0 0.0
        %678 = vmatprep.subr.mxu0 0.0
        %679 = vmatpush1.msra.mxu0 0.0
        %680 = vmatprep.subr.mxu0 0.0
        %681 = vmatpush1.msra.mxu0 0.0
        %682 = vmatprep.subr.mxu0 0.0
        %683 = vmatpush1.msra.mxu0 0.0
        %684 = vmatprep.subr.mxu0 0.0
        %685 = vmatpush1.msra.mxu0 0.0
        %686 = vmatprep.subr.mxu0 0.0
        %687 = vmatpush1.msra.mxu0 0.0
        %688 = vmatprep.subr.mxu0 0.0
        %689 = vmatpush1.msra.mxu0 0.0
        %690 = vmatprep.subr.mxu0 0.0
        %691 = vmatpush1.msra.mxu0 0.0
        %692 = vmatprep.subr.mxu0 0.0
        %693 = vmatpush1.msra.mxu0 0.0
        %694 = vmatprep.mubr.f32.mxu0 0.0
        %v695 = vand.u32 %v388, 4294901760
        %v696 = vsub.f32 %v388, %v695
        %v697 = vand.u32 %v696, 4294901760
        %698 = vmatmul.mubr.f32.gmra.mrb[0].mxu0 %v697
        %v699 = vpop.f32.mrb[0].mxu0
        %v700 = vadd.f32 %v625, %v699
        %v701 = vpop.f32.mrb[0].mxu0
        %702 = vdwg.mxu0
        %703 = vmatprep.subr.mxu0 0.0
        %v704 = vand.u32 %v357, 4294901760
        %v705 = vsub.f32 %v357, %v704
        %v706 = vand.u32 %v705, 4294901760
        %707 = vmatpush1.msra.mxu0 %v706
        %708 = vmatprep.subr.mxu0 0.0
        %v709 = vand.u32 %v392, 4294901760
        %v710 = vsub.f32 %v392, %v709
        %v711 = vand.u32 %v710, 4294901760
        %712 = vmatpush1.msra.mxu0 %v711
        %713 = vmatprep.subr.mxu0 0.0
        %714 = vmatpush1.msra.mxu0 0.0
        %715 = vmatprep.subr.mxu0 0.0
        %716 = vmatpush1.msra.mxu0 0.0
        %717 = vmatprep.subr.mxu0 0.0
        %718 = vmatpush1.msra.mxu0 0.0
        %719 = vmatprep.subr.mxu0 0.0
        %720 = vmatpush1.msra.mxu0 0.0
        %721 = vmatprep.subr.mxu0 0.0
        %722 = vmatpush1.msra.mxu0 0.0
        %723 = vmatprep.subr.mxu0 0.0
        %724 = vmatpush1.msra.mxu0 0.0
        %725 = vmatprep.subr.mxu0 0.0
        %726 = vmatpush1.msra.mxu0 0.0
        %727 = vmatprep.subr.mxu0 0.0
        %728 = vmatpush1.msra.mxu0 0.0
        %729 = vmatprep.subr.mxu0 0.0
        %730 = vmatpush1.msra.mxu0 0.0
        %731 = vmatprep.subr.mxu0 0.0
        %732 = vmatpush1.msra.mxu0 0.0
        %733 = vmatprep.subr.mxu0 0.0
        %734 = vmatpush1.msra.mxu0 0.0
        %735 = vmatprep.subr.mxu0 0.0
        %736 = vmatpush1.msra.mxu0 0.0
        %737 = vmatprep.subr.mxu0 0.0
        %738 = vmatpush1.msra.mxu0 0.0
        %739 = vmatprep.subr.mxu0 0.0
        %740 = vmatpush1.msra.mxu0 0.0
        %741 = vmatprep.subr.mxu0 0.0
        %742 = vmatpush1.msra.mxu0 0.0
        %743 = vmatprep.subr.mxu0 0.0
        %744 = vmatpush1.msra.mxu0 0.0
        %745 = vmatprep.subr.mxu0 0.0
        %746 = vmatpush1.msra.mxu0 0.0
        %747 = vmatprep.subr.mxu0 0.0
        %748 = vmatpush1.msra.mxu0 0.0
        %749 = vmatprep.subr.mxu0 0.0
        %750 = vmatpush1.msra.mxu0 0.0
        %751 = vmatprep.subr.mxu0 0.0
        %752 = vmatpush1.msra.mxu0 0.0
        %753 = vmatprep.subr.mxu0 0.0
        %754 = vmatpush1.msra.mxu0 0.0
        %755 = vmatprep.subr.mxu0 0.0
        %756 = vmatpush1.msra.mxu0 0.0
        %757 = vmatprep.subr.mxu0 0.0
        %758 = vmatpush1.msra.mxu0 0.0
        %759 = vmatprep.subr.mxu0 0.0
        %760 = vmatpush1.msra.mxu0 0.0
        %761 = vmatprep.subr.mxu0 0.0
        %762 = vmatpush1.msra.mxu0 0.0
        %763 = vmatprep.subr.mxu0 0.0
        %764 = vmatpush1.msra.mxu0 0.0
        %765 = vmatprep.subr.mxu0 0.0
        %766 = vmatpush1.msra.mxu0 0.0
        %767 = vmatprep.subr.mxu0 0.0
        %768 = vmatpush1.msra.mxu0 0.0
        %769 = vmatprep.subr.mxu0 0.0
        %770 = vmatpush1.msra.mxu0 0.0
        %771 = vmatprep.subr.mxu0 0.0
        %772 = vmatpush1.msra.mxu0 0.0
        %773 = vmatprep.mubr.f32.mxu0 0.0
        %v774 = vand.u32 %v388, 4294901760
        %775 = vmatmul.mubr.f32.gmra.mrb[0].mxu0 %v774
        %v776 = vpop.f32.mrb[0].mxu0
        %v777 = vadd.f32 %v700, %v776
        %v778 = vpop.f32.mrb[0].mxu0
        %779 = vdwg.mxu0
        %780 = vmatprep.subr.mxu0 0.0
        %v781 = vand.u32 %v357, 4294901760
        %782 = vmatpush1.msra.mxu0 %v781
        %783 = vmatprep.subr.mxu0 0.0
        %v784 = vand.u32 %v392, 4294901760
        %785 = vmatpush1.msra.mxu0 %v784
        %786 = vmatprep.subr.mxu0 0.0
        %787 = vmatpush1.msra.mxu0 0.0
        %788 = vmatprep.subr.mxu0 0.0
        %789 = vmatpush1.msra.mxu0 0.0
        %790 = vmatprep.subr.mxu0 0.0
        %791 = vmatpush1.msra.mxu0 0.0
        %792 = vmatprep.subr.mxu0 0.0
        %793 = vmatpush1.msra.mxu0 0.0
        %794 = vmatprep.subr.mxu0 0.0
        %795 = vmatpush1.msra.mxu0 0.0
        %796 = vmatprep.subr.mxu0 0.0
        %797 = vmatpush1.msra.mxu0 0.0
        %798 = vmatprep.subr.mxu0 0.0
        %799 = vmatpush1.msra.mxu0 0.0
        %800 = vmatprep.subr.mxu0 0.0
        %801 = vmatpush1.msra.mxu0 0.0
        %802 = vmatprep.subr.mxu0 0.0
        %803 = vmatpush1.msra.mxu0 0.0
        %804 = vmatprep.subr.mxu0 0.0
        %805 = vmatpush1.msra.mxu0 0.0
        %806 = vmatprep.subr.mxu0 0.0
        %807 = vmatpush1.msra.mxu0 0.0
        %808 = vmatprep.subr.mxu0 0.0
        %809 = vmatpush1.msra.mxu0 0.0
        %810 = vmatprep.subr.mxu0 0.0
        %811 = vmatpush1.msra.mxu0 0.0
        %812 = vmatprep.subr.mxu0 0.0
        %813 = vmatpush1.msra.mxu0 0.0
        %814 = vmatprep.subr.mxu0 0.0
        %815 = vmatpush1.msra.mxu0 0.0
        %816 = vmatprep.subr.mxu0 0.0
        %817 = vmatpush1.msra.mxu0 0.0
        %818 = vmatprep.subr.mxu0 0.0
        %819 = vmatpush1.msra.mxu0 0.0
        %820 = vmatprep.subr.mxu0 0.0
        %821 = vmatpush1.msra.mxu0 0.0
        %822 = vmatprep.subr.mxu0 0.0
        %823 = vmatpush1.msra.mxu0 0.0
        %824 = vmatprep.subr.mxu0 0.0
        %825 = vmatpush1.msra.mxu0 0.0
        %826 = vmatprep.subr.mxu0 0.0
        %827 = vmatpush1.msra.mxu0 0.0
        %828 = vmatprep.subr.mxu0 0.0
        %829 = vmatpush1.msra.mxu0 0.0
        %830 = vmatprep.subr.mxu0 0.0
        %831 = vmatpush1.msra.mxu0 0.0
        %832 = vmatprep.subr.mxu0 0.0
        %833 = vmatpush1.msra.mxu0 0.0
        %834 = vmatprep.subr.mxu0 0.0
        %835 = vmatpush1.msra.mxu0 0.0
        %836 = vmatprep.subr.mxu0 0.0
        %837 = vmatpush1.msra.mxu0 0.0
        %838 = vmatprep.subr.mxu0 0.0
        %839 = vmatpush1.msra.mxu0 0.0
        %840 = vmatprep.subr.mxu0 0.0
        %841 = vmatpush1.msra.mxu0 0.0
        %842 = vmatprep.subr.mxu0 0.0
        %843 = vmatpush1.msra.mxu0 0.0
        %844 = vmatprep.subr.mxu0 0.0
        %845 = vmatpush1.msra.mxu0 0.0
        %846 = vmatprep.mubr.f32.mxu0 0.0
        %v847 = vand.u32 %v388, 4294901760
        %848 = vmatmul.mubr.f32.gmra.mrb[0].mxu0 %v847
        %v849 = vpop.f32.mrb[0].mxu0
        %v850 = vadd.f32 %v777, %v849
        %v851 = vpop.f32.mrb[0].mxu0
        %852 = vdwg.mxu0
        %v854 = vsel %vm390, %v360, 0
        %856 = vmatprep.subr.mxu0 0.0
        %v857 = vand.u32 %v359, 4294901760
        %858 = vmatpush1.msra.mxu0 %v857
        %859 = vmatprep.subr.mxu0 0.0
        %v860 = vand.u32 %v854, 4294901760
        %861 = vmatpush1.msra.mxu0 %v860
        %862 = vmatprep.subr.mxu0 0.0
        %863 = vmatpush1.msra.mxu0 0.0
        %864 = vmatprep.subr.mxu0 0.0
        %865 = vmatpush1.msra.mxu0 0.0
        %866 = vmatprep.subr.mxu0 0.0
        %867 = vmatpush1.msra.mxu0 0.0
        %868 = vmatprep.subr.mxu0 0.0
        %869 = vmatpush1.msra.mxu0 0.0
        %870 = vmatprep.subr.mxu0 0.0
        %871 = vmatpush1.msra.mxu0 0.0
        %872 = vmatprep.subr.mxu0 0.0
        %873 = vmatpush1.msra.mxu0 0.0
        %874 = vmatprep.subr.mxu0 0.0
        %875 = vmatpush1.msra.mxu0 0.0
        %876 = vmatprep.subr.mxu0 0.0
        %877 = vmatpush1.msra.mxu0 0.0
        %878 = vmatprep.subr.mxu0 0.0
        %879 = vmatpush1.msra.mxu0 0.0
        %880 = vmatprep.subr.mxu0 0.0
        %881 = vmatpush1.msra.mxu0 0.0
        %882 = vmatprep.subr.mxu0 0.0
        %883 = vmatpush1.msra.mxu0 0.0
        %884 = vmatprep.subr.mxu0 0.0
        %885 = vmatpush1.msra.mxu0 0.0
        %886 = vmatprep.subr.mxu0 0.0
        %887 = vmatpush1.msra.mxu0 0.0
        %888 = vmatprep.subr.mxu0 0.0
        %889 = vmatpush1.msra.mxu0 0.0
        %890 = vmatprep.subr.mxu0 0.0
        %891 = vmatpush1.msra.mxu0 0.0
        %892 = vmatprep.subr.mxu0 0.0
        %893 = vmatpush1.msra.mxu0 0.0
        %894 = vmatprep.subr.mxu0 0.0
        %895 = vmatpush1.msra.mxu0 0.0
        %896 = vmatprep.subr.mxu0 0.0
        %897 = vmatpush1.msra.mxu0 0.0
        %898 = vmatprep.subr.mxu0 0.0
        %899 = vmatpush1.msra.mxu0 0.0
        %900 = vmatprep.subr.mxu0 0.0
        %901 = vmatpush1.msra.mxu0 0.0
        %902 = vmatprep.subr.mxu0 0.0
        %903 = vmatpush1.msra.mxu0 0.0
        %904 = vmatprep.subr.mxu0 0.0
        %905 = vmatpush1.msra.mxu0 0.0
        %906 = vmatprep.subr.mxu0 0.0
        %907 = vmatpush1.msra.mxu0 0.0
        %908 = vmatprep.subr.mxu0 0.0
        %909 = vmatpush1.msra.mxu0 0.0
        %910 = vmatprep.subr.mxu0 0.0
        %911 = vmatpush1.msra.mxu0 0.0
        %912 = vmatprep.subr.mxu0 0.0
        %913 = vmatpush1.msra.mxu0 0.0
        %914 = vmatprep.subr.mxu0 0.0
        %915 = vmatpush1.msra.mxu0 0.0
        %916 = vmatprep.subr.mxu0 0.0
        %917 = vmatpush1.msra.mxu0 0.0
        %918 = vmatprep.subr.mxu0 0.0
        %919 = vmatpush1.msra.mxu0 0.0
        %920 = vmatprep.subr.mxu0 0.0
        %921 = vmatpush1.msra.mxu0 0.0
        %922 = vmatprep.mubr.f32.mxu0 0.0
        %v923 = vand.u32 %v388, 4294901760
        %v924 = vsub.f32 %v388, %v923
        %v925 = vand.u32 %v924, 4294901760
        %v926 = vsub.f32 %v924, %v925
        %v927 = vand.u32 %v926, 4294901760
        %928 = vmatmul.mubr.f32.gmra.mrb[0].mxu0 %v927
        %v929 = vpop.f32.mrb[0].mxu0
        %v930 = vadd.f32 0.0, %v929
        %v931 = vpop.f32.mrb[0].mxu0
        %932 = vdwg.mxu0
        %933 = vmatprep.subr.mxu0 0.0
        %v934 = vand.u32 %v359, 4294901760
        %v935 = vsub.f32 %v359, %v934
        %v936 = vand.u32 %v935, 4294901760
        %v937 = vsub.f32 %v935, %v936
        %v938 = vand.u32 %v937, 4294901760
        %939 = vmatpush1.msra.mxu0 %v938
        %940 = vmatprep.subr.mxu0 0.0
        %v941 = vand.u32 %v854, 4294901760
        %v942 = vsub.f32 %v854, %v941
        %v943 = vand.u32 %v942, 4294901760
        %v944 = vsub.f32 %v942, %v943
        %v945 = vand.u32 %v944, 4294901760
        %946 = vmatpush1.msra.mxu0 %v945
        %947 = vmatprep.subr.mxu0 0.0
        %948 = vmatpush1.msra.mxu0 0.0
        %949 = vmatprep.subr.mxu0 0.0
        %950 = vmatpush1.msra.mxu0 0.0
        %951 = vmatprep.subr.mxu0 0.0
        %952 = vmatpush1.msra.mxu0 0.0
        %953 = vmatprep.subr.mxu0 0.0
        %954 = vmatpush1.msra.mxu0 0.0
        %955 = vmatprep.subr.mxu0 0.0
        %956 = vmatpush1.msra.mxu0 0.0
        %957 = vmatprep.subr.mxu0 0.0
        %958 = vmatpush1.msra.mxu0 0.0
        %959 = vmatprep.subr.mxu0 0.0
        %960 = vmatpush1.msra.mxu0 0.0
        %961 = vmatprep.subr.mxu0 0.0
        %962 = vmatpush1.msra.mxu0 0.0
        %963 = vmatprep.subr.mxu0 0.0
        %964 = vmatpush1.msra.mxu0 0.0
        %965 = vmatprep.subr.mxu0 0.0
        %966 = vmatpush1.msra.mxu0 0.0
        %967 = vmatprep.subr.mxu0 0.0
        %968 = vmatpush1.msra.mxu0 0.0
        %969 = vmatprep.subr.mxu0 0.0
        %970 = vmatpush1.msra.mxu0 0.0
        %971 = vmatprep.subr.mxu0 0.0
        %972 = vmatpush1.msra.mxu0 0.0
        %973 = vmatprep.subr.mxu0 0.0
        %974 = vmatpush1.msra.mxu0 0.0
        %975 = vmatprep.subr.mxu0 0.0
        %976 = vmatpush1.msra.mxu0 0.0
        %977 = vmatprep.subr.mxu0 0.0
        %978 = vmatpush1.msra.mxu0 0.0
        %979 = vmatprep.subr.mxu0 0.0
        %980 = vmatpush1.msra.mxu0 0.0
        %981 = vmatprep.subr.mxu0 0.0
        %982 = vmatpush1.msra.mxu0 0.0
        %983 = vmatprep.subr.mxu0 0.0
        %984 = vmatpush1.msra.mxu0 0.0
        %985 = vmatprep.subr.mxu0 0.0
        %986 = vmatpush1.msra.mxu0 0.0
        %987 = vmatprep.subr.mxu0 0.0
        %988 = vmatpush1.msra.mxu0 0.0
        %989 = vmatprep.subr.mxu0 0.0
        %990 = vmatpush1.msra.mxu0 0.0
        %991 = vmatprep.subr.mxu0 0.0
        %992 = vmatpush1.msra.mxu0 0.0
        %993 = vmatprep.subr.mxu0 0.0
        %994 = vmatpush1.msra.mxu0 0.0
        %995 = vmatprep.subr.mxu0 0.0
        %996 = vmatpush1.msra.mxu0 0.0
        %997 = vmatprep.subr.mxu0 0.0
        %998 = vmatpush1.msra.mxu0 0.0
        %999 = vmatprep.subr.mxu0 0.0
        %1000 = vmatpush1.msra.mxu0 0.0
        %1001 = vmatprep.subr.mxu0 0.0
        %1002 = vmatpush1.msra.mxu0 0.0
        %1003 = vmatprep.subr.mxu0 0.0
        %1004 = vmatpush1.msra.mxu0 0.0
        %1005 = vmatprep.subr.mxu0 0.0
        %1006 = vmatpush1.msra.mxu0 0.0
        %1007 = vmatprep.mubr.f32.mxu0 0.0
        %v1008 = vand.u32 %v388, 4294901760
        %1009 = vmatmul.mubr.f32.gmra.mrb[0].mxu0 %v1008
        %v1010 = vpop.f32.mrb[0].mxu0
        %v1011 = vadd.f32 %v930, %v1010
        %v1012 = vpop.f32.mrb[0].mxu0
        %1013 = vdwg.mxu0
        %1014 = vmatprep.subr.mxu0 0.0
        %v1015 = vand.u32 %v359, 4294901760
        %v1016 = vsub.f32 %v359, %v1015
        %1017 = vmatpush1.msra.mxu0 %v1016
        %1018 = vmatprep.subr.mxu0 0.0
        %v1019 = vand.u32 %v854, 4294901760
        %v1020 = vsub.f32 %v854, %v1019
        %1021 = vmatpush1.msra.mxu0 %v1020
        %1022 = vmatprep.subr.mxu0 0.0
        %1023 = vmatpush1.msra.mxu0 0.0
        %1024 = vmatprep.subr.mxu0 0.0
        %1025 = vmatpush1.msra.mxu0 0.0
        %1026 = vmatprep.subr.mxu0 0.0
        %1027 = vmatpush1.msra.mxu0 0.0
        %1028 = vmatprep.subr.mxu0 0.0
        %1029 = vmatpush1.msra.mxu0 0.0
        %1030 = vmatprep.subr.mxu0 0.0
        %1031 = vmatpush1.msra.mxu0 0.0
        %1032 = vmatprep.subr.mxu0 0.0
        %1033 = vmatpush1.msra.mxu0 0.0
        %1034 = vmatprep.subr.mxu0 0.0
        %1035 = vmatpush1.msra.mxu0 0.0
        %1036 = vmatprep.subr.mxu0 0.0
        %1037 = vmatpush1.msra.mxu0 0.0
        %1038 = vmatprep.subr.mxu0 0.0
        %1039 = vmatpush1.msra.mxu0 0.0
        %1040 = vmatprep.subr.mxu0 0.0
        %1041 = vmatpush1.msra.mxu0 0.0
        %1042 = vmatprep.subr.mxu0 0.0
        %1043 = vmatpush1.msra.mxu0 0.0
        %1044 = vmatprep.subr.mxu0 0.0
        %1045 = vmatpush1.msra.mxu0 0.0
        %1046 = vmatprep.subr.mxu0 0.0
        %1047 = vmatpush1.msra.mxu0 0.0
        %1048 = vmatprep.subr.mxu0 0.0
        %1049 = vmatpush1.msra.mxu0 0.0
        %1050 = vmatprep.subr.mxu0 0.0
        %1051 = vmatpush1.msra.mxu0 0.0
        %1052 = vmatprep.subr.mxu0 0.0
        %1053 = vmatpush1.msra.mxu0 0.0
        %1054 = vmatprep.subr.mxu0 0.0
        %1055 = vmatpush1.msra.mxu0 0.0
        %1056 = vmatprep.subr.mxu0 0.0
        %1057 = vmatpush1.msra.mxu0 0.0
        %1058 = vmatprep.subr.mxu0 0.0
        %1059 = vmatpush1.msra.mxu0 0.0
        %1060 = vmatprep.subr.mxu0 0.0
        %1061 = vmatpush1.msra.mxu0 0.0
        %1062 = vmatprep.subr.mxu0 0.0
        %1063 = vmatpush1.msra.mxu0 0.0
        %1064 = vmatprep.subr.mxu0 0.0
        %1065 = vmatpush1.msra.mxu0 0.0
        %1066 = vmatprep.subr.mxu0 0.0
        %1067 = vmatpush1.msra.mxu0 0.0
        %1068 = vmatprep.subr.mxu0 0.0
        %1069 = vmatpush1.msra.mxu0 0.0
        %1070 = vmatprep.subr.mxu0 0.0
        %1071 = vmatpush1.msra.mxu0 0.0
        %1072 = vmatprep.subr.mxu0 0.0
        %1073 = vmatpush1.msra.mxu0 0.0
        %1074 = vmatprep.subr.mxu0 0.0
        %1075 = vmatpush1.msra.mxu0 0.0
        %1076 = vmatprep.subr.mxu0 0.0
        %1077 = vmatpush1.msra.mxu0 0.0
        %1078 = vmatprep.subr.mxu0 0.0
        %1079 = vmatpush1.msra.mxu0 0.0
        %1080 = vmatprep.subr.mxu0 0.0
        %1081 = vmatpush1.msra.mxu0 0.0
        %1082 = vmatprep.mubr.f32.mxu0 0.0
        %v1083 = vand.u32 %v388, 4294901760
        %v1084 = vsub.f32 %v388, %v1083
        %1085 = vmatmul.mubr.f32.gmra.mrb[0].mxu0 %v1084
        %v1086 = vpop.f32.mrb[0].mxu0
        %v1087 = vadd.f32 %v1011, %v1086
        %v1088 = vpop.f32.mrb[0].mxu0
        %1089 = vdwg.mxu0
        %1090 = vmatprep.subr.mxu0 0.0
        %v1091 = vand.u32 %v359, 4294901760
        %1092 = vmatpush1.msra.mxu0 %v1091
        %1093 = vmatprep.subr.mxu0 0.0
        %v1094 = vand.u32 %v854, 4294901760
        %1095 = vmatpush1.msra.mxu0 %v1094
        %1096 = vmatprep.subr.mxu0 0.0
        %1097 = vmatpush1.msra.mxu0 0.0
        %1098 = vmatprep.subr.mxu0 0.0
        %1099 = vmatpush1.msra.mxu0 0.0
        %1100 = vmatprep.subr.mxu0 0.0
        %1101 = vmatpush1.msra.mxu0 0.0
        %1102 = vmatprep.subr.mxu0 0.0
        %1103 = vmatpush1.msra.mxu0 0.0
        %1104 = vmatprep.subr.mxu0 0.0
        %1105 = vmatpush1.msra.mxu0 0.0
        %1106 = vmatprep.subr.mxu0 0.0
        %1107 = vmatpush1.msra.mxu0 0.0
        %1108 = vmatprep.subr.mxu0 0.0
        %1109 = vmatpush1.msra.mxu0 0.0
        %1110 = vmatprep.subr.mxu0 0.0
        %1111 = vmatpush1.msra.mxu0 0.0
        %1112 = vmatprep.subr.mxu0 0.0
        %1113 = vmatpush1.msra.mxu0 0.0
        %1114 = vmatprep.subr.mxu0 0.0
        %1115 = vmatpush1.msra.mxu0 0.0
        %1116 = vmatprep.subr.mxu0 0.0
        %1117 = vmatpush1.msra.mxu0 0.0
        %1118 = vmatprep.subr.mxu0 0.0
        %1119 = vmatpush1.msra.mxu0 0.0
        %1120 = vmatprep.subr.mxu0 0.0
        %1121 = vmatpush1.msra.mxu0 0.0
        %1122 = vmatprep.subr.mxu0 0.0
        %1123 = vmatpush1.msra.mxu0 0.0
        %1124 = vmatprep.subr.mxu0 0.0
        %1125 = vmatpush1.msra.mxu0 0.0
        %1126 = vmatprep.subr.mxu0 0.0
        %1127 = vmatpush1.msra.mxu0 0.0
        %1128 = vmatprep.subr.mxu0 0.0
        %1129 = vmatpush1.msra.mxu0 0.0
        %1130 = vmatprep.subr.mxu0 0.0
        %1131 = vmatpush1.msra.mxu0 0.0
        %1132 = vmatprep.subr.mxu0 0.0
        %1133 = vmatpush1.msra.mxu0 0.0
        %1134 = vmatprep.subr.mxu0 0.0
        %1135 = vmatpush1.msra.mxu0 0.0
        %1136 = vmatprep.subr.mxu0 0.0
        %1137 = vmatpush1.msra.mxu0 0.0
        %1138 = vmatprep.subr.mxu0 0.0
        %1139 = vmatpush1.msra.mxu0 0.0
        %1140 = vmatprep.subr.mxu0 0.0
        %1141 = vmatpush1.msra.mxu0 0.0
        %1142 = vmatprep.subr.mxu0 0.0
        %1143 = vmatpush1.msra.mxu0 0.0
        %1144 = vmatprep.subr.mxu0 0.0
        %1145 = vmatpush1.msra.mxu0 0.0
        %1146 = vmatprep.subr.mxu0 0.0
        %1147 = vmatpush1.msra.mxu0 0.0
        %1148 = vmatprep.subr.mxu0 0.0
        %1149 = vmatpush1.msra.mxu0 0.0
        %1150 = vmatprep.subr.mxu0 0.0
        %1151 = vmatpush1.msra.mxu0 0.0
        %1152 = vmatprep.subr.mxu0 0.0
        %1153 = vmatpush1.msra.mxu0 0.0
        %1154 = vmatprep.subr.mxu0 0.0
        %1155 = vmatpush1.msra.mxu0 0.0
        %1156 = vmatprep.mubr.f32.mxu0 0.0
        %v1157 = vand.u32 %v388, 4294901760
        %v1158 = vsub.f32 %v388, %v1157
        %v1159 = vand.u32 %v1158, 4294901760
        %1160 = vmatmul.mubr.f32.gmra.mrb[0].mxu0 %v1159
        %v1161 = vpop.f32.mrb[0].mxu0
        %v1162 = vadd.f32 %v1087, %v1161
        %v1163 = vpop.f32.mrb[0].mxu0
        %1164 = vdwg.mxu0
        %1165 = vmatprep.subr.mxu0 0.0
        %v1166 = vand.u32 %v359, 4294901760
        %v1167 = vsub.f32 %v359, %v1166
        %v1168 = vand.u32 %v1167, 4294901760
        %1169 = vmatpush1.msra.mxu0 %v1168
        %1170 = vmatprep.subr.mxu0 0.0
        %v1171 = vand.u32 %v854, 4294901760
        %v1172 = vsub.f32 %v854, %v1171
        %v1173 = vand.u32 %v1172, 4294901760
        %1174 = vmatpush1.msra.mxu0 %v1173
        %1175 = vmatprep.subr.mxu0 0.0
        %1176 = vmatpush1.msra.mxu0 0.0
        %1177 = vmatprep.subr.mxu0 0.0
        %1178 = vmatpush1.msra.mxu0 0.0
        %1179 = vmatprep.subr.mxu0 0.0
        %1180 = vmatpush1.msra.mxu0 0.0
        %1181 = vmatprep.subr.mxu0 0.0
        %1182 = vmatpush1.msra.mxu0 0.0
        %1183 = vmatprep.subr.mxu0 0.0
        %1184 = vmatpush1.msra.mxu0 0.0
        %1185 = vmatprep.subr.mxu0 0.0
        %1186 = vmatpush1.msra.mxu0 0.0
        %1187 = vmatprep.subr.mxu0 0.0
        %1188 = vmatpush1.msra.mxu0 0.0
        %1189 = vmatprep.subr.mxu0 0.0
        %1190 = vmatpush1.msra.mxu0 0.0
        %1191 = vmatprep.subr.mxu0 0.0
        %1192 = vmatpush1.msra.mxu0 0.0
        %1193 = vmatprep.subr.mxu0 0.0
        %1194 = vmatpush1.msra.mxu0 0.0
        %1195 = vmatprep.subr.mxu0 0.0
        %1196 = vmatpush1.msra.mxu0 0.0
        %1197 = vmatprep.subr.mxu0 0.0
        %1198 = vmatpush1.msra.mxu0 0.0
        %1199 = vmatprep.subr.mxu0 0.0
        %1200 = vmatpush1.msra.mxu0 0.0
        %1201 = vmatprep.subr.mxu0 0.0
        %1202 = vmatpush1.msra.mxu0 0.0
        %1203 = vmatprep.subr.mxu0 0.0
        %1204 = vmatpush1.msra.mxu0 0.0
        %1205 = vmatprep.subr.mxu0 0.0
        %1206 = vmatpush1.msra.mxu0 0.0
        %1207 = vmatprep.subr.mxu0 0.0
        %1208 = vmatpush1.msra.mxu0 0.0
        %1209 = vmatprep.subr.mxu0 0.0
        %1210 = vmatpush1.msra.mxu0 0.0
        %1211 = vmatprep.subr.mxu0 0.0
        %1212 = vmatpush1.msra.mxu0 0.0
        %1213 = vmatprep.subr.mxu0 0.0
        %1214 = vmatpush1.msra.mxu0 0.0
        %1215 = vmatprep.subr.mxu0 0.0
        %1216 = vmatpush1.msra.mxu0 0.0
        %1217 = vmatprep.subr.mxu0 0.0
        %1218 = vmatpush1.msra.mxu0 0.0
        %1219 = vmatprep.subr.mxu0 0.0
        %1220 = vmatpush1.msra.mxu0 0.0
        %1221 = vmatprep.subr.mxu0 0.0
        %1222 = vmatpush1.msra.mxu0 0.0
        %1223 = vmatprep.subr.mxu0 0.0
        %1224 = vmatpush1.msra.mxu0 0.0
        %1225 = vmatprep.subr.mxu0 0.0
        %1226 = vmatpush1.msra.mxu0 0.0
        %1227 = vmatprep.subr.mxu0 0.0
        %1228 = vmatpush1.msra.mxu0 0.0
        %1229 = vmatprep.subr.mxu0 0.0
        %1230 = vmatpush1.msra.mxu0 0.0
        %1231 = vmatprep.subr.mxu0 0.0
        %1232 = vmatpush1.msra.mxu0 0.0
        %1233 = vmatprep.subr.mxu0 0.0
        %1234 = vmatpush1.msra.mxu0 0.0
        %1235 = vmatprep.mubr.f32.mxu0 0.0
        %v1236 = vand.u32 %v388, 4294901760
        %1237 = vmatmul.mubr.f32.gmra.mrb[0].mxu0 %v1236
        %v1238 = vpop.f32.mrb[0].mxu0
        %v1239 = vadd.f32 %v1162, %v1238
        %v1240 = vpop.f32.mrb[0].mxu0
        %1241 = vdwg.mxu0
        %1242 = vmatprep.subr.mxu0 0.0
        %v1243 = vand.u32 %v359, 4294901760
        %1244 = vmatpush1.msra.mxu0 %v1243
        %1245 = vmatprep.subr.mxu0 0.0
        %v1246 = vand.u32 %v854, 4294901760
        %1247 = vmatpush1.msra.mxu0 %v1246
        %1248 = vmatprep.subr.mxu0 0.0
        %1249 = vmatpush1.msra.mxu0 0.0
        %1250 = vmatprep.subr.mxu0 0.0
        %1251 = vmatpush1.msra.mxu0 0.0
        %1252 = vmatprep.subr.mxu0 0.0
        %1253 = vmatpush1.msra.mxu0 0.0
        %1254 = vmatprep.subr.mxu0 0.0
        %1255 = vmatpush1.msra.mxu0 0.0
        %1256 = vmatprep.subr.mxu0 0.0
        %1257 = vmatpush1.msra.mxu0 0.0
        %1258 = vmatprep.subr.mxu0 0.0
        %1259 = vmatpush1.msra.mxu0 0.0
        %1260 = vmatprep.subr.mxu0 0.0
        %1261 = vmatpush1.msra.mxu0 0.0
        %1262 = vmatprep.subr.mxu0 0.0
        %1263 = vmatpush1.msra.mxu0 0.0
        %1264 = vmatprep.subr.mxu0 0.0
        %1265 = vmatpush1.msra.mxu0 0.0
        %1266 = vmatprep.subr.mxu0 0.0
        %1267 = vmatpush1.msra.mxu0 0.0
        %1268 = vmatprep.subr.mxu0 0.0
        %1269 = vmatpush1.msra.mxu0 0.0
        %1270 = vmatprep.subr.mxu0 0.0
        %1271 = vmatpush1.msra.mxu0 0.0
        %1272 = vmatprep.subr.mxu0 0.0
        %1273 = vmatpush1.msra.mxu0 0.0
        %1274 = vmatprep.subr.mxu0 0.0
        %1275 = vmatpush1.msra.mxu0 0.0
        %1276 = vmatprep.subr.mxu0 0.0
        %1277 = vmatpush1.msra.mxu0 0.0
        %1278 = vmatprep.subr.mxu0 0.0
        %1279 = vmatpush1.msra.mxu0 0.0
        %1280 = vmatprep.subr.mxu0 0.0
        %1281 = vmatpush1.msra.mxu0 0.0
        %1282 = vmatprep.subr.mxu0 0.0
        %1283 = vmatpush1.msra.mxu0 0.0
        %1284 = vmatprep.subr.mxu0 0.0
        %1285 = vmatpush1.msra.mxu0 0.0
        %1286 = vmatprep.subr.mxu0 0.0
        %1287 = vmatpush1.msra.mxu0 0.0
        %1288 = vmatprep.subr.mxu0 0.0
        %1289 = vmatpush1.msra.mxu0 0.0
        %1290 = vmatprep.subr.mxu0 0.0
        %1291 = vmatpush1.msra.mxu0 0.0
        %1292 = vmatprep.subr.mxu0 0.0
        %1293 = vmatpush1.msra.mxu0 0.0
        %1294 = vmatprep.subr.mxu0 0.0
        %1295 = vmatpush1.msra.mxu0 0.0
        %1296 = vmatprep.subr.mxu0 0.0
        %1297 = vmatpush1.msra.mxu0 0.0
        %1298 = vmatprep.subr.mxu0 0.0
        %1299 = vmatpush1.msra.mxu0 0.0
        %1300 = vmatprep.subr.mxu0 0.0
        %1301 = vmatpush1.msra.mxu0 0.0
        %1302 = vmatprep.subr.mxu0 0.0
        %1303 = vmatpush1.msra.mxu0 0.0
        %1304 = vmatprep.subr.mxu0 0.0
        %1305 = vmatpush1.msra.mxu0 0.0
        %1306 = vmatprep.subr.mxu0 0.0
        %1307 = vmatpush1.msra.mxu0 0.0
        %1308 = vmatprep.mubr.f32.mxu0 0.0
        %v1309 = vand.u32 %v388, 4294901760
        %1310 = vmatmul.mubr.f32.gmra.mrb[0].mxu0 %v1309
        %v1311 = vpop.f32.mrb[0].mxu0
        %v1312 = vadd.f32 %v1239, %v1311
        %v1313 = vpop.f32.mrb[0].mxu0
        %1314 = vdwg.mxu0
        %v1316 = vsel %vm390, %v362, 0
        %1318 = vmatprep.subr.mxu0 0.0
        %v1319 = vand.u32 %v361, 4294901760
        %1320 = vmatpush1.msra.mxu0 %v1319
        %1321 = vmatprep.subr.mxu0 0.0
        %v1322 = vand.u32 %v1316, 4294901760
        %1323 = vmatpush1.msra.mxu0 %v1322
        %1324 = vmatprep.subr.mxu0 0.0
        %1325 = vmatpush1.msra.mxu0 0.0
        %1326 = vmatprep.subr.mxu0 0.0
        %1327 = vmatpush1.msra.mxu0 0.0
        %1328 = vmatprep.subr.mxu0 0.0
        %1329 = vmatpush1.msra.mxu0 0.0
        %1330 = vmatprep.subr.mxu0 0.0
        %1331 = vmatpush1.msra.mxu0 0.0
        %1332 = vmatprep.subr.mxu0 0.0
        %1333 = vmatpush1.msra.mxu0 0.0
        %1334 = vmatprep.subr.mxu0 0.0
        %1335 = vmatpush1.msra.mxu0 0.0
        %1336 = vmatprep.subr.mxu0 0.0
        %1337 = vmatpush1.msra.mxu0 0.0
        %1338 = vmatprep.subr.mxu0 0.0
        %1339 = vmatpush1.msra.mxu0 0.0
        %1340 = vmatprep.subr.mxu0 0.0
        %1341 = vmatpush1.msra.mxu0 0.0
        %1342 = vmatprep.subr.mxu0 0.0
        %1343 = vmatpush1.msra.mxu0 0.0
        %1344 = vmatprep.subr.mxu0 0.0
        %1345 = vmatpush1.msra.mxu0 0.0
        %1346 = vmatprep.subr.mxu0 0.0
        %1347 = vmatpush1.msra.mxu0 0.0
        %1348 = vmatprep.subr.mxu0 0.0
        %1349 = vmatpush1.msra.mxu0 0.0
        %1350 = vmatprep.subr.mxu0 0.0
        %1351 = vmatpush1.msra.mxu0 0.0
        %1352 = vmatprep.subr.mxu0 0.0
        %1353 = vmatpush1.msra.mxu0 0.0
        %1354 = vmatprep.subr.mxu0 0.0
        %1355 = vmatpush1.msra.mxu0 0.0
        %1356 = vmatprep.subr.mxu0 0.0
        %1357 = vmatpush1.msra.mxu0 0.0
        %1358 = vmatprep.subr.mxu0 0.0
        %1359 = vmatpush1.msra.mxu0 0.0
        %1360 = vmatprep.subr.mxu0 0.0
        %1361 = vmatpush1.msra.mxu0 0.0
        %1362 = vmatprep.subr.mxu0 0.0
        %1363 = vmatpush1.msra.mxu0 0.0
        %1364 = vmatprep.subr.mxu0 0.0
        %1365 = vmatpush1.msra.mxu0 0.0
        %1366 = vmatprep.subr.mxu0 0.0
        %1367 = vmatpush1.msra.mxu0 0.0
        %1368 = vmatprep.subr.mxu0 0.0
        %1369 = vmatpush1.msra.mxu0 0.0
        %1370 = vmatprep.subr.mxu0 0.0
        %1371 = vmatpush1.msra.mxu0 0.0
        %1372 = vmatprep.subr.mxu0 0.0
        %1373 = vmatpush1.msra.mxu0 0.0
        %1374 = vmatprep.subr.mxu0 0.0
        %1375 = vmatpush1.msra.mxu0 0.0
        %1376 = vmatprep.subr.mxu0 0.0
        %1377 = vmatpush1.msra.mxu0 0.0
        %1378 = vmatprep.subr.mxu0 0.0
        %1379 = vmatpush1.msra.mxu0 0.0
        %1380 = vmatprep.subr.mxu0 0.0
        %1381 = vmatpush1.msra.mxu0 0.0
        %1382 = vmatprep.subr.mxu0 0.0
        %1383 = vmatpush1.msra.mxu0 0.0
        %1384 = vmatprep.mubr.f32.mxu0 0.0
        %v1385 = vand.u32 %v388, 4294901760
        %v1386 = vsub.f32 %v388, %v1385
        %v1387 = vand.u32 %v1386, 4294901760
        %v1388 = vsub.f32 %v1386, %v1387
        %v1389 = vand.u32 %v1388, 4294901760
        %1390 = vmatmul.mubr.f32.gmra.mrb[0].mxu0 %v1389
        %v1391 = vpop.f32.mrb[0].mxu0
        %v1392 = vadd.f32 0.0, %v1391
        %v1393 = vpop.f32.mrb[0].mxu0
        %1394 = vdwg.mxu0
        %1395 = vmatprep.subr.mxu0 0.0
        %v1396 = vand.u32 %v361, 4294901760
        %v1397 = vsub.f32 %v361, %v1396
        %v1398 = vand.u32 %v1397, 4294901760
        %v1399 = vsub.f32 %v1397, %v1398
        %v1400 = vand.u32 %v1399, 4294901760
        %1401 = vmatpush1.msra.mxu0 %v1400
        %1402 = vmatprep.subr.mxu0 0.0
        %v1403 = vand.u32 %v1316, 4294901760
        %v1404 = vsub.f32 %v1316, %v1403
        %v1405 = vand.u32 %v1404, 4294901760
        %v1406 = vsub.f32 %v1404, %v1405
        %v1407 = vand.u32 %v1406, 4294901760
        %1408 = vmatpush1.msra.mxu0 %v1407
        %1409 = vmatprep.subr.mxu0 0.0
        %1410 = vmatpush1.msra.mxu0 0.0
        %1411 = vmatprep.subr.mxu0 0.0
        %1412 = vmatpush1.msra.mxu0 0.0
        %1413 = vmatprep.subr.mxu0 0.0
        %1414 = vmatpush1.msra.mxu0 0.0
        %1415 = vmatprep.subr.mxu0 0.0
        %1416 = vmatpush1.msra.mxu0 0.0
        %1417 = vmatprep.subr.mxu0 0.0
        %1418 = vmatpush1.msra.mxu0 0.0
        %1419 = vmatprep.subr.mxu0 0.0
        %1420 = vmatpush1.msra.mxu0 0.0
        %1421 = vmatprep.subr.mxu0 0.0
        %1422 = vmatpush1.msra.mxu0 0.0
        %1423 = vmatprep.subr.mxu0 0.0
        %1424 = vmatpush1.msra.mxu0 0.0
        %1425 = vmatprep.subr.mxu0 0.0
        %1426 = vmatpush1.msra.mxu0 0.0
        %1427 = vmatprep.subr.mxu0 0.0
        %1428 = vmatpush1.msra.mxu0 0.0
        %1429 = vmatprep.subr.mxu0 0.0
        %1430 = vmatpush1.msra.mxu0 0.0
        %1431 = vmatprep.subr.mxu0 0.0
        %1432 = vmatpush1.msra.mxu0 0.0
        %1433 = vmatprep.subr.mxu0 0.0
        %1434 = vmatpush1.msra.mxu0 0.0
        %1435 = vmatprep.subr.mxu0 0.0
        %1436 = vmatpush1.msra.mxu0 0.0
        %1437 = vmatprep.subr.mxu0 0.0
        %1438 = vmatpush1.msra.mxu0 0.0
        %1439 = vmatprep.subr.mxu0 0.0
        %1440 = vmatpush1.msra.mxu0 0.0
        %1441 = vmatprep.subr.mxu0 0.0
        %1442 = vmatpush1.msra.mxu0 0.0
        %1443 = vmatprep.subr.mxu0 0.0
        %1444 = vmatpush1.msra.mxu0 0.0
        %1445 = vmatprep.subr.mxu0 0.0
        %1446 = vmatpush1.msra.mxu0 0.0
        %1447 = vmatprep.subr.mxu0 0.0
        %1448 = vmatpush1.msra.mxu0 0.0
        %1449 = vmatprep.subr.mxu0 0.0
        %1450 = vmatpush1.msra.mxu0 0.0
        %1451 = vmatprep.subr.mxu0 0.0
        %1452 = vmatpush1.msra.mxu0 0.0
        %1453 = vmatprep.subr.mxu0 0.0
        %1454 = vmatpush1.msra.mxu0 0.0
        %1455 = vmatprep.subr.mxu0 0.0
        %1456 = vmatpush1.msra.mxu0 0.0
        %1457 = vmatprep.subr.mxu0 0.0
        %1458 = vmatpush1.msra.mxu0 0.0
        %1459 = vmatprep.subr.mxu0 0.0
        %1460 = vmatpush1.msra.mxu0 0.0
        %1461 = vmatprep.subr.mxu0 0.0
        %1462 = vmatpush1.msra.mxu0 0.0
        %1463 = vmatprep.subr.mxu0 0.0
        %1464 = vmatpush1.msra.mxu0 0.0
        %1465 = vmatprep.subr.mxu0 0.0
        %1466 = vmatpush1.msra.mxu0 0.0
        %1467 = vmatprep.subr.mxu0 0.0
        %1468 = vmatpush1.msra.mxu0 0.0
        %1469 = vmatprep.mubr.f32.mxu0 0.0
        %v1470 = vand.u32 %v388, 4294901760
        %1471 = vmatmul.mubr.f32.gmra.mrb[0].mxu0 %v1470
        %v1472 = vpop.f32.mrb[0].mxu0
        %v1473 = vadd.f32 %v1392, %v1472
        %v1474 = vpop.f32.mrb[0].mxu0
        %1475 = vdwg.mxu0
        %1476 = vmatprep.subr.mxu0 0.0
        %v1477 = vand.u32 %v361, 4294901760
        %v1478 = vsub.f32 %v361, %v1477
        %1479 = vmatpush1.msra.mxu0 %v1478
        %1480 = vmatprep.subr.mxu0 0.0
        %v1481 = vand.u32 %v1316, 4294901760
        %v1482 = vsub.f32 %v1316, %v1481
        %1483 = vmatpush1.msra.mxu0 %v1482
        %1484 = vmatprep.subr.mxu0 0.0
        %1485 = vmatpush1.msra.mxu0 0.0
        %1486 = vmatprep.subr.mxu0 0.0
        %1487 = vmatpush1.msra.mxu0 0.0
        %1488 = vmatprep.subr.mxu0 0.0
        %1489 = vmatpush1.msra.mxu0 0.0
        %1490 = vmatprep.subr.mxu0 0.0
        %1491 = vmatpush1.msra.mxu0 0.0
        %1492 = vmatprep.subr.mxu0 0.0
        %1493 = vmatpush1.msra.mxu0 0.0
        %1494 = vmatprep.subr.mxu0 0.0
        %1495 = vmatpush1.msra.mxu0 0.0
        %1496 = vmatprep.subr.mxu0 0.0
        %1497 = vmatpush1.msra.mxu0 0.0
        %1498 = vmatprep.subr.mxu0 0.0
        %1499 = vmatpush1.msra.mxu0 0.0
        %1500 = vmatprep.subr.mxu0 0.0
        %1501 = vmatpush1.msra.mxu0 0.0
        %1502 = vmatprep.subr.mxu0 0.0
        %1503 = vmatpush1.msra.mxu0 0.0
        %1504 = vmatprep.subr.mxu0 0.0
        %1505 = vmatpush1.msra.mxu0 0.0
        %1506 = vmatprep.subr.mxu0 0.0
        %1507 = vmatpush1.msra.mxu0 0.0
        %1508 = vmatprep.subr.mxu0 0.0
        %1509 = vmatpush1.msra.mxu0 0.0
        %1510 = vmatprep.subr.mxu0 0.0
        %1511 = vmatpush1.msra.mxu0 0.0
        %1512 = vmatprep.subr.mxu0 0.0
        %1513 = vmatpush1.msra.mxu0 0.0
        %1514 = vmatprep.subr.mxu0 0.0
        %1515 = vmatpush1.msra.mxu0 0.0
        %1516 = vmatprep.subr.mxu0 0.0
        %1517 = vmatpush1.msra.mxu0 0.0
        %1518 = vmatprep.subr.mxu0 0.0
        %1519 = vmatpush1.msra.mxu0 0.0
        %1520 = vmatprep.subr.mxu0 0.0
        %1521 = vmatpush1.msra.mxu0 0.0
        %1522 = vmatprep.subr.mxu0 0.0
        %1523 = vmatpush1.msra.mxu0 0.0
        %1524 = vmatprep.subr.mxu0 0.0
        %1525 = vmatpush1.msra.mxu0 0.0
        %1526 = vmatprep.subr.mxu0 0.0
        %1527 = vmatpush1.msra.mxu0 0.0
        %1528 = vmatprep.subr.mxu0 0.0
        %1529 = vmatpush1.msra.mxu0 0.0
        %1530 = vmatprep.subr.mxu0 0.0
        %1531 = vmatpush1.msra.mxu0 0.0
        %1532 = vmatprep.subr.mxu0 0.0
        %1533 = vmatpush1.msra.mxu0 0.0
        %1534 = vmatprep.subr.mxu0 0.0
        %1535 = vmatpush1.msra.mxu0 0.0
        %1536 = vmatprep.subr.mxu0 0.0
        %1537 = vmatpush1.msra.mxu0 0.0
        %1538 = vmatprep.subr.mxu0 0.0
        %1539 = vmatpush1.msra.mxu0 0.0
        %1540 = vmatprep.subr.mxu0 0.0
        %1541 = vmatpush1.msra.mxu0 0.0
        %1542 = vmatprep.subr.mxu0 0.0
        %1543 = vmatpush1.msra.mxu0 0.0
        %1544 = vmatprep.mubr.f32.mxu0 0.0
        %v1545 = vand.u32 %v388, 4294901760
        %v1546 = vsub.f32 %v388, %v1545
        %1547 = vmatmul.mubr.f32.gmra.mrb[0].mxu0 %v1546
        %v1548 = vpop.f32.mrb[0].mxu0
        %v1549 = vadd.f32 %v1473, %v1548
        %v1550 = vpop.f32.mrb[0].mxu0
        %1551 = vdwg.mxu0
        %1552 = vmatprep.subr.mxu0 0.0
        %v1553 = vand.u32 %v361, 4294901760
        %1554 = vmatpush1.msra.mxu0 %v1553
        %1555 = vmatprep.subr.mxu0 0.0
        %v1556 = vand.u32 %v1316, 4294901760
        %1557 = vmatpush1.msra.mxu0 %v1556
        %1558 = vmatprep.subr.mxu0 0.0
        %1559 = vmatpush1.msra.mxu0 0.0
        %1560 = vmatprep.subr.mxu0 0.0
        %1561 = vmatpush1.msra.mxu0 0.0
        %1562 = vmatprep.subr.mxu0 0.0
        %1563 = vmatpush1.msra.mxu0 0.0
        %1564 = vmatprep.subr.mxu0 0.0
        %1565 = vmatpush1.msra.mxu0 0.0
        %1566 = vmatprep.subr.mxu0 0.0
        %1567 = vmatpush1.msra.mxu0 0.0
        %1568 = vmatprep.subr.mxu0 0.0
        %1569 = vmatpush1.msra.mxu0 0.0
        %1570 = vmatprep.subr.mxu0 0.0
        %1571 = vmatpush1.msra.mxu0 0.0
        %1572 = vmatprep.subr.mxu0 0.0
        %1573 = vmatpush1.msra.mxu0 0.0
        %1574 = vmatprep.subr.mxu0 0.0
        %1575 = vmatpush1.msra.mxu0 0.0
        %1576 = vmatprep.subr.mxu0 0.0
        %1577 = vmatpush1.msra.mxu0 0.0
        %1578 = vmatprep.subr.mxu0 0.0
        %1579 = vmatpush1.msra.mxu0 0.0
        %1580 = vmatprep.subr.mxu0 0.0
        %1581 = vmatpush1.msra.mxu0 0.0
        %1582 = vmatprep.subr.mxu0 0.0
        %1583 = vmatpush1.msra.mxu0 0.0
        %1584 = vmatprep.subr.mxu0 0.0
        %1585 = vmatpush1.msra.mxu0 0.0
        %1586 = vmatprep.subr.mxu0 0.0
        %1587 = vmatpush1.msra.mxu0 0.0
        %1588 = vmatprep.subr.mxu0 0.0
        %1589 = vmatpush1.msra.mxu0 0.0
        %1590 = vmatprep.subr.mxu0 0.0
        %1591 = vmatpush1.msra.mxu0 0.0
        %1592 = vmatprep.subr.mxu0 0.0
        %1593 = vmatpush1.msra.mxu0 0.0
        %1594 = vmatprep.subr.mxu0 0.0
        %1595 = vmatpush1.msra.mxu0 0.0
        %1596 = vmatprep.subr.mxu0 0.0
        %1597 = vmatpush1.msra.mxu0 0.0
        %1598 = vmatprep.subr.mxu0 0.0
        %1599 = vmatpush1.msra.mxu0 0.0
        %1600 = vmatprep.subr.mxu0 0.0
        %1601 = vmatpush1.msra.mxu0 0.0
        %1602 = vmatprep.subr.mxu0 0.0
        %1603 = vmatpush1.msra.mxu0 0.0
        %1604 = vmatprep.subr.mxu0 0.0
        %1605 = vmatpush1.msra.mxu0 0.0
        %1606 = vmatprep.subr.mxu0 0.0
        %1607 = vmatpush1.msra.mxu0 0.0
        %1608 = vmatprep.subr.mxu0 0.0
        %1609 = vmatpush1.msra.mxu0 0.0
        %1610 = vmatprep.subr.mxu0 0.0
        %1611 = vmatpush1.msra.mxu0 0.0
        %1612 = vmatprep.subr.mxu0 0.0
        %1613 = vmatpush1.msra.mxu0 0.0
        %1614 = vmatprep.subr.mxu0 0.0
        %1615 = vmatpush1.msra.mxu0 0.0
        %1616 = vmatprep.subr.mxu0 0.0
        %1617 = vmatpush1.msra.mxu0 0.0
        %1618 = vmatprep.mubr.f32.mxu0 0.0
        %v1619 = vand.u32 %v388, 4294901760
        %v1620 = vsub.f32 %v388, %v1619
        %v1621 = vand.u32 %v1620, 4294901760
        %1622 = vmatmul.mubr.f32.gmra.mrb[0].mxu0 %v1621
        %v1623 = vpop.f32.mrb[0].mxu0
        %v1624 = vadd.f32 %v1549, %v1623
        %v1625 = vpop.f32.mrb[0].mxu0
        %1626 = vdwg.mxu0
        %1627 = vmatprep.subr.mxu0 0.0
        %v1628 = vand.u32 %v361, 4294901760
        %v1629 = vsub.f32 %v361, %v1628
        %v1630 = vand.u32 %v1629, 4294901760
        %1631 = vmatpush1.msra.mxu0 %v1630
        %1632 = vmatprep.subr.mxu0 0.0
        %v1633 = vand.u32 %v1316, 4294901760
        %v1634 = vsub.f32 %v1316, %v1633
        %v1635 = vand.u32 %v1634, 4294901760
        %1636 = vmatpush1.msra.mxu0 %v1635
        %1637 = vmatprep.subr.mxu0 0.0
        %1638 = vmatpush1.msra.mxu0 0.0
        %1639 = vmatprep.subr.mxu0 0.0
        %1640 = vmatpush1.msra.mxu0 0.0
        %1641 = vmatprep.subr.mxu0 0.0
        %1642 = vmatpush1.msra.mxu0 0.0
        %1643 = vmatprep.subr.mxu0 0.0
        %1644 = vmatpush1.msra.mxu0 0.0
        %1645 = vmatprep.subr.mxu0 0.0
        %1646 = vmatpush1.msra.mxu0 0.0
        %1647 = vmatprep.subr.mxu0 0.0
        %1648 = vmatpush1.msra.mxu0 0.0
        %1649 = vmatprep.subr.mxu0 0.0
        %1650 = vmatpush1.msra.mxu0 0.0
        %1651 = vmatprep.subr.mxu0 0.0
        %1652 = vmatpush1.msra.mxu0 0.0
        %1653 = vmatprep.subr.mxu0 0.0
        %1654 = vmatpush1.msra.mxu0 0.0
        %1655 = vmatprep.subr.mxu0 0.0
        %1656 = vmatpush1.msra.mxu0 0.0
        %1657 = vmatprep.subr.mxu0 0.0
        %1658 = vmatpush1.msra.mxu0 0.0
        %1659 = vmatprep.subr.mxu0 0.0
        %1660 = vmatpush1.msra.mxu0 0.0
        %1661 = vmatprep.subr.mxu0 0.0
        %1662 = vmatpush1.msra.mxu0 0.0
        %1663 = vmatprep.subr.mxu0 0.0
        %1664 = vmatpush1.msra.mxu0 0.0
        %1665 = vmatprep.subr.mxu0 0.0
        %1666 = vmatpush1.msra.mxu0 0.0
        %1667 = vmatprep.subr.mxu0 0.0
        %1668 = vmatpush1.msra.mxu0 0.0
        %1669 = vmatprep.subr.mxu0 0.0
        %1670 = vmatpush1.msra.mxu0 0.0
        %1671 = vmatprep.subr.mxu0 0.0
        %1672 = vmatpush1.msra.mxu0 0.0
        %1673 = vmatprep.subr.mxu0 0.0
        %1674 = vmatpush1.msra.mxu0 0.0
        %1675 = vmatprep.subr.mxu0 0.0
        %1676 = vmatpush1.msra.mxu0 0.0
        %1677 = vmatprep.subr.mxu0 0.0
        %1678 = vmatpush1.msra.mxu0 0.0
        %1679 = vmatprep.subr.mxu0 0.0
        %1680 = vmatpush1.msra.mxu0 0.0
        %1681 = vmatprep.subr.mxu0 0.0
        %1682 = vmatpush1.msra.mxu0 0.0
        %1683 = vmatprep.subr.mxu0 0.0
        %1684 = vmatpush1.msra.mxu0 0.0
        %1685 = vmatprep.subr.mxu0 0.0
        %1686 = vmatpush1.msra.mxu0 0.0
        %1687 = vmatprep.subr.mxu0 0.0
        %1688 = vmatpush1.msra.mxu0 0.0
        %1689 = vmatprep.subr.mxu0 0.0
        %1690 = vmatpush1.msra.mxu0 0.0
        %1691 = vmatprep.subr.mxu0 0.0
        %1692 = vmatpush1.msra.mxu0 0.0
        %1693 = vmatprep.subr.mxu0 0.0
        %1694 = vmatpush1.msra.mxu0 0.0
        %1695 = vmatprep.subr.mxu0 0.0
        %1696 = vmatpush1.msra.mxu0 0.0
        %1697 = vmatprep.mubr.f32.mxu0 0.0
        %v1698 = vand.u32 %v388, 4294901760
        %1699 = vmatmul.mubr.f32.gmra.mrb[0].mxu0 %v1698
        %v1700 = vpop.f32.mrb[0].mxu0
        %v1701 = vadd.f32 %v1624, %v1700
        %v1702 = vpop.f32.mrb[0].mxu0
        %1703 = vdwg.mxu0
        %1704 = vmatprep.subr.mxu0 0.0
        %v1705 = vand.u32 %v361, 4294901760
        %1706 = vmatpush1.msra.mxu0 %v1705
        %1707 = vmatprep.subr.mxu0 0.0
        %v1708 = vand.u32 %v1316, 4294901760
        %1709 = vmatpush1.msra.mxu0 %v1708
        %1710 = vmatprep.subr.mxu0 0.0
        %1711 = vmatpush1.msra.mxu0 0.0
        %1712 = vmatprep.subr.mxu0 0.0
        %1713 = vmatpush1.msra.mxu0 0.0
        %1714 = vmatprep.subr.mxu0 0.0
        %1715 = vmatpush1.msra.mxu0 0.0
        %1716 = vmatprep.subr.mxu0 0.0
        %1717 = vmatpush1.msra.mxu0 0.0
        %1718 = vmatprep.subr.mxu0 0.0
        %1719 = vmatpush1.msra.mxu0 0.0
        %1720 = vmatprep.subr.mxu0 0.0
        %1721 = vmatpush1.msra.mxu0 0.0
        %1722 = vmatprep.subr.mxu0 0.0
        %1723 = vmatpush1.msra.mxu0 0.0
        %1724 = vmatprep.subr.mxu0 0.0
        %1725 = vmatpush1.msra.mxu0 0.0
        %1726 = vmatprep.subr.mxu0 0.0
        %1727 = vmatpush1.msra.mxu0 0.0
        %1728 = vmatprep.subr.mxu0 0.0
        %1729 = vmatpush1.msra.mxu0 0.0
        %1730 = vmatprep.subr.mxu0 0.0
        %1731 = vmatpush1.msra.mxu0 0.0
        %1732 = vmatprep.subr.mxu0 0.0
        %1733 = vmatpush1.msra.mxu0 0.0
        %1734 = vmatprep.subr.mxu0 0.0
        %1735 = vmatpush1.msra.mxu0 0.0
        %1736 = vmatprep.subr.mxu0 0.0
        %1737 = vmatpush1.msra.mxu0 0.0
        %1738 = vmatprep.subr.mxu0 0.0
        %1739 = vmatpush1.msra.mxu0 0.0
        %1740 = vmatprep.subr.mxu0 0.0
        %1741 = vmatpush1.msra.mxu0 0.0
        %1742 = vmatprep.subr.mxu0 0.0
        %1743 = vmatpush1.msra.mxu0 0.0
        %1744 = vmatprep.subr.mxu0 0.0
        %1745 = vmatpush1.msra.mxu0 0.0
        %1746 = vmatprep.subr.mxu0 0.0
        %1747 = vmatpush1.msra.mxu0 0.0
        %1748 = vmatprep.subr.mxu0 0.0
        %1749 = vmatpush1.msra.mxu0 0.0
        %1750 = vmatprep.subr.mxu0 0.0
        %1751 = vmatpush1.msra.mxu0 0.0
        %1752 = vmatprep.subr.mxu0 0.0
        %1753 = vmatpush1.msra.mxu0 0.0
        %1754 = vmatprep.subr.mxu0 0.0
        %1755 = vmatpush1.msra.mxu0 0.0
        %1756 = vmatprep.subr.mxu0 0.0
        %1757 = vmatpush1.msra.mxu0 0.0
        %1758 = vmatprep.subr.mxu0 0.0
        %1759 = vmatpush1.msra.mxu0 0.0
        %1760 = vmatprep.subr.mxu0 0.0
        %1761 = vmatpush1.msra.mxu0 0.0
        %1762 = vmatprep.subr.mxu0 0.0
        %1763 = vmatpush1.msra.mxu0 0.0
        %1764 = vmatprep.subr.mxu0 0.0
        %1765 = vmatpush1.msra.mxu0 0.0
        %1766 = vmatprep.subr.mxu0 0.0
        %1767 = vmatpush1.msra.mxu0 0.0
        %1768 = vmatprep.subr.mxu0 0.0
        %1769 = vmatpush1.msra.mxu0 0.0
        %1770 = vmatprep.mubr.f32.mxu0 0.0
        %v1771 = vand.u32 %v388, 4294901760
        %1772 = vmatmul.mubr.f32.gmra.mrb[0].mxu0 %v1771
        %v1773 = vpop.f32.mrb[0].mxu0
        %v1774 = vadd.f32 %v1701, %v1773
        %v1775 = vpop.f32.mrb[0].mxu0
        %1776 = vdwg.mxu0
        %v1778 = vsel %vm390, %v364, 0
        %1780 = vmatprep.subr.mxu0 0.0
        %v1781 = vand.u32 %v363, 4294901760
        %1782 = vmatpush1.msra.mxu0 %v1781
        %1783 = vmatprep.subr.mxu0 0.0
        %v1784 = vand.u32 %v1778, 4294901760
        %1785 = vmatpush1.msra.mxu0 %v1784
        %1786 = vmatprep.subr.mxu0 0.0
        %1787 = vmatpush1.msra.mxu0 0.0
        %1788 = vmatprep.subr.mxu0 0.0
        %1789 = vmatpush1.msra.mxu0 0.0
        %1790 = vmatprep.subr.mxu0 0.0
        %1791 = vmatpush1.msra.mxu0 0.0
        %1792 = vmatprep.subr.mxu0 0.0
        %1793 = vmatpush1.msra.mxu0 0.0
        %1794 = vmatprep.subr.mxu0 0.0
        %1795 = vmatpush1.msra.mxu0 0.0
        %1796 = vmatprep.subr.mxu0 0.0
        %1797 = vmatpush1.msra.mxu0 0.0
        %1798 = vmatprep.subr.mxu0 0.0
        %1799 = vmatpush1.msra.mxu0 0.0
        %1800 = vmatprep.subr.mxu0 0.0
        %1801 = vmatpush1.msra.mxu0 0.0
        %1802 = vmatprep.subr.mxu0 0.0
        %1803 = vmatpush1.msra.mxu0 0.0
        %1804 = vmatprep.subr.mxu0 0.0
        %1805 = vmatpush1.msra.mxu0 0.0
        %1806 = vmatprep.subr.mxu0 0.0
        %1807 = vmatpush1.msra.mxu0 0.0
        %1808 = vmatprep.subr.mxu0 0.0
        %1809 = vmatpush1.msra.mxu0 0.0
        %1810 = vmatprep.subr.mxu0 0.0
        %1811 = vmatpush1.msra.mxu0 0.0
        %1812 = vmatprep.subr.mxu0 0.0
        %1813 = vmatpush1.msra.mxu0 0.0
        %1814 = vmatprep.subr.mxu0 0.0
        %1815 = vmatpush1.msra.mxu0 0.0
        %1816 = vmatprep.subr.mxu0 0.0
        %1817 = vmatpush1.msra.mxu0 0.0
        %1818 = vmatprep.subr.mxu0 0.0
        %1819 = vmatpush1.msra.mxu0 0.0
        %1820 = vmatprep.subr.mxu0 0.0
        %1821 = vmatpush1.msra.mxu0 0.0
        %1822 = vmatprep.subr.mxu0 0.0
        %1823 = vmatpush1.msra.mxu0 0.0
        %1824 = vmatprep.subr.mxu0 0.0
        %1825 = vmatpush1.msra.mxu0 0.0
        %1826 = vmatprep.subr.mxu0 0.0
        %1827 = vmatpush1.msra.mxu0 0.0
        %1828 = vmatprep.subr.mxu0 0.0
        %1829 = vmatpush1.msra.mxu0 0.0
        %1830 = vmatprep.subr.mxu0 0.0
        %1831 = vmatpush1.msra.mxu0 0.0
        %1832 = vmatprep.subr.mxu0 0.0
        %1833 = vmatpush1.msra.mxu0 0.0
        %1834 = vmatprep.subr.mxu0 0.0
        %1835 = vmatpush1.msra.mxu0 0.0
        %1836 = vmatprep.subr.mxu0 0.0
        %1837 = vmatpush1.msra.mxu0 0.0
        %1838 = vmatprep.subr.mxu0 0.0
        %1839 = vmatpush1.msra.mxu0 0.0
        %1840 = vmatprep.subr.mxu0 0.0
        %1841 = vmatpush1.msra.mxu0 0.0
        %1842 = vmatprep.subr.mxu0 0.0
        %1843 = vmatpush1.msra.mxu0 0.0
        %1844 = vmatprep.subr.mxu0 0.0
        %1845 = vmatpush1.msra.mxu0 0.0
        %1846 = vmatprep.mubr.f32.mxu0 0.0
        %v1847 = vand.u32 %v388, 4294901760
        %v1848 = vsub.f32 %v388, %v1847
        %v1849 = vand.u32 %v1848, 4294901760
        %v1850 = vsub.f32 %v1848, %v1849
        %v1851 = vand.u32 %v1850, 4294901760
        %1852 = vmatmul.mubr.f32.gmra.mrb[0].mxu0 %v1851
        %v1853 = vpop.f32.mrb[0].mxu0
        %v1854 = vadd.f32 0.0, %v1853
        %v1855 = vpop.f32.mrb[0].mxu0
        %1856 = vdwg.mxu0
        %1857 = vmatprep.subr.mxu0 0.0
        %v1858 = vand.u32 %v363, 4294901760
        %v1859 = vsub.f32 %v363, %v1858
        %v1860 = vand.u32 %v1859, 4294901760
        %v1861 = vsub.f32 %v1859, %v1860
        %v1862 = vand.u32 %v1861, 4294901760
        %1863 = vmatpush1.msra.mxu0 %v1862
        %1864 = vmatprep.subr.mxu0 0.0
        %v1865 = vand.u32 %v1778, 4294901760
        %v1866 = vsub.f32 %v1778, %v1865
        %v1867 = vand.u32 %v1866, 4294901760
        %v1868 = vsub.f32 %v1866, %v1867
        %v1869 = vand.u32 %v1868, 4294901760
        %1870 = vmatpush1.msra.mxu0 %v1869
        %1871 = vmatprep.subr.mxu0 0.0
        %1872 = vmatpush1.msra.mxu0 0.0
        %1873 = vmatprep.subr.mxu0 0.0
        %1874 = vmatpush1.msra.mxu0 0.0
        %1875 = vmatprep.subr.mxu0 0.0
        %1876 = vmatpush1.msra.mxu0 0.0
        %1877 = vmatprep.subr.mxu0 0.0
        %1878 = vmatpush1.msra.mxu0 0.0
        %1879 = vmatprep.subr.mxu0 0.0
        %1880 = vmatpush1.msra.mxu0 0.0
        %1881 = vmatprep.subr.mxu0 0.0
        %1882 = vmatpush1.msra.mxu0 0.0
        %1883 = vmatprep.subr.mxu0 0.0
        %1884 = vmatpush1.msra.mxu0 0.0
        %1885 = vmatprep.subr.mxu0 0.0
        %1886 = vmatpush1.msra.mxu0 0.0
        %1887 = vmatprep.subr.mxu0 0.0
        %1888 = vmatpush1.msra.mxu0 0.0
        %1889 = vmatprep.subr.mxu0 0.0
        %1890 = vmatpush1.msra.mxu0 0.0
        %1891 = vmatprep.subr.mxu0 0.0
        %1892 = vmatpush1.msra.mxu0 0.0
        %1893 = vmatprep.subr.mxu0 0.0
        %1894 = vmatpush1.msra.mxu0 0.0
        %1895 = vmatprep.subr.mxu0 0.0
        %1896 = vmatpush1.msra.mxu0 0.0
        %1897 = vmatprep.subr.mxu0 0.0
        %1898 = vmatpush1.msra.mxu0 0.0
        %1899 = vmatprep.subr.mxu0 0.0
        %1900 = vmatpush1.msra.mxu0 0.0
        %1901 = vmatprep.subr.mxu0 0.0
        %1902 = vmatpush1.msra.mxu0 0.0
        %1903 = vmatprep.subr.mxu0 0.0
        %1904 = vmatpush1.msra.mxu0 0.0
        %1905 = vmatprep.subr.mxu0 0.0
        %1906 = vmatpush1.msra.mxu0 0.0
        %1907 = vmatprep.subr.mxu0 0.0
        %1908 = vmatpush1.msra.mxu0 0.0
        %1909 = vmatprep.subr.mxu0 0.0
        %1910 = vmatpush1.msra.mxu0 0.0
        %1911 = vmatprep.subr.mxu0 0.0
        %1912 = vmatpush1.msra.mxu0 0.0
        %1913 = vmatprep.subr.mxu0 0.0
        %1914 = vmatpush1.msra.mxu0 0.0
        %1915 = vmatprep.subr.mxu0 0.0
        %1916 = vmatpush1.msra.mxu0 0.0
        %1917 = vmatprep.subr.mxu0 0.0
        %1918 = vmatpush1.msra.mxu0 0.0
        %1919 = vmatprep.subr.mxu0 0.0
        %1920 = vmatpush1.msra.mxu0 0.0
        %1921 = vmatprep.subr.mxu0 0.0
        %1922 = vmatpush1.msra.mxu0 0.0
        %1923 = vmatprep.subr.mxu0 0.0
        %1924 = vmatpush1.msra.mxu0 0.0
        %1925 = vmatprep.subr.mxu0 0.0
        %1926 = vmatpush1.msra.mxu0 0.0
        %1927 = vmatprep.subr.mxu0 0.0
        %1928 = vmatpush1.msra.mxu0 0.0
        %1929 = vmatprep.subr.mxu0 0.0
        %1930 = vmatpush1.msra.mxu0 0.0
        %1931 = vmatprep.mubr.f32.mxu0 0.0
        %v1932 = vand.u32 %v388, 4294901760
        %1933 = vmatmul.mubr.f32.gmra.mrb[0].mxu0 %v1932
        %v1934 = vpop.f32.mrb[0].mxu0
        %v1935 = vadd.f32 %v1854, %v1934
        %v1936 = vpop.f32.mrb[0].mxu0
        %1937 = vdwg.mxu0
        %1938 = vmatprep.subr.mxu0 0.0
        %v1939 = vand.u32 %v363, 4294901760
        %v1940 = vsub.f32 %v363, %v1939
        %1941 = vmatpush1.msra.mxu0 %v1940
        %1942 = vmatprep.subr.mxu0 0.0
        %v1943 = vand.u32 %v1778, 4294901760
        %v1944 = vsub.f32 %v1778, %v1943
        %1945 = vmatpush1.msra.mxu0 %v1944
        %1946 = vmatprep.subr.mxu0 0.0
        %1947 = vmatpush1.msra.mxu0 0.0
        %1948 = vmatprep.subr.mxu0 0.0
        %1949 = vmatpush1.msra.mxu0 0.0
        %1950 = vmatprep.subr.mxu0 0.0
        %1951 = vmatpush1.msra.mxu0 0.0
        %1952 = vmatprep.subr.mxu0 0.0
        %1953 = vmatpush1.msra.mxu0 0.0
        %1954 = vmatprep.subr.mxu0 0.0
        %1955 = vmatpush1.msra.mxu0 0.0
        %1956 = vmatprep.subr.mxu0 0.0
        %1957 = vmatpush1.msra.mxu0 0.0
        %1958 = vmatprep.subr.mxu0 0.0
        %1959 = vmatpush1.msra.mxu0 0.0
        %1960 = vmatprep.subr.mxu0 0.0
        %1961 = vmatpush1.msra.mxu0 0.0
        %1962 = vmatprep.subr.mxu0 0.0
        %1963 = vmatpush1.msra.mxu0 0.0
        %1964 = vmatprep.subr.mxu0 0.0
        %1965 = vmatpush1.msra.mxu0 0.0
        %1966 = vmatprep.subr.mxu0 0.0
        %1967 = vmatpush1.msra.mxu0 0.0
        %1968 = vmatprep.subr.mxu0 0.0
        %1969 = vmatpush1.msra.mxu0 0.0
        %1970 = vmatprep.subr.mxu0 0.0
        %1971 = vmatpush1.msra.mxu0 0.0
        %1972 = vmatprep.subr.mxu0 0.0
        %1973 = vmatpush1.msra.mxu0 0.0
        %1974 = vmatprep.subr.mxu0 0.0
        %1975 = vmatpush1.msra.mxu0 0.0
        %1976 = vmatprep.subr.mxu0 0.0
        %1977 = vmatpush1.msra.mxu0 0.0
        %1978 = vmatprep.subr.mxu0 0.0
        %1979 = vmatpush1.msra.mxu0 0.0
        %1980 = vmatprep.subr.mxu0 0.0
        %1981 = vmatpush1.msra.mxu0 0.0
        %1982 = vmatprep.subr.mxu0 0.0
        %1983 = vmatpush1.msra.mxu0 0.0
        %1984 = vmatprep.subr.mxu0 0.0
        %1985 = vmatpush1.msra.mxu0 0.0
        %1986 = vmatprep.subr.mxu0 0.0
        %1987 = vmatpush1.msra.mxu0 0.0
        %1988 = vmatprep.subr.mxu0 0.0
        %1989 = vmatpush1.msra.mxu0 0.0
        %1990 = vmatprep.subr.mxu0 0.0
        %1991 = vmatpush1.msra.mxu0 0.0
        %1992 = vmatprep.subr.mxu0 0.0
        %1993 = vmatpush1.msra.mxu0 0.0
        %1994 = vmatprep.subr.mxu0 0.0
        %1995 = vmatpush1.msra.mxu0 0.0
        %1996 = vmatprep.subr.mxu0 0.0
        %1997 = vmatpush1.msra.mxu0 0.0
        %1998 = vmatprep.subr.mxu0 0.0
        %1999 = vmatpush1.msra.mxu0 0.0
        %2000 = vmatprep.subr.mxu0 0.0
        %2001 = vmatpush1.msra.mxu0 0.0
        %2002 = vmatprep.subr.mxu0 0.0
        %2003 = vmatpush1.msra.mxu0 0.0
        %2004 = vmatprep.subr.mxu0 0.0
        %2005 = vmatpush1.msra.mxu0 0.0
        %2006 = vmatprep.mubr.f32.mxu0 0.0
        %v2007 = vand.u32 %v388, 4294901760
        %v2008 = vsub.f32 %v388, %v2007
        %2009 = vmatmul.mubr.f32.gmra.mrb[0].mxu0 %v2008
        %v2010 = vpop.f32.mrb[0].mxu0
        %v2011 = vadd.f32 %v1935, %v2010
        %v2012 = vpop.f32.mrb[0].mxu0
        %2013 = vdwg.mxu0
        %2014 = vmatprep.subr.mxu0 0.0
        %v2015 = vand.u32 %v363, 4294901760
        %2016 = vmatpush1.msra.mxu0 %v2015
        %2017 = vmatprep.subr.mxu0 0.0
        %v2018 = vand.u32 %v1778, 4294901760
        %2019 = vmatpush1.msra.mxu0 %v2018
        %2020 = vmatprep.subr.mxu0 0.0
        %2021 = vmatpush1.msra.mxu0 0.0
        %2022 = vmatprep.subr.mxu0 0.0
        %2023 = vmatpush1.msra.mxu0 0.0
        %2024 = vmatprep.subr.mxu0 0.0
        %2025 = vmatpush1.msra.mxu0 0.0
        %2026 = vmatprep.subr.mxu0 0.0
        %2027 = vmatpush1.msra.mxu0 0.0
        %2028 = vmatprep.subr.mxu0 0.0
        %2029 = vmatpush1.msra.mxu0 0.0
        %2030 = vmatprep.subr.mxu0 0.0
        %2031 = vmatpush1.msra.mxu0 0.0
        %2032 = vmatprep.subr.mxu0 0.0
        %2033 = vmatpush1.msra.mxu0 0.0
        %2034 = vmatprep.subr.mxu0 0.0
        %2035 = vmatpush1.msra.mxu0 0.0
        %2036 = vmatprep.subr.mxu0 0.0
        %2037 = vmatpush1.msra.mxu0 0.0
        %2038 = vmatprep.subr.mxu0 0.0
        %2039 = vmatpush1.msra.mxu0 0.0
        %2040 = vmatprep.subr.mxu0 0.0
        %2041 = vmatpush1.msra.mxu0 0.0
        %2042 = vmatprep.subr.mxu0 0.0
        %2043 = vmatpush1.msra.mxu0 0.0
        %2044 = vmatprep.subr.mxu0 0.0
        %2045 = vmatpush1.msra.mxu0 0.0
        %2046 = vmatprep.subr.mxu0 0.0
        %2047 = vmatpush1.msra.mxu0 0.0
        %2048 = vmatprep.subr.mxu0 0.0
        %2049 = vmatpush1.msra.mxu0 0.0
        %2050 = vmatprep.subr.mxu0 0.0
        %2051 = vmatpush1.msra.mxu0 0.0
        %2052 = vmatprep.subr.mxu0 0.0
        %2053 = vmatpush1.msra.mxu0 0.0
        %2054 = vmatprep.subr.mxu0 0.0
        %2055 = vmatpush1.msra.mxu0 0.0
        %2056 = vmatprep.subr.mxu0 0.0
        %2057 = vmatpush1.msra.mxu0 0.0
        %2058 = vmatprep.subr.mxu0 0.0
        %2059 = vmatpush1.msra.mxu0 0.0
        %2060 = vmatprep.subr.mxu0 0.0
        %2061 = vmatpush1.msra.mxu0 0.0
        %2062 = vmatprep.subr.mxu0 0.0
        %2063 = vmatpush1.msra.mxu0 0.0
        %2064 = vmatprep.subr.mxu0 0.0
        %2065 = vmatpush1.msra.mxu0 0.0
        %2066 = vmatprep.subr.mxu0 0.0
        %2067 = vmatpush1.msra.mxu0 0.0
        %2068 = vmatprep.subr.mxu0 0.0
        %2069 = vmatpush1.msra.mxu0 0.0
        %2070 = vmatprep.subr.mxu0 0.0
        %2071 = vmatpush1.msra.mxu0 0.0
        %2072 = vmatprep.subr.mxu0 0.0
        %2073 = vmatpush1.msra.mxu0 0.0
        %2074 = vmatprep.subr.mxu0 0.0
        %2075 = vmatpush1.msra.mxu0 0.0
        %2076 = vmatprep.subr.mxu0 0.0
        %2077 = vmatpush1.msra.mxu0 0.0
        %2078 = vmatprep.subr.mxu0 0.0
        %2079 = vmatpush1.msra.mxu0 0.0
        %2080 = vmatprep.mubr.f32.mxu0 0.0
        %v2081 = vand.u32 %v388, 4294901760
        %v2082 = vsub.f32 %v388, %v2081
        %v2083 = vand.u32 %v2082, 4294901760
        %2084 = vmatmul.mubr.f32.gmra.mrb[0].mxu0 %v2083
        %v2085 = vpop.f32.mrb[0].mxu0
        %v2086 = vadd.f32 %v2011, %v2085
        %v2087 = vpop.f32.mrb[0].mxu0
        %2088 = vdwg.mxu0
        %2089 = vmatprep.subr.mxu0 0.0
        %v2090 = vand.u32 %v363, 4294901760
        %v2091 = vsub.f32 %v363, %v2090
        %v2092 = vand.u32 %v2091, 4294901760
        %2093 = vmatpush1.msra.mxu0 %v2092
        %2094 = vmatprep.subr.mxu0 0.0
        %v2095 = vand.u32 %v1778, 4294901760
        %v2096 = vsub.f32 %v1778, %v2095
        %v2097 = vand.u32 %v2096, 4294901760
        %2098 = vmatpush1.msra.mxu0 %v2097
        %2099 = vmatprep.subr.mxu0 0.0
        %2100 = vmatpush1.msra.mxu0 0.0
        %2101 = vmatprep.subr.mxu0 0.0
        %2102 = vmatpush1.msra.mxu0 0.0
        %2103 = vmatprep.subr.mxu0 0.0
        %2104 = vmatpush1.msra.mxu0 0.0
        %2105 = vmatprep.subr.mxu0 0.0
        %2106 = vmatpush1.msra.mxu0 0.0
        %2107 = vmatprep.subr.mxu0 0.0
        %2108 = vmatpush1.msra.mxu0 0.0
        %2109 = vmatprep.subr.mxu0 0.0
        %2110 = vmatpush1.msra.mxu0 0.0
        %2111 = vmatprep.subr.mxu0 0.0
        %2112 = vmatpush1.msra.mxu0 0.0
        %2113 = vmatprep.subr.mxu0 0.0
        %2114 = vmatpush1.msra.mxu0 0.0
        %2115 = vmatprep.subr.mxu0 0.0
        %2116 = vmatpush1.msra.mxu0 0.0
        %2117 = vmatprep.subr.mxu0 0.0
        %2118 = vmatpush1.msra.mxu0 0.0
        %2119 = vmatprep.subr.mxu0 0.0
        %2120 = vmatpush1.msra.mxu0 0.0
        %2121 = vmatprep.subr.mxu0 0.0
        %2122 = vmatpush1.msra.mxu0 0.0
        %2123 = vmatprep.subr.mxu0 0.0
        %2124 = vmatpush1.msra.mxu0 0.0
        %2125 = vmatprep.subr.mxu0 0.0
        %2126 = vmatpush1.msra.mxu0 0.0
        %2127 = vmatprep.subr.mxu0 0.0
        %2128 = vmatpush1.msra.mxu0 0.0
        %2129 = vmatprep.subr.mxu0 0.0
        %2130 = vmatpush1.msra.mxu0 0.0
        %2131 = vmatprep.subr.mxu0 0.0
        %2132 = vmatpush1.msra.mxu0 0.0
        %2133 = vmatprep.subr.mxu0 0.0
        %2134 = vmatpush1.msra.mxu0 0.0
        %2135 = vmatprep.subr.mxu0 0.0
        %2136 = vmatpush1.msra.mxu0 0.0
        %2137 = vmatprep.subr.mxu0 0.0
        %2138 = vmatpush1.msra.mxu0 0.0
        %2139 = vmatprep.subr.mxu0 0.0
        %2140 = vmatpush1.msra.mxu0 0.0
        %2141 = vmatprep.subr.mxu0 0.0
        %2142 = vmatpush1.msra.mxu0 0.0
        %2143 = vmatprep.subr.mxu0 0.0
        %2144 = vmatpush1.msra.mxu0 0.0
        %2145 = vmatprep.subr.mxu0 0.0
        %2146 = vmatpush1.msra.mxu0 0.0
        %2147 = vmatprep.subr.mxu0 0.0
        %2148 = vmatpush1.msra.mxu0 0.0
        %2149 = vmatprep.subr.mxu0 0.0
        %2150 = vmatpush1.msra.mxu0 0.0
        %2151 = vmatprep.subr.mxu0 0.0
        %2152 = vmatpush1.msra.mxu0 0.0
        %2153 = vmatprep.subr.mxu0 0.0
        %2154 = vmatpush1.msra.mxu0 0.0
        %2155 = vmatprep.subr.mxu0 0.0
        %2156 = vmatpush1.msra.mxu0 0.0
        %2157 = vmatprep.subr.mxu0 0.0
        %2158 = vmatpush1.msra.mxu0 0.0
        %2159 = vmatprep.mubr.f32.mxu0 0.0
        %v2160 = vand.u32 %v388, 4294901760
        %2161 = vmatmul.mubr.f32.gmra.mrb[0].mxu0 %v2160
        %v2162 = vpop.f32.mrb[0].mxu0
        %v2163 = vadd.f32 %v2086, %v2162
        %v2164 = vpop.f32.mrb[0].mxu0
        %2165 = vdwg.mxu0
        %2166 = vmatprep.subr.mxu0 0.0
        %v2167 = vand.u32 %v363, 4294901760
        %2168 = vmatpush1.msra.mxu0 %v2167
        %2169 = vmatprep.subr.mxu0 0.0
        %v2170 = vand.u32 %v1778, 4294901760
        %2171 = vmatpush1.msra.mxu0 %v2170
        %2172 = vmatprep.subr.mxu0 0.0
        %2173 = vmatpush1.msra.mxu0 0.0
        %2174 = vmatprep.subr.mxu0 0.0
        %2175 = vmatpush1.msra.mxu0 0.0
        %2176 = vmatprep.subr.mxu0 0.0
        %2177 = vmatpush1.msra.mxu0 0.0
        %2178 = vmatprep.subr.mxu0 0.0
        %2179 = vmatpush1.msra.mxu0 0.0
        %2180 = vmatprep.subr.mxu0 0.0
        %2181 = vmatpush1.msra.mxu0 0.0
        %2182 = vmatprep.subr.mxu0 0.0
        %2183 = vmatpush1.msra.mxu0 0.0
        %2184 = vmatprep.subr.mxu0 0.0
        %2185 = vmatpush1.msra.mxu0 0.0
        %2186 = vmatprep.subr.mxu0 0.0
        %2187 = vmatpush1.msra.mxu0 0.0
        %2188 = vmatprep.subr.mxu0 0.0
        %2189 = vmatpush1.msra.mxu0 0.0
        %2190 = vmatprep.subr.mxu0 0.0
        %2191 = vmatpush1.msra.mxu0 0.0
        %2192 = vmatprep.subr.mxu0 0.0
        %2193 = vmatpush1.msra.mxu0 0.0
        %2194 = vmatprep.subr.mxu0 0.0
        %2195 = vmatpush1.msra.mxu0 0.0
        %2196 = vmatprep.subr.mxu0 0.0
        %2197 = vmatpush1.msra.mxu0 0.0
        %2198 = vmatprep.subr.mxu0 0.0
        %2199 = vmatpush1.msra.mxu0 0.0
        %2200 = vmatprep.subr.mxu0 0.0
        %2201 = vmatpush1.msra.mxu0 0.0
        %2202 = vmatprep.subr.mxu0 0.0
        %2203 = vmatpush1.msra.mxu0 0.0
        %2204 = vmatprep.subr.mxu0 0.0
        %2205 = vmatpush1.msra.mxu0 0.0
        %2206 = vmatprep.subr.mxu0 0.0
        %2207 = vmatpush1.msra.mxu0 0.0
        %2208 = vmatprep.subr.mxu0 0.0
        %2209 = vmatpush1.msra.mxu0 0.0
        %2210 = vmatprep.subr.mxu0 0.0
        %2211 = vmatpush1.msra.mxu0 0.0
        %2212 = vmatprep.subr.mxu0 0.0
        %2213 = vmatpush1.msra.mxu0 0.0
        %2214 = vmatprep.subr.mxu0 0.0
        %2215 = vmatpush1.msra.mxu0 0.0
        %2216 = vmatprep.subr.mxu0 0.0
        %2217 = vmatpush1.msra.mxu0 0.0
        %2218 = vmatprep.subr.mxu0 0.0
        %2219 = vmatpush1.msra.mxu0 0.0
        %2220 = vmatprep.subr.mxu0 0.0
        %2221 = vmatpush1.msra.mxu0 0.0
        %2222 = vmatprep.subr.mxu0 0.0
        %2223 = vmatpush1.msra.mxu0 0.0
        %2224 = vmatprep.subr.mxu0 0.0
        %2225 = vmatpush1.msra.mxu0 0.0
        %2226 = vmatprep.subr.mxu0 0.0
        %2227 = vmatpush1.msra.mxu0 0.0
        %2228 = vmatprep.subr.mxu0 0.0
        %2229 = vmatpush1.msra.mxu0 0.0
        %2230 = vmatprep.subr.mxu0 0.0
        %2231 = vmatpush1.msra.mxu0 0.0
        %2232 = vmatprep.mubr.f32.mxu0 0.0
        %v2233 = vand.u32 %v388, 4294901760
        %2234 = vmatmul.mubr.f32.gmra.mrb[0].mxu0 %v2233
        %v2235 = vpop.f32.mrb[0].mxu0
        %v2236 = vadd.f32 %v2163, %v2235
        %v2237 = vpop.f32.mrb[0].mxu0
        %2238 = vdwg.mxu0
        %v2240 = vsel %vm390, %v366, 0
        %2242 = vmatprep.subr.mxu0 0.0
        %v2243 = vand.u32 %v365, 4294901760
        %2244 = vmatpush1.msra.mxu0 %v2243
        %2245 = vmatprep.subr.mxu0 0.0
        %v2246 = vand.u32 %v2240, 4294901760
        %2247 = vmatpush1.msra.mxu0 %v2246
        %2248 = vmatprep.subr.mxu0 0.0
        %2249 = vmatpush1.msra.mxu0 0.0
        %2250 = vmatprep.subr.mxu0 0.0
        %2251 = vmatpush1.msra.mxu0 0.0
        %2252 = vmatprep.subr.mxu0 0.0
        %2253 = vmatpush1.msra.mxu0 0.0
        %2254 = vmatprep.subr.mxu0 0.0
        %2255 = vmatpush1.msra.mxu0 0.0
        %2256 = vmatprep.subr.mxu0 0.0
        %2257 = vmatpush1.msra.mxu0 0.0
        %2258 = vmatprep.subr.mxu0 0.0
        %2259 = vmatpush1.msra.mxu0 0.0
        %2260 = vmatprep.subr.mxu0 0.0
        %2261 = vmatpush1.msra.mxu0 0.0
        %2262 = vmatprep.subr.mxu0 0.0
        %2263 = vmatpush1.msra.mxu0 0.0
        %2264 = vmatprep.subr.mxu0 0.0
        %2265 = vmatpush1.msra.mxu0 0.0
        %2266 = vmatprep.subr.mxu0 0.0
        %2267 = vmatpush1.msra.mxu0 0.0
        %2268 = vmatprep.subr.mxu0 0.0
        %2269 = vmatpush1.msra.mxu0 0.0
        %2270 = vmatprep.subr.mxu0 0.0
        %2271 = vmatpush1.msra.mxu0 0.0
        %2272 = vmatprep.subr.mxu0 0.0
        %2273 = vmatpush1.msra.mxu0 0.0
        %2274 = vmatprep.subr.mxu0 0.0
        %2275 = vmatpush1.msra.mxu0 0.0
        %2276 = vmatprep.subr.mxu0 0.0
        %2277 = vmatpush1.msra.mxu0 0.0
        %2278 = vmatprep.subr.mxu0 0.0
        %2279 = vmatpush1.msra.mxu0 0.0
        %2280 = vmatprep.subr.mxu0 0.0
        %2281 = vmatpush1.msra.mxu0 0.0
        %2282 = vmatprep.subr.mxu0 0.0
        %2283 = vmatpush1.msra.mxu0 0.0
        %2284 = vmatprep.subr.mxu0 0.0
        %2285 = vmatpush1.msra.mxu0 0.0
        %2286 = vmatprep.subr.mxu0 0.0
        %2287 = vmatpush1.msra.mxu0 0.0
        %2288 = vmatprep.subr.mxu0 0.0
        %2289 = vmatpush1.msra.mxu0 0.0
        %2290 = vmatprep.subr.mxu0 0.0
        %2291 = vmatpush1.msra.mxu0 0.0
        %2292 = vmatprep.subr.mxu0 0.0
        %2293 = vmatpush1.msra.mxu0 0.0
        %2294 = vmatprep.subr.mxu0 0.0
        %2295 = vmatpush1.msra.mxu0 0.0
        %2296 = vmatprep.subr.mxu0 0.0
        %2297 = vmatpush1.msra.mxu0 0.0
        %2298 = vmatprep.subr.mxu0 0.0
        %2299 = vmatpush1.msra.mxu0 0.0
        %2300 = vmatprep.subr.mxu0 0.0
        %2301 = vmatpush1.msra.mxu0 0.0
        %2302 = vmatprep.subr.mxu0 0.0
        %2303 = vmatpush1.msra.mxu0 0.0
        %2304 = vmatprep.subr.mxu0 0.0
        %2305 = vmatpush1.msra.mxu0 0.0
        %2306 = vmatprep.subr.mxu0 0.0
        %2307 = vmatpush1.msra.mxu0 0.0
        %2308 = vmatprep.mubr.f32.mxu0 0.0
        %v2309 = vand.u32 %v388, 4294901760
        %v2310 = vsub.f32 %v388, %v2309
        %v2311 = vand.u32 %v2310, 4294901760
        %v2312 = vsub.f32 %v2310, %v2311
        %v2313 = vand.u32 %v2312, 4294901760
        %2314 = vmatmul.mubr.f32.gmra.mrb[0].mxu0 %v2313
        %v2315 = vpop.f32.mrb[0].mxu0
        %v2316 = vadd.f32 0.0, %v2315
        %v2317 = vpop.f32.mrb[0].mxu0
        %2318 = vdwg.mxu0
        %2319 = vmatprep.subr.mxu0 0.0
        %v2320 = vand.u32 %v365, 4294901760
        %v2321 = vsub.f32 %v365, %v2320
        %v2322 = vand.u32 %v2321, 4294901760
        %v2323 = vsub.f32 %v2321, %v2322
        %v2324 = vand.u32 %v2323, 4294901760
        %2325 = vmatpush1.msra.mxu0 %v2324
        %2326 = vmatprep.subr.mxu0 0.0
        %v2327 = vand.u32 %v2240, 4294901760
        %v2328 = vsub.f32 %v2240, %v2327
        %v2329 = vand.u32 %v2328, 4294901760
        %v2330 = vsub.f32 %v2328, %v2329
        %v2331 = vand.u32 %v2330, 4294901760
        %2332 = vmatpush1.msra.mxu0 %v2331
        %2333 = vmatprep.subr.mxu0 0.0
        %2334 = vmatpush1.msra.mxu0 0.0
        %2335 = vmatprep.subr.mxu0 0.0
        %2336 = vmatpush1.msra.mxu0 0.0
        %2337 = vmatprep.subr.mxu0 0.0
        %2338 = vmatpush1.msra.mxu0 0.0
        %2339 = vmatprep.subr.mxu0 0.0
        %2340 = vmatpush1.msra.mxu0 0.0
        %2341 = vmatprep.subr.mxu0 0.0
        %2342 = vmatpush1.msra.mxu0 0.0
        %2343 = vmatprep.subr.mxu0 0.0
        %2344 = vmatpush1.msra.mxu0 0.0
        %2345 = vmatprep.subr.mxu0 0.0
        %2346 = vmatpush1.msra.mxu0 0.0
        %2347 = vmatprep.subr.mxu0 0.0
        %2348 = vmatpush1.msra.mxu0 0.0
        %2349 = vmatprep.subr.mxu0 0.0
        %2350 = vmatpush1.msra.mxu0 0.0
        %2351 = vmatprep.subr.mxu0 0.0
        %2352 = vmatpush1.msra.mxu0 0.0
        %2353 = vmatprep.subr.mxu0 0.0
        %2354 = vmatpush1.msra.mxu0 0.0
        %2355 = vmatprep.subr.mxu0 0.0
        %2356 = vmatpush1.msra.mxu0 0.0
        %2357 = vmatprep.subr.mxu0 0.0
        %2358 = vmatpush1.msra.mxu0 0.0
        %2359 = vmatprep.subr.mxu0 0.0
        %2360 = vmatpush1.msra.mxu0 0.0
        %2361 = vmatprep.subr.mxu0 0.0
        %2362 = vmatpush1.msra.mxu0 0.0
        %2363 = vmatprep.subr.mxu0 0.0
        %2364 = vmatpush1.msra.mxu0 0.0
        %2365 = vmatprep.subr.mxu0 0.0
        %2366 = vmatpush1.msra.mxu0 0.0
        %2367 = vmatprep.subr.mxu0 0.0
        %2368 = vmatpush1.msra.mxu0 0.0
        %2369 = vmatprep.subr.mxu0 0.0
        %2370 = vmatpush1.msra.mxu0 0.0
        %2371 = vmatprep.subr.mxu0 0.0
        %2372 = vmatpush1.msra.mxu0 0.0
        %2373 = vmatprep.subr.mxu0 0.0
        %2374 = vmatpush1.msra.mxu0 0.0
        %2375 = vmatprep.subr.mxu0 0.0
        %2376 = vmatpush1.msra.mxu0 0.0
        %2377 = vmatprep.subr.mxu0 0.0
        %2378 = vmatpush1.msra.mxu0 0.0
        %2379 = vmatprep.subr.mxu0 0.0
        %2380 = vmatpush1.msra.mxu0 0.0
        %2381 = vmatprep.subr.mxu0 0.0
        %2382 = vmatpush1.msra.mxu0 0.0
        %2383 = vmatprep.subr.mxu0 0.0
        %2384 = vmatpush1.msra.mxu0 0.0
        %2385 = vmatprep.subr.mxu0 0.0
        %2386 = vmatpush1.msra.mxu0 0.0
        %2387 = vmatprep.subr.mxu0 0.0
        %2388 = vmatpush1.msra.mxu0 0.0
        %2389 = vmatprep.subr.mxu0 0.0
        %2390 = vmatpush1.msra.mxu0 0.0
        %2391 = vmatprep.subr.mxu0 0.0
        %2392 = vmatpush1.msra.mxu0 0.0
        %2393 = vmatprep.mubr.f32.mxu0 0.0
        %v2394 = vand.u32 %v388, 4294901760
        %2395 = vmatmul.mubr.f32.gmra.mrb[0].mxu0 %v2394
        %v2396 = vpop.f32.mrb[0].mxu0
        %v2397 = vadd.f32 %v2316, %v2396
        %v2398 = vpop.f32.mrb[0].mxu0
        %2399 = vdwg.mxu0
        %2400 = vmatprep.subr.mxu0 0.0
        %v2401 = vand.u32 %v365, 4294901760
        %v2402 = vsub.f32 %v365, %v2401
        %2403 = vmatpush1.msra.mxu0 %v2402
        %2404 = vmatprep.subr.mxu0 0.0
        %v2405 = vand.u32 %v2240, 4294901760
        %v2406 = vsub.f32 %v2240, %v2405
        %2407 = vmatpush1.msra.mxu0 %v2406
        %2408 = vmatprep.subr.mxu0 0.0
        %2409 = vmatpush1.msra.mxu0 0.0
        %2410 = vmatprep.subr.mxu0 0.0
        %2411 = vmatpush1.msra.mxu0 0.0
        %2412 = vmatprep.subr.mxu0 0.0
        %2413 = vmatpush1.msra.mxu0 0.0
        %2414 = vmatprep.subr.mxu0 0.0
        %2415 = vmatpush1.msra.mxu0 0.0
        %2416 = vmatprep.subr.mxu0 0.0
        %2417 = vmatpush1.msra.mxu0 0.0
        %2418 = vmatprep.subr.mxu0 0.0
        %2419 = vmatpush1.msra.mxu0 0.0
        %2420 = vmatprep.subr.mxu0 0.0
        %2421 = vmatpush1.msra.mxu0 0.0
        %2422 = vmatprep.subr.mxu0 0.0
        %2423 = vmatpush1.msra.mxu0 0.0
        %2424 = vmatprep.subr.mxu0 0.0
        %2425 = vmatpush1.msra.mxu0 0.0
        %2426 = vmatprep.subr.mxu0 0.0
        %2427 = vmatpush1.msra.mxu0 0.0
        %2428 = vmatprep.subr.mxu0 0.0
        %2429 = vmatpush1.msra.mxu0 0.0
        %2430 = vmatprep.subr.mxu0 0.0
        %2431 = vmatpush1.msra.mxu0 0.0
        %2432 = vmatprep.subr.mxu0 0.0
        %2433 = vmatpush1.msra.mxu0 0.0
        %2434 = vmatprep.subr.mxu0 0.0
        %2435 = vmatpush1.msra.mxu0 0.0
        %2436 = vmatprep.subr.mxu0 0.0
        %2437 = vmatpush1.msra.mxu0 0.0
        %2438 = vmatprep.subr.mxu0 0.0
        %2439 = vmatpush1.msra.mxu0 0.0
        %2440 = vmatprep.subr.mxu0 0.0
        %2441 = vmatpush1.msra.mxu0 0.0
        %2442 = vmatprep.subr.mxu0 0.0
        %2443 = vmatpush1.msra.mxu0 0.0
        %2444 = vmatprep.subr.mxu0 0.0
        %2445 = vmatpush1.msra.mxu0 0.0
        %2446 = vmatprep.subr.mxu0 0.0
        %2447 = vmatpush1.msra.mxu0 0.0
        %2448 = vmatprep.subr.mxu0 0.0
        %2449 = vmatpush1.msra.mxu0 0.0
        %2450 = vmatprep.subr.mxu0 0.0
        %2451 = vmatpush1.msra.mxu0 0.0
        %2452 = vmatprep.subr.mxu0 0.0
        %2453 = vmatpush1.msra.mxu0 0.0
        %2454 = vmatprep.subr.mxu0 0.0
        %2455 = vmatpush1.msra.mxu0 0.0
        %2456 = vmatprep.subr.mxu0 0.0
        %2457 = vmatpush1.msra.mxu0 0.0
        %2458 = vmatprep.subr.mxu0 0.0
        %2459 = vmatpush1.msra.mxu0 0.0
        %2460 = vmatprep.subr.mxu0 0.0
        %2461 = vmatpush1.msra.mxu0 0.0
        %2462 = vmatprep.subr.mxu0 0.0
        %2463 = vmatpush1.msra.mxu0 0.0
        %2464 = vmatprep.subr.mxu0 0.0
        %2465 = vmatpush1.msra.mxu0 0.0
        %2466 = vmatprep.subr.mxu0 0.0
        %2467 = vmatpush1.msra.mxu0 0.0
        %2468 = vmatprep.mubr.f32.mxu0 0.0
        %v2469 = vand.u32 %v388, 4294901760
        %v2470 = vsub.f32 %v388, %v2469
        %2471 = vmatmul.mubr.f32.gmra.mrb[0].mxu0 %v2470
        %v2472 = vpop.f32.mrb[0].mxu0
        %v2473 = vadd.f32 %v2397, %v2472
        %v2474 = vpop.f32.mrb[0].mxu0
        %2475 = vdwg.mxu0
        %2476 = vmatprep.subr.mxu0 0.0
        %v2477 = vand.u32 %v365, 4294901760
        %2478 = vmatpush1.msra.mxu0 %v2477
        %2479 = vmatprep.subr.mxu0 0.0
        %v2480 = vand.u32 %v2240, 4294901760
        %2481 = vmatpush1.msra.mxu0 %v2480
        %2482 = vmatprep.subr.mxu0 0.0
        %2483 = vmatpush1.msra.mxu0 0.0
        %2484 = vmatprep.subr.mxu0 0.0
        %2485 = vmatpush1.msra.mxu0 0.0
        %2486 = vmatprep.subr.mxu0 0.0
        %2487 = vmatpush1.msra.mxu0 0.0
        %2488 = vmatprep.subr.mxu0 0.0
        %2489 = vmatpush1.msra.mxu0 0.0
        %2490 = vmatprep.subr.mxu0 0.0
        %2491 = vmatpush1.msra.mxu0 0.0
        %2492 = vmatprep.subr.mxu0 0.0
        %2493 = vmatpush1.msra.mxu0 0.0
        %2494 = vmatprep.subr.mxu0 0.0
        %2495 = vmatpush1.msra.mxu0 0.0
        %2496 = vmatprep.subr.mxu0 0.0
        %2497 = vmatpush1.msra.mxu0 0.0
        %2498 = vmatprep.subr.mxu0 0.0
        %2499 = vmatpush1.msra.mxu0 0.0
        %2500 = vmatprep.subr.mxu0 0.0
        %2501 = vmatpush1.msra.mxu0 0.0
        %2502 = vmatprep.subr.mxu0 0.0
        %2503 = vmatpush1.msra.mxu0 0.0
        %2504 = vmatprep.subr.mxu0 0.0
        %2505 = vmatpush1.msra.mxu0 0.0
        %2506 = vmatprep.subr.mxu0 0.0
        %2507 = vmatpush1.msra.mxu0 0.0
        %2508 = vmatprep.subr.mxu0 0.0
        %2509 = vmatpush1.msra.mxu0 0.0
        %2510 = vmatprep.subr.mxu0 0.0
        %2511 = vmatpush1.msra.mxu0 0.0
        %2512 = vmatprep.subr.mxu0 0.0
        %2513 = vmatpush1.msra.mxu0 0.0
        %2514 = vmatprep.subr.mxu0 0.0
        %2515 = vmatpush1.msra.mxu0 0.0
        %2516 = vmatprep.subr.mxu0 0.0
        %2517 = vmatpush1.msra.mxu0 0.0
        %2518 = vmatprep.subr.mxu0 0.0
        %2519 = vmatpush1.msra.mxu0 0.0
        %2520 = vmatprep.subr.mxu0 0.0
        %2521 = vmatpush1.msra.mxu0 0.0
        %2522 = vmatprep.subr.mxu0 0.0
        %2523 = vmatpush1.msra.mxu0 0.0
        %2524 = vmatprep.subr.mxu0 0.0
        %2525 = vmatpush1.msra.mxu0 0.0
        %2526 = vmatprep.subr.mxu0 0.0
        %2527 = vmatpush1.msra.mxu0 0.0
        %2528 = vmatprep.subr.mxu0 0.0
        %2529 = vmatpush1.msra.mxu0 0.0
        %2530 = vmatprep.subr.mxu0 0.0
        %2531 = vmatpush1.msra.mxu0 0.0
        %2532 = vmatprep.subr.mxu0 0.0
        %2533 = vmatpush1.msra.mxu0 0.0
        %2534 = vmatprep.subr.mxu0 0.0
        %2535 = vmatpush1.msra.mxu0 0.0
        %2536 = vmatprep.subr.mxu0 0.0
        %2537 = vmatpush1.msra.mxu0 0.0
        %2538 = vmatprep.subr.mxu0 0.0
        %2539 = vmatpush1.msra.mxu0 0.0
        %2540 = vmatprep.subr.mxu0 0.0
        %2541 = vmatpush1.msra.mxu0 0.0
        %2542 = vmatprep.mubr.f32.mxu0 0.0
        %v2543 = vand.u32 %v388, 4294901760
        %v2544 = vsub.f32 %v388, %v2543
        %v2545 = vand.u32 %v2544, 4294901760
        %2546 = vmatmul.mubr.f32.gmra.mrb[0].mxu0 %v2545
        %v2547 = vpop.f32.mrb[0].mxu0
        %v2548 = vadd.f32 %v2473, %v2547
        %v2549 = vpop.f32.mrb[0].mxu0
        %2550 = vdwg.mxu0
        %2551 = vmatprep.subr.mxu0 0.0
        %v2552 = vand.u32 %v365, 4294901760
        %v2553 = vsub.f32 %v365, %v2552
        %v2554 = vand.u32 %v2553, 4294901760
        %2555 = vmatpush1.msra.mxu0 %v2554
        %2556 = vmatprep.subr.mxu0 0.0
        %v2557 = vand.u32 %v2240, 4294901760
        %v2558 = vsub.f32 %v2240, %v2557
        %v2559 = vand.u32 %v2558, 4294901760
        %2560 = vmatpush1.msra.mxu0 %v2559
        %2561 = vmatprep.subr.mxu0 0.0
        %2562 = vmatpush1.msra.mxu0 0.0
        %2563 = vmatprep.subr.mxu0 0.0
        %2564 = vmatpush1.msra.mxu0 0.0
        %2565 = vmatprep.subr.mxu0 0.0
        %2566 = vmatpush1.msra.mxu0 0.0
        %2567 = vmatprep.subr.mxu0 0.0
        %2568 = vmatpush1.msra.mxu0 0.0
        %2569 = vmatprep.subr.mxu0 0.0
        %2570 = vmatpush1.msra.mxu0 0.0
        %2571 = vmatprep.subr.mxu0 0.0
        %2572 = vmatpush1.msra.mxu0 0.0
        %2573 = vmatprep.subr.mxu0 0.0
        %2574 = vmatpush1.msra.mxu0 0.0
        %2575 = vmatprep.subr.mxu0 0.0
        %2576 = vmatpush1.msra.mxu0 0.0
        %2577 = vmatprep.subr.mxu0 0.0
        %2578 = vmatpush1.msra.mxu0 0.0
        %2579 = vmatprep.subr.mxu0 0.0
        %2580 = vmatpush1.msra.mxu0 0.0
        %2581 = vmatprep.subr.mxu0 0.0
        %2582 = vmatpush1.msra.mxu0 0.0
        %2583 = vmatprep.subr.mxu0 0.0
        %2584 = vmatpush1.msra.mxu0 0.0
        %2585 = vmatprep.subr.mxu0 0.0
        %2586 = vmatpush1.msra.mxu0 0.0
        %2587 = vmatprep.subr.mxu0 0.0
        %2588 = vmatpush1.msra.mxu0 0.0
        %2589 = vmatprep.subr.mxu0 0.0
        %2590 = vmatpush1.msra.mxu0 0.0
        %2591 = vmatprep.subr.mxu0 0.0
        %2592 = vmatpush1.msra.mxu0 0.0
        %2593 = vmatprep.subr.mxu0 0.0
        %2594 = vmatpush1.msra.mxu0 0.0
        %2595 = vmatprep.subr.mxu0 0.0
        %2596 = vmatpush1.msra.mxu0 0.0
        %2597 = vmatprep.subr.mxu0 0.0
        %2598 = vmatpush1.msra.mxu0 0.0
        %2599 = vmatprep.subr.mxu0 0.0
        %2600 = vmatpush1.msra.mxu0 0.0
        %2601 = vmatprep.subr.mxu0 0.0
        %2602 = vmatpush1.msra.mxu0 0.0
        %2603 = vmatprep.subr.mxu0 0.0
        %2604 = vmatpush1.msra.mxu0 0.0
        %2605 = vmatprep.subr.mxu0 0.0
        %2606 = vmatpush1.msra.mxu0 0.0
        %2607 = vmatprep.subr.mxu0 0.0
        %2608 = vmatpush1.msra.mxu0 0.0
        %2609 = vmatprep.subr.mxu0 0.0
        %2610 = vmatpush1.msra.mxu0 0.0
        %2611 = vmatprep.subr.mxu0 0.0
        %2612 = vmatpush1.msra.mxu0 0.0
        %2613 = vmatprep.subr.mxu0 0.0
        %2614 = vmatpush1.msra.mxu0 0.0
        %2615 = vmatprep.subr.mxu0 0.0
        %2616 = vmatpush1.msra.mxu0 0.0
        %2617 = vmatprep.subr.mxu0 0.0
        %2618 = vmatpush1.msra.mxu0 0.0
        %2619 = vmatprep.subr.mxu0 0.0
        %2620 = vmatpush1.msra.mxu0 0.0
        %2621 = vmatprep.mubr.f32.mxu0 0.0
        %v2622 = vand.u32 %v388, 4294901760
        %2623 = vmatmul.mubr.f32.gmra.mrb[0].mxu0 %v2622
        %v2624 = vpop.f32.mrb[0].mxu0
        %v2625 = vadd.f32 %v2548, %v2624
        %v2626 = vpop.f32.mrb[0].mxu0
        %2627 = vdwg.mxu0
        %2628 = vmatprep.subr.mxu0 0.0
        %v2629 = vand.u32 %v365, 4294901760
        %2630 = vmatpush1.msra.mxu0 %v2629
        %2631 = vmatprep.subr.mxu0 0.0
        %v2632 = vand.u32 %v2240, 4294901760
        %2633 = vmatpush1.msra.mxu0 %v2632
        %2634 = vmatprep.subr.mxu0 0.0
        %2635 = vmatpush1.msra.mxu0 0.0
        %2636 = vmatprep.subr.mxu0 0.0
        %2637 = vmatpush1.msra.mxu0 0.0
        %2638 = vmatprep.subr.mxu0 0.0
        %2639 = vmatpush1.msra.mxu0 0.0
        %2640 = vmatprep.subr.mxu0 0.0
        %2641 = vmatpush1.msra.mxu0 0.0
        %2642 = vmatprep.subr.mxu0 0.0
        %2643 = vmatpush1.msra.mxu0 0.0
        %2644 = vmatprep.subr.mxu0 0.0
        %2645 = vmatpush1.msra.mxu0 0.0
        %2646 = vmatprep.subr.mxu0 0.0
        %2647 = vmatpush1.msra.mxu0 0.0
        %2648 = vmatprep.subr.mxu0 0.0
        %2649 = vmatpush1.msra.mxu0 0.0
        %2650 = vmatprep.subr.mxu0 0.0
        %2651 = vmatpush1.msra.mxu0 0.0
        %2652 = vmatprep.subr.mxu0 0.0
        %2653 = vmatpush1.msra.mxu0 0.0
        %2654 = vmatprep.subr.mxu0 0.0
        %2655 = vmatpush1.msra.mxu0 0.0
        %2656 = vmatprep.subr.mxu0 0.0
        %2657 = vmatpush1.msra.mxu0 0.0
        %2658 = vmatprep.subr.mxu0 0.0
        %2659 = vmatpush1.msra.mxu0 0.0
        %2660 = vmatprep.subr.mxu0 0.0
        %2661 = vmatpush1.msra.mxu0 0.0
        %2662 = vmatprep.subr.mxu0 0.0
        %2663 = vmatpush1.msra.mxu0 0.0
        %2664 = vmatprep.subr.mxu0 0.0
        %2665 = vmatpush1.msra.mxu0 0.0
        %2666 = vmatprep.subr.mxu0 0.0
        %2667 = vmatpush1.msra.mxu0 0.0
        %2668 = vmatprep.subr.mxu0 0.0
        %2669 = vmatpush1.msra.mxu0 0.0
        %2670 = vmatprep.subr.mxu0 0.0
        %2671 = vmatpush1.msra.mxu0 0.0
        %2672 = vmatprep.subr.mxu0 0.0
        %2673 = vmatpush1.msra.mxu0 0.0
        %2674 = vmatprep.subr.mxu0 0.0
        %2675 = vmatpush1.msra.mxu0 0.0
        %2676 = vmatprep.subr.mxu0 0.0
        %2677 = vmatpush1.msra.mxu0 0.0
        %2678 = vmatprep.subr.mxu0 0.0
        %2679 = vmatpush1.msra.mxu0 0.0
        %2680 = vmatprep.subr.mxu0 0.0
        %2681 = vmatpush1.msra.mxu0 0.0
        %2682 = vmatprep.subr.mxu0 0.0
        %2683 = vmatpush1.msra.mxu0 0.0
        %2684 = vmatprep.subr.mxu0 0.0
        %2685 = vmatpush1.msra.mxu0 0.0
        %2686 = vmatprep.subr.mxu0 0.0
        %2687 = vmatpush1.msra.mxu0 0.0
        %2688 = vmatprep.subr.mxu0 0.0
        %2689 = vmatpush1.msra.mxu0 0.0
        %2690 = vmatprep.subr.mxu0 0.0
        %2691 = vmatpush1.msra.mxu0 0.0
        %2692 = vmatprep.subr.mxu0 0.0
        %2693 = vmatpush1.msra.mxu0 0.0
        %2694 = vmatprep.mubr.f32.mxu0 0.0
        %v2695 = vand.u32 %v388, 4294901760
        %2696 = vmatmul.mubr.f32.gmra.mrb[0].mxu0 %v2695
        %v2697 = vpop.f32.mrb[0].mxu0
        %v2698 = vadd.f32 %v2625, %v2697
        %v2699 = vpop.f32.mrb[0].mxu0
        %2700 = vdwg.mxu0
        %v2702 = vsel %vm390, %v368, 0
        %2704 = vmatprep.subr.mxu0 0.0
        %v2705 = vand.u32 %v367, 4294901760
        %2706 = vmatpush1.msra.mxu0 %v2705
        %2707 = vmatprep.subr.mxu0 0.0
        %v2708 = vand.u32 %v2702, 4294901760
        %2709 = vmatpush1.msra.mxu0 %v2708
        %2710 = vmatprep.subr.mxu0 0.0
        %2711 = vmatpush1.msra.mxu0 0.0
        %2712 = vmatprep.subr.mxu0 0.0
        %2713 = vmatpush1.msra.mxu0 0.0
        %2714 = vmatprep.subr.mxu0 0.0
        %2715 = vmatpush1.msra.mxu0 0.0
        %2716 = vmatprep.subr.mxu0 0.0
        %2717 = vmatpush1.msra.mxu0 0.0
        %2718 = vmatprep.subr.mxu0 0.0
        %2719 = vmatpush1.msra.mxu0 0.0
        %2720 = vmatprep.subr.mxu0 0.0
        %2721 = vmatpush1.msra.mxu0 0.0
        %2722 = vmatprep.subr.mxu0 0.0
        %2723 = vmatpush1.msra.mxu0 0.0
        %2724 = vmatprep.subr.mxu0 0.0
        %2725 = vmatpush1.msra.mxu0 0.0
        %2726 = vmatprep.subr.mxu0 0.0
        %2727 = vmatpush1.msra.mxu0 0.0
        %2728 = vmatprep.subr.mxu0 0.0
        %2729 = vmatpush1.msra.mxu0 0.0
        %2730 = vmatprep.subr.mxu0 0.0
        %2731 = vmatpush1.msra.mxu0 0.0
        %2732 = vmatprep.subr.mxu0 0.0
        %2733 = vmatpush1.msra.mxu0 0.0
        %2734 = vmatprep.subr.mxu0 0.0
        %2735 = vmatpush1.msra.mxu0 0.0
        %2736 = vmatprep.subr.mxu0 0.0
        %2737 = vmatpush1.msra.mxu0 0.0
        %2738 = vmatprep.subr.mxu0 0.0
        %2739 = vmatpush1.msra.mxu0 0.0
        %2740 = vmatprep.subr.mxu0 0.0
        %2741 = vmatpush1.msra.mxu0 0.0
        %2742 = vmatprep.subr.mxu0 0.0
        %2743 = vmatpush1.msra.mxu0 0.0
        %2744 = vmatprep.subr.mxu0 0.0
        %2745 = vmatpush1.msra.mxu0 0.0
        %2746 = vmatprep.subr.mxu0 0.0
        %2747 = vmatpush1.msra.mxu0 0.0
        %2748 = vmatprep.subr.mxu0 0.0
        %2749 = vmatpush1.msra.mxu0 0.0
        %2750 = vmatprep.subr.mxu0 0.0
        %2751 = vmatpush1.msra.mxu0 0.0
        %2752 = vmatprep.subr.mxu0 0.0
        %2753 = vmatpush1.msra.mxu0 0.0
        %2754 = vmatprep.subr.mxu0 0.0
        %2755 = vmatpush1.msra.mxu0 0.0
        %2756 = vmatprep.subr.mxu0 0.0
        %2757 = vmatpush1.msra.mxu0 0.0
        %2758 = vmatprep.subr.mxu0 0.0
        %2759 = vmatpush1.msra.mxu0 0.0
        %2760 = vmatprep.subr.mxu0 0.0
        %2761 = vmatpush1.msra.mxu0 0.0
        %2762 = vmatprep.subr.mxu0 0.0
        %2763 = vmatpush1.msra.mxu0 0.0
        %2764 = vmatprep.subr.mxu0 0.0
        %2765 = vmatpush1.msra.mxu0 0.0
        %2766 = vmatprep.subr.mxu0 0.0
        %2767 = vmatpush1.msra.mxu0 0.0
        %2768 = vmatprep.subr.mxu0 0.0
        %2769 = vmatpush1.msra.mxu0 0.0
        %2770 = vmatprep.mubr.f32.mxu0 0.0
        %v2771 = vand.u32 %v388, 4294901760
        %v2772 = vsub.f32 %v388, %v2771
        %v2773 = vand.u32 %v2772, 4294901760
        %v2774 = vsub.f32 %v2772, %v2773
        %v2775 = vand.u32 %v2774, 4294901760
        %2776 = vmatmul.mubr.f32.gmra.mrb[0].mxu0 %v2775
        %v2777 = vpop.f32.mrb[0].mxu0
        %v2778 = vadd.f32 0.0, %v2777
        %v2779 = vpop.f32.mrb[0].mxu0
        %2780 = vdwg.mxu0
        %2781 = vmatprep.subr.mxu0 0.0
        %v2782 = vand.u32 %v367, 4294901760
        %v2783 = vsub.f32 %v367, %v2782
        %v2784 = vand.u32 %v2783, 4294901760
        %v2785 = vsub.f32 %v2783, %v2784
        %v2786 = vand.u32 %v2785, 4294901760
        %2787 = vmatpush1.msra.mxu0 %v2786
        %2788 = vmatprep.subr.mxu0 0.0
        %v2789 = vand.u32 %v2702, 4294901760
        %v2790 = vsub.f32 %v2702, %v2789
        %v2791 = vand.u32 %v2790, 4294901760
        %v2792 = vsub.f32 %v2790, %v2791
        %v2793 = vand.u32 %v2792, 4294901760
        %2794 = vmatpush1.msra.mxu0 %v2793
        %2795 = vmatprep.subr.mxu0 0.0
        %2796 = vmatpush1.msra.mxu0 0.0
        %2797 = vmatprep.subr.mxu0 0.0
        %2798 = vmatpush1.msra.mxu0 0.0
        %2799 = vmatprep.subr.mxu0 0.0
        %2800 = vmatpush1.msra.mxu0 0.0
        %2801 = vmatprep.subr.mxu0 0.0
        %2802 = vmatpush1.msra.mxu0 0.0
        %2803 = vmatprep.subr.mxu0 0.0
        %2804 = vmatpush1.msra.mxu0 0.0
        %2805 = vmatprep.subr.mxu0 0.0
        %2806 = vmatpush1.msra.mxu0 0.0
        %2807 = vmatprep.subr.mxu0 0.0
        %2808 = vmatpush1.msra.mxu0 0.0
        %2809 = vmatprep.subr.mxu0 0.0
        %2810 = vmatpush1.msra.mxu0 0.0
        %2811 = vmatprep.subr.mxu0 0.0
        %2812 = vmatpush1.msra.mxu0 0.0
        %2813 = vmatprep.subr.mxu0 0.0
        %2814 = vmatpush1.msra.mxu0 0.0
        %2815 = vmatprep.subr.mxu0 0.0
        %2816 = vmatpush1.msra.mxu0 0.0
        %2817 = vmatprep.subr.mxu0 0.0
        %2818 = vmatpush1.msra.mxu0 0.0
        %2819 = vmatprep.subr.mxu0 0.0
        %2820 = vmatpush1.msra.mxu0 0.0
        %2821 = vmatprep.subr.mxu0 0.0
        %2822 = vmatpush1.msra.mxu0 0.0
        %2823 = vmatprep.subr.mxu0 0.0
        %2824 = vmatpush1.msra.mxu0 0.0
        %2825 = vmatprep.subr.mxu0 0.0
        %2826 = vmatpush1.msra.mxu0 0.0
        %2827 = vmatprep.subr.mxu0 0.0
        %2828 = vmatpush1.msra.mxu0 0.0
        %2829 = vmatprep.subr.mxu0 0.0
        %2830 = vmatpush1.msra.mxu0 0.0
        %2831 = vmatprep.subr.mxu0 0.0
        %2832 = vmatpush1.msra.mxu0 0.0
        %2833 = vmatprep.subr.mxu0 0.0
        %2834 = vmatpush1.msra.mxu0 0.0
        %2835 = vmatprep.subr.mxu0 0.0
        %2836 = vmatpush1.msra.mxu0 0.0
        %2837 = vmatprep.subr.mxu0 0.0
        %2838 = vmatpush1.msra.mxu0 0.0
        %2839 = vmatprep.subr.mxu0 0.0
        %2840 = vmatpush1.msra.mxu0 0.0
        %2841 = vmatprep.subr.mxu0 0.0
        %2842 = vmatpush1.msra.mxu0 0.0
        %2843 = vmatprep.subr.mxu0 0.0
        %2844 = vmatpush1.msra.mxu0 0.0
        %2845 = vmatprep.subr.mxu0 0.0
        %2846 = vmatpush1.msra.mxu0 0.0
        %2847 = vmatprep.subr.mxu0 0.0
        %2848 = vmatpush1.msra.mxu0 0.0
        %2849 = vmatprep.subr.mxu0 0.0
        %2850 = vmatpush1.msra.mxu0 0.0
        %2851 = vmatprep.subr.mxu0 0.0
        %2852 = vmatpush1.msra.mxu0 0.0
        %2853 = vmatprep.subr.mxu0 0.0
        %2854 = vmatpush1.msra.mxu0 0.0
        %2855 = vmatprep.mubr.f32.mxu0 0.0
        %v2856 = vand.u32 %v388, 4294901760
        %2857 = vmatmul.mubr.f32.gmra.mrb[0].mxu0 %v2856
        %v2858 = vpop.f32.mrb[0].mxu0
        %v2859 = vadd.f32 %v2778, %v2858
        %v2860 = vpop.f32.mrb[0].mxu0
        %2861 = vdwg.mxu0
        %2862 = vmatprep.subr.mxu0 0.0
        %v2863 = vand.u32 %v367, 4294901760
        %v2864 = vsub.f32 %v367, %v2863
        %2865 = vmatpush1.msra.mxu0 %v2864
        %2866 = vmatprep.subr.mxu0 0.0
        %v2867 = vand.u32 %v2702, 4294901760
        %v2868 = vsub.f32 %v2702, %v2867
        %2869 = vmatpush1.msra.mxu0 %v2868
        %2870 = vmatprep.subr.mxu0 0.0
        %2871 = vmatpush1.msra.mxu0 0.0
        %2872 = vmatprep.subr.mxu0 0.0
        %2873 = vmatpush1.msra.mxu0 0.0
        %2874 = vmatprep.subr.mxu0 0.0
        %2875 = vmatpush1.msra.mxu0 0.0
        %2876 = vmatprep.subr.mxu0 0.0
        %2877 = vmatpush1.msra.mxu0 0.0
        %2878 = vmatprep.subr.mxu0 0.0
        %2879 = vmatpush1.msra.mxu0 0.0
        %2880 = vmatprep.subr.mxu0 0.0
        %2881 = vmatpush1.msra.mxu0 0.0
        %2882 = vmatprep.subr.mxu0 0.0
        %2883 = vmatpush1.msra.mxu0 0.0
        %2884 = vmatprep.subr.mxu0 0.0
        %2885 = vmatpush1.msra.mxu0 0.0
        %2886 = vmatprep.subr.mxu0 0.0
        %2887 = vmatpush1.msra.mxu0 0.0
        %2888 = vmatprep.subr.mxu0 0.0
        %2889 = vmatpush1.msra.mxu0 0.0
        %2890 = vmatprep.subr.mxu0 0.0
        %2891 = vmatpush1.msra.mxu0 0.0
        %2892 = vmatprep.subr.mxu0 0.0
        %2893 = vmatpush1.msra.mxu0 0.0
        %2894 = vmatprep.subr.mxu0 0.0
        %2895 = vmatpush1.msra.mxu0 0.0
        %2896 = vmatprep.subr.mxu0 0.0
        %2897 = vmatpush1.msra.mxu0 0.0
        %2898 = vmatprep.subr.mxu0 0.0
        %2899 = vmatpush1.msra.mxu0 0.0
        %2900 = vmatprep.subr.mxu0 0.0
        %2901 = vmatpush1.msra.mxu0 0.0
        %2902 = vmatprep.subr.mxu0 0.0
        %2903 = vmatpush1.msra.mxu0 0.0
        %2904 = vmatprep.subr.mxu0 0.0
        %2905 = vmatpush1.msra.mxu0 0.0
        %2906 = vmatprep.subr.mxu0 0.0
        %2907 = vmatpush1.msra.mxu0 0.0
        %2908 = vmatprep.subr.mxu0 0.0
        %2909 = vmatpush1.msra.mxu0 0.0
        %2910 = vmatprep.subr.mxu0 0.0
        %2911 = vmatpush1.msra.mxu0 0.0
        %2912 = vmatprep.subr.mxu0 0.0
        %2913 = vmatpush1.msra.mxu0 0.0
        %2914 = vmatprep.subr.mxu0 0.0
        %2915 = vmatpush1.msra.mxu0 0.0
        %2916 = vmatprep.subr.mxu0 0.0
        %2917 = vmatpush1.msra.mxu0 0.0
        %2918 = vmatprep.subr.mxu0 0.0
        %2919 = vmatpush1.msra.mxu0 0.0
        %2920 = vmatprep.subr.mxu0 0.0
        %2921 = vmatpush1.msra.mxu0 0.0
        %2922 = vmatprep.subr.mxu0 0.0
        %2923 = vmatpush1.msra.mxu0 0.0
        %2924 = vmatprep.subr.mxu0 0.0
        %2925 = vmatpush1.msra.mxu0 0.0
        %2926 = vmatprep.subr.mxu0 0.0
        %2927 = vmatpush1.msra.mxu0 0.0
        %2928 = vmatprep.subr.mxu0 0.0
        %2929 = vmatpush1.msra.mxu0 0.0
        %2930 = vmatprep.mubr.f32.mxu0 0.0
        %v2931 = vand.u32 %v388, 4294901760
        %v2932 = vsub.f32 %v388, %v2931
        %2933 = vmatmul.mubr.f32.gmra.mrb[0].mxu0 %v2932
        %v2934 = vpop.f32.mrb[0].mxu0
        %v2935 = vadd.f32 %v2859, %v2934
        %v2936 = vpop.f32.mrb[0].mxu0
        %2937 = vdwg.mxu0
        %2938 = vmatprep.subr.mxu0 0.0
        %v2939 = vand.u32 %v367, 4294901760
        %2940 = vmatpush1.msra.mxu0 %v2939
        %2941 = vmatprep.subr.mxu0 0.0
        %v2942 = vand.u32 %v2702, 4294901760
        %2943 = vmatpush1.msra.mxu0 %v2942
        %2944 = vmatprep.subr.mxu0 0.0
        %2945 = vmatpush1.msra.mxu0 0.0
        %2946 = vmatprep.subr.mxu0 0.0
        %2947 = vmatpush1.msra.mxu0 0.0
        %2948 = vmatprep.subr.mxu0 0.0
        %2949 = vmatpush1.msra.mxu0 0.0
        %2950 = vmatprep.subr.mxu0 0.0
        %2951 = vmatpush1.msra.mxu0 0.0
        %2952 = vmatprep.subr.mxu0 0.0
        %2953 = vmatpush1.msra.mxu0 0.0
        %2954 = vmatprep.subr.mxu0 0.0
        %2955 = vmatpush1.msra.mxu0 0.0
        %2956 = vmatprep.subr.mxu0 0.0
        %2957 = vmatpush1.msra.mxu0 0.0
        %2958 = vmatprep.subr.mxu0 0.0
        %2959 = vmatpush1.msra.mxu0 0.0
        %2960 = vmatprep.subr.mxu0 0.0
        %2961 = vmatpush1.msra.mxu0 0.0
        %2962 = vmatprep.subr.mxu0 0.0
        %2963 = vmatpush1.msra.mxu0 0.0
        %2964 = vmatprep.subr.mxu0 0.0
        %2965 = vmatpush1.msra.mxu0 0.0
        %2966 = vmatprep.subr.mxu0 0.0
        %2967 = vmatpush1.msra.mxu0 0.0
        %2968 = vmatprep.subr.mxu0 0.0
        %2969 = vmatpush1.msra.mxu0 0.0
        %2970 = vmatprep.subr.mxu0 0.0
        %2971 = vmatpush1.msra.mxu0 0.0
        %2972 = vmatprep.subr.mxu0 0.0
        %2973 = vmatpush1.msra.mxu0 0.0
        %2974 = vmatprep.subr.mxu0 0.0
        %2975 = vmatpush1.msra.mxu0 0.0
        %2976 = vmatprep.subr.mxu0 0.0
        %2977 = vmatpush1.msra.mxu0 0.0
        %2978 = vmatprep.subr.mxu0 0.0
        %2979 = vmatpush1.msra.mxu0 0.0
        %2980 = vmatprep.subr.mxu0 0.0
        %2981 = vmatpush1.msra.mxu0 0.0
        %2982 = vmatprep.subr.mxu0 0.0
        %2983 = vmatpush1.msra.mxu0 0.0
        %2984 = vmatprep.subr.mxu0 0.0
        %2985 = vmatpush1.msra.mxu0 0.0
        %2986 = vmatprep.subr.mxu0 0.0
        %2987 = vmatpush1.msra.mxu0 0.0
        %2988 = vmatprep.subr.mxu0 0.0
        %2989 = vmatpush1.msra.mxu0 0.0
        %2990 = vmatprep.subr.mxu0 0.0
        %2991 = vmatpush1.msra.mxu0 0.0
        %2992 = vmatprep.subr.mxu0 0.0
        %2993 = vmatpush1.msra.mxu0 0.0
        %2994 = vmatprep.subr.mxu0 0.0
        %2995 = vmatpush1.msra.mxu0 0.0
        %2996 = vmatprep.subr.mxu0 0.0
        %2997 = vmatpush1.msra.mxu0 0.0
        %2998 = vmatprep.subr.mxu0 0.0
        %2999 = vmatpush1.msra.mxu0 0.0
        %3000 = vmatprep.subr.mxu0 0.0
        %3001 = vmatpush1.msra.mxu0 0.0
        %3002 = vmatprep.subr.mxu0 0.0
        %3003 = vmatpush1.msra.mxu0 0.0
        %3004 = vmatprep.mubr.f32.mxu0 0.0
        %v3005 = vand.u32 %v388, 4294901760
        %v3006 = vsub.f32 %v388, %v3005
        %v3007 = vand.u32 %v3006, 4294901760
        %3008 = vmatmul.mubr.f32.gmra.mrb[0].mxu0 %v3007
        %v3009 = vpop.f32.mrb[0].mxu0
        %v3010 = vadd.f32 %v2935, %v3009
        %v3011 = vpop.f32.mrb[0].mxu0
        %3012 = vdwg.mxu0
        %3013 = vmatprep.subr.mxu0 0.0
        %v3014 = vand.u32 %v367, 4294901760
        %v3015 = vsub.f32 %v367, %v3014
        %v3016 = vand.u32 %v3015, 4294901760
        %3017 = vmatpush1.msra.mxu0 %v3016
        %3018 = vmatprep.subr.mxu0 0.0
        %v3019 = vand.u32 %v2702, 4294901760
        %v3020 = vsub.f32 %v2702, %v3019
        %v3021 = vand.u32 %v3020, 4294901760
        %3022 = vmatpush1.msra.mxu0 %v3021
        %3023 = vmatprep.subr.mxu0 0.0
        %3024 = vmatpush1.msra.mxu0 0.0
        %3025 = vmatprep.subr.mxu0 0.0
        %3026 = vmatpush1.msra.mxu0 0.0
        %3027 = vmatprep.subr.mxu0 0.0
        %3028 = vmatpush1.msra.mxu0 0.0
        %3029 = vmatprep.subr.mxu0 0.0
        %3030 = vmatpush1.msra.mxu0 0.0
        %3031 = vmatprep.subr.mxu0 0.0
        %3032 = vmatpush1.msra.mxu0 0.0
        %3033 = vmatprep.subr.mxu0 0.0
        %3034 = vmatpush1.msra.mxu0 0.0
        %3035 = vmatprep.subr.mxu0 0.0
        %3036 = vmatpush1.msra.mxu0 0.0
        %3037 = vmatprep.subr.mxu0 0.0
        %3038 = vmatpush1.msra.mxu0 0.0
        %3039 = vmatprep.subr.mxu0 0.0
        %3040 = vmatpush1.msra.mxu0 0.0
        %3041 = vmatprep.subr.mxu0 0.0
        %3042 = vmatpush1.msra.mxu0 0.0
        %3043 = vmatprep.subr.mxu0 0.0
        %3044 = vmatpush1.msra.mxu0 0.0
        %3045 = vmatprep.subr.mxu0 0.0
        %3046 = vmatpush1.msra.mxu0 0.0
        %3047 = vmatprep.subr.mxu0 0.0
        %3048 = vmatpush1.msra.mxu0 0.0
        %3049 = vmatprep.subr.mxu0 0.0
        %3050 = vmatpush1.msra.mxu0 0.0
        %3051 = vmatprep.subr.mxu0 0.0
        %3052 = vmatpush1.msra.mxu0 0.0
        %3053 = vmatprep.subr.mxu0 0.0
        %3054 = vmatpush1.msra.mxu0 0.0
        %3055 = vmatprep.subr.mxu0 0.0
        %3056 = vmatpush1.msra.mxu0 0.0
        %3057 = vmatprep.subr.mxu0 0.0
        %3058 = vmatpush1.msra.mxu0 0.0
        %3059 = vmatprep.subr.mxu0 0.0
        %3060 = vmatpush1.msra.mxu0 0.0
        %3061 = vmatprep.subr.mxu0 0.0
        %3062 = vmatpush1.msra.mxu0 0.0
        %3063 = vmatprep.subr.mxu0 0.0
        %3064 = vmatpush1.msra.mxu0 0.0
        %3065 = vmatprep.subr.mxu0 0.0
        %3066 = vmatpush1.msra.mxu0 0.0
        %3067 = vmatprep.subr.mxu0 0.0
        %3068 = vmatpush1.msra.mxu0 0.0
        %3069 = vmatprep.subr.mxu0 0.0
        %3070 = vmatpush1.msra.mxu0 0.0
        %3071 = vmatprep.subr.mxu0 0.0
        %3072 = vmatpush1.msra.mxu0 0.0
        %3073 = vmatprep.subr.mxu0 0.0
        %3074 = vmatpush1.msra.mxu0 0.0
        %3075 = vmatprep.subr.mxu0 0.0
        %3076 = vmatpush1.msra.mxu0 0.0
        %3077 = vmatprep.subr.mxu0 0.0
        %3078 = vmatpush1.msra.mxu0 0.0
        %3079 = vmatprep.subr.mxu0 0.0
        %3080 = vmatpush1.msra.mxu0 0.0
        %3081 = vmatprep.subr.mxu0 0.0
        %3082 = vmatpush1.msra.mxu0 0.0
        %3083 = vmatprep.mubr.f32.mxu0 0.0
        %v3084 = vand.u32 %v388, 4294901760
        %3085 = vmatmul.mubr.f32.gmra.mrb[0].mxu0 %v3084
        %v3086 = vpop.f32.mrb[0].mxu0
        %v3087 = vadd.f32 %v3010, %v3086
        %v3088 = vpop.f32.mrb[0].mxu0
        %3089 = vdwg.mxu0
        %3090 = vmatprep.subr.mxu0 0.0
        %v3091 = vand.u32 %v367, 4294901760
        %3092 = vmatpush1.msra.mxu0 %v3091
        %3093 = vmatprep.subr.mxu0 0.0
        %v3094 = vand.u32 %v2702, 4294901760
        %3095 = vmatpush1.msra.mxu0 %v3094
        %3096 = vmatprep.subr.mxu0 0.0
        %3097 = vmatpush1.msra.mxu0 0.0
        %3098 = vmatprep.subr.mxu0 0.0
        %3099 = vmatpush1.msra.mxu0 0.0
        %3100 = vmatprep.subr.mxu0 0.0
        %3101 = vmatpush1.msra.mxu0 0.0
        %3102 = vmatprep.subr.mxu0 0.0
        %3103 = vmatpush1.msra.mxu0 0.0
        %3104 = vmatprep.subr.mxu0 0.0
        %3105 = vmatpush1.msra.mxu0 0.0
        %3106 = vmatprep.subr.mxu0 0.0
        %3107 = vmatpush1.msra.mxu0 0.0
        %3108 = vmatprep.subr.mxu0 0.0
        %3109 = vmatpush1.msra.mxu0 0.0
        %3110 = vmatprep.subr.mxu0 0.0
        %3111 = vmatpush1.msra.mxu0 0.0
        %3112 = vmatprep.subr.mxu0 0.0
        %3113 = vmatpush1.msra.mxu0 0.0
        %3114 = vmatprep.subr.mxu0 0.0
        %3115 = vmatpush1.msra.mxu0 0.0
        %3116 = vmatprep.subr.mxu0 0.0
        %3117 = vmatpush1.msra.mxu0 0.0
        %3118 = vmatprep.subr.mxu0 0.0
        %3119 = vmatpush1.msra.mxu0 0.0
        %3120 = vmatprep.subr.mxu0 0.0
        %3121 = vmatpush1.msra.mxu0 0.0
        %3122 = vmatprep.subr.mxu0 0.0
        %3123 = vmatpush1.msra.mxu0 0.0
        %3124 = vmatprep.subr.mxu0 0.0
        %3125 = vmatpush1.msra.mxu0 0.0
        %3126 = vmatprep.subr.mxu0 0.0
        %3127 = vmatpush1.msra.mxu0 0.0
        %3128 = vmatprep.subr.mxu0 0.0
        %3129 = vmatpush1.msra.mxu0 0.0
        %3130 = vmatprep.subr.mxu0 0.0
        %3131 = vmatpush1.msra.mxu0 0.0
        %3132 = vmatprep.subr.mxu0 0.0
        %3133 = vmatpush1.msra.mxu0 0.0
        %3134 = vmatprep.subr.mxu0 0.0
        %3135 = vmatpush1.msra.mxu0 0.0
        %3136 = vmatprep.subr.mxu0 0.0
        %3137 = vmatpush1.msra.mxu0 0.0
        %3138 = vmatprep.subr.mxu0 0.0
        %3139 = vmatpush1.msra.mxu0 0.0
        %3140 = vmatprep.subr.mxu0 0.0
        %3141 = vmatpush1.msra.mxu0 0.0
        %3142 = vmatprep.subr.mxu0 0.0
        %3143 = vmatpush1.msra.mxu0 0.0
        %3144 = vmatprep.subr.mxu0 0.0
        %3145 = vmatpush1.msra.mxu0 0.0
        %3146 = vmatprep.subr.mxu0 0.0
        %3147 = vmatpush1.msra.mxu0 0.0
        %3148 = vmatprep.subr.mxu0 0.0
        %3149 = vmatpush1.msra.mxu0 0.0
        %3150 = vmatprep.subr.mxu0 0.0
        %3151 = vmatpush1.msra.mxu0 0.0
        %3152 = vmatprep.subr.mxu0 0.0
        %3153 = vmatpush1.msra.mxu0 0.0
        %3154 = vmatprep.subr.mxu0 0.0
        %3155 = vmatpush1.msra.mxu0 0.0
        %3156 = vmatprep.mubr.f32.mxu0 0.0
        %v3157 = vand.u32 %v388, 4294901760
        %3158 = vmatmul.mubr.f32.gmra.mrb[0].mxu0 %v3157
        %v3159 = vpop.f32.mrb[0].mxu0
        %v3160 = vadd.f32 %v3087, %v3159
        %v3161 = vpop.f32.mrb[0].mxu0
        %3162 = vdwg.mxu0
        %v3164 = vsel %vm390, %v370, 0
        %3166 = vmatprep.subr.mxu0 0.0
        %v3167 = vand.u32 %v369, 4294901760
        %3168 = vmatpush1.msra.mxu0 %v3167
        %3169 = vmatprep.subr.mxu0 0.0
        %v3170 = vand.u32 %v3164, 4294901760
        %3171 = vmatpush1.msra.mxu0 %v3170
        %3172 = vmatprep.subr.mxu0 0.0
        %3173 = vmatpush1.msra.mxu0 0.0
        %3174 = vmatprep.subr.mxu0 0.0
        %3175 = vmatpush1.msra.mxu0 0.0
        %3176 = vmatprep.subr.mxu0 0.0
        %3177 = vmatpush1.msra.mxu0 0.0
        %3178 = vmatprep.subr.mxu0 0.0
        %3179 = vmatpush1.msra.mxu0 0.0
        %3180 = vmatprep.subr.mxu0 0.0
        %3181 = vmatpush1.msra.mxu0 0.0
        %3182 = vmatprep.subr.mxu0 0.0
        %3183 = vmatpush1.msra.mxu0 0.0
        %3184 = vmatprep.subr.mxu0 0.0
        %3185 = vmatpush1.msra.mxu0 0.0
        %3186 = vmatprep.subr.mxu0 0.0
        %3187 = vmatpush1.msra.mxu0 0.0
        %3188 = vmatprep.subr.mxu0 0.0
        %3189 = vmatpush1.msra.mxu0 0.0
        %3190 = vmatprep.subr.mxu0 0.0
        %3191 = vmatpush1.msra.mxu0 0.0
        %3192 = vmatprep.subr.mxu0 0.0
        %3193 = vmatpush1.msra.mxu0 0.0
        %3194 = vmatprep.subr.mxu0 0.0
        %3195 = vmatpush1.msra.mxu0 0.0
        %3196 = vmatprep.subr.mxu0 0.0
        %3197 = vmatpush1.msra.mxu0 0.0
        %3198 = vmatprep.subr.mxu0 0.0
        %3199 = vmatpush1.msra.mxu0 0.0
        %3200 = vmatprep.subr.mxu0 0.0
        %3201 = vmatpush1.msra.mxu0 0.0
        %3202 = vmatprep.subr.mxu0 0.0
        %3203 = vmatpush1.msra.mxu0 0.0
        %3204 = vmatprep.subr.mxu0 0.0
        %3205 = vmatpush1.msra.mxu0 0.0
        %3206 = vmatprep.subr.mxu0 0.0
        %3207 = vmatpush1.msra.mxu0 0.0
        %3208 = vmatprep.subr.mxu0 0.0
        %3209 = vmatpush1.msra.mxu0 0.0
        %3210 = vmatprep.subr.mxu0 0.0
        %3211 = vmatpush1.msra.mxu0 0.0
        %3212 = vmatprep.subr.mxu0 0.0
        %3213 = vmatpush1.msra.mxu0 0.0
        %3214 = vmatprep.subr.mxu0 0.0
        %3215 = vmatpush1.msra.mxu0 0.0
        %3216 = vmatprep.subr.mxu0 0.0
        %3217 = vmatpush1.msra.mxu0 0.0
        %3218 = vmatprep.subr.mxu0 0.0
        %3219 = vmatpush1.msra.mxu0 0.0
        %3220 = vmatprep.subr.mxu0 0.0
        %3221 = vmatpush1.msra.mxu0 0.0
        %3222 = vmatprep.subr.mxu0 0.0
        %3223 = vmatpush1.msra.mxu0 0.0
        %3224 = vmatprep.subr.mxu0 0.0
        %3225 = vmatpush1.msra.mxu0 0.0
        %3226 = vmatprep.subr.mxu0 0.0
        %3227 = vmatpush1.msra.mxu0 0.0
        %3228 = vmatprep.subr.mxu0 0.0
        %3229 = vmatpush1.msra.mxu0 0.0
        %3230 = vmatprep.subr.mxu0 0.0
        %3231 = vmatpush1.msra.mxu0 0.0
        %3232 = vmatprep.mubr.f32.mxu0 0.0
        %v3233 = vand.u32 %v388, 4294901760
        %v3234 = vsub.f32 %v388, %v3233
        %v3235 = vand.u32 %v3234, 4294901760
        %v3236 = vsub.f32 %v3234, %v3235
        %v3237 = vand.u32 %v3236, 4294901760
        %3238 = vmatmul.mubr.f32.gmra.mrb[0].mxu0 %v3237
        %v3239 = vpop.f32.mrb[0].mxu0
        %v3240 = vadd.f32 0.0, %v3239
        %v3241 = vpop.f32.mrb[0].mxu0
        %3242 = vdwg.mxu0
        %3243 = vmatprep.subr.mxu0 0.0
        %v3244 = vand.u32 %v369, 4294901760
        %v3245 = vsub.f32 %v369, %v3244
        %v3246 = vand.u32 %v3245, 4294901760
        %v3247 = vsub.f32 %v3245, %v3246
        %v3248 = vand.u32 %v3247, 4294901760
        %3249 = vmatpush1.msra.mxu0 %v3248
        %3250 = vmatprep.subr.mxu0 0.0
        %v3251 = vand.u32 %v3164, 4294901760
        %v3252 = vsub.f32 %v3164, %v3251
        %v3253 = vand.u32 %v3252, 4294901760
        %v3254 = vsub.f32 %v3252, %v3253
        %v3255 = vand.u32 %v3254, 4294901760
        %3256 = vmatpush1.msra.mxu0 %v3255
        %3257 = vmatprep.subr.mxu0 0.0
        %3258 = vmatpush1.msra.mxu0 0.0
        %3259 = vmatprep.subr.mxu0 0.0
        %3260 = vmatpush1.msra.mxu0 0.0
        %3261 = vmatprep.subr.mxu0 0.0
        %3262 = vmatpush1.msra.mxu0 0.0
        %3263 = vmatprep.subr.mxu0 0.0
        %3264 = vmatpush1.msra.mxu0 0.0
        %3265 = vmatprep.subr.mxu0 0.0
        %3266 = vmatpush1.msra.mxu0 0.0
        %3267 = vmatprep.subr.mxu0 0.0
        %3268 = vmatpush1.msra.mxu0 0.0
        %3269 = vmatprep.subr.mxu0 0.0
        %3270 = vmatpush1.msra.mxu0 0.0
        %3271 = vmatprep.subr.mxu0 0.0
        %3272 = vmatpush1.msra.mxu0 0.0
        %3273 = vmatprep.subr.mxu0 0.0
        %3274 = vmatpush1.msra.mxu0 0.0
        %3275 = vmatprep.subr.mxu0 0.0
        %3276 = vmatpush1.msra.mxu0 0.0
        %3277 = vmatprep.subr.mxu0 0.0
        %3278 = vmatpush1.msra.mxu0 0.0
        %3279 = vmatprep.subr.mxu0 0.0
        %3280 = vmatpush1.msra.mxu0 0.0
        %3281 = vmatprep.subr.mxu0 0.0
        %3282 = vmatpush1.msra.mxu0 0.0
        %3283 = vmatprep.subr.mxu0 0.0
        %3284 = vmatpush1.msra.mxu0 0.0
        %3285 = vmatprep.subr.mxu0 0.0
        %3286 = vmatpush1.msra.mxu0 0.0
        %3287 = vmatprep.subr.mxu0 0.0
        %3288 = vmatpush1.msra.mxu0 0.0
        %3289 = vmatprep.subr.mxu0 0.0
        %3290 = vmatpush1.msra.mxu0 0.0
        %3291 = vmatprep.subr.mxu0 0.0
        %3292 = vmatpush1.msra.mxu0 0.0
        %3293 = vmatprep.subr.mxu0 0.0
        %3294 = vmatpush1.msra.mxu0 0.0
        %3295 = vmatprep.subr.mxu0 0.0
        %3296 = vmatpush1.msra.mxu0 0.0
        %3297 = vmatprep.subr.mxu0 0.0
        %3298 = vmatpush1.msra.mxu0 0.0
        %3299 = vmatprep.subr.mxu0 0.0
        %3300 = vmatpush1.msra.mxu0 0.0
        %3301 = vmatprep.subr.mxu0 0.0
        %3302 = vmatpush1.msra.mxu0 0.0
        %3303 = vmatprep.subr.mxu0 0.0
        %3304 = vmatpush1.msra.mxu0 0.0
        %3305 = vmatprep.subr.mxu0 0.0
        %3306 = vmatpush1.msra.mxu0 0.0
        %3307 = vmatprep.subr.mxu0 0.0
        %3308 = vmatpush1.msra.mxu0 0.0
        %3309 = vmatprep.subr.mxu0 0.0
        %3310 = vmatpush1.msra.mxu0 0.0
        %3311 = vmatprep.subr.mxu0 0.0
        %3312 = vmatpush1.msra.mxu0 0.0
        %3313 = vmatprep.subr.mxu0 0.0
        %3314 = vmatpush1.msra.mxu0 0.0
        %3315 = vmatprep.subr.mxu0 0.0
        %3316 = vmatpush1.msra.mxu0 0.0
        %3317 = vmatprep.mubr.f32.mxu0 0.0
        %v3318 = vand.u32 %v388, 4294901760
        %3319 = vmatmul.mubr.f32.gmra.mrb[0].mxu0 %v3318
        %v3320 = vpop.f32.mrb[0].mxu0
        %v3321 = vadd.f32 %v3240, %v3320
        %v3322 = vpop.f32.mrb[0].mxu0
        %3323 = vdwg.mxu0
        %3324 = vmatprep.subr.mxu0 0.0
        %v3325 = vand.u32 %v369, 4294901760
        %v3326 = vsub.f32 %v369, %v3325
        %3327 = vmatpush1.msra.mxu0 %v3326
        %3328 = vmatprep.subr.mxu0 0.0
        %v3329 = vand.u32 %v3164, 4294901760
        %v3330 = vsub.f32 %v3164, %v3329
        %3331 = vmatpush1.msra.mxu0 %v3330
        %3332 = vmatprep.subr.mxu0 0.0
        %3333 = vmatpush1.msra.mxu0 0.0
        %3334 = vmatprep.subr.mxu0 0.0
        %3335 = vmatpush1.msra.mxu0 0.0
        %3336 = vmatprep.subr.mxu0 0.0
        %3337 = vmatpush1.msra.mxu0 0.0
        %3338 = vmatprep.subr.mxu0 0.0
        %3339 = vmatpush1.msra.mxu0 0.0
        %3340 = vmatprep.subr.mxu0 0.0
        %3341 = vmatpush1.msra.mxu0 0.0
        %3342 = vmatprep.subr.mxu0 0.0
        %3343 = vmatpush1.msra.mxu0 0.0
        %3344 = vmatprep.subr.mxu0 0.0
        %3345 = vmatpush1.msra.mxu0 0.0
        %3346 = vmatprep.subr.mxu0 0.0
        %3347 = vmatpush1.msra.mxu0 0.0
        %3348 = vmatprep.subr.mxu0 0.0
        %3349 = vmatpush1.msra.mxu0 0.0
        %3350 = vmatprep.subr.mxu0 0.0
        %3351 = vmatpush1.msra.mxu0 0.0
        %3352 = vmatprep.subr.mxu0 0.0
        %3353 = vmatpush1.msra.mxu0 0.0
        %3354 = vmatprep.subr.mxu0 0.0
        %3355 = vmatpush1.msra.mxu0 0.0
        %3356 = vmatprep.subr.mxu0 0.0
        %3357 = vmatpush1.msra.mxu0 0.0
        %3358 = vmatprep.subr.mxu0 0.0
        %3359 = vmatpush1.msra.mxu0 0.0
        %3360 = vmatprep.subr.mxu0 0.0
        %3361 = vmatpush1.msra.mxu0 0.0
        %3362 = vmatprep.subr.mxu0 0.0
        %3363 = vmatpush1.msra.mxu0 0.0
        %3364 = vmatprep.subr.mxu0 0.0
        %3365 = vmatpush1.msra.mxu0 0.0
        %3366 = vmatprep.subr.mxu0 0.0
        %3367 = vmatpush1.msra.mxu0 0.0
        %3368 = vmatprep.subr.mxu0 0.0
        %3369 = vmatpush1.msra.mxu0 0.0
        %3370 = vmatprep.subr.mxu0 0.0
        %3371 = vmatpush1.msra.mxu0 0.0
        %3372 = vmatprep.subr.mxu0 0.0
        %3373 = vmatpush1.msra.mxu0 0.0
        %3374 = vmatprep.subr.mxu0 0.0
        %3375 = vmatpush1.msra.mxu0 0.0
        %3376 = vmatprep.subr.mxu0 0.0
        %3377 = vmatpush1.msra.mxu0 0.0
        %3378 = vmatprep.subr.mxu0 0.0
        %3379 = vmatpush1.msra.mxu0 0.0
        %3380 = vmatprep.subr.mxu0 0.0
        %3381 = vmatpush1.msra.mxu0 0.0
        %3382 = vmatprep.subr.mxu0 0.0
        %3383 = vmatpush1.msra.mxu0 0.0
        %3384 = vmatprep.subr.mxu0 0.0
        %3385 = vmatpush1.msra.mxu0 0.0
        %3386 = vmatprep.subr.mxu0 0.0
        %3387 = vmatpush1.msra.mxu0 0.0
        %3388 = vmatprep.subr.mxu0 0.0
        %3389 = vmatpush1.msra.mxu0 0.0
        %3390 = vmatprep.subr.mxu0 0.0
        %3391 = vmatpush1.msra.mxu0 0.0
        %3392 = vmatprep.mubr.f32.mxu0 0.0
        %v3393 = vand.u32 %v388, 4294901760
        %v3394 = vsub.f32 %v388, %v3393
        %3395 = vmatmul.mubr.f32.gmra.mrb[0].mxu0 %v3394
        %v3396 = vpop.f32.mrb[0].mxu0
        %v3397 = vadd.f32 %v3321, %v3396
        %v3398 = vpop.f32.mrb[0].mxu0
        %3399 = vdwg.mxu0
        %3400 = vmatprep.subr.mxu0 0.0
        %v3401 = vand.u32 %v369, 4294901760
        %3402 = vmatpush1.msra.mxu0 %v3401
        %3403 = vmatprep.subr.mxu0 0.0
        %v3404 = vand.u32 %v3164, 4294901760
        %3405 = vmatpush1.msra.mxu0 %v3404
        %3406 = vmatprep.subr.mxu0 0.0
        %3407 = vmatpush1.msra.mxu0 0.0
        %3408 = vmatprep.subr.mxu0 0.0
        %3409 = vmatpush1.msra.mxu0 0.0
        %3410 = vmatprep.subr.mxu0 0.0
        %3411 = vmatpush1.msra.mxu0 0.0
        %3412 = vmatprep.subr.mxu0 0.0
        %3413 = vmatpush1.msra.mxu0 0.0
        %3414 = vmatprep.subr.mxu0 0.0
        %3415 = vmatpush1.msra.mxu0 0.0
        %3416 = vmatprep.subr.mxu0 0.0
        %3417 = vmatpush1.msra.mxu0 0.0
        %3418 = vmatprep.subr.mxu0 0.0
        %3419 = vmatpush1.msra.mxu0 0.0
        %3420 = vmatprep.subr.mxu0 0.0
        %3421 = vmatpush1.msra.mxu0 0.0
        %3422 = vmatprep.subr.mxu0 0.0
        %3423 = vmatpush1.msra.mxu0 0.0
        %3424 = vmatprep.subr.mxu0 0.0
        %3425 = vmatpush1.msra.mxu0 0.0
        %3426 = vmatprep.subr.mxu0 0.0
        %3427 = vmatpush1.msra.mxu0 0.0
        %3428 = vmatprep.subr.mxu0 0.0
        %3429 = vmatpush1.msra.mxu0 0.0
        %3430 = vmatprep.subr.mxu0 0.0
        %3431 = vmatpush1.msra.mxu0 0.0
        %3432 = vmatprep.subr.mxu0 0.0
        %3433 = vmatpush1.msra.mxu0 0.0
        %3434 = vmatprep.subr.mxu0 0.0
        %3435 = vmatpush1.msra.mxu0 0.0
        %3436 = vmatprep.subr.mxu0 0.0
        %3437 = vmatpush1.msra.mxu0 0.0
        %3438 = vmatprep.subr.mxu0 0.0
        %3439 = vmatpush1.msra.mxu0 0.0
        %3440 = vmatprep.subr.mxu0 0.0
        %3441 = vmatpush1.msra.mxu0 0.0
        %3442 = vmatprep.subr.mxu0 0.0
        %3443 = vmatpush1.msra.mxu0 0.0
        %3444 = vmatprep.subr.mxu0 0.0
        %3445 = vmatpush1.msra.mxu0 0.0
        %3446 = vmatprep.subr.mxu0 0.0
        %3447 = vmatpush1.msra.mxu0 0.0
        %3448 = vmatprep.subr.mxu0 0.0
        %3449 = vmatpush1.msra.mxu0 0.0
        %3450 = vmatprep.subr.mxu0 0.0
        %3451 = vmatpush1.msra.mxu0 0.0
        %3452 = vmatprep.subr.mxu0 0.0
        %3453 = vmatpush1.msra.mxu0 0.0
        %3454 = vmatprep.subr.mxu0 0.0
        %3455 = vmatpush1.msra.mxu0 0.0
        %3456 = vmatprep.subr.mxu0 0.0
        %3457 = vmatpush1.msra.mxu0 0.0
        %3458 = vmatprep.subr.mxu0 0.0
        %3459 = vmatpush1.msra.mxu0 0.0
        %3460 = vmatprep.subr.mxu0 0.0
        %3461 = vmatpush1.msra.mxu0 0.0
        %3462 = vmatprep.subr.mxu0 0.0
        %3463 = vmatpush1.msra.mxu0 0.0
        %3464 = vmatprep.subr.mxu0 0.0
        %3465 = vmatpush1.msra.mxu0 0.0
        %3466 = vmatprep.mubr.f32.mxu0 0.0
        %v3467 = vand.u32 %v388, 4294901760
        %v3468 = vsub.f32 %v388, %v3467
        %v3469 = vand.u32 %v3468, 4294901760
        %3470 = vmatmul.mubr.f32.gmra.mrb[0].mxu0 %v3469
        %v3471 = vpop.f32.mrb[0].mxu0
        %v3472 = vadd.f32 %v3397, %v3471
        %v3473 = vpop.f32.mrb[0].mxu0
        %3474 = vdwg.mxu0
        %3475 = vmatprep.subr.mxu0 0.0
        %v3476 = vand.u32 %v369, 4294901760
        %v3477 = vsub.f32 %v369, %v3476
        %v3478 = vand.u32 %v3477, 4294901760
        %3479 = vmatpush1.msra.mxu0 %v3478
        %3480 = vmatprep.subr.mxu0 0.0
        %v3481 = vand.u32 %v3164, 4294901760
        %v3482 = vsub.f32 %v3164, %v3481
        %v3483 = vand.u32 %v3482, 4294901760
        %3484 = vmatpush1.msra.mxu0 %v3483
        %3485 = vmatprep.subr.mxu0 0.0
        %3486 = vmatpush1.msra.mxu0 0.0
        %3487 = vmatprep.subr.mxu0 0.0
        %3488 = vmatpush1.msra.mxu0 0.0
        %3489 = vmatprep.subr.mxu0 0.0
        %3490 = vmatpush1.msra.mxu0 0.0
        %3491 = vmatprep.subr.mxu0 0.0
        %3492 = vmatpush1.msra.mxu0 0.0
        %3493 = vmatprep.subr.mxu0 0.0
        %3494 = vmatpush1.msra.mxu0 0.0
        %3495 = vmatprep.subr.mxu0 0.0
        %3496 = vmatpush1.msra.mxu0 0.0
        %3497 = vmatprep.subr.mxu0 0.0
        %3498 = vmatpush1.msra.mxu0 0.0
        %3499 = vmatprep.subr.mxu0 0.0
        %3500 = vmatpush1.msra.mxu0 0.0
        %3501 = vmatprep.subr.mxu0 0.0
        %3502 = vmatpush1.msra.mxu0 0.0
        %3503 = vmatprep.subr.mxu0 0.0
        %3504 = vmatpush1.msra.mxu0 0.0
        %3505 = vmatprep.subr.mxu0 0.0
        %3506 = vmatpush1.msra.mxu0 0.0
        %3507 = vmatprep.subr.mxu0 0.0
        %3508 = vmatpush1.msra.mxu0 0.0
        %3509 = vmatprep.subr.mxu0 0.0
        %3510 = vmatpush1.msra.mxu0 0.0
        %3511 = vmatprep.subr.mxu0 0.0
        %3512 = vmatpush1.msra.mxu0 0.0
        %3513 = vmatprep.subr.mxu0 0.0
        %3514 = vmatpush1.msra.mxu0 0.0
        %3515 = vmatprep.subr.mxu0 0.0
        %3516 = vmatpush1.msra.mxu0 0.0
        %3517 = vmatprep.subr.mxu0 0.0
        %3518 = vmatpush1.msra.mxu0 0.0
        %3519 = vmatprep.subr.mxu0 0.0
        %3520 = vmatpush1.msra.mxu0 0.0
        %3521 = vmatprep.subr.mxu0 0.0
        %3522 = vmatpush1.msra.mxu0 0.0
        %3523 = vmatprep.subr.mxu0 0.0
        %3524 = vmatpush1.msra.mxu0 0.0
        %3525 = vmatprep.subr.mxu0 0.0
        %3526 = vmatpush1.msra.mxu0 0.0
        %3527 = vmatprep.subr.mxu0 0.0
        %3528 = vmatpush1.msra.mxu0 0.0
        %3529 = vmatprep.subr.mxu0 0.0
        %3530 = vmatpush1.msra.mxu0 0.0
        %3531 = vmatprep.subr.mxu0 0.0
        %3532 = vmatpush1.msra.mxu0 0.0
        %3533 = vmatprep.subr.mxu0 0.0
        %3534 = vmatpush1.msra.mxu0 0.0
        %3535 = vmatprep.subr.mxu0 0.0
        %3536 = vmatpush1.msra.mxu0 0.0
        %3537 = vmatprep.subr.mxu0 0.0
        %3538 = vmatpush1.msra.mxu0 0.0
        %3539 = vmatprep.subr.mxu0 0.0
        %3540 = vmatpush1.msra.mxu0 0.0
        %3541 = vmatprep.subr.mxu0 0.0
        %3542 = vmatpush1.msra.mxu0 0.0
        %3543 = vmatprep.subr.mxu0 0.0
        %3544 = vmatpush1.msra.mxu0 0.0
        %3545 = vmatprep.mubr.f32.mxu0 0.0
        %v3546 = vand.u32 %v388, 4294901760
        %3547 = vmatmul.mubr.f32.gmra.mrb[0].mxu0 %v3546
        %v3548 = vpop.f32.mrb[0].mxu0
        %v3549 = vadd.f32 %v3472, %v3548
        %v3550 = vpop.f32.mrb[0].mxu0
        %3551 = vdwg.mxu0
        %3552 = vmatprep.subr.mxu0 0.0
        %v3553 = vand.u32 %v369, 4294901760
        %3554 = vmatpush1.msra.mxu0 %v3553
        %3555 = vmatprep.subr.mxu0 0.0
        %v3556 = vand.u32 %v3164, 4294901760
        %3557 = vmatpush1.msra.mxu0 %v3556
        %3558 = vmatprep.subr.mxu0 0.0
        %3559 = vmatpush1.msra.mxu0 0.0
        %3560 = vmatprep.subr.mxu0 0.0
        %3561 = vmatpush1.msra.mxu0 0.0
        %3562 = vmatprep.subr.mxu0 0.0
        %3563 = vmatpush1.msra.mxu0 0.0
        %3564 = vmatprep.subr.mxu0 0.0
        %3565 = vmatpush1.msra.mxu0 0.0
        %3566 = vmatprep.subr.mxu0 0.0
        %3567 = vmatpush1.msra.mxu0 0.0
        %3568 = vmatprep.subr.mxu0 0.0
        %3569 = vmatpush1.msra.mxu0 0.0
        %3570 = vmatprep.subr.mxu0 0.0
        %3571 = vmatpush1.msra.mxu0 0.0
        %3572 = vmatprep.subr.mxu0 0.0
        %3573 = vmatpush1.msra.mxu0 0.0
        %3574 = vmatprep.subr.mxu0 0.0
        %3575 = vmatpush1.msra.mxu0 0.0
        %3576 = vmatprep.subr.mxu0 0.0
        %3577 = vmatpush1.msra.mxu0 0.0
        %3578 = vmatprep.subr.mxu0 0.0
        %3579 = vmatpush1.msra.mxu0 0.0
        %3580 = vmatprep.subr.mxu0 0.0
        %3581 = vmatpush1.msra.mxu0 0.0
        %3582 = vmatprep.subr.mxu0 0.0
        %3583 = vmatpush1.msra.mxu0 0.0
        %3584 = vmatprep.subr.mxu0 0.0
        %3585 = vmatpush1.msra.mxu0 0.0
        %3586 = vmatprep.subr.mxu0 0.0
        %3587 = vmatpush1.msra.mxu0 0.0
        %3588 = vmatprep.subr.mxu0 0.0
        %3589 = vmatpush1.msra.mxu0 0.0
        %3590 = vmatprep.subr.mxu0 0.0
        %3591 = vmatpush1.msra.mxu0 0.0
        %3592 = vmatprep.subr.mxu0 0.0
        %3593 = vmatpush1.msra.mxu0 0.0
        %3594 = vmatprep.subr.mxu0 0.0
        %3595 = vmatpush1.msra.mxu0 0.0
        %3596 = vmatprep.subr.mxu0 0.0
        %3597 = vmatpush1.msra.mxu0 0.0
        %3598 = vmatprep.subr.mxu0 0.0
        %3599 = vmatpush1.msra.mxu0 0.0
        %3600 = vmatprep.subr.mxu0 0.0
        %3601 = vmatpush1.msra.mxu0 0.0
        %3602 = vmatprep.subr.mxu0 0.0
        %3603 = vmatpush1.msra.mxu0 0.0
        %3604 = vmatprep.subr.mxu0 0.0
        %3605 = vmatpush1.msra.mxu0 0.0
        %3606 = vmatprep.subr.mxu0 0.0
        %3607 = vmatpush1.msra.mxu0 0.0
        %3608 = vmatprep.subr.mxu0 0.0
        %3609 = vmatpush1.msra.mxu0 0.0
        %3610 = vmatprep.subr.mxu0 0.0
        %3611 = vmatpush1.msra.mxu0 0.0
        %3612 = vmatprep.subr.mxu0 0.0
        %3613 = vmatpush1.msra.mxu0 0.0
        %3614 = vmatprep.subr.mxu0 0.0
        %3615 = vmatpush1.msra.mxu0 0.0
        %3616 = vmatprep.subr.mxu0 0.0
        %3617 = vmatpush1.msra.mxu0 0.0
        %3618 = vmatprep.mubr.f32.mxu0 0.0
        %v3619 = vand.u32 %v388, 4294901760
        %3620 = vmatmul.mubr.f32.gmra.mrb[0].mxu0 %v3619
        %v3621 = vpop.f32.mrb[0].mxu0
        %v3622 = vadd.f32 %v3549, %v3621
        %v3623 = vpop.f32.mrb[0].mxu0
        %3624 = vdwg.mxu0
        %v3626 = vsel %vm390, %v372, 0
        %3628 = vmatprep.subr.mxu0 0.0
        %v3629 = vand.u32 %v371, 4294901760
        %3630 = vmatpush1.msra.mxu0 %v3629
        %3631 = vmatprep.subr.mxu0 0.0
        %v3632 = vand.u32 %v3626, 4294901760
        %3633 = vmatpush1.msra.mxu0 %v3632
        %3634 = vmatprep.subr.mxu0 0.0
        %3635 = vmatpush1.msra.mxu0 0.0
        %3636 = vmatprep.subr.mxu0 0.0
        %3637 = vmatpush1.msra.mxu0 0.0
        %3638 = vmatprep.subr.mxu0 0.0
        %3639 = vmatpush1.msra.mxu0 0.0
        %3640 = vmatprep.subr.mxu0 0.0
        %3641 = vmatpush1.msra.mxu0 0.0
        %3642 = vmatprep.subr.mxu0 0.0
        %3643 = vmatpush1.msra.mxu0 0.0
        %3644 = vmatprep.subr.mxu0 0.0
        %3645 = vmatpush1.msra.mxu0 0.0
        %3646 = vmatprep.subr.mxu0 0.0
        %3647 = vmatpush1.msra.mxu0 0.0
        %3648 = vmatprep.subr.mxu0 0.0
        %3649 = vmatpush1.msra.mxu0 0.0
        %3650 = vmatprep.subr.mxu0 0.0
        %3651 = vmatpush1.msra.mxu0 0.0
        %3652 = vmatprep.subr.mxu0 0.0
        %3653 = vmatpush1.msra.mxu0 0.0
        %3654 = vmatprep.subr.mxu0 0.0
        %3655 = vmatpush1.msra.mxu0 0.0
        %3656 = vmatprep.subr.mxu0 0.0
        %3657 = vmatpush1.msra.mxu0 0.0
        %3658 = vmatprep.subr.mxu0 0.0
        %3659 = vmatpush1.msra.mxu0 0.0
        %3660 = vmatprep.subr.mxu0 0.0
        %3661 = vmatpush1.msra.mxu0 0.0
        %3662 = vmatprep.subr.mxu0 0.0
        %3663 = vmatpush1.msra.mxu0 0.0
        %3664 = vmatprep.subr.mxu0 0.0
        %3665 = vmatpush1.msra.mxu0 0.0
        %3666 = vmatprep.subr.mxu0 0.0
        %3667 = vmatpush1.msra.mxu0 0.0
        %3668 = vmatprep.subr.mxu0 0.0
        %3669 = vmatpush1.msra.mxu0 0.0
        %3670 = vmatprep.subr.mxu0 0.0
        %3671 = vmatpush1.msra.mxu0 0.0
        %3672 = vmatprep.subr.mxu0 0.0
        %3673 = vmatpush1.msra.mxu0 0.0
        %3674 = vmatprep.subr.mxu0 0.0
        %3675 = vmatpush1.msra.mxu0 0.0
        %3676 = vmatprep.subr.mxu0 0.0
        %3677 = vmatpush1.msra.mxu0 0.0
        %3678 = vmatprep.subr.mxu0 0.0
        %3679 = vmatpush1.msra.mxu0 0.0
        %3680 = vmatprep.subr.mxu0 0.0
        %3681 = vmatpush1.msra.mxu0 0.0
        %3682 = vmatprep.subr.mxu0 0.0
        %3683 = vmatpush1.msra.mxu0 0.0
        %3684 = vmatprep.subr.mxu0 0.0
        %3685 = vmatpush1.msra.mxu0 0.0
        %3686 = vmatprep.subr.mxu0 0.0
        %3687 = vmatpush1.msra.mxu0 0.0
        %3688 = vmatprep.subr.mxu0 0.0
        %3689 = vmatpush1.msra.mxu0 0.0
        %3690 = vmatprep.subr.mxu0 0.0
        %3691 = vmatpush1.msra.mxu0 0.0
        %3692 = vmatprep.subr.mxu0 0.0
        %3693 = vmatpush1.msra.mxu0 0.0
        %3694 = vmatprep.mubr.f32.mxu0 0.0
        %v3695 = vand.u32 %v388, 4294901760
        %v3696 = vsub.f32 %v388, %v3695
        %v3697 = vand.u32 %v3696, 4294901760
        %v3698 = vsub.f32 %v3696, %v3697
        %v3699 = vand.u32 %v3698, 4294901760
        %3700 = vmatmul.mubr.f32.gmra.mrb[0].mxu0 %v3699
        %v3701 = vpop.f32.mrb[0].mxu0
        %v3702 = vadd.f32 0.0, %v3701
        %v3703 = vpop.f32.mrb[0].mxu0
        %3704 = vdwg.mxu0
        %3705 = vmatprep.subr.mxu0 0.0
        %v3706 = vand.u32 %v371, 4294901760
        %v3707 = vsub.f32 %v371, %v3706
        %v3708 = vand.u32 %v3707, 4294901760
        %v3709 = vsub.f32 %v3707, %v3708
        %v3710 = vand.u32 %v3709, 4294901760
        %3711 = vmatpush1.msra.mxu0 %v3710
        %3712 = vmatprep.subr.mxu0 0.0
        %v3713 = vand.u32 %v3626, 4294901760
        %v3714 = vsub.f32 %v3626, %v3713
        %v3715 = vand.u32 %v3714, 4294901760
        %v3716 = vsub.f32 %v3714, %v3715
        %v3717 = vand.u32 %v3716, 4294901760
        %3718 = vmatpush1.msra.mxu0 %v3717
        %3719 = vmatprep.subr.mxu0 0.0
        %3720 = vmatpush1.msra.mxu0 0.0
        %3721 = vmatprep.subr.mxu0 0.0
        %3722 = vmatpush1.msra.mxu0 0.0
        %3723 = vmatprep.subr.mxu0 0.0
        %3724 = vmatpush1.msra.mxu0 0.0
        %3725 = vmatprep.subr.mxu0 0.0
        %3726 = vmatpush1.msra.mxu0 0.0
        %3727 = vmatprep.subr.mxu0 0.0
        %3728 = vmatpush1.msra.mxu0 0.0
        %3729 = vmatprep.subr.mxu0 0.0
        %3730 = vmatpush1.msra.mxu0 0.0
        %3731 = vmatprep.subr.mxu0 0.0
        %3732 = vmatpush1.msra.mxu0 0.0
        %3733 = vmatprep.subr.mxu0 0.0
        %3734 = vmatpush1.msra.mxu0 0.0
        %3735 = vmatprep.subr.mxu0 0.0
        %3736 = vmatpush1.msra.mxu0 0.0
        %3737 = vmatprep.subr.mxu0 0.0
        %3738 = vmatpush1.msra.mxu0 0.0
        %3739 = vmatprep.subr.mxu0 0.0
        %3740 = vmatpush1.msra.mxu0 0.0
        %3741 = vmatprep.subr.mxu0 0.0
        %3742 = vmatpush1.msra.mxu0 0.0
        %3743 = vmatprep.subr.mxu0 0.0
        %3744 = vmatpush1.msra.mxu0 0.0
        %3745 = vmatprep.subr.mxu0 0.0
        %3746 = vmatpush1.msra.mxu0 0.0
        %3747 = vmatprep.subr.mxu0 0.0
        %3748 = vmatpush1.msra.mxu0 0.0
        %3749 = vmatprep.subr.mxu0 0.0
        %3750 = vmatpush1.msra.mxu0 0.0
        %3751 = vmatprep.subr.mxu0 0.0
        %3752 = vmatpush1.msra.mxu0 0.0
        %3753 = vmatprep.subr.mxu0 0.0
        %3754 = vmatpush1.msra.mxu0 0.0
        %3755 = vmatprep.subr.mxu0 0.0
        %3756 = vmatpush1.msra.mxu0 0.0
        %3757 = vmatprep.subr.mxu0 0.0
        %3758 = vmatpush1.msra.mxu0 0.0
        %3759 = vmatprep.subr.mxu0 0.0
        %3760 = vmatpush1.msra.mxu0 0.0
        %3761 = vmatprep.subr.mxu0 0.0
        %3762 = vmatpush1.msra.mxu0 0.0
        %3763 = vmatprep.subr.mxu0 0.0
        %3764 = vmatpush1.msra.mxu0 0.0
        %3765 = vmatprep.subr.mxu0 0.0
        %3766 = vmatpush1.msra.mxu0 0.0
        %3767 = vmatprep.subr.mxu0 0.0
        %3768 = vmatpush1.msra.mxu0 0.0
        %3769 = vmatprep.subr.mxu0 0.0
        %3770 = vmatpush1.msra.mxu0 0.0
        %3771 = vmatprep.subr.mxu0 0.0
        %3772 = vmatpush1.msra.mxu0 0.0
        %3773 = vmatprep.subr.mxu0 0.0
        %3774 = vmatpush1.msra.mxu0 0.0
        %3775 = vmatprep.subr.mxu0 0.0
        %3776 = vmatpush1.msra.mxu0 0.0
        %3777 = vmatprep.subr.mxu0 0.0
        %3778 = vmatpush1.msra.mxu0 0.0
        %3779 = vmatprep.mubr.f32.mxu0 0.0
        %v3780 = vand.u32 %v388, 4294901760
        %3781 = vmatmul.mubr.f32.gmra.mrb[0].mxu0 %v3780
        %v3782 = vpop.f32.mrb[0].mxu0
        %v3783 = vadd.f32 %v3702, %v3782
        %v3784 = vpop.f32.mrb[0].mxu0
        %3785 = vdwg.mxu0
        %3786 = vmatprep.subr.mxu0 0.0
        %v3787 = vand.u32 %v371, 4294901760
        %v3788 = vsub.f32 %v371, %v3787
        %3789 = vmatpush1.msra.mxu0 %v3788
        %3790 = vmatprep.subr.mxu0 0.0
        %v3791 = vand.u32 %v3626, 4294901760
        %v3792 = vsub.f32 %v3626, %v3791
        %3793 = vmatpush1.msra.mxu0 %v3792
        %3794 = vmatprep.subr.mxu0 0.0
        %3795 = vmatpush1.msra.mxu0 0.0
        %3796 = vmatprep.subr.mxu0 0.0
        %3797 = vmatpush1.msra.mxu0 0.0
        %3798 = vmatprep.subr.mxu0 0.0
        %3799 = vmatpush1.msra.mxu0 0.0
        %3800 = vmatprep.subr.mxu0 0.0
        %3801 = vmatpush1.msra.mxu0 0.0
        %3802 = vmatprep.subr.mxu0 0.0
        %3803 = vmatpush1.msra.mxu0 0.0
        %3804 = vmatprep.subr.mxu0 0.0
        %3805 = vmatpush1.msra.mxu0 0.0
        %3806 = vmatprep.subr.mxu0 0.0
        %3807 = vmatpush1.msra.mxu0 0.0
        %3808 = vmatprep.subr.mxu0 0.0
        %3809 = vmatpush1.msra.mxu0 0.0
        %3810 = vmatprep.subr.mxu0 0.0
        %3811 = vmatpush1.msra.mxu0 0.0
        %3812 = vmatprep.subr.mxu0 0.0
        %3813 = vmatpush1.msra.mxu0 0.0
        %3814 = vmatprep.subr.mxu0 0.0
        %3815 = vmatpush1.msra.mxu0 0.0
        %3816 = vmatprep.subr.mxu0 0.0
        %3817 = vmatpush1.msra.mxu0 0.0
        %3818 = vmatprep.subr.mxu0 0.0
        %3819 = vmatpush1.msra.mxu0 0.0
        %3820 = vmatprep.subr.mxu0 0.0
        %3821 = vmatpush1.msra.mxu0 0.0
        %3822 = vmatprep.subr.mxu0 0.0
        %3823 = vmatpush1.msra.mxu0 0.0
        %3824 = vmatprep.subr.mxu0 0.0
        %3825 = vmatpush1.msra.mxu0 0.0
        %3826 = vmatprep.subr.mxu0 0.0
        %3827 = vmatpush1.msra.mxu0 0.0
        %3828 = vmatprep.subr.mxu0 0.0
        %3829 = vmatpush1.msra.mxu0 0.0
        %3830 = vmatprep.subr.mxu0 0.0
        %3831 = vmatpush1.msra.mxu0 0.0
        %3832 = vmatprep.subr.mxu0 0.0
        %3833 = vmatpush1.msra.mxu0 0.0
        %3834 = vmatprep.subr.mxu0 0.0
        %3835 = vmatpush1.msra.mxu0 0.0
        %3836 = vmatprep.subr.mxu0 0.0
        %3837 = vmatpush1.msra.mxu0 0.0
        %3838 = vmatprep.subr.mxu0 0.0
        %3839 = vmatpush1.msra.mxu0 0.0
        %3840 = vmatprep.subr.mxu0 0.0
        %3841 = vmatpush1.msra.mxu0 0.0
        %3842 = vmatprep.subr.mxu0 0.0
        %3843 = vmatpush1.msra.mxu0 0.0
        %3844 = vmatprep.subr.mxu0 0.0
        %3845 = vmatpush1.msra.mxu0 0.0
        %3846 = vmatprep.subr.mxu0 0.0
        %3847 = vmatpush1.msra.mxu0 0.0
        %3848 = vmatprep.subr.mxu0 0.0
        %3849 = vmatpush1.msra.mxu0 0.0
        %3850 = vmatprep.subr.mxu0 0.0
        %3851 = vmatpush1.msra.mxu0 0.0
        %3852 = vmatprep.subr.mxu0 0.0
        %3853 = vmatpush1.msra.mxu0 0.0
        %3854 = vmatprep.mubr.f32.mxu0 0.0
        %v3855 = vand.u32 %v388, 4294901760
        %v3856 = vsub.f32 %v388, %v3855
        %3857 = vmatmul.mubr.f32.gmra.mrb[0].mxu0 %v3856
        %v3858 = vpop.f32.mrb[0].mxu0
        %v3859 = vadd.f32 %v3783, %v3858
        %v3860 = vpop.f32.mrb[0].mxu0
        %3861 = vdwg.mxu0
        %3862 = vmatprep.subr.mxu0 0.0
        %v3863 = vand.u32 %v371, 4294901760
        %3864 = vmatpush1.msra.mxu0 %v3863
        %3865 = vmatprep.subr.mxu0 0.0
        %v3866 = vand.u32 %v3626, 4294901760
        %3867 = vmatpush1.msra.mxu0 %v3866
        %3868 = vmatprep.subr.mxu0 0.0
        %3869 = vmatpush1.msra.mxu0 0.0
        %3870 = vmatprep.subr.mxu0 0.0
        %3871 = vmatpush1.msra.mxu0 0.0
        %3872 = vmatprep.subr.mxu0 0.0
        %3873 = vmatpush1.msra.mxu0 0.0
        %3874 = vmatprep.subr.mxu0 0.0
        %3875 = vmatpush1.msra.mxu0 0.0
        %3876 = vmatprep.subr.mxu0 0.0
        %3877 = vmatpush1.msra.mxu0 0.0
        %3878 = vmatprep.subr.mxu0 0.0
        %3879 = vmatpush1.msra.mxu0 0.0
        %3880 = vmatprep.subr.mxu0 0.0
        %3881 = vmatpush1.msra.mxu0 0.0
        %3882 = vmatprep.subr.mxu0 0.0
        %3883 = vmatpush1.msra.mxu0 0.0
        %3884 = vmatprep.subr.mxu0 0.0
        %3885 = vmatpush1.msra.mxu0 0.0
        %3886 = vmatprep.subr.mxu0 0.0
        %3887 = vmatpush1.msra.mxu0 0.0
        %3888 = vmatprep.subr.mxu0 0.0
        %3889 = vmatpush1.msra.mxu0 0.0
        %3890 = vmatprep.subr.mxu0 0.0
        %3891 = vmatpush1.msra.mxu0 0.0
        %3892 = vmatprep.subr.mxu0 0.0
        %3893 = vmatpush1.msra.mxu0 0.0
        %3894 = vmatprep.subr.mxu0 0.0
        %3895 = vmatpush1.msra.mxu0 0.0
        %3896 = vmatprep.subr.mxu0 0.0
        %3897 = vmatpush1.msra.mxu0 0.0
        %3898 = vmatprep.subr.mxu0 0.0
        %3899 = vmatpush1.msra.mxu0 0.0
        %3900 = vmatprep.subr.mxu0 0.0
        %3901 = vmatpush1.msra.mxu0 0.0
        %3902 = vmatprep.subr.mxu0 0.0
        %3903 = vmatpush1.msra.mxu0 0.0
        %3904 = vmatprep.subr.mxu0 0.0
        %3905 = vmatpush1.msra.mxu0 0.0
        %3906 = vmatprep.subr.mxu0 0.0
        %3907 = vmatpush1.msra.mxu0 0.0
        %3908 = vmatprep.subr.mxu0 0.0
        %3909 = vmatpush1.msra.mxu0 0.0
        %3910 = vmatprep.subr.mxu0 0.0
        %3911 = vmatpush1.msra.mxu0 0.0
        %3912 = vmatprep.subr.mxu0 0.0
        %3913 = vmatpush1.msra.mxu0 0.0
        %3914 = vmatprep.subr.mxu0 0.0
        %3915 = vmatpush1.msra.mxu0 0.0
        %3916 = vmatprep.subr.mxu0 0.0
        %3917 = vmatpush1.msra.mxu0 0.0
        %3918 = vmatprep.subr.mxu0 0.0
        %3919 = vmatpush1.msra.mxu0 0.0
        %3920 = vmatprep.subr.mxu0 0.0
        %3921 = vmatpush1.msra.mxu0 0.0
        %3922 = vmatprep.subr.mxu0 0.0
        %3923 = vmatpush1.msra.mxu0 0.0
        %3924 = vmatprep.subr.mxu0 0.0
        %3925 = vmatpush1.msra.mxu0 0.0
        %3926 = vmatprep.subr.mxu0 0.0
        %3927 = vmatpush1.msra.mxu0 0.0
        %3928 = vmatprep.mubr.f32.mxu0 0.0
        %v3929 = vand.u32 %v388, 4294901760
        %v3930 = vsub.f32 %v388, %v3929
        %v3931 = vand.u32 %v3930, 4294901760
        %3932 = vmatmul.mubr.f32.gmra.mrb[0].mxu0 %v3931
        %v3933 = vpop.f32.mrb[0].mxu0
        %v3934 = vadd.f32 %v3859, %v3933
        %v3935 = vpop.f32.mrb[0].mxu0
        %3936 = vdwg.mxu0
        %3937 = vmatprep.subr.mxu0 0.0
        %v3938 = vand.u32 %v371, 4294901760
        %v3939 = vsub.f32 %v371, %v3938
        %v3940 = vand.u32 %v3939, 4294901760
        %3941 = vmatpush1.msra.mxu0 %v3940
        %3942 = vmatprep.subr.mxu0 0.0
        %v3943 = vand.u32 %v3626, 4294901760
        %v3944 = vsub.f32 %v3626, %v3943
        %v3945 = vand.u32 %v3944, 4294901760
        %3946 = vmatpush1.msra.mxu0 %v3945
        %3947 = vmatprep.subr.mxu0 0.0
        %3948 = vmatpush1.msra.mxu0 0.0
        %3949 = vmatprep.subr.mxu0 0.0
        %3950 = vmatpush1.msra.mxu0 0.0
        %3951 = vmatprep.subr.mxu0 0.0
        %3952 = vmatpush1.msra.mxu0 0.0
        %3953 = vmatprep.subr.mxu0 0.0
        %3954 = vmatpush1.msra.mxu0 0.0
        %3955 = vmatprep.subr.mxu0 0.0
        %3956 = vmatpush1.msra.mxu0 0.0
        %3957 = vmatprep.subr.mxu0 0.0
        %3958 = vmatpush1.msra.mxu0 0.0
        %3959 = vmatprep.subr.mxu0 0.0
        %3960 = vmatpush1.msra.mxu0 0.0
        %3961 = vmatprep.subr.mxu0 0.0
        %3962 = vmatpush1.msra.mxu0 0.0
        %3963 = vmatprep.subr.mxu0 0.0
        %3964 = vmatpush1.msra.mxu0 0.0
        %3965 = vmatprep.subr.mxu0 0.0
        %3966 = vmatpush1.msra.mxu0 0.0
        %3967 = vmatprep.subr.mxu0 0.0
        %3968 = vmatpush1.msra.mxu0 0.0
        %3969 = vmatprep.subr.mxu0 0.0
        %3970 = vmatpush1.msra.mxu0 0.0
        %3971 = vmatprep.subr.mxu0 0.0
        %3972 = vmatpush1.msra.mxu0 0.0
        %3973 = vmatprep.subr.mxu0 0.0
        %3974 = vmatpush1.msra.mxu0 0.0
        %3975 = vmatprep.subr.mxu0 0.0
        %3976 = vmatpush1.msra.mxu0 0.0
        %3977 = vmatprep.subr.mxu0 0.0
        %3978 = vmatpush1.msra.mxu0 0.0
        %3979 = vmatprep.subr.mxu0 0.0
        %3980 = vmatpush1.msra.mxu0 0.0
        %3981 = vmatprep.subr.mxu0 0.0
        %3982 = vmatpush1.msra.mxu0 0.0
        %3983 = vmatprep.subr.mxu0 0.0
        %3984 = vmatpush1.msra.mxu0 0.0
        %3985 = vmatprep.subr.mxu0 0.0
        %3986 = vmatpush1.msra.mxu0 0.0
        %3987 = vmatprep.subr.mxu0 0.0
        %3988 = vmatpush1.msra.mxu0 0.0
        %3989 = vmatprep.subr.mxu0 0.0
        %3990 = vmatpush1.msra.mxu0 0.0
        %3991 = vmatprep.subr.mxu0 0.0
        %3992 = vmatpush1.msra.mxu0 0.0
        %3993 = vmatprep.subr.mxu0 0.0
        %3994 = vmatpush1.msra.mxu0 0.0
        %3995 = vmatprep.subr.mxu0 0.0
        %3996 = vmatpush1.msra.mxu0 0.0
        %3997 = vmatprep.subr.mxu0 0.0
        %3998 = vmatpush1.msra.mxu0 0.0
        %3999 = vmatprep.subr.mxu0 0.0
        %4000 = vmatpush1.msra.mxu0 0.0
        %4001 = vmatprep.subr.mxu0 0.0
        %4002 = vmatpush1.msra.mxu0 0.0
        %4003 = vmatprep.subr.mxu0 0.0
        %4004 = vmatpush1.msra.mxu0 0.0
        %4005 = vmatprep.subr.mxu0 0.0
        %4006 = vmatpush1.msra.mxu0 0.0
        %4007 = vmatprep.mubr.f32.mxu0 0.0
        %v4008 = vand.u32 %v388, 4294901760
        %4009 = vmatmul.mubr.f32.gmra.mrb[0].mxu0 %v4008
        %v4010 = vpop.f32.mrb[0].mxu0
        %v4011 = vadd.f32 %v3934, %v4010
        %v4012 = vpop.f32.mrb[0].mxu0
        %4013 = vdwg.mxu0
        %4014 = vmatprep.subr.mxu0 0.0
        %v4015 = vand.u32 %v371, 4294901760
        %4016 = vmatpush1.msra.mxu0 %v4015
        %4017 = vmatprep.subr.mxu0 0.0
        %v4018 = vand.u32 %v3626, 4294901760
        %4019 = vmatpush1.msra.mxu0 %v4018
        %4020 = vmatprep.subr.mxu0 0.0
        %4021 = vmatpush1.msra.mxu0 0.0
        %4022 = vmatprep.subr.mxu0 0.0
        %4023 = vmatpush1.msra.mxu0 0.0
        %4024 = vmatprep.subr.mxu0 0.0
        %4025 = vmatpush1.msra.mxu0 0.0
        %4026 = vmatprep.subr.mxu0 0.0
        %4027 = vmatpush1.msra.mxu0 0.0
        %4028 = vmatprep.subr.mxu0 0.0
        %4029 = vmatpush1.msra.mxu0 0.0
        %4030 = vmatprep.subr.mxu0 0.0
        %4031 = vmatpush1.msra.mxu0 0.0
        %4032 = vmatprep.subr.mxu0 0.0
        %4033 = vmatpush1.msra.mxu0 0.0
        %4034 = vmatprep.subr.mxu0 0.0
        %4035 = vmatpush1.msra.mxu0 0.0
        %4036 = vmatprep.subr.mxu0 0.0
        %4037 = vmatpush1.msra.mxu0 0.0
        %4038 = vmatprep.subr.mxu0 0.0
        %4039 = vmatpush1.msra.mxu0 0.0
        %4040 = vmatprep.subr.mxu0 0.0
        %4041 = vmatpush1.msra.mxu0 0.0
        %4042 = vmatprep.subr.mxu0 0.0
        %4043 = vmatpush1.msra.mxu0 0.0
        %4044 = vmatprep.subr.mxu0 0.0
        %4045 = vmatpush1.msra.mxu0 0.0
        %4046 = vmatprep.subr.mxu0 0.0
        %4047 = vmatpush1.msra.mxu0 0.0
        %4048 = vmatprep.subr.mxu0 0.0
        %4049 = vmatpush1.msra.mxu0 0.0
        %4050 = vmatprep.subr.mxu0 0.0
        %4051 = vmatpush1.msra.mxu0 0.0
        %4052 = vmatprep.subr.mxu0 0.0
        %4053 = vmatpush1.msra.mxu0 0.0
        %4054 = vmatprep.subr.mxu0 0.0
        %4055 = vmatpush1.msra.mxu0 0.0
        %4056 = vmatprep.subr.mxu0 0.0
        %4057 = vmatpush1.msra.mxu0 0.0
        %4058 = vmatprep.subr.mxu0 0.0
        %4059 = vmatpush1.msra.mxu0 0.0
        %4060 = vmatprep.subr.mxu0 0.0
        %4061 = vmatpush1.msra.mxu0 0.0
        %4062 = vmatprep.subr.mxu0 0.0
        %4063 = vmatpush1.msra.mxu0 0.0
        %4064 = vmatprep.subr.mxu0 0.0
        %4065 = vmatpush1.msra.mxu0 0.0
        %4066 = vmatprep.subr.mxu0 0.0
        %4067 = vmatpush1.msra.mxu0 0.0
        %4068 = vmatprep.subr.mxu0 0.0
        %4069 = vmatpush1.msra.mxu0 0.0
        %4070 = vmatprep.subr.mxu0 0.0
        %4071 = vmatpush1.msra.mxu0 0.0
        %4072 = vmatprep.subr.mxu0 0.0
        %4073 = vmatpush1.msra.mxu0 0.0
        %4074 = vmatprep.subr.mxu0 0.0
        %4075 = vmatpush1.msra.mxu0 0.0
        %4076 = vmatprep.subr.mxu0 0.0
        %4077 = vmatpush1.msra.mxu0 0.0
        %4078 = vmatprep.subr.mxu0 0.0
        %4079 = vmatpush1.msra.mxu0 0.0
        %4080 = vmatprep.mubr.f32.mxu0 0.0
        %v4081 = vand.u32 %v388, 4294901760
        %4082 = vmatmul.mubr.f32.gmra.mrb[0].mxu0 %v4081
        %v4083 = vpop.f32.mrb[0].mxu0
        %v4084 = vadd.f32 %v4011, %v4083
        %v4085 = vpop.f32.mrb[0].mxu0
        %4086 = vdwg.mxu0
        %v4088 = vsel %vm386, %v850, 0
        %v4091 = vsel %vm390, %v385, 0
        %4093 = vmatprep.subr.mxu0 0.0
        %4094 = vmatpush1.msra.mxu0 %v384
        %4095 = vmatprep.subr.mxu0 0.0
        %v4096 = vand.u32 %v4091, 4294901760
        %4097 = vmatpush1.msra.mxu0 %v4096
        %4098 = vmatprep.subr.mxu0 0.0
        %4099 = vmatpush1.msra.mxu0 0.0
        %4100 = vmatprep.subr.mxu0 0.0
        %4101 = vmatpush1.msra.mxu0 0.0
        %4102 = vmatprep.subr.mxu0 0.0
        %4103 = vmatpush1.msra.mxu0 0.0
        %4104 = vmatprep.subr.mxu0 0.0
        %4105 = vmatpush1.msra.mxu0 0.0
        %4106 = vmatprep.subr.mxu0 0.0
        %4107 = vmatpush1.msra.mxu0 0.0
        %4108 = vmatprep.subr.mxu0 0.0
        %4109 = vmatpush1.msra.mxu0 0.0
        %4110 = vmatprep.subr.mxu0 0.0
        %4111 = vmatpush1.msra.mxu0 0.0
        %4112 = vmatprep.subr.mxu0 0.0
        %4113 = vmatpush1.msra.mxu0 0.0
        %4114 = vmatprep.subr.mxu0 0.0
        %4115 = vmatpush1.msra.mxu0 0.0
        %4116 = vmatprep.subr.mxu0 0.0
        %4117 = vmatpush1.msra.mxu0 0.0
        %4118 = vmatprep.subr.mxu0 0.0
        %4119 = vmatpush1.msra.mxu0 0.0
        %4120 = vmatprep.subr.mxu0 0.0
        %4121 = vmatpush1.msra.mxu0 0.0
        %4122 = vmatprep.subr.mxu0 0.0
        %4123 = vmatpush1.msra.mxu0 0.0
        %4124 = vmatprep.subr.mxu0 0.0
        %4125 = vmatpush1.msra.mxu0 0.0
        %4126 = vmatprep.subr.mxu0 0.0
        %4127 = vmatpush1.msra.mxu0 0.0
        %4128 = vmatprep.subr.mxu0 0.0
        %4129 = vmatpush1.msra.mxu0 0.0
        %4130 = vmatprep.subr.mxu0 0.0
        %4131 = vmatpush1.msra.mxu0 0.0
        %4132 = vmatprep.subr.mxu0 0.0
        %4133 = vmatpush1.msra.mxu0 0.0
        %4134 = vmatprep.subr.mxu0 0.0
        %4135 = vmatpush1.msra.mxu0 0.0
        %4136 = vmatprep.subr.mxu0 0.0
        %4137 = vmatpush1.msra.mxu0 0.0
        %4138 = vmatprep.subr.mxu0 0.0
        %4139 = vmatpush1.msra.mxu0 0.0
        %4140 = vmatprep.subr.mxu0 0.0
        %4141 = vmatpush1.msra.mxu0 0.0
        %4142 = vmatprep.subr.mxu0 0.0
        %4143 = vmatpush1.msra.mxu0 0.0
        %4144 = vmatprep.subr.mxu0 0.0
        %4145 = vmatpush1.msra.mxu0 0.0
        %4146 = vmatprep.subr.mxu0 0.0
        %4147 = vmatpush1.msra.mxu0 0.0
        %4148 = vmatprep.subr.mxu0 0.0
        %4149 = vmatpush1.msra.mxu0 0.0
        %4150 = vmatprep.subr.mxu0 0.0
        %4151 = vmatpush1.msra.mxu0 0.0
        %4152 = vmatprep.subr.mxu0 0.0
        %4153 = vmatpush1.msra.mxu0 0.0
        %4154 = vmatprep.subr.mxu0 0.0
        %4155 = vmatpush1.msra.mxu0 0.0
        %4156 = vmatprep.subr.mxu0 0.0
        %4157 = vmatpush1.msra.mxu0 0.0
        %4158 = vmatprep.mubr.f32.mxu0 0.0
        %v4159 = vand.u32 %v4088, 4294901760
        %v4160 = vsub.f32 %v4088, %v4159
        %v4161 = vand.u32 %v4160, 4294901760
        %v4162 = vsub.f32 %v4160, %v4161
        %v4163 = vand.u32 %v4162, 4294901760
        %4164 = vmatmul.mubr.f32.gmra.mrb[0].mxu0 %v4163
        %v4165 = vpop.f32.mrb[0].mxu0
        %v4166 = vadd.f32 0.0, %v4165
        %v4167 = vpop.f32.mrb[0].mxu0
        %4168 = vdwg.mxu0
        %4169 = vmatprep.subr.mxu0 0.0
        %v4170 = vsub.f32 %v384, %v384
        %v4171 = vand.u32 %v4170, 4294901760
        %v4172 = vsub.f32 %v4170, %v4171
        %v4173 = vand.u32 %v4172, 4294901760
        %4174 = vmatpush1.msra.mxu0 %v4173
        %4175 = vmatprep.subr.mxu0 0.0
        %v4176 = vand.u32 %v4091, 4294901760
        %v4177 = vsub.f32 %v4091, %v4176
        %v4178 = vand.u32 %v4177, 4294901760
        %v4179 = vsub.f32 %v4177, %v4178
        %v4180 = vand.u32 %v4179, 4294901760
        %4181 = vmatpush1.msra.mxu0 %v4180
        %4182 = vmatprep.subr.mxu0 0.0
        %4183 = vmatpush1.msra.mxu0 0.0
        %4184 = vmatprep.subr.mxu0 0.0
        %4185 = vmatpush1.msra.mxu0 0.0
        %4186 = vmatprep.subr.mxu0 0.0
        %4187 = vmatpush1.msra.mxu0 0.0
        %4188 = vmatprep.subr.mxu0 0.0
        %4189 = vmatpush1.msra.mxu0 0.0
        %4190 = vmatprep.subr.mxu0 0.0
        %4191 = vmatpush1.msra.mxu0 0.0
        %4192 = vmatprep.subr.mxu0 0.0
        %4193 = vmatpush1.msra.mxu0 0.0
        %4194 = vmatprep.subr.mxu0 0.0
        %4195 = vmatpush1.msra.mxu0 0.0
        %4196 = vmatprep.subr.mxu0 0.0
        %4197 = vmatpush1.msra.mxu0 0.0
        %4198 = vmatprep.subr.mxu0 0.0
        %4199 = vmatpush1.msra.mxu0 0.0
        %4200 = vmatprep.subr.mxu0 0.0
        %4201 = vmatpush1.msra.mxu0 0.0
        %4202 = vmatprep.subr.mxu0 0.0
        %4203 = vmatpush1.msra.mxu0 0.0
        %4204 = vmatprep.subr.mxu0 0.0
        %4205 = vmatpush1.msra.mxu0 0.0
        %4206 = vmatprep.subr.mxu0 0.0
        %4207 = vmatpush1.msra.mxu0 0.0
        %4208 = vmatprep.subr.mxu0 0.0
        %4209 = vmatpush1.msra.mxu0 0.0
        %4210 = vmatprep.subr.mxu0 0.0
        %4211 = vmatpush1.msra.mxu0 0.0
        %4212 = vmatprep.subr.mxu0 0.0
        %4213 = vmatpush1.msra.mxu0 0.0
        %4214 = vmatprep.subr.mxu0 0.0
        %4215 = vmatpush1.msra.mxu0 0.0
        %4216 = vmatprep.subr.mxu0 0.0
        %4217 = vmatpush1.msra.mxu0 0.0
        %4218 = vmatprep.subr.mxu0 0.0
        %4219 = vmatpush1.msra.mxu0 0.0
        %4220 = vmatprep.subr.mxu0 0.0
        %4221 = vmatpush1.msra.mxu0 0.0
        %4222 = vmatprep.subr.mxu0 0.0
        %4223 = vmatpush1.msra.mxu0 0.0
        %4224 = vmatprep.subr.mxu0 0.0
        %4225 = vmatpush1.msra.mxu0 0.0
        %4226 = vmatprep.subr.mxu0 0.0
        %4227 = vmatpush1.msra.mxu0 0.0
        %4228 = vmatprep.subr.mxu0 0.0
        %4229 = vmatpush1.msra.mxu0 0.0
        %4230 = vmatprep.subr.mxu0 0.0
        %4231 = vmatpush1.msra.mxu0 0.0
        %4232 = vmatprep.subr.mxu0 0.0
        %4233 = vmatpush1.msra.mxu0 0.0
        %4234 = vmatprep.subr.mxu0 0.0
        %4235 = vmatpush1.msra.mxu0 0.0
        %4236 = vmatprep.subr.mxu0 0.0
        %4237 = vmatpush1.msra.mxu0 0.0
        %4238 = vmatprep.subr.mxu0 0.0
        %4239 = vmatpush1.msra.mxu0 0.0
        %4240 = vmatprep.subr.mxu0 0.0
        %4241 = vmatpush1.msra.mxu0 0.0
        %4242 = vmatprep.mubr.f32.mxu0 0.0
        %v4243 = vand.u32 %v4088, 4294901760
        %4244 = vmatmul.mubr.f32.gmra.mrb[0].mxu0 %v4243
        %v4245 = vpop.f32.mrb[0].mxu0
        %v4246 = vadd.f32 %v4166, %v4245
        %v4247 = vpop.f32.mrb[0].mxu0
        %4248 = vdwg.mxu0
        %4249 = vmatprep.subr.mxu0 0.0
        %v4250 = vsub.f32 %v384, %v384
        %4251 = vmatpush1.msra.mxu0 %v4250
        %4252 = vmatprep.subr.mxu0 0.0
        %v4253 = vand.u32 %v4091, 4294901760
        %v4254 = vsub.f32 %v4091, %v4253
        %4255 = vmatpush1.msra.mxu0 %v4254
        %4256 = vmatprep.subr.mxu0 0.0
        %4257 = vmatpush1.msra.mxu0 0.0
        %4258 = vmatprep.subr.mxu0 0.0
        %4259 = vmatpush1.msra.mxu0 0.0
        %4260 = vmatprep.subr.mxu0 0.0
        %4261 = vmatpush1.msra.mxu0 0.0
        %4262 = vmatprep.subr.mxu0 0.0
        %4263 = vmatpush1.msra.mxu0 0.0
        %4264 = vmatprep.subr.mxu0 0.0
        %4265 = vmatpush1.msra.mxu0 0.0
        %4266 = vmatprep.subr.mxu0 0.0
        %4267 = vmatpush1.msra.mxu0 0.0
        %4268 = vmatprep.subr.mxu0 0.0
        %4269 = vmatpush1.msra.mxu0 0.0
        %4270 = vmatprep.subr.mxu0 0.0
        %4271 = vmatpush1.msra.mxu0 0.0
        %4272 = vmatprep.subr.mxu0 0.0
        %4273 = vmatpush1.msra.mxu0 0.0
        %4274 = vmatprep.subr.mxu0 0.0
        %4275 = vmatpush1.msra.mxu0 0.0
        %4276 = vmatprep.subr.mxu0 0.0
        %4277 = vmatpush1.msra.mxu0 0.0
        %4278 = vmatprep.subr.mxu0 0.0
        %4279 = vmatpush1.msra.mxu0 0.0
        %4280 = vmatprep.subr.mxu0 0.0
        %4281 = vmatpush1.msra.mxu0 0.0
        %4282 = vmatprep.subr.mxu0 0.0
        %4283 = vmatpush1.msra.mxu0 0.0
        %4284 = vmatprep.subr.mxu0 0.0
        %4285 = vmatpush1.msra.mxu0 0.0
        %4286 = vmatprep.subr.mxu0 0.0
        %4287 = vmatpush1.msra.mxu0 0.0
        %4288 = vmatprep.subr.mxu0 0.0
        %4289 = vmatpush1.msra.mxu0 0.0
        %4290 = vmatprep.subr.mxu0 0.0
        %4291 = vmatpush1.msra.mxu0 0.0
        %4292 = vmatprep.subr.mxu0 0.0
        %4293 = vmatpush1.msra.mxu0 0.0
        %4294 = vmatprep.subr.mxu0 0.0
        %4295 = vmatpush1.msra.mxu0 0.0
        %4296 = vmatprep.subr.mxu0 0.0
        %4297 = vmatpush1.msra.mxu0 0.0
        %4298 = vmatprep.subr.mxu0 0.0
        %4299 = vmatpush1.msra.mxu0 0.0
        %4300 = vmatprep.subr.mxu0 0.0
        %4301 = vmatpush1.msra.mxu0 0.0
        %4302 = vmatprep.subr.mxu0 0.0
        %4303 = vmatpush1.msra.mxu0 0.0
        %4304 = vmatprep.subr.mxu0 0.0
        %4305 = vmatpush1.msra.mxu0 0.0
        %4306 = vmatprep.subr.mxu0 0.0
        %4307 = vmatpush1.msra.mxu0 0.0
        %4308 = vmatprep.subr.mxu0 0.0
        %4309 = vmatpush1.msra.mxu0 0.0
        %4310 = vmatprep.subr.mxu0 0.0
        %4311 = vmatpush1.msra.mxu0 0.0
        %4312 = vmatprep.subr.mxu0 0.0
        %4313 = vmatpush1.msra.mxu0 0.0
        %4314 = vmatprep.subr.mxu0 0.0
        %4315 = vmatpush1.msra.mxu0 0.0
        %4316 = vmatprep.mubr.f32.mxu0 0.0
        %v4317 = vand.u32 %v4088, 4294901760
        %v4318 = vsub.f32 %v4088, %v4317
        %4319 = vmatmul.mubr.f32.gmra.mrb[0].mxu0 %v4318
        %v4320 = vpop.f32.mrb[0].mxu0
        %v4321 = vadd.f32 %v4246, %v4320
        %v4322 = vpop.f32.mrb[0].mxu0
        %4323 = vdwg.mxu0
        %4324 = vmatprep.subr.mxu0 0.0
        %4325 = vmatpush1.msra.mxu0 %v384
        %4326 = vmatprep.subr.mxu0 0.0
        %v4327 = vand.u32 %v4091, 4294901760
        %4328 = vmatpush1.msra.mxu0 %v4327
        %4329 = vmatprep.subr.mxu0 0.0
        %4330 = vmatpush1.msra.mxu0 0.0
        %4331 = vmatprep.subr.mxu0 0.0
        %4332 = vmatpush1.msra.mxu0 0.0
        %4333 = vmatprep.subr.mxu0 0.0
        %4334 = vmatpush1.msra.mxu0 0.0
        %4335 = vmatprep.subr.mxu0 0.0
        %4336 = vmatpush1.msra.mxu0 0.0
        %4337 = vmatprep.subr.mxu0 0.0
        %4338 = vmatpush1.msra.mxu0 0.0
        %4339 = vmatprep.subr.mxu0 0.0
        %4340 = vmatpush1.msra.mxu0 0.0
        %4341 = vmatprep.subr.mxu0 0.0
        %4342 = vmatpush1.msra.mxu0 0.0
        %4343 = vmatprep.subr.mxu0 0.0
        %4344 = vmatpush1.msra.mxu0 0.0
        %4345 = vmatprep.subr.mxu0 0.0
        %4346 = vmatpush1.msra.mxu0 0.0
        %4347 = vmatprep.subr.mxu0 0.0
        %4348 = vmatpush1.msra.mxu0 0.0
        %4349 = vmatprep.subr.mxu0 0.0
        %4350 = vmatpush1.msra.mxu0 0.0
        %4351 = vmatprep.subr.mxu0 0.0
        %4352 = vmatpush1.msra.mxu0 0.0
        %4353 = vmatprep.subr.mxu0 0.0
        %4354 = vmatpush1.msra.mxu0 0.0
        %4355 = vmatprep.subr.mxu0 0.0
        %4356 = vmatpush1.msra.mxu0 0.0
        %4357 = vmatprep.subr.mxu0 0.0
        %4358 = vmatpush1.msra.mxu0 0.0
        %4359 = vmatprep.subr.mxu0 0.0
        %4360 = vmatpush1.msra.mxu0 0.0
        %4361 = vmatprep.subr.mxu0 0.0
        %4362 = vmatpush1.msra.mxu0 0.0
        %4363 = vmatprep.subr.mxu0 0.0
        %4364 = vmatpush1.msra.mxu0 0.0
        %4365 = vmatprep.subr.mxu0 0.0
        %4366 = vmatpush1.msra.mxu0 0.0
        %4367 = vmatprep.subr.mxu0 0.0
        %4368 = vmatpush1.msra.mxu0 0.0
        %4369 = vmatprep.subr.mxu0 0.0
        %4370 = vmatpush1.msra.mxu0 0.0
        %4371 = vmatprep.subr.mxu0 0.0
        %4372 = vmatpush1.msra.mxu0 0.0
        %4373 = vmatprep.subr.mxu0 0.0
        %4374 = vmatpush1.msra.mxu0 0.0
        %4375 = vmatprep.subr.mxu0 0.0
        %4376 = vmatpush1.msra.mxu0 0.0
        %4377 = vmatprep.subr.mxu0 0.0
        %4378 = vmatpush1.msra.mxu0 0.0
        %4379 = vmatprep.subr.mxu0 0.0
        %4380 = vmatpush1.msra.mxu0 0.0
        %4381 = vmatprep.subr.mxu0 0.0
        %4382 = vmatpush1.msra.mxu0 0.0
        %4383 = vmatprep.subr.mxu0 0.0
        %4384 = vmatpush1.msra.mxu0 0.0
        %4385 = vmatprep.subr.mxu0 0.0
        %4386 = vmatpush1.msra.mxu0 0.0
        %4387 = vmatprep.subr.mxu0 0.0
        %4388 = vmatpush1.msra.mxu0 0.0
        %4389 = vmatprep.mubr.f32.mxu0 0.0
        %v4390 = vand.u32 %v4088, 4294901760
        %v4391 = vsub.f32 %v4088, %v4390
        %v4392 = vand.u32 %v4391, 4294901760
        %4393 = vmatmul.mubr.f32.gmra.mrb[0].mxu0 %v4392
        %v4394 = vpop.f32.mrb[0].mxu0
        %v4395 = vadd.f32 %v4321, %v4394
        %v4396 = vpop.f32.mrb[0].mxu0
        %4397 = vdwg.mxu0
        %4398 = vmatprep.subr.mxu0 0.0
        %v4399 = vsub.f32 %v384, %v384
        %v4400 = vand.u32 %v4399, 4294901760
        %4401 = vmatpush1.msra.mxu0 %v4400
        %4402 = vmatprep.subr.mxu0 0.0
        %v4403 = vand.u32 %v4091, 4294901760
        %v4404 = vsub.f32 %v4091, %v4403
        %v4405 = vand.u32 %v4404, 4294901760
        %4406 = vmatpush1.msra.mxu0 %v4405
        %4407 = vmatprep.subr.mxu0 0.0
        %4408 = vmatpush1.msra.mxu0 0.0
        %4409 = vmatprep.subr.mxu0 0.0
        %4410 = vmatpush1.msra.mxu0 0.0
        %4411 = vmatprep.subr.mxu0 0.0
        %4412 = vmatpush1.msra.mxu0 0.0
        %4413 = vmatprep.subr.mxu0 0.0
        %4414 = vmatpush1.msra.mxu0 0.0
        %4415 = vmatprep.subr.mxu0 0.0
        %4416 = vmatpush1.msra.mxu0 0.0
        %4417 = vmatprep.subr.mxu0 0.0
        %4418 = vmatpush1.msra.mxu0 0.0
        %4419 = vmatprep.subr.mxu0 0.0
        %4420 = vmatpush1.msra.mxu0 0.0
        %4421 = vmatprep.subr.mxu0 0.0
        %4422 = vmatpush1.msra.mxu0 0.0
        %4423 = vmatprep.subr.mxu0 0.0
        %4424 = vmatpush1.msra.mxu0 0.0
        %4425 = vmatprep.subr.mxu0 0.0
        %4426 = vmatpush1.msra.mxu0 0.0
        %4427 = vmatprep.subr.mxu0 0.0
        %4428 = vmatpush1.msra.mxu0 0.0
        %4429 = vmatprep.subr.mxu0 0.0
        %4430 = vmatpush1.msra.mxu0 0.0
        %4431 = vmatprep.subr.mxu0 0.0
        %4432 = vmatpush1.msra.mxu0 0.0
        %4433 = vmatprep.subr.mxu0 0.0
        %4434 = vmatpush1.msra.mxu0 0.0
        %4435 = vmatprep.subr.mxu0 0.0
        %4436 = vmatpush1.msra.mxu0 0.0
        %4437 = vmatprep.subr.mxu0 0.0
        %4438 = vmatpush1.msra.mxu0 0.0
        %4439 = vmatprep.subr.mxu0 0.0
        %4440 = vmatpush1.msra.mxu0 0.0
        %4441 = vmatprep.subr.mxu0 0.0
        %4442 = vmatpush1.msra.mxu0 0.0
        %4443 = vmatprep.subr.mxu0 0.0
        %4444 = vmatpush1.msra.mxu0 0.0
        %4445 = vmatprep.subr.mxu0 0.0
        %4446 = vmatpush1.msra.mxu0 0.0
        %4447 = vmatprep.subr.mxu0 0.0
        %4448 = vmatpush1.msra.mxu0 0.0
        %4449 = vmatprep.subr.mxu0 0.0
        %4450 = vmatpush1.msra.mxu0 0.0
        %4451 = vmatprep.subr.mxu0 0.0
        %4452 = vmatpush1.msra.mxu0 0.0
        %4453 = vmatprep.subr.mxu0 0.0
        %4454 = vmatpush1.msra.mxu0 0.0
        %4455 = vmatprep.subr.mxu0 0.0
        %4456 = vmatpush1.msra.mxu0 0.0
        %4457 = vmatprep.subr.mxu0 0.0
        %4458 = vmatpush1.msra.mxu0 0.0
        %4459 = vmatprep.subr.mxu0 0.0
        %4460 = vmatpush1.msra.mxu0 0.0
        %4461 = vmatprep.subr.mxu0 0.0
        %4462 = vmatpush1.msra.mxu0 0.0
        %4463 = vmatprep.subr.mxu0 0.0
        %4464 = vmatpush1.msra.mxu0 0.0
        %4465 = vmatprep.subr.mxu0 0.0
        %4466 = vmatpush1.msra.mxu0 0.0
        %4467 = vmatprep.mubr.f32.mxu0 0.0
        %v4468 = vand.u32 %v4088, 4294901760
        %4469 = vmatmul.mubr.f32.gmra.mrb[0].mxu0 %v4468
        %v4470 = vpop.f32.mrb[0].mxu0
        %v4471 = vadd.f32 %v4395, %v4470
        %v4472 = vpop.f32.mrb[0].mxu0
        %4473 = vdwg.mxu0
        %4474 = vmatprep.subr.mxu0 0.0
        %4475 = vmatpush1.msra.mxu0 %v384
        %4476 = vmatprep.subr.mxu0 0.0
        %v4477 = vand.u32 %v4091, 4294901760
        %4478 = vmatpush1.msra.mxu0 %v4477
        %4479 = vmatprep.subr.mxu0 0.0
        %4480 = vmatpush1.msra.mxu0 0.0
        %4481 = vmatprep.subr.mxu0 0.0
        %4482 = vmatpush1.msra.mxu0 0.0
        %4483 = vmatprep.subr.mxu0 0.0
        %4484 = vmatpush1.msra.mxu0 0.0
        %4485 = vmatprep.subr.mxu0 0.0
        %4486 = vmatpush1.msra.mxu0 0.0
        %4487 = vmatprep.subr.mxu0 0.0
        %4488 = vmatpush1.msra.mxu0 0.0
        %4489 = vmatprep.subr.mxu0 0.0
        %4490 = vmatpush1.msra.mxu0 0.0
        %4491 = vmatprep.subr.mxu0 0.0
        %4492 = vmatpush1.msra.mxu0 0.0
        %4493 = vmatprep.subr.mxu0 0.0
        %4494 = vmatpush1.msra.mxu0 0.0
        %4495 = vmatprep.subr.mxu0 0.0
        %4496 = vmatpush1.msra.mxu0 0.0
        %4497 = vmatprep.subr.mxu0 0.0
        %4498 = vmatpush1.msra.mxu0 0.0
        %4499 = vmatprep.subr.mxu0 0.0
        %4500 = vmatpush1.msra.mxu0 0.0
        %4501 = vmatprep.subr.mxu0 0.0
        %4502 = vmatpush1.msra.mxu0 0.0
        %4503 = vmatprep.subr.mxu0 0.0
        %4504 = vmatpush1.msra.mxu0 0.0
        %4505 = vmatprep.subr.mxu0 0.0
        %4506 = vmatpush1.msra.mxu0 0.0
        %4507 = vmatprep.subr.mxu0 0.0
        %4508 = vmatpush1.msra.mxu0 0.0
        %4509 = vmatprep.subr.mxu0 0.0
        %4510 = vmatpush1.msra.mxu0 0.0
        %4511 = vmatprep.subr.mxu0 0.0
        %4512 = vmatpush1.msra.mxu0 0.0
        %4513 = vmatprep.subr.mxu0 0.0
        %4514 = vmatpush1.msra.mxu0 0.0
        %4515 = vmatprep.subr.mxu0 0.0
        %4516 = vmatpush1.msra.mxu0 0.0
        %4517 = vmatprep.subr.mxu0 0.0
        %4518 = vmatpush1.msra.mxu0 0.0
        %4519 = vmatprep.subr.mxu0 0.0
        %4520 = vmatpush1.msra.mxu0 0.0
        %4521 = vmatprep.subr.mxu0 0.0
        %4522 = vmatpush1.msra.mxu0 0.0
        %4523 = vmatprep.subr.mxu0 0.0
        %4524 = vmatpush1.msra.mxu0 0.0
        %4525 = vmatprep.subr.mxu0 0.0
        %4526 = vmatpush1.msra.mxu0 0.0
        %4527 = vmatprep.subr.mxu0 0.0
        %4528 = vmatpush1.msra.mxu0 0.0
        %4529 = vmatprep.subr.mxu0 0.0
        %4530 = vmatpush1.msra.mxu0 0.0
        %4531 = vmatprep.subr.mxu0 0.0
        %4532 = vmatpush1.msra.mxu0 0.0
        %4533 = vmatprep.subr.mxu0 0.0
        %4534 = vmatpush1.msra.mxu0 0.0
        %4535 = vmatprep.subr.mxu0 0.0
        %4536 = vmatpush1.msra.mxu0 0.0
        %4537 = vmatprep.subr.mxu0 0.0
        %4538 = vmatpush1.msra.mxu0 0.0
        %4539 = vmatprep.mubr.f32.mxu0 0.0
        %v4540 = vand.u32 %v4088, 4294901760
        %4541 = vmatmul.mubr.f32.gmra.mrb[0].mxu0 %v4540
        %v4542 = vpop.f32.mrb[0].mxu0
        %v4543 = vadd.f32 %v4471, %v4542
        %v4544 = vpop.f32.mrb[0].mxu0
        %4545 = vdwg.mxu0
        %v4547 = vsel %vm386, %v1312, 0
        %4549 = vmatprep.subr.mxu0 0.0
        %4550 = vmatpush1.msra.mxu0 %v384
        %4551 = vmatprep.subr.mxu0 0.0
        %v4552 = vand.u32 %v4091, 4294901760
        %4553 = vmatpush1.msra.mxu0 %v4552
        %4554 = vmatprep.subr.mxu0 0.0
        %4555 = vmatpush1.msra.mxu0 0.0
        %4556 = vmatprep.subr.mxu0 0.0
        %4557 = vmatpush1.msra.mxu0 0.0
        %4558 = vmatprep.subr.mxu0 0.0
        %4559 = vmatpush1.msra.mxu0 0.0
        %4560 = vmatprep.subr.mxu0 0.0
        %4561 = vmatpush1.msra.mxu0 0.0
        %4562 = vmatprep.subr.mxu0 0.0
        %4563 = vmatpush1.msra.mxu0 0.0
        %4564 = vmatprep.subr.mxu0 0.0
        %4565 = vmatpush1.msra.mxu0 0.0
        %4566 = vmatprep.subr.mxu0 0.0
        %4567 = vmatpush1.msra.mxu0 0.0
        %4568 = vmatprep.subr.mxu0 0.0
        %4569 = vmatpush1.msra.mxu0 0.0
        %4570 = vmatprep.subr.mxu0 0.0
        %4571 = vmatpush1.msra.mxu0 0.0
        %4572 = vmatprep.subr.mxu0 0.0
        %4573 = vmatpush1.msra.mxu0 0.0
        %4574 = vmatprep.subr.mxu0 0.0
        %4575 = vmatpush1.msra.mxu0 0.0
        %4576 = vmatprep.subr.mxu0 0.0
        %4577 = vmatpush1.msra.mxu0 0.0
        %4578 = vmatprep.subr.mxu0 0.0
        %4579 = vmatpush1.msra.mxu0 0.0
        %4580 = vmatprep.subr.mxu0 0.0
        %4581 = vmatpush1.msra.mxu0 0.0
        %4582 = vmatprep.subr.mxu0 0.0
        %4583 = vmatpush1.msra.mxu0 0.0
        %4584 = vmatprep.subr.mxu0 0.0
        %4585 = vmatpush1.msra.mxu0 0.0
        %4586 = vmatprep.subr.mxu0 0.0
        %4587 = vmatpush1.msra.mxu0 0.0
        %4588 = vmatprep.subr.mxu0 0.0
        %4589 = vmatpush1.msra.mxu0 0.0
        %4590 = vmatprep.subr.mxu0 0.0
        %4591 = vmatpush1.msra.mxu0 0.0
        %4592 = vmatprep.subr.mxu0 0.0
        %4593 = vmatpush1.msra.mxu0 0.0
        %4594 = vmatprep.subr.mxu0 0.0
        %4595 = vmatpush1.msra.mxu0 0.0
        %4596 = vmatprep.subr.mxu0 0.0
        %4597 = vmatpush1.msra.mxu0 0.0
        %4598 = vmatprep.subr.mxu0 0.0
        %4599 = vmatpush1.msra.mxu0 0.0
        %4600 = vmatprep.subr.mxu0 0.0
        %4601 = vmatpush1.msra.mxu0 0.0
        %4602 = vmatprep.subr.mxu0 0.0
        %4603 = vmatpush1.msra.mxu0 0.0
        %4604 = vmatprep.subr.mxu0 0.0
        %4605 = vmatpush1.msra.mxu0 0.0
        %4606 = vmatprep.subr.mxu0 0.0
        %4607 = vmatpush1.msra.mxu0 0.0
        %4608 = vmatprep.subr.mxu0 0.0
        %4609 = vmatpush1.msra.mxu0 0.0
        %4610 = vmatprep.subr.mxu0 0.0
        %4611 = vmatpush1.msra.mxu0 0.0
        %4612 = vmatprep.subr.mxu0 0.0
        %4613 = vmatpush1.msra.mxu0 0.0
        %4614 = vmatprep.mubr.f32.mxu0 0.0
        %v4615 = vand.u32 %v4547, 4294901760
        %v4616 = vsub.f32 %v4547, %v4615
        %v4617 = vand.u32 %v4616, 4294901760
        %v4618 = vsub.f32 %v4616, %v4617
        %v4619 = vand.u32 %v4618, 4294901760
        %4620 = vmatmul.mubr.f32.gmra.mrb[0].mxu0 %v4619
        %v4621 = vpop.f32.mrb[0].mxu0
        %v4622 = vadd.f32 0.0, %v4621
        %v4623 = vpop.f32.mrb[0].mxu0
        %4624 = vdwg.mxu0
        %4625 = vmatprep.subr.mxu0 0.0
        %v4626 = vsub.f32 %v384, %v384
        %v4627 = vand.u32 %v4626, 4294901760
        %v4628 = vsub.f32 %v4626, %v4627
        %v4629 = vand.u32 %v4628, 4294901760
        %4630 = vmatpush1.msra.mxu0 %v4629
        %4631 = vmatprep.subr.mxu0 0.0
        %v4632 = vand.u32 %v4091, 4294901760
        %v4633 = vsub.f32 %v4091, %v4632
        %v4634 = vand.u32 %v4633, 4294901760
        %v4635 = vsub.f32 %v4633, %v4634
        %v4636 = vand.u32 %v4635, 4294901760
        %4637 = vmatpush1.msra.mxu0 %v4636
        %4638 = vmatprep.subr.mxu0 0.0
        %4639 = vmatpush1.msra.mxu0 0.0
        %4640 = vmatprep.subr.mxu0 0.0
        %4641 = vmatpush1.msra.mxu0 0.0
        %4642 = vmatprep.subr.mxu0 0.0
        %4643 = vmatpush1.msra.mxu0 0.0
        %4644 = vmatprep.subr.mxu0 0.0
        %4645 = vmatpush1.msra.mxu0 0.0
        %4646 = vmatprep.subr.mxu0 0.0
        %4647 = vmatpush1.msra.mxu0 0.0
        %4648 = vmatprep.subr.mxu0 0.0
        %4649 = vmatpush1.msra.mxu0 0.0
        %4650 = vmatprep.subr.mxu0 0.0
        %4651 = vmatpush1.msra.mxu0 0.0
        %4652 = vmatprep.subr.mxu0 0.0
        %4653 = vmatpush1.msra.mxu0 0.0
        %4654 = vmatprep.subr.mxu0 0.0
        %4655 = vmatpush1.msra.mxu0 0.0
        %4656 = vmatprep.subr.mxu0 0.0
        %4657 = vmatpush1.msra.mxu0 0.0
        %4658 = vmatprep.subr.mxu0 0.0
        %4659 = vmatpush1.msra.mxu0 0.0
        %4660 = vmatprep.subr.mxu0 0.0
        %4661 = vmatpush1.msra.mxu0 0.0
        %4662 = vmatprep.subr.mxu0 0.0
        %4663 = vmatpush1.msra.mxu0 0.0
        %4664 = vmatprep.subr.mxu0 0.0
        %4665 = vmatpush1.msra.mxu0 0.0
        %4666 = vmatprep.subr.mxu0 0.0
        %4667 = vmatpush1.msra.mxu0 0.0
        %4668 = vmatprep.subr.mxu0 0.0
        %4669 = vmatpush1.msra.mxu0 0.0
        %4670 = vmatprep.subr.mxu0 0.0
        %4671 = vmatpush1.msra.mxu0 0.0
        %4672 = vmatprep.subr.mxu0 0.0
        %4673 = vmatpush1.msra.mxu0 0.0
        %4674 = vmatprep.subr.mxu0 0.0
        %4675 = vmatpush1.msra.mxu0 0.0
        %4676 = vmatprep.subr.mxu0 0.0
        %4677 = vmatpush1.msra.mxu0 0.0
        %4678 = vmatprep.subr.mxu0 0.0
        %4679 = vmatpush1.msra.mxu0 0.0
        %4680 = vmatprep.subr.mxu0 0.0
        %4681 = vmatpush1.msra.mxu0 0.0
        %4682 = vmatprep.subr.mxu0 0.0
        %4683 = vmatpush1.msra.mxu0 0.0
        %4684 = vmatprep.subr.mxu0 0.0
        %4685 = vmatpush1.msra.mxu0 0.0
        %4686 = vmatprep.subr.mxu0 0.0
        %4687 = vmatpush1.msra.mxu0 0.0
        %4688 = vmatprep.subr.mxu0 0.0
        %4689 = vmatpush1.msra.mxu0 0.0
        %4690 = vmatprep.subr.mxu0 0.0
        %4691 = vmatpush1.msra.mxu0 0.0
        %4692 = vmatprep.subr.mxu0 0.0
        %4693 = vmatpush1.msra.mxu0 0.0
        %4694 = vmatprep.subr.mxu0 0.0
        %4695 = vmatpush1.msra.mxu0 0.0
        %4696 = vmatprep.subr.mxu0 0.0
        %4697 = vmatpush1.msra.mxu0 0.0
        %4698 = vmatprep.mubr.f32.mxu0 0.0
        %v4699 = vand.u32 %v4547, 4294901760
        %4700 = vmatmul.mubr.f32.gmra.mrb[0].mxu0 %v4699
        %v4701 = vpop.f32.mrb[0].mxu0
        %v4702 = vadd.f32 %v4622, %v4701
        %v4703 = vpop.f32.mrb[0].mxu0
        %4704 = vdwg.mxu0
        %4705 = vmatprep.subr.mxu0 0.0
        %v4706 = vsub.f32 %v384, %v384
        %4707 = vmatpush1.msra.mxu0 %v4706
        %4708 = vmatprep.subr.mxu0 0.0
        %v4709 = vand.u32 %v4091, 4294901760
        %v4710 = vsub.f32 %v4091, %v4709
        %4711 = vmatpush1.msra.mxu0 %v4710
        %4712 = vmatprep.subr.mxu0 0.0
        %4713 = vmatpush1.msra.mxu0 0.0
        %4714 = vmatprep.subr.mxu0 0.0
        %4715 = vmatpush1.msra.mxu0 0.0
        %4716 = vmatprep.subr.mxu0 0.0
        %4717 = vmatpush1.msra.mxu0 0.0
        %4718 = vmatprep.subr.mxu0 0.0
        %4719 = vmatpush1.msra.mxu0 0.0
        %4720 = vmatprep.subr.mxu0 0.0
        %4721 = vmatpush1.msra.mxu0 0.0
        %4722 = vmatprep.subr.mxu0 0.0
        %4723 = vmatpush1.msra.mxu0 0.0
        %4724 = vmatprep.subr.mxu0 0.0
        %4725 = vmatpush1.msra.mxu0 0.0
        %4726 = vmatprep.subr.mxu0 0.0
        %4727 = vmatpush1.msra.mxu0 0.0
        %4728 = vmatprep.subr.mxu0 0.0
        %4729 = vmatpush1.msra.mxu0 0.0
        %4730 = vmatprep.subr.mxu0 0.0
        %4731 = vmatpush1.msra.mxu0 0.0
        %4732 = vmatprep.subr.mxu0 0.0
        %4733 = vmatpush1.msra.mxu0 0.0
        %4734 = vmatprep.subr.mxu0 0.0
        %4735 = vmatpush1.msra.mxu0 0.0
        %4736 = vmatprep.subr.mxu0 0.0
        %4737 = vmatpush1.msra.mxu0 0.0
        %4738 = vmatprep.subr.mxu0 0.0
        %4739 = vmatpush1.msra.mxu0 0.0
        %4740 = vmatprep.subr.mxu0 0.0
        %4741 = vmatpush1.msra.mxu0 0.0
        %4742 = vmatprep.subr.mxu0 0.0
        %4743 = vmatpush1.msra.mxu0 0.0
        %4744 = vmatprep.subr.mxu0 0.0
        %4745 = vmatpush1.msra.mxu0 0.0
        %4746 = vmatprep.subr.mxu0 0.0
        %4747 = vmatpush1.msra.mxu0 0.0
        %4748 = vmatprep.subr.mxu0 0.0
        %4749 = vmatpush1.msra.mxu0 0.0
        %4750 = vmatprep.subr.mxu0 0.0
        %4751 = vmatpush1.msra.mxu0 0.0
        %4752 = vmatprep.subr.mxu0 0.0
        %4753 = vmatpush1.msra.mxu0 0.0
        %4754 = vmatprep.subr.mxu0 0.0
        %4755 = vmatpush1.msra.mxu0 0.0
        %4756 = vmatprep.subr.mxu0 0.0
        %4757 = vmatpush1.msra.mxu0 0.0
        %4758 = vmatprep.subr.mxu0 0.0
        %4759 = vmatpush1.msra.mxu0 0.0
        %4760 = vmatprep.subr.mxu0 0.0
        %4761 = vmatpush1.msra.mxu0 0.0
        %4762 = vmatprep.subr.mxu0 0.0
        %4763 = vmatpush1.msra.mxu0 0.0
        %4764 = vmatprep.subr.mxu0 0.0
        %4765 = vmatpush1.msra.mxu0 0.0
        %4766 = vmatprep.subr.mxu0 0.0
        %4767 = vmatpush1.msra.mxu0 0.0
        %4768 = vmatprep.subr.mxu0 0.0
        %4769 = vmatpush1.msra.mxu0 0.0
        %4770 = vmatprep.subr.mxu0 0.0
        %4771 = vmatpush1.msra.mxu0 0.0
        %4772 = vmatprep.mubr.f32.mxu0 0.0
        %v4773 = vand.u32 %v4547, 4294901760
        %v4774 = vsub.f32 %v4547, %v4773
        %4775 = vmatmul.mubr.f32.gmra.mrb[0].mxu0 %v4774
        %v4776 = vpop.f32.mrb[0].mxu0
        %v4777 = vadd.f32 %v4702, %v4776
        %v4778 = vpop.f32.mrb[0].mxu0
        %4779 = vdwg.mxu0
        %4780 = vmatprep.subr.mxu0 0.0
        %4781 = vmatpush1.msra.mxu0 %v384
        %4782 = vmatprep.subr.mxu0 0.0
        %v4783 = vand.u32 %v4091, 4294901760
        %4784 = vmatpush1.msra.mxu0 %v4783
        %4785 = vmatprep.subr.mxu0 0.0
        %4786 = vmatpush1.msra.mxu0 0.0
        %4787 = vmatprep.subr.mxu0 0.0
        %4788 = vmatpush1.msra.mxu0 0.0
        %4789 = vmatprep.subr.mxu0 0.0
        %4790 = vmatpush1.msra.mxu0 0.0
        %4791 = vmatprep.subr.mxu0 0.0
        %4792 = vmatpush1.msra.mxu0 0.0
        %4793 = vmatprep.subr.mxu0 0.0
        %4794 = vmatpush1.msra.mxu0 0.0
        %4795 = vmatprep.subr.mxu0 0.0
        %4796 = vmatpush1.msra.mxu0 0.0
        %4797 = vmatprep.subr.mxu0 0.0
        %4798 = vmatpush1.msra.mxu0 0.0
        %4799 = vmatprep.subr.mxu0 0.0
        %4800 = vmatpush1.msra.mxu0 0.0
        %4801 = vmatprep.subr.mxu0 0.0
        %4802 = vmatpush1.msra.mxu0 0.0
        %4803 = vmatprep.subr.mxu0 0.0
        %4804 = vmatpush1.msra.mxu0 0.0
        %4805 = vmatprep.subr.mxu0 0.0
        %4806 = vmatpush1.msra.mxu0 0.0
        %4807 = vmatprep.subr.mxu0 0.0
        %4808 = vmatpush1.msra.mxu0 0.0
        %4809 = vmatprep.subr.mxu0 0.0
        %4810 = vmatpush1.msra.mxu0 0.0
        %4811 = vmatprep.subr.mxu0 0.0
        %4812 = vmatpush1.msra.mxu0 0.0
        %4813 = vmatprep.subr.mxu0 0.0
        %4814 = vmatpush1.msra.mxu0 0.0
        %4815 = vmatprep.subr.mxu0 0.0
        %4816 = vmatpush1.msra.mxu0 0.0
        %4817 = vmatprep.subr.mxu0 0.0
        %4818 = vmatpush1.msra.mxu0 0.0
        %4819 = vmatprep.subr.mxu0 0.0
        %4820 = vmatpush1.msra.mxu0 0.0
        %4821 = vmatprep.subr.mxu0 0.0
        %4822 = vmatpush1.msra.mxu0 0.0
        %4823 = vmatprep.subr.mxu0 0.0
        %4824 = vmatpush1.msra.mxu0 0.0
        %4825 = vmatprep.subr.mxu0 0.0
        %4826 = vmatpush1.msra.mxu0 0.0
        %4827 = vmatprep.subr.mxu0 0.0
        %4828 = vmatpush1.msra.mxu0 0.0
        %4829 = vmatprep.subr.mxu0 0.0
        %4830 = vmatpush1.msra.mxu0 0.0
        %4831 = vmatprep.subr.mxu0 0.0
        %4832 = vmatpush1.msra.mxu0 0.0
        %4833 = vmatprep.subr.mxu0 0.0
        %4834 = vmatpush1.msra.mxu0 0.0
        %4835 = vmatprep.subr.mxu0 0.0
        %4836 = vmatpush1.msra.mxu0 0.0
        %4837 = vmatprep.subr.mxu0 0.0
        %4838 = vmatpush1.msra.mxu0 0.0
        %4839 = vmatprep.subr.mxu0 0.0
        %4840 = vmatpush1.msra.mxu0 0.0
        %4841 = vmatprep.subr.mxu0 0.0
        %4842 = vmatpush1.msra.mxu0 0.0
        %4843 = vmatprep.subr.mxu0 0.0
        %4844 = vmatpush1.msra.mxu0 0.0
        %4845 = vmatprep.mubr.f32.mxu0 0.0
        %v4846 = vand.u32 %v4547, 4294901760
        %v4847 = vsub.f32 %v4547, %v4846
        %v4848 = vand.u32 %v4847, 4294901760
        %4849 = vmatmul.mubr.f32.gmra.mrb[0].mxu0 %v4848
        %v4850 = vpop.f32.mrb[0].mxu0
        %v4851 = vadd.f32 %v4777, %v4850
        %v4852 = vpop.f32.mrb[0].mxu0
        %4853 = vdwg.mxu0
        %4854 = vmatprep.subr.mxu0 0.0
        %v4855 = vsub.f32 %v384, %v384
        %v4856 = vand.u32 %v4855, 4294901760
        %4857 = vmatpush1.msra.mxu0 %v4856
        %4858 = vmatprep.subr.mxu0 0.0
        %v4859 = vand.u32 %v4091, 4294901760
        %v4860 = vsub.f32 %v4091, %v4859
        %v4861 = vand.u32 %v4860, 4294901760
        %4862 = vmatpush1.msra.mxu0 %v4861
        %4863 = vmatprep.subr.mxu0 0.0
        %4864 = vmatpush1.msra.mxu0 0.0
        %4865 = vmatprep.subr.mxu0 0.0
        %4866 = vmatpush1.msra.mxu0 0.0
        %4867 = vmatprep.subr.mxu0 0.0
        %4868 = vmatpush1.msra.mxu0 0.0
        %4869 = vmatprep.subr.mxu0 0.0
        %4870 = vmatpush1.msra.mxu0 0.0
        %4871 = vmatprep.subr.mxu0 0.0
        %4872 = vmatpush1.msra.mxu0 0.0
        %4873 = vmatprep.subr.mxu0 0.0
        %4874 = vmatpush1.msra.mxu0 0.0
        %4875 = vmatprep.subr.mxu0 0.0
        %4876 = vmatpush1.msra.mxu0 0.0
        %4877 = vmatprep.subr.mxu0 0.0
        %4878 = vmatpush1.msra.mxu0 0.0
        %4879 = vmatprep.subr.mxu0 0.0
        %4880 = vmatpush1.msra.mxu0 0.0
        %4881 = vmatprep.subr.mxu0 0.0
        %4882 = vmatpush1.msra.mxu0 0.0
        %4883 = vmatprep.subr.mxu0 0.0
        %4884 = vmatpush1.msra.mxu0 0.0
        %4885 = vmatprep.subr.mxu0 0.0
        %4886 = vmatpush1.msra.mxu0 0.0
        %4887 = vmatprep.subr.mxu0 0.0
        %4888 = vmatpush1.msra.mxu0 0.0
        %4889 = vmatprep.subr.mxu0 0.0
        %4890 = vmatpush1.msra.mxu0 0.0
        %4891 = vmatprep.subr.mxu0 0.0
        %4892 = vmatpush1.msra.mxu0 0.0
        %4893 = vmatprep.subr.mxu0 0.0
        %4894 = vmatpush1.msra.mxu0 0.0
        %4895 = vmatprep.subr.mxu0 0.0
        %4896 = vmatpush1.msra.mxu0 0.0
        %4897 = vmatprep.subr.mxu0 0.0
        %4898 = vmatpush1.msra.mxu0 0.0
        %4899 = vmatprep.subr.mxu0 0.0
        %4900 = vmatpush1.msra.mxu0 0.0
        %4901 = vmatprep.subr.mxu0 0.0
        %4902 = vmatpush1.msra.mxu0 0.0
        %4903 = vmatprep.subr.mxu0 0.0
        %4904 = vmatpush1.msra.mxu0 0.0
        %4905 = vmatprep.subr.mxu0 0.0
        %4906 = vmatpush1.msra.mxu0 0.0
        %4907 = vmatprep.subr.mxu0 0.0
        %4908 = vmatpush1.msra.mxu0 0.0
        %4909 = vmatprep.subr.mxu0 0.0
        %4910 = vmatpush1.msra.mxu0 0.0
        %4911 = vmatprep.subr.mxu0 0.0
        %4912 = vmatpush1.msra.mxu0 0.0
        %4913 = vmatprep.subr.mxu0 0.0
        %4914 = vmatpush1.msra.mxu0 0.0
        %4915 = vmatprep.subr.mxu0 0.0
        %4916 = vmatpush1.msra.mxu0 0.0
        %4917 = vmatprep.subr.mxu0 0.0
        %4918 = vmatpush1.msra.mxu0 0.0
        %4919 = vmatprep.subr.mxu0 0.0
        %4920 = vmatpush1.msra.mxu0 0.0
        %4921 = vmatprep.subr.mxu0 0.0
        %4922 = vmatpush1.msra.mxu0 0.0
        %4923 = vmatprep.mubr.f32.mxu0 0.0
        %v4924 = vand.u32 %v4547, 4294901760
        %4925 = vmatmul.mubr.f32.gmra.mrb[0].mxu0 %v4924
        %v4926 = vpop.f32.mrb[0].mxu0
        %v4927 = vadd.f32 %v4851, %v4926
        %v4928 = vpop.f32.mrb[0].mxu0
        %4929 = vdwg.mxu0
        %4930 = vmatprep.subr.mxu0 0.0
        %4931 = vmatpush1.msra.mxu0 %v384
        %4932 = vmatprep.subr.mxu0 0.0
        %v4933 = vand.u32 %v4091, 4294901760
        %4934 = vmatpush1.msra.mxu0 %v4933
        %4935 = vmatprep.subr.mxu0 0.0
        %4936 = vmatpush1.msra.mxu0 0.0
        %4937 = vmatprep.subr.mxu0 0.0
        %4938 = vmatpush1.msra.mxu0 0.0
        %4939 = vmatprep.subr.mxu0 0.0
        %4940 = vmatpush1.msra.mxu0 0.0
        %4941 = vmatprep.subr.mxu0 0.0
        %4942 = vmatpush1.msra.mxu0 0.0
        %4943 = vmatprep.subr.mxu0 0.0
        %4944 = vmatpush1.msra.mxu0 0.0
        %4945 = vmatprep.subr.mxu0 0.0
        %4946 = vmatpush1.msra.mxu0 0.0
        %4947 = vmatprep.subr.mxu0 0.0
        %4948 = vmatpush1.msra.mxu0 0.0
        %4949 = vmatprep.subr.mxu0 0.0
        %4950 = vmatpush1.msra.mxu0 0.0
        %4951 = vmatprep.subr.mxu0 0.0
        %4952 = vmatpush1.msra.mxu0 0.0
        %4953 = vmatprep.subr.mxu0 0.0
        %4954 = vmatpush1.msra.mxu0 0.0
        %4955 = vmatprep.subr.mxu0 0.0
        %4956 = vmatpush1.msra.mxu0 0.0
        %4957 = vmatprep.subr.mxu0 0.0
        %4958 = vmatpush1.msra.mxu0 0.0
        %4959 = vmatprep.subr.mxu0 0.0
        %4960 = vmatpush1.msra.mxu0 0.0
        %4961 = vmatprep.subr.mxu0 0.0
        %4962 = vmatpush1.msra.mxu0 0.0
        %4963 = vmatprep.subr.mxu0 0.0
        %4964 = vmatpush1.msra.mxu0 0.0
        %4965 = vmatprep.subr.mxu0 0.0
        %4966 = vmatpush1.msra.mxu0 0.0
        %4967 = vmatprep.subr.mxu0 0.0
        %4968 = vmatpush1.msra.mxu0 0.0
        %4969 = vmatprep.subr.mxu0 0.0
        %4970 = vmatpush1.msra.mxu0 0.0
        %4971 = vmatprep.subr.mxu0 0.0
        %4972 = vmatpush1.msra.mxu0 0.0
        %4973 = vmatprep.subr.mxu0 0.0
        %4974 = vmatpush1.msra.mxu0 0.0
        %4975 = vmatprep.subr.mxu0 0.0
        %4976 = vmatpush1.msra.mxu0 0.0
        %4977 = vmatprep.subr.mxu0 0.0
        %4978 = vmatpush1.msra.mxu0 0.0
        %4979 = vmatprep.subr.mxu0 0.0
        %4980 = vmatpush1.msra.mxu0 0.0
        %4981 = vmatprep.subr.mxu0 0.0
        %4982 = vmatpush1.msra.mxu0 0.0
        %4983 = vmatprep.subr.mxu0 0.0
        %4984 = vmatpush1.msra.mxu0 0.0
        %4985 = vmatprep.subr.mxu0 0.0
        %4986 = vmatpush1.msra.mxu0 0.0
        %4987 = vmatprep.subr.mxu0 0.0
        %4988 = vmatpush1.msra.mxu0 0.0
        %4989 = vmatprep.subr.mxu0 0.0
        %4990 = vmatpush1.msra.mxu0 0.0
        %4991 = vmatprep.subr.mxu0 0.0
        %4992 = vmatpush1.msra.mxu0 0.0
        %4993 = vmatprep.subr.mxu0 0.0
        %4994 = vmatpush1.msra.mxu0 0.0
        %4995 = vmatprep.mubr.f32.mxu0 0.0
        %v4996 = vand.u32 %v4547, 4294901760
        %4997 = vmatmul.mubr.f32.gmra.mrb[0].mxu0 %v4996
        %v4998 = vpop.f32.mrb[0].mxu0
        %v4999 = vadd.f32 %v4927, %v4998
        %v5000 = vpop.f32.mrb[0].mxu0
        %5001 = vdwg.mxu0
        %v5003 = vsel %vm386, %v1774, 0
        %5005 = vmatprep.subr.mxu0 0.0
        %5006 = vmatpush1.msra.mxu0 %v384
        %5007 = vmatprep.subr.mxu0 0.0
        %v5008 = vand.u32 %v4091, 4294901760
        %5009 = vmatpush1.msra.mxu0 %v5008
        %5010 = vmatprep.subr.mxu0 0.0
        %5011 = vmatpush1.msra.mxu0 0.0
        %5012 = vmatprep.subr.mxu0 0.0
        %5013 = vmatpush1.msra.mxu0 0.0
        %5014 = vmatprep.subr.mxu0 0.0
        %5015 = vmatpush1.msra.mxu0 0.0
        %5016 = vmatprep.subr.mxu0 0.0
        %5017 = vmatpush1.msra.mxu0 0.0
        %5018 = vmatprep.subr.mxu0 0.0
        %5019 = vmatpush1.msra.mxu0 0.0
        %5020 = vmatprep.subr.mxu0 0.0
        %5021 = vmatpush1.msra.mxu0 0.0
        %5022 = vmatprep.subr.mxu0 0.0
        %5023 = vmatpush1.msra.mxu0 0.0
        %5024 = vmatprep.subr.mxu0 0.0
        %5025 = vmatpush1.msra.mxu0 0.0
        %5026 = vmatprep.subr.mxu0 0.0
        %5027 = vmatpush1.msra.mxu0 0.0
        %5028 = vmatprep.subr.mxu0 0.0
        %5029 = vmatpush1.msra.mxu0 0.0
        %5030 = vmatprep.subr.mxu0 0.0
        %5031 = vmatpush1.msra.mxu0 0.0
        %5032 = vmatprep.subr.mxu0 0.0
        %5033 = vmatpush1.msra.mxu0 0.0
        %5034 = vmatprep.subr.mxu0 0.0
        %5035 = vmatpush1.msra.mxu0 0.0
        %5036 = vmatprep.subr.mxu0 0.0
        %5037 = vmatpush1.msra.mxu0 0.0
        %5038 = vmatprep.subr.mxu0 0.0
        %5039 = vmatpush1.msra.mxu0 0.0
        %5040 = vmatprep.subr.mxu0 0.0
        %5041 = vmatpush1.msra.mxu0 0.0
        %5042 = vmatprep.subr.mxu0 0.0
        %5043 = vmatpush1.msra.mxu0 0.0
        %5044 = vmatprep.subr.mxu0 0.0
        %5045 = vmatpush1.msra.mxu0 0.0
        %5046 = vmatprep.subr.mxu0 0.0
        %5047 = vmatpush1.msra.mxu0 0.0
        %5048 = vmatprep.subr.mxu0 0.0
        %5049 = vmatpush1.msra.mxu0 0.0
        %5050 = vmatprep.subr.mxu0 0.0
        %5051 = vmatpush1.msra.mxu0 0.0
        %5052 = vmatprep.subr.mxu0 0.0
        %5053 = vmatpush1.msra.mxu0 0.0
        %5054 = vmatprep.subr.mxu0 0.0
        %5055 = vmatpush1.msra.mxu0 0.0
        %5056 = vmatprep.subr.mxu0 0.0
        %5057 = vmatpush1.msra.mxu0 0.0
        %5058 = vmatprep.subr.mxu0 0.0
        %5059 = vmatpush1.msra.mxu0 0.0
        %5060 = vmatprep.subr.mxu0 0.0
        %5061 = vmatpush1.msra.mxu0 0.0
        %5062 = vmatprep.subr.mxu0 0.0
        %5063 = vmatpush1.msra.mxu0 0.0
        %5064 = vmatprep.subr.mxu0 0.0
        %5065 = vmatpush1.msra.mxu0 0.0
        %5066 = vmatprep.subr.mxu0 0.0
        %5067 = vmatpush1.msra.mxu0 0.0
        %5068 = vmatprep.subr.mxu0 0.0
        %5069 = vmatpush1.msra.mxu0 0.0
        %5070 = vmatprep.mubr.f32.mxu0 0.0
        %v5071 = vand.u32 %v5003, 4294901760
        %v5072 = vsub.f32 %v5003, %v5071
        %v5073 = vand.u32 %v5072, 4294901760
        %v5074 = vsub.f32 %v5072, %v5073
        %v5075 = vand.u32 %v5074, 4294901760
        %5076 = vmatmul.mubr.f32.gmra.mrb[0].mxu0 %v5075
        %v5077 = vpop.f32.mrb[0].mxu0
        %v5078 = vadd.f32 0.0, %v5077
        %v5079 = vpop.f32.mrb[0].mxu0
        %5080 = vdwg.mxu0
        %5081 = vmatprep.subr.mxu0 0.0
        %v5082 = vsub.f32 %v384, %v384
        %v5083 = vand.u32 %v5082, 4294901760
        %v5084 = vsub.f32 %v5082, %v5083
        %v5085 = vand.u32 %v5084, 4294901760
        %5086 = vmatpush1.msra.mxu0 %v5085
        %5087 = vmatprep.subr.mxu0 0.0
        %v5088 = vand.u32 %v4091, 4294901760
        %v5089 = vsub.f32 %v4091, %v5088
        %v5090 = vand.u32 %v5089, 4294901760
        %v5091 = vsub.f32 %v5089, %v5090
        %v5092 = vand.u32 %v5091, 4294901760
        %5093 = vmatpush1.msra.mxu0 %v5092
        %5094 = vmatprep.subr.mxu0 0.0
        %5095 = vmatpush1.msra.mxu0 0.0
        %5096 = vmatprep.subr.mxu0 0.0
        %5097 = vmatpush1.msra.mxu0 0.0
        %5098 = vmatprep.subr.mxu0 0.0
        %5099 = vmatpush1.msra.mxu0 0.0
        %5100 = vmatprep.subr.mxu0 0.0
        %5101 = vmatpush1.msra.mxu0 0.0
        %5102 = vmatprep.subr.mxu0 0.0
        %5103 = vmatpush1.msra.mxu0 0.0
        %5104 = vmatprep.subr.mxu0 0.0
        %5105 = vmatpush1.msra.mxu0 0.0
        %5106 = vmatprep.subr.mxu0 0.0
        %5107 = vmatpush1.msra.mxu0 0.0
        %5108 = vmatprep.subr.mxu0 0.0
        %5109 = vmatpush1.msra.mxu0 0.0
        %5110 = vmatprep.subr.mxu0 0.0
        %5111 = vmatpush1.msra.mxu0 0.0
        %5112 = vmatprep.subr.mxu0 0.0
        %5113 = vmatpush1.msra.mxu0 0.0
        %5114 = vmatprep.subr.mxu0 0.0
        %5115 = vmatpush1.msra.mxu0 0.0
        %5116 = vmatprep.subr.mxu0 0.0
        %5117 = vmatpush1.msra.mxu0 0.0
        %5118 = vmatprep.subr.mxu0 0.0
        %5119 = vmatpush1.msra.mxu0 0.0
        %5120 = vmatprep.subr.mxu0 0.0
        %5121 = vmatpush1.msra.mxu0 0.0
        %5122 = vmatprep.subr.mxu0 0.0
        %5123 = vmatpush1.msra.mxu0 0.0
        %5124 = vmatprep.subr.mxu0 0.0
        %5125 = vmatpush1.msra.mxu0 0.0
        %5126 = vmatprep.subr.mxu0 0.0
        %5127 = vmatpush1.msra.mxu0 0.0
        %5128 = vmatprep.subr.mxu0 0.0
        %5129 = vmatpush1.msra.mxu0 0.0
        %5130 = vmatprep.subr.mxu0 0.0
        %5131 = vmatpush1.msra.mxu0 0.0
        %5132 = vmatprep.subr.mxu0 0.0
        %5133 = vmatpush1.msra.mxu0 0.0
        %5134 = vmatprep.subr.mxu0 0.0
        %5135 = vmatpush1.msra.mxu0 0.0
        %5136 = vmatprep.subr.mxu0 0.0
        %5137 = vmatpush1.msra.mxu0 0.0
        %5138 = vmatprep.subr.mxu0 0.0
        %5139 = vmatpush1.msra.mxu0 0.0
        %5140 = vmatprep.subr.mxu0 0.0
        %5141 = vmatpush1.msra.mxu0 0.0
        %5142 = vmatprep.subr.mxu0 0.0
        %5143 = vmatpush1.msra.mxu0 0.0
        %5144 = vmatprep.subr.mxu0 0.0
        %5145 = vmatpush1.msra.mxu0 0.0
        %5146 = vmatprep.subr.mxu0 0.0
        %5147 = vmatpush1.msra.mxu0 0.0
        %5148 = vmatprep.subr.mxu0 0.0
        %5149 = vmatpush1.msra.mxu0 0.0
        %5150 = vmatprep.subr.mxu0 0.0
        %5151 = vmatpush1.msra.mxu0 0.0
        %5152 = vmatprep.subr.mxu0 0.0
        %5153 = vmatpush1.msra.mxu0 0.0
        %5154 = vmatprep.mubr.f32.mxu0 0.0
        %v5155 = vand.u32 %v5003, 4294901760
        %5156 = vmatmul.mubr.f32.gmra.mrb[0].mxu0 %v5155
        %v5157 = vpop.f32.mrb[0].mxu0
        %v5158 = vadd.f32 %v5078, %v5157
        %v5159 = vpop.f32.mrb[0].mxu0
        %5160 = vdwg.mxu0
        %5161 = vmatprep.subr.mxu0 0.0
        %v5162 = vsub.f32 %v384, %v384
        %5163 = vmatpush1.msra.mxu0 %v5162
        %5164 = vmatprep.subr.mxu0 0.0
        %v5165 = vand.u32 %v4091, 4294901760
        %v5166 = vsub.f32 %v4091, %v5165
        %5167 = vmatpush1.msra.mxu0 %v5166
        %5168 = vmatprep.subr.mxu0 0.0
        %5169 = vmatpush1.msra.mxu0 0.0
        %5170 = vmatprep.subr.mxu0 0.0
        %5171 = vmatpush1.msra.mxu0 0.0
        %5172 = vmatprep.subr.mxu0 0.0
        %5173 = vmatpush1.msra.mxu0 0.0
        %5174 = vmatprep.subr.mxu0 0.0
        %5175 = vmatpush1.msra.mxu0 0.0
        %5176 = vmatprep.subr.mxu0 0.0
        %5177 = vmatpush1.msra.mxu0 0.0
        %5178 = vmatprep.subr.mxu0 0.0
        %5179 = vmatpush1.msra.mxu0 0.0
        %5180 = vmatprep.subr.mxu0 0.0
        %5181 = vmatpush1.msra.mxu0 0.0
        %5182 = vmatprep.subr.mxu0 0.0
        %5183 = vmatpush1.msra.mxu0 0.0
        %5184 = vmatprep.subr.mxu0 0.0
        %5185 = vmatpush1.msra.mxu0 0.0
        %5186 = vmatprep.subr.mxu0 0.0
        %5187 = vmatpush1.msra.mxu0 0.0
        %5188 = vmatprep.subr.mxu0 0.0
        %5189 = vmatpush1.msra.mxu0 0.0
        %5190 = vmatprep.subr.mxu0 0.0
        %5191 = vmatpush1.msra.mxu0 0.0
        %5192 = vmatprep.subr.mxu0 0.0
        %5193 = vmatpush1.msra.mxu0 0.0
        %5194 = vmatprep.subr.mxu0 0.0
        %5195 = vmatpush1.msra.mxu0 0.0
        %5196 = vmatprep.subr.mxu0 0.0
        %5197 = vmatpush1.msra.mxu0 0.0
        %5198 = vmatprep.subr.mxu0 0.0
        %5199 = vmatpush1.msra.mxu0 0.0
        %5200 = vmatprep.subr.mxu0 0.0
        %5201 = vmatpush1.msra.mxu0 0.0
        %5202 = vmatprep.subr.mxu0 0.0
        %5203 = vmatpush1.msra.mxu0 0.0
        %5204 = vmatprep.subr.mxu0 0.0
        %5205 = vmatpush1.msra.mxu0 0.0
        %5206 = vmatprep.subr.mxu0 0.0
        %5207 = vmatpush1.msra.mxu0 0.0
        %5208 = vmatprep.subr.mxu0 0.0
        %5209 = vmatpush1.msra.mxu0 0.0
        %5210 = vmatprep.subr.mxu0 0.0
        %5211 = vmatpush1.msra.mxu0 0.0
        %5212 = vmatprep.subr.mxu0 0.0
        %5213 = vmatpush1.msra.mxu0 0.0
        %5214 = vmatprep.subr.mxu0 0.0
        %5215 = vmatpush1.msra.mxu0 0.0
        %5216 = vmatprep.subr.mxu0 0.0
        %5217 = vmatpush1.msra.mxu0 0.0
        %5218 = vmatprep.subr.mxu0 0.0
        %5219 = vmatpush1.msra.mxu0 0.0
        %5220 = vmatprep.subr.mxu0 0.0
        %5221 = vmatpush1.msra.mxu0 0.0
        %5222 = vmatprep.subr.mxu0 0.0
        %5223 = vmatpush1.msra.mxu0 0.0
        %5224 = vmatprep.subr.mxu0 0.0
        %5225 = vmatpush1.msra.mxu0 0.0
        %5226 = vmatprep.subr.mxu0 0.0
        %5227 = vmatpush1.msra.mxu0 0.0
        %5228 = vmatprep.mubr.f32.mxu0 0.0
        %v5229 = vand.u32 %v5003, 4294901760
        %v5230 = vsub.f32 %v5003, %v5229
        %5231 = vmatmul.mubr.f32.gmra.mrb[0].mxu0 %v5230
        %v5232 = vpop.f32.mrb[0].mxu0
        %v5233 = vadd.f32 %v5158, %v5232
        %v5234 = vpop.f32.mrb[0].mxu0
        %5235 = vdwg.mxu0
        %5236 = vmatprep.subr.mxu0 0.0
        %5237 = vmatpush1.msra.mxu0 %v384
        %5238 = vmatprep.subr.mxu0 0.0
        %v5239 = vand.u32 %v4091, 4294901760
        %5240 = vmatpush1.msra.mxu0 %v5239
        %5241 = vmatprep.subr.mxu0 0.0
        %5242 = vmatpush1.msra.mxu0 0.0
        %5243 = vmatprep.subr.mxu0 0.0
        %5244 = vmatpush1.msra.mxu0 0.0
        %5245 = vmatprep.subr.mxu0 0.0
        %5246 = vmatpush1.msra.mxu0 0.0
        %5247 = vmatprep.subr.mxu0 0.0
        %5248 = vmatpush1.msra.mxu0 0.0
        %5249 = vmatprep.subr.mxu0 0.0
        %5250 = vmatpush1.msra.mxu0 0.0
        %5251 = vmatprep.subr.mxu0 0.0
        %5252 = vmatpush1.msra.mxu0 0.0
        %5253 = vmatprep.subr.mxu0 0.0
        %5254 = vmatpush1.msra.mxu0 0.0
        %5255 = vmatprep.subr.mxu0 0.0
        %5256 = vmatpush1.msra.mxu0 0.0
        %5257 = vmatprep.subr.mxu0 0.0
        %5258 = vmatpush1.msra.mxu0 0.0
        %5259 = vmatprep.subr.mxu0 0.0
        %5260 = vmatpush1.msra.mxu0 0.0
        %5261 = vmatprep.subr.mxu0 0.0
        %5262 = vmatpush1.msra.mxu0 0.0
        %5263 = vmatprep.subr.mxu0 0.0
        %5264 = vmatpush1.msra.mxu0 0.0
        %5265 = vmatprep.subr.mxu0 0.0
        %5266 = vmatpush1.msra.mxu0 0.0
        %5267 = vmatprep.subr.mxu0 0.0
        %5268 = vmatpush1.msra.mxu0 0.0
        %5269 = vmatprep.subr.mxu0 0.0
        %5270 = vmatpush1.msra.mxu0 0.0
        %5271 = vmatprep.subr.mxu0 0.0
        %5272 = vmatpush1.msra.mxu0 0.0
        %5273 = vmatprep.subr.mxu0 0.0
        %5274 = vmatpush1.msra.mxu0 0.0
        %5275 = vmatprep.subr.mxu0 0.0
        %5276 = vmatpush1.msra.mxu0 0.0
        %5277 = vmatprep.subr.mxu0 0.0
        %5278 = vmatpush1.msra.mxu0 0.0
        %5279 = vmatprep.subr.mxu0 0.0
        %5280 = vmatpush1.msra.mxu0 0.0
        %5281 = vmatprep.subr.mxu0 0.0
        %5282 = vmatpush1.msra.mxu0 0.0
        %5283 = vmatprep.subr.mxu0 0.0
        %5284 = vmatpush1.msra.mxu0 0.0
        %5285 = vmatprep.subr.mxu0 0.0
        %5286 = vmatpush1.msra.mxu0 0.0
        %5287 = vmatprep.subr.mxu0 0.0
        %5288 = vmatpush1.msra.mxu0 0.0
        %5289 = vmatprep.subr.mxu0 0.0
        %5290 = vmatpush1.msra.mxu0 0.0
        %5291 = vmatprep.subr.mxu0 0.0
        %5292 = vmatpush1.msra.mxu0 0.0
        %5293 = vmatprep.subr.mxu0 0.0
        %5294 = vmatpush1.msra.mxu0 0.0
        %5295 = vmatprep.subr.mxu0 0.0
        %5296 = vmatpush1.msra.mxu0 0.0
        %5297 = vmatprep.subr.mxu0 0.0
        %5298 = vmatpush1.msra.mxu0 0.0
        %5299 = vmatprep.subr.mxu0 0.0
        %5300 = vmatpush1.msra.mxu0 0.0
        %5301 = vmatprep.mubr.f32.mxu0 0.0
        %v5302 = vand.u32 %v5003, 4294901760
        %v5303 = vsub.f32 %v5003, %v5302
        %v5304 = vand.u32 %v5303, 4294901760
        %5305 = vmatmul.mubr.f32.gmra.mrb[0].mxu0 %v5304
        %v5306 = vpop.f32.mrb[0].mxu0
        %v5307 = vadd.f32 %v5233, %v5306
        %v5308 = vpop.f32.mrb[0].mxu0
        %5309 = vdwg.mxu0
        %5310 = vmatprep.subr.mxu0 0.0
        %v5311 = vsub.f32 %v384, %v384
        %v5312 = vand.u32 %v5311, 4294901760
        %5313 = vmatpush1.msra.mxu0 %v5312
        %5314 = vmatprep.subr.mxu0 0.0
        %v5315 = vand.u32 %v4091, 4294901760
        %v5316 = vsub.f32 %v4091, %v5315
        %v5317 = vand.u32 %v5316, 4294901760
        %5318 = vmatpush1.msra.mxu0 %v5317
        %5319 = vmatprep.subr.mxu0 0.0
        %5320 = vmatpush1.msra.mxu0 0.0
        %5321 = vmatprep.subr.mxu0 0.0
        %5322 = vmatpush1.msra.mxu0 0.0
        %5323 = vmatprep.subr.mxu0 0.0
        %5324 = vmatpush1.msra.mxu0 0.0
        %5325 = vmatprep.subr.mxu0 0.0
        %5326 = vmatpush1.msra.mxu0 0.0
        %5327 = vmatprep.subr.mxu0 0.0
        %5328 = vmatpush1.msra.mxu0 0.0
        %5329 = vmatprep.subr.mxu0 0.0
        %5330 = vmatpush1.msra.mxu0 0.0
        %5331 = vmatprep.subr.mxu0 0.0
        %5332 = vmatpush1.msra.mxu0 0.0
        %5333 = vmatprep.subr.mxu0 0.0
        %5334 = vmatpush1.msra.mxu0 0.0
        %5335 = vmatprep.subr.mxu0 0.0
        %5336 = vmatpush1.msra.mxu0 0.0
        %5337 = vmatprep.subr.mxu0 0.0
        %5338 = vmatpush1.msra.mxu0 0.0
        %5339 = vmatprep.subr.mxu0 0.0
        %5340 = vmatpush1.msra.mxu0 0.0
        %5341 = vmatprep.subr.mxu0 0.0
        %5342 = vmatpush1.msra.mxu0 0.0
        %5343 = vmatprep.subr.mxu0 0.0
        %5344 = vmatpush1.msra.mxu0 0.0
        %5345 = vmatprep.subr.mxu0 0.0
        %5346 = vmatpush1.msra.mxu0 0.0
        %5347 = vmatprep.subr.mxu0 0.0
        %5348 = vmatpush1.msra.mxu0 0.0
        %5349 = vmatprep.subr.mxu0 0.0
        %5350 = vmatpush1.msra.mxu0 0.0
        %5351 = vmatprep.subr.mxu0 0.0
        %5352 = vmatpush1.msra.mxu0 0.0
        %5353 = vmatprep.subr.mxu0 0.0
        %5354 = vmatpush1.msra.mxu0 0.0
        %5355 = vmatprep.subr.mxu0 0.0
        %5356 = vmatpush1.msra.mxu0 0.0
        %5357 = vmatprep.subr.mxu0 0.0
        %5358 = vmatpush1.msra.mxu0 0.0
        %5359 = vmatprep.subr.mxu0 0.0
        %5360 = vmatpush1.msra.mxu0 0.0
        %5361 = vmatprep.subr.mxu0 0.0
        %5362 = vmatpush1.msra.mxu0 0.0
        %5363 = vmatprep.subr.mxu0 0.0
        %5364 = vmatpush1.msra.mxu0 0.0
        %5365 = vmatprep.subr.mxu0 0.0
        %5366 = vmatpush1.msra.mxu0 0.0
        %5367 = vmatprep.subr.mxu0 0.0
        %5368 = vmatpush1.msra.mxu0 0.0
        %5369 = vmatprep.subr.mxu0 0.0
        %5370 = vmatpush1.msra.mxu0 0.0
        %5371 = vmatprep.subr.mxu0 0.0
        %5372 = vmatpush1.msra.mxu0 0.0
        %5373 = vmatprep.subr.mxu0 0.0
        %5374 = vmatpush1.msra.mxu0 0.0
        %5375 = vmatprep.subr.mxu0 0.0
        %5376 = vmatpush1.msra.mxu0 0.0
        %5377 = vmatprep.subr.mxu0 0.0
        %5378 = vmatpush1.msra.mxu0 0.0
        %5379 = vmatprep.mubr.f32.mxu0 0.0
        %v5380 = vand.u32 %v5003, 4294901760
        %5381 = vmatmul.mubr.f32.gmra.mrb[0].mxu0 %v5380
        %v5382 = vpop.f32.mrb[0].mxu0
        %v5383 = vadd.f32 %v5307, %v5382
        %v5384 = vpop.f32.mrb[0].mxu0
        %5385 = vdwg.mxu0
        %5386 = vmatprep.subr.mxu0 0.0
        %5387 = vmatpush1.msra.mxu0 %v384
        %5388 = vmatprep.subr.mxu0 0.0
        %v5389 = vand.u32 %v4091, 4294901760
        %5390 = vmatpush1.msra.mxu0 %v5389
        %5391 = vmatprep.subr.mxu0 0.0
        %5392 = vmatpush1.msra.mxu0 0.0
        %5393 = vmatprep.subr.mxu0 0.0
        %5394 = vmatpush1.msra.mxu0 0.0
        %5395 = vmatprep.subr.mxu0 0.0
        %5396 = vmatpush1.msra.mxu0 0.0
        %5397 = vmatprep.subr.mxu0 0.0
        %5398 = vmatpush1.msra.mxu0 0.0
        %5399 = vmatprep.subr.mxu0 0.0
        %5400 = vmatpush1.msra.mxu0 0.0
        %5401 = vmatprep.subr.mxu0 0.0
        %5402 = vmatpush1.msra.mxu0 0.0
        %5403 = vmatprep.subr.mxu0 0.0
        %5404 = vmatpush1.msra.mxu0 0.0
        %5405 = vmatprep.subr.mxu0 0.0
        %5406 = vmatpush1.msra.mxu0 0.0
        %5407 = vmatprep.subr.mxu0 0.0
        %5408 = vmatpush1.msra.mxu0 0.0
        %5409 = vmatprep.subr.mxu0 0.0
        %5410 = vmatpush1.msra.mxu0 0.0
        %5411 = vmatprep.subr.mxu0 0.0
        %5412 = vmatpush1.msra.mxu0 0.0
        %5413 = vmatprep.subr.mxu0 0.0
        %5414 = vmatpush1.msra.mxu0 0.0
        %5415 = vmatprep.subr.mxu0 0.0
        %5416 = vmatpush1.msra.mxu0 0.0
        %5417 = vmatprep.subr.mxu0 0.0
        %5418 = vmatpush1.msra.mxu0 0.0
        %5419 = vmatprep.subr.mxu0 0.0
        %5420 = vmatpush1.msra.mxu0 0.0
        %5421 = vmatprep.subr.mxu0 0.0
        %5422 = vmatpush1.msra.mxu0 0.0
        %5423 = vmatprep.subr.mxu0 0.0
        %5424 = vmatpush1.msra.mxu0 0.0
        %5425 = vmatprep.subr.mxu0 0.0
        %5426 = vmatpush1.msra.mxu0 0.0
        %5427 = vmatprep.subr.mxu0 0.0
        %5428 = vmatpush1.msra.mxu0 0.0
        %5429 = vmatprep.subr.mxu0 0.0
        %5430 = vmatpush1.msra.mxu0 0.0
        %5431 = vmatprep.subr.mxu0 0.0
        %5432 = vmatpush1.msra.mxu0 0.0
        %5433 = vmatprep.subr.mxu0 0.0
        %5434 = vmatpush1.msra.mxu0 0.0
        %5435 = vmatprep.subr.mxu0 0.0
        %5436 = vmatpush1.msra.mxu0 0.0
        %5437 = vmatprep.subr.mxu0 0.0
        %5438 = vmatpush1.msra.mxu0 0.0
        %5439 = vmatprep.subr.mxu0 0.0
        %5440 = vmatpush1.msra.mxu0 0.0
        %5441 = vmatprep.subr.mxu0 0.0
        %5442 = vmatpush1.msra.mxu0 0.0
        %5443 = vmatprep.subr.mxu0 0.0
        %5444 = vmatpush1.msra.mxu0 0.0
        %5445 = vmatprep.subr.mxu0 0.0
        %5446 = vmatpush1.msra.mxu0 0.0
        %5447 = vmatprep.subr.mxu0 0.0
        %5448 = vmatpush1.msra.mxu0 0.0
        %5449 = vmatprep.subr.mxu0 0.0
        %5450 = vmatpush1.msra.mxu0 0.0
        %5451 = vmatprep.mubr.f32.mxu0 0.0
        %v5452 = vand.u32 %v5003, 4294901760
        %5453 = vmatmul.mubr.f32.gmra.mrb[0].mxu0 %v5452
        %v5454 = vpop.f32.mrb[0].mxu0
        %v5455 = vadd.f32 %v5383, %v5454
        %v5456 = vpop.f32.mrb[0].mxu0
        %5457 = vdwg.mxu0
        %v5459 = vsel %vm386, %v2236, 0
        %5461 = vmatprep.subr.mxu0 0.0
        %5462 = vmatpush1.msra.mxu0 %v384
        %5463 = vmatprep.subr.mxu0 0.0
        %v5464 = vand.u32 %v4091, 4294901760
        %5465 = vmatpush1.msra.mxu0 %v5464
        %5466 = vmatprep.subr.mxu0 0.0
        %5467 = vmatpush1.msra.mxu0 0.0
        %5468 = vmatprep.subr.mxu0 0.0
        %5469 = vmatpush1.msra.mxu0 0.0
        %5470 = vmatprep.subr.mxu0 0.0
        %5471 = vmatpush1.msra.mxu0 0.0
        %5472 = vmatprep.subr.mxu0 0.0
        %5473 = vmatpush1.msra.mxu0 0.0
        %5474 = vmatprep.subr.mxu0 0.0
        %5475 = vmatpush1.msra.mxu0 0.0
        %5476 = vmatprep.subr.mxu0 0.0
        %5477 = vmatpush1.msra.mxu0 0.0
        %5478 = vmatprep.subr.mxu0 0.0
        %5479 = vmatpush1.msra.mxu0 0.0
        %5480 = vmatprep.subr.mxu0 0.0
        %5481 = vmatpush1.msra.mxu0 0.0
        %5482 = vmatprep.subr.mxu0 0.0
        %5483 = vmatpush1.msra.mxu0 0.0
        %5484 = vmatprep.subr.mxu0 0.0
        %5485 = vmatpush1.msra.mxu0 0.0
        %5486 = vmatprep.subr.mxu0 0.0
        %5487 = vmatpush1.msra.mxu0 0.0
        %5488 = vmatprep.subr.mxu0 0.0
        %5489 = vmatpush1.msra.mxu0 0.0
        %5490 = vmatprep.subr.mxu0 0.0
        %5491 = vmatpush1.msra.mxu0 0.0
        %5492 = vmatprep.subr.mxu0 0.0
        %5493 = vmatpush1.msra.mxu0 0.0
        %5494 = vmatprep.subr.mxu0 0.0
        %5495 = vmatpush1.msra.mxu0 0.0
        %5496 = vmatprep.subr.mxu0 0.0
        %5497 = vmatpush1.msra.mxu0 0.0
        %5498 = vmatprep.subr.mxu0 0.0
        %5499 = vmatpush1.msra.mxu0 0.0
        %5500 = vmatprep.subr.mxu0 0.0
        %5501 = vmatpush1.msra.mxu0 0.0
        %5502 = vmatprep.subr.mxu0 0.0
        %5503 = vmatpush1.msra.mxu0 0.0
        %5504 = vmatprep.subr.mxu0 0.0
        %5505 = vmatpush1.msra.mxu0 0.0
        %5506 = vmatprep.subr.mxu0 0.0
        %5507 = vmatpush1.msra.mxu0 0.0
        %5508 = vmatprep.subr.mxu0 0.0
        %5509 = vmatpush1.msra.mxu0 0.0
        %5510 = vmatprep.subr.mxu0 0.0
        %5511 = vmatpush1.msra.mxu0 0.0
        %5512 = vmatprep.subr.mxu0 0.0
        %5513 = vmatpush1.msra.mxu0 0.0
        %5514 = vmatprep.subr.mxu0 0.0
        %5515 = vmatpush1.msra.mxu0 0.0
        %5516 = vmatprep.subr.mxu0 0.0
        %5517 = vmatpush1.msra.mxu0 0.0
        %5518 = vmatprep.subr.mxu0 0.0
        %5519 = vmatpush1.msra.mxu0 0.0
        %5520 = vmatprep.subr.mxu0 0.0
        %5521 = vmatpush1.msra.mxu0 0.0
        %5522 = vmatprep.subr.mxu0 0.0
        %5523 = vmatpush1.msra.mxu0 0.0
        %5524 = vmatprep.subr.mxu0 0.0
        %5525 = vmatpush1.msra.mxu0 0.0
        %5526 = vmatprep.mubr.f32.mxu0 0.0
        %v5527 = vand.u32 %v5459, 4294901760
        %v5528 = vsub.f32 %v5459, %v5527
        %v5529 = vand.u32 %v5528, 4294901760
        %v5530 = vsub.f32 %v5528, %v5529
        %v5531 = vand.u32 %v5530, 4294901760
        %5532 = vmatmul.mubr.f32.gmra.mrb[0].mxu0 %v5531
        %v5533 = vpop.f32.mrb[0].mxu0
        %v5534 = vadd.f32 0.0, %v5533
        %v5535 = vpop.f32.mrb[0].mxu0
        %5536 = vdwg.mxu0
        %5537 = vmatprep.subr.mxu0 0.0
        %v5538 = vsub.f32 %v384, %v384
        %v5539 = vand.u32 %v5538, 4294901760
        %v5540 = vsub.f32 %v5538, %v5539
        %v5541 = vand.u32 %v5540, 4294901760
        %5542 = vmatpush1.msra.mxu0 %v5541
        %5543 = vmatprep.subr.mxu0 0.0
        %v5544 = vand.u32 %v4091, 4294901760
        %v5545 = vsub.f32 %v4091, %v5544
        %v5546 = vand.u32 %v5545, 4294901760
        %v5547 = vsub.f32 %v5545, %v5546
        %v5548 = vand.u32 %v5547, 4294901760
        %5549 = vmatpush1.msra.mxu0 %v5548
        %5550 = vmatprep.subr.mxu0 0.0
        %5551 = vmatpush1.msra.mxu0 0.0
        %5552 = vmatprep.subr.mxu0 0.0
        %5553 = vmatpush1.msra.mxu0 0.0
        %5554 = vmatprep.subr.mxu0 0.0
        %5555 = vmatpush1.msra.mxu0 0.0
        %5556 = vmatprep.subr.mxu0 0.0
        %5557 = vmatpush1.msra.mxu0 0.0
        %5558 = vmatprep.subr.mxu0 0.0
        %5559 = vmatpush1.msra.mxu0 0.0
        %5560 = vmatprep.subr.mxu0 0.0
        %5561 = vmatpush1.msra.mxu0 0.0
        %5562 = vmatprep.subr.mxu0 0.0
        %5563 = vmatpush1.msra.mxu0 0.0
        %5564 = vmatprep.subr.mxu0 0.0
        %5565 = vmatpush1.msra.mxu0 0.0
        %5566 = vmatprep.subr.mxu0 0.0
        %5567 = vmatpush1.msra.mxu0 0.0
        %5568 = vmatprep.subr.mxu0 0.0
        %5569 = vmatpush1.msra.mxu0 0.0
        %5570 = vmatprep.subr.mxu0 0.0
        %5571 = vmatpush1.msra.mxu0 0.0
        %5572 = vmatprep.subr.mxu0 0.0
        %5573 = vmatpush1.msra.mxu0 0.0
        %5574 = vmatprep.subr.mxu0 0.0
        %5575 = vmatpush1.msra.mxu0 0.0
        %5576 = vmatprep.subr.mxu0 0.0
        %5577 = vmatpush1.msra.mxu0 0.0
        %5578 = vmatprep.subr.mxu0 0.0
        %5579 = vmatpush1.msra.mxu0 0.0
        %5580 = vmatprep.subr.mxu0 0.0
        %5581 = vmatpush1.msra.mxu0 0.0
        %5582 = vmatprep.subr.mxu0 0.0
        %5583 = vmatpush1.msra.mxu0 0.0
        %5584 = vmatprep.subr.mxu0 0.0
        %5585 = vmatpush1.msra.mxu0 0.0
        %5586 = vmatprep.subr.mxu0 0.0
        %5587 = vmatpush1.msra.mxu0 0.0
        %5588 = vmatprep.subr.mxu0 0.0
        %5589 = vmatpush1.msra.mxu0 0.0
        %5590 = vmatprep.subr.mxu0 0.0
        %5591 = vmatpush1.msra.mxu0 0.0
        %5592 = vmatprep.subr.mxu0 0.0
        %5593 = vmatpush1.msra.mxu0 0.0
        %5594 = vmatprep.subr.mxu0 0.0
        %5595 = vmatpush1.msra.mxu0 0.0
        %5596 = vmatprep.subr.mxu0 0.0
        %5597 = vmatpush1.msra.mxu0 0.0
        %5598 = vmatprep.subr.mxu0 0.0
        %5599 = vmatpush1.msra.mxu0 0.0
        %5600 = vmatprep.subr.mxu0 0.0
        %5601 = vmatpush1.msra.mxu0 0.0
        %5602 = vmatprep.subr.mxu0 0.0
        %5603 = vmatpush1.msra.mxu0 0.0
        %5604 = vmatprep.subr.mxu0 0.0
        %5605 = vmatpush1.msra.mxu0 0.0
        %5606 = vmatprep.subr.mxu0 0.0
        %5607 = vmatpush1.msra.mxu0 0.0
        %5608 = vmatprep.subr.mxu0 0.0
        %5609 = vmatpush1.msra.mxu0 0.0
        %5610 = vmatprep.mubr.f32.mxu0 0.0
        %v5611 = vand.u32 %v5459, 4294901760
        %5612 = vmatmul.mubr.f32.gmra.mrb[0].mxu0 %v5611
        %v5613 = vpop.f32.mrb[0].mxu0
        %v5614 = vadd.f32 %v5534, %v5613
        %v5615 = vpop.f32.mrb[0].mxu0
        %5616 = vdwg.mxu0
        %5617 = vmatprep.subr.mxu0 0.0
        %v5618 = vsub.f32 %v384, %v384
        %5619 = vmatpush1.msra.mxu0 %v5618
        %5620 = vmatprep.subr.mxu0 0.0
        %v5621 = vand.u32 %v4091, 4294901760
        %v5622 = vsub.f32 %v4091, %v5621
        %5623 = vmatpush1.msra.mxu0 %v5622
        %5624 = vmatprep.subr.mxu0 0.0
        %5625 = vmatpush1.msra.mxu0 0.0
        %5626 = vmatprep.subr.mxu0 0.0
        %5627 = vmatpush1.msra.mxu0 0.0
        %5628 = vmatprep.subr.mxu0 0.0
        %5629 = vmatpush1.msra.mxu0 0.0
        %5630 = vmatprep.subr.mxu0 0.0
        %5631 = vmatpush1.msra.mxu0 0.0
        %5632 = vmatprep.subr.mxu0 0.0
        %5633 = vmatpush1.msra.mxu0 0.0
        %5634 = vmatprep.subr.mxu0 0.0
        %5635 = vmatpush1.msra.mxu0 0.0
        %5636 = vmatprep.subr.mxu0 0.0
        %5637 = vmatpush1.msra.mxu0 0.0
        %5638 = vmatprep.subr.mxu0 0.0
        %5639 = vmatpush1.msra.mxu0 0.0
        %5640 = vmatprep.subr.mxu0 0.0
        %5641 = vmatpush1.msra.mxu0 0.0
        %5642 = vmatprep.subr.mxu0 0.0
        %5643 = vmatpush1.msra.mxu0 0.0
        %5644 = vmatprep.subr.mxu0 0.0
        %5645 = vmatpush1.msra.mxu0 0.0
        %5646 = vmatprep.subr.mxu0 0.0
        %5647 = vmatpush1.msra.mxu0 0.0
        %5648 = vmatprep.subr.mxu0 0.0
        %5649 = vmatpush1.msra.mxu0 0.0
        %5650 = vmatprep.subr.mxu0 0.0
        %5651 = vmatpush1.msra.mxu0 0.0
        %5652 = vmatprep.subr.mxu0 0.0
        %5653 = vmatpush1.msra.mxu0 0.0
        %5654 = vmatprep.subr.mxu0 0.0
        %5655 = vmatpush1.msra.mxu0 0.0
        %5656 = vmatprep.subr.mxu0 0.0
        %5657 = vmatpush1.msra.mxu0 0.0
        %5658 = vmatprep.subr.mxu0 0.0
        %5659 = vmatpush1.msra.mxu0 0.0
        %5660 = vmatprep.subr.mxu0 0.0
        %5661 = vmatpush1.msra.mxu0 0.0
        %5662 = vmatprep.subr.mxu0 0.0
        %5663 = vmatpush1.msra.mxu0 0.0
        %5664 = vmatprep.subr.mxu0 0.0
        %5665 = vmatpush1.msra.mxu0 0.0
        %5666 = vmatprep.subr.mxu0 0.0
        %5667 = vmatpush1.msra.mxu0 0.0
        %5668 = vmatprep.subr.mxu0 0.0
        %5669 = vmatpush1.msra.mxu0 0.0
        %5670 = vmatprep.subr.mxu0 0.0
        %5671 = vmatpush1.msra.mxu0 0.0
        %5672 = vmatprep.subr.mxu0 0.0
        %5673 = vmatpush1.msra.mxu0 0.0
        %5674 = vmatprep.subr.mxu0 0.0
        %5675 = vmatpush1.msra.mxu0 0.0
        %5676 = vmatprep.subr.mxu0 0.0
        %5677 = vmatpush1.msra.mxu0 0.0
        %5678 = vmatprep.subr.mxu0 0.0
        %5679 = vmatpush1.msra.mxu0 0.0
        %5680 = vmatprep.subr.mxu0 0.0
        %5681 = vmatpush1.msra.mxu0 0.0
        %5682 = vmatprep.subr.mxu0 0.0
        %5683 = vmatpush1.msra.mxu0 0.0
        %5684 = vmatprep.mubr.f32.mxu0 0.0
        %v5685 = vand.u32 %v5459, 4294901760
        %v5686 = vsub.f32 %v5459, %v5685
        %5687 = vmatmul.mubr.f32.gmra.mrb[0].mxu0 %v5686
        %v5688 = vpop.f32.mrb[0].mxu0
        %v5689 = vadd.f32 %v5614, %v5688
        %v5690 = vpop.f32.mrb[0].mxu0
        %5691 = vdwg.mxu0
        %5692 = vmatprep.subr.mxu0 0.0
        %5693 = vmatpush1.msra.mxu0 %v384
        %5694 = vmatprep.subr.mxu0 0.0
        %v5695 = vand.u32 %v4091, 4294901760
        %5696 = vmatpush1.msra.mxu0 %v5695
        %5697 = vmatprep.subr.mxu0 0.0
        %5698 = vmatpush1.msra.mxu0 0.0
        %5699 = vmatprep.subr.mxu0 0.0
        %5700 = vmatpush1.msra.mxu0 0.0
        %5701 = vmatprep.subr.mxu0 0.0
        %5702 = vmatpush1.msra.mxu0 0.0
        %5703 = vmatprep.subr.mxu0 0.0
        %5704 = vmatpush1.msra.mxu0 0.0
        %5705 = vmatprep.subr.mxu0 0.0
        %5706 = vmatpush1.msra.mxu0 0.0
        %5707 = vmatprep.subr.mxu0 0.0
        %5708 = vmatpush1.msra.mxu0 0.0
        %5709 = vmatprep.subr.mxu0 0.0
        %5710 = vmatpush1.msra.mxu0 0.0
        %5711 = vmatprep.subr.mxu0 0.0
        %5712 = vmatpush1.msra.mxu0 0.0
        %5713 = vmatprep.subr.mxu0 0.0
        %5714 = vmatpush1.msra.mxu0 0.0
        %5715 = vmatprep.subr.mxu0 0.0
        %5716 = vmatpush1.msra.mxu0 0.0
        %5717 = vmatprep.subr.mxu0 0.0
        %5718 = vmatpush1.msra.mxu0 0.0
        %5719 = vmatprep.subr.mxu0 0.0
        %5720 = vmatpush1.msra.mxu0 0.0
        %5721 = vmatprep.subr.mxu0 0.0
        %5722 = vmatpush1.msra.mxu0 0.0
        %5723 = vmatprep.subr.mxu0 0.0
        %5724 = vmatpush1.msra.mxu0 0.0
        %5725 = vmatprep.subr.mxu0 0.0
        %5726 = vmatpush1.msra.mxu0 0.0
        %5727 = vmatprep.subr.mxu0 0.0
        %5728 = vmatpush1.msra.mxu0 0.0
        %5729 = vmatprep.subr.mxu0 0.0
        %5730 = vmatpush1.msra.mxu0 0.0
        %5731 = vmatprep.subr.mxu0 0.0
        %5732 = vmatpush1.msra.mxu0 0.0
        %5733 = vmatprep.subr.mxu0 0.0
        %5734 = vmatpush1.msra.mxu0 0.0
        %5735 = vmatprep.subr.mxu0 0.0
        %5736 = vmatpush1.msra.mxu0 0.0
        %5737 = vmatprep.subr.mxu0 0.0
        %5738 = vmatpush1.msra.mxu0 0.0
        %5739 = vmatprep.subr.mxu0 0.0
        %5740 = vmatpush1.msra.mxu0 0.0
        %5741 = vmatprep.subr.mxu0 0.0
        %5742 = vmatpush1.msra.mxu0 0.0
        %5743 = vmatprep.subr.mxu0 0.0
        %5744 = vmatpush1.msra.mxu0 0.0
        %5745 = vmatprep.subr.mxu0 0.0
        %5746 = vmatpush1.msra.mxu0 0.0
        %5747 = vmatprep.subr.mxu0 0.0
        %5748 = vmatpush1.msra.mxu0 0.0
        %5749 = vmatprep.subr.mxu0 0.0
        %5750 = vmatpush1.msra.mxu0 0.0
        %5751 = vmatprep.subr.mxu0 0.0
        %5752 = vmatpush1.msra.mxu0 0.0
        %5753 = vmatprep.subr.mxu0 0.0
        %5754 = vmatpush1.msra.mxu0 0.0
        %5755 = vmatprep.subr.mxu0 0.0
        %5756 = vmatpush1.msra.mxu0 0.0
        %5757 = vmatprep.mubr.f32.mxu0 0.0
        %v5758 = vand.u32 %v5459, 4294901760
        %v5759 = vsub.f32 %v5459, %v5758
        %v5760 = vand.u32 %v5759, 4294901760
        %5761 = vmatmul.mubr.f32.gmra.mrb[0].mxu0 %v5760
        %v5762 = vpop.f32.mrb[0].mxu0
        %v5763 = vadd.f32 %v5689, %v5762
        %v5764 = vpop.f32.mrb[0].mxu0
        %5765 = vdwg.mxu0
        %5766 = vmatprep.subr.mxu0 0.0
        %v5767 = vsub.f32 %v384, %v384
        %v5768 = vand.u32 %v5767, 4294901760
        %5769 = vmatpush1.msra.mxu0 %v5768
        %5770 = vmatprep.subr.mxu0 0.0
        %v5771 = vand.u32 %v4091, 4294901760
        %v5772 = vsub.f32 %v4091, %v5771
        %v5773 = vand.u32 %v5772, 4294901760
        %5774 = vmatpush1.msra.mxu0 %v5773
        %5775 = vmatprep.subr.mxu0 0.0
        %5776 = vmatpush1.msra.mxu0 0.0
        %5777 = vmatprep.subr.mxu0 0.0
        %5778 = vmatpush1.msra.mxu0 0.0
        %5779 = vmatprep.subr.mxu0 0.0
        %5780 = vmatpush1.msra.mxu0 0.0
        %5781 = vmatprep.subr.mxu0 0.0
        %5782 = vmatpush1.msra.mxu0 0.0
        %5783 = vmatprep.subr.mxu0 0.0
        %5784 = vmatpush1.msra.mxu0 0.0
        %5785 = vmatprep.subr.mxu0 0.0
        %5786 = vmatpush1.msra.mxu0 0.0
        %5787 = vmatprep.subr.mxu0 0.0
        %5788 = vmatpush1.msra.mxu0 0.0
        %5789 = vmatprep.subr.mxu0 0.0
        %5790 = vmatpush1.msra.mxu0 0.0
        %5791 = vmatprep.subr.mxu0 0.0
        %5792 = vmatpush1.msra.mxu0 0.0
        %5793 = vmatprep.subr.mxu0 0.0
        %5794 = vmatpush1.msra.mxu0 0.0
        %5795 = vmatprep.subr.mxu0 0.0
        %5796 = vmatpush1.msra.mxu0 0.0
        %5797 = vmatprep.subr.mxu0 0.0
        %5798 = vmatpush1.msra.mxu0 0.0
        %5799 = vmatprep.subr.mxu0 0.0
        %5800 = vmatpush1.msra.mxu0 0.0
        %5801 = vmatprep.subr.mxu0 0.0
        %5802 = vmatpush1.msra.mxu0 0.0
        %5803 = vmatprep.subr.mxu0 0.0
        %5804 = vmatpush1.msra.mxu0 0.0
        %5805 = vmatprep.subr.mxu0 0.0
        %5806 = vmatpush1.msra.mxu0 0.0
        %5807 = vmatprep.subr.mxu0 0.0
        %5808 = vmatpush1.msra.mxu0 0.0
        %5809 = vmatprep.subr.mxu0 0.0
        %5810 = vmatpush1.msra.mxu0 0.0
        %5811 = vmatprep.subr.mxu0 0.0
        %5812 = vmatpush1.msra.mxu0 0.0
        %5813 = vmatprep.subr.mxu0 0.0
        %5814 = vmatpush1.msra.mxu0 0.0
        %5815 = vmatprep.subr.mxu0 0.0
        %5816 = vmatpush1.msra.mxu0 0.0
        %5817 = vmatprep.subr.mxu0 0.0
        %5818 = vmatpush1.msra.mxu0 0.0
        %5819 = vmatprep.subr.mxu0 0.0
        %5820 = vmatpush1.msra.mxu0 0.0
        %5821 = vmatprep.subr.mxu0 0.0
        %5822 = vmatpush1.msra.mxu0 0.0
        %5823 = vmatprep.subr.mxu0 0.0
        %5824 = vmatpush1.msra.mxu0 0.0
        %5825 = vmatprep.subr.mxu0 0.0
        %5826 = vmatpush1.msra.mxu0 0.0
        %5827 = vmatprep.subr.mxu0 0.0
        %5828 = vmatpush1.msra.mxu0 0.0
        %5829 = vmatprep.subr.mxu0 0.0
        %5830 = vmatpush1.msra.mxu0 0.0
        %5831 = vmatprep.subr.mxu0 0.0
        %5832 = vmatpush1.msra.mxu0 0.0
        %5833 = vmatprep.subr.mxu0 0.0
        %5834 = vmatpush1.msra.mxu0 0.0
        %5835 = vmatprep.mubr.f32.mxu0 0.0
        %v5836 = vand.u32 %v5459, 4294901760
        %5837 = vmatmul.mubr.f32.gmra.mrb[0].mxu0 %v5836
        %v5838 = vpop.f32.mrb[0].mxu0
        %v5839 = vadd.f32 %v5763, %v5838
        %v5840 = vpop.f32.mrb[0].mxu0
        %5841 = vdwg.mxu0
        %5842 = vmatprep.subr.mxu0 0.0
        %5843 = vmatpush1.msra.mxu0 %v384
        %5844 = vmatprep.subr.mxu0 0.0
        %v5845 = vand.u32 %v4091, 4294901760
        %5846 = vmatpush1.msra.mxu0 %v5845
        %5847 = vmatprep.subr.mxu0 0.0
        %5848 = vmatpush1.msra.mxu0 0.0
        %5849 = vmatprep.subr.mxu0 0.0
        %5850 = vmatpush1.msra.mxu0 0.0
        %5851 = vmatprep.subr.mxu0 0.0
        %5852 = vmatpush1.msra.mxu0 0.0
        %5853 = vmatprep.subr.mxu0 0.0
        %5854 = vmatpush1.msra.mxu0 0.0
        %5855 = vmatprep.subr.mxu0 0.0
        %5856 = vmatpush1.msra.mxu0 0.0
        %5857 = vmatprep.subr.mxu0 0.0
        %5858 = vmatpush1.msra.mxu0 0.0
        %5859 = vmatprep.subr.mxu0 0.0
        %5860 = vmatpush1.msra.mxu0 0.0
        %5861 = vmatprep.subr.mxu0 0.0
        %5862 = vmatpush1.msra.mxu0 0.0
        %5863 = vmatprep.subr.mxu0 0.0
        %5864 = vmatpush1.msra.mxu0 0.0
        %5865 = vmatprep.subr.mxu0 0.0
        %5866 = vmatpush1.msra.mxu0 0.0
        %5867 = vmatprep.subr.mxu0 0.0
        %5868 = vmatpush1.msra.mxu0 0.0
        %5869 = vmatprep.subr.mxu0 0.0
        %5870 = vmatpush1.msra.mxu0 0.0
        %5871 = vmatprep.subr.mxu0 0.0
        %5872 = vmatpush1.msra.mxu0 0.0
        %5873 = vmatprep.subr.mxu0 0.0
        %5874 = vmatpush1.msra.mxu0 0.0
        %5875 = vmatprep.subr.mxu0 0.0
        %5876 = vmatpush1.msra.mxu0 0.0
        %5877 = vmatprep.subr.mxu0 0.0
        %5878 = vmatpush1.msra.mxu0 0.0
        %5879 = vmatprep.subr.mxu0 0.0
        %5880 = vmatpush1.msra.mxu0 0.0
        %5881 = vmatprep.subr.mxu0 0.0
        %5882 = vmatpush1.msra.mxu0 0.0
        %5883 = vmatprep.subr.mxu0 0.0
        %5884 = vmatpush1.msra.mxu0 0.0
        %5885 = vmatprep.subr.mxu0 0.0
        %5886 = vmatpush1.msra.mxu0 0.0
        %5887 = vmatprep.subr.mxu0 0.0
        %5888 = vmatpush1.msra.mxu0 0.0
        %5889 = vmatprep.subr.mxu0 0.0
        %5890 = vmatpush1.msra.mxu0 0.0
        %5891 = vmatprep.subr.mxu0 0.0
        %5892 = vmatpush1.msra.mxu0 0.0
        %5893 = vmatprep.subr.mxu0 0.0
        %5894 = vmatpush1.msra.mxu0 0.0
        %5895 = vmatprep.subr.mxu0 0.0
        %5896 = vmatpush1.msra.mxu0 0.0
        %5897 = vmatprep.subr.mxu0 0.0
        %5898 = vmatpush1.msra.mxu0 0.0
        %5899 = vmatprep.subr.mxu0 0.0
        %5900 = vmatpush1.msra.mxu0 0.0
        %5901 = vmatprep.subr.mxu0 0.0
        %5902 = vmatpush1.msra.mxu0 0.0
        %5903 = vmatprep.subr.mxu0 0.0
        %5904 = vmatpush1.msra.mxu0 0.0
        %5905 = vmatprep.subr.mxu0 0.0
        %5906 = vmatpush1.msra.mxu0 0.0
        %5907 = vmatprep.mubr.f32.mxu0 0.0
        %v5908 = vand.u32 %v5459, 4294901760
        %5909 = vmatmul.mubr.f32.gmra.mrb[0].mxu0 %v5908
        %v5910 = vpop.f32.mrb[0].mxu0
        %v5911 = vadd.f32 %v5839, %v5910
        %v5912 = vpop.f32.mrb[0].mxu0
        %5913 = vdwg.mxu0
        %v5915 = vsel %vm386, %v2698, 0
        %5917 = vmatprep.subr.mxu0 0.0
        %5918 = vmatpush1.msra.mxu0 %v384
        %5919 = vmatprep.subr.mxu0 0.0
        %v5920 = vand.u32 %v4091, 4294901760
        %5921 = vmatpush1.msra.mxu0 %v5920
        %5922 = vmatprep.subr.mxu0 0.0
        %5923 = vmatpush1.msra.mxu0 0.0
        %5924 = vmatprep.subr.mxu0 0.0
        %5925 = vmatpush1.msra.mxu0 0.0
        %5926 = vmatprep.subr.mxu0 0.0
        %5927 = vmatpush1.msra.mxu0 0.0
        %5928 = vmatprep.subr.mxu0 0.0
        %5929 = vmatpush1.msra.mxu0 0.0
        %5930 = vmatprep.subr.mxu0 0.0
        %5931 = vmatpush1.msra.mxu0 0.0
        %5932 = vmatprep.subr.mxu0 0.0
        %5933 = vmatpush1.msra.mxu0 0.0
        %5934 = vmatprep.subr.mxu0 0.0
        %5935 = vmatpush1.msra.mxu0 0.0
        %5936 = vmatprep.subr.mxu0 0.0
        %5937 = vmatpush1.msra.mxu0 0.0
        %5938 = vmatprep.subr.mxu0 0.0
        %5939 = vmatpush1.msra.mxu0 0.0
        %5940 = vmatprep.subr.mxu0 0.0
        %5941 = vmatpush1.msra.mxu0 0.0
        %5942 = vmatprep.subr.mxu0 0.0
        %5943 = vmatpush1.msra.mxu0 0.0
        %5944 = vmatprep.subr.mxu0 0.0
        %5945 = vmatpush1.msra.mxu0 0.0
        %5946 = vmatprep.subr.mxu0 0.0
        %5947 = vmatpush1.msra.mxu0 0.0
        %5948 = vmatprep.subr.mxu0 0.0
        %5949 = vmatpush1.msra.mxu0 0.0
        %5950 = vmatprep.subr.mxu0 0.0
        %5951 = vmatpush1.msra.mxu0 0.0
        %5952 = vmatprep.subr.mxu0 0.0
        %5953 = vmatpush1.msra.mxu0 0.0
        %5954 = vmatprep.subr.mxu0 0.0
        %5955 = vmatpush1.msra.mxu0 0.0
        %5956 = vmatprep.subr.mxu0 0.0
        %5957 = vmatpush1.msra.mxu0 0.0
        %5958 = vmatprep.subr.mxu0 0.0
        %5959 = vmatpush1.msra.mxu0 0.0
        %5960 = vmatprep.subr.mxu0 0.0
        %5961 = vmatpush1.msra.mxu0 0.0
        %5962 = vmatprep.subr.mxu0 0.0
        %5963 = vmatpush1.msra.mxu0 0.0
        %5964 = vmatprep.subr.mxu0 0.0
        %5965 = vmatpush1.msra.mxu0 0.0
        %5966 = vmatprep.subr.mxu0 0.0
        %5967 = vmatpush1.msra.mxu0 0.0
        %5968 = vmatprep.subr.mxu0 0.0
        %5969 = vmatpush1.msra.mxu0 0.0
        %5970 = vmatprep.subr.mxu0 0.0
        %5971 = vmatpush1.msra.mxu0 0.0
        %5972 = vmatprep.subr.mxu0 0.0
        %5973 = vmatpush1.msra.mxu0 0.0
        %5974 = vmatprep.subr.mxu0 0.0
        %5975 = vmatpush1.msra.mxu0 0.0
        %5976 = vmatprep.subr.mxu0 0.0
        %5977 = vmatpush1.msra.mxu0 0.0
        %5978 = vmatprep.subr.mxu0 0.0
        %5979 = vmatpush1.msra.mxu0 0.0
        %5980 = vmatprep.subr.mxu0 0.0
        %5981 = vmatpush1.msra.mxu0 0.0
        %5982 = vmatprep.mubr.f32.mxu0 0.0
        %v5983 = vand.u32 %v5915, 4294901760
        %v5984 = vsub.f32 %v5915, %v5983
        %v5985 = vand.u32 %v5984, 4294901760
        %v5986 = vsub.f32 %v5984, %v5985
        %v5987 = vand.u32 %v5986, 4294901760
        %5988 = vmatmul.mubr.f32.gmra.mrb[0].mxu0 %v5987
        %v5989 = vpop.f32.mrb[0].mxu0
        %v5990 = vadd.f32 0.0, %v5989
        %v5991 = vpop.f32.mrb[0].mxu0
        %5992 = vdwg.mxu0
        %5993 = vmatprep.subr.mxu0 0.0
        %v5994 = vsub.f32 %v384, %v384
        %v5995 = vand.u32 %v5994, 4294901760
        %v5996 = vsub.f32 %v5994, %v5995
        %v5997 = vand.u32 %v5996, 4294901760
        %5998 = vmatpush1.msra.mxu0 %v5997
        %5999 = vmatprep.subr.mxu0 0.0
        %v6000 = vand.u32 %v4091, 4294901760
        %v6001 = vsub.f32 %v4091, %v6000
        %v6002 = vand.u32 %v6001, 4294901760
        %v6003 = vsub.f32 %v6001, %v6002
        %v6004 = vand.u32 %v6003, 4294901760
        %6005 = vmatpush1.msra.mxu0 %v6004
        %6006 = vmatprep.subr.mxu0 0.0
        %6007 = vmatpush1.msra.mxu0 0.0
        %6008 = vmatprep.subr.mxu0 0.0
        %6009 = vmatpush1.msra.mxu0 0.0
        %6010 = vmatprep.subr.mxu0 0.0
        %6011 = vmatpush1.msra.mxu0 0.0
        %6012 = vmatprep.subr.mxu0 0.0
        %6013 = vmatpush1.msra.mxu0 0.0
        %6014 = vmatprep.subr.mxu0 0.0
        %6015 = vmatpush1.msra.mxu0 0.0
        %6016 = vmatprep.subr.mxu0 0.0
        %6017 = vmatpush1.msra.mxu0 0.0
        %6018 = vmatprep.subr.mxu0 0.0
        %6019 = vmatpush1.msra.mxu0 0.0
        %6020 = vmatprep.subr.mxu0 0.0
        %6021 = vmatpush1.msra.mxu0 0.0
        %6022 = vmatprep.subr.mxu0 0.0
        %6023 = vmatpush1.msra.mxu0 0.0
        %6024 = vmatprep.subr.mxu0 0.0
        %6025 = vmatpush1.msra.mxu0 0.0
        %6026 = vmatprep.subr.mxu0 0.0
        %6027 = vmatpush1.msra.mxu0 0.0
        %6028 = vmatprep.subr.mxu0 0.0
        %6029 = vmatpush1.msra.mxu0 0.0
        %6030 = vmatprep.subr.mxu0 0.0
        %6031 = vmatpush1.msra.mxu0 0.0
        %6032 = vmatprep.subr.mxu0 0.0
        %6033 = vmatpush1.msra.mxu0 0.0
        %6034 = vmatprep.subr.mxu0 0.0
        %6035 = vmatpush1.msra.mxu0 0.0
        %6036 = vmatprep.subr.mxu0 0.0
        %6037 = vmatpush1.msra.mxu0 0.0
        %6038 = vmatprep.subr.mxu0 0.0
        %6039 = vmatpush1.msra.mxu0 0.0
        %6040 = vmatprep.subr.mxu0 0.0
        %6041 = vmatpush1.msra.mxu0 0.0
        %6042 = vmatprep.subr.mxu0 0.0
        %6043 = vmatpush1.msra.mxu0 0.0
        %6044 = vmatprep.subr.mxu0 0.0
        %6045 = vmatpush1.msra.mxu0 0.0
        %6046 = vmatprep.subr.mxu0 0.0
        %6047 = vmatpush1.msra.mxu0 0.0
        %6048 = vmatprep.subr.mxu0 0.0
        %6049 = vmatpush1.msra.mxu0 0.0
        %6050 = vmatprep.subr.mxu0 0.0
        %6051 = vmatpush1.msra.mxu0 0.0
        %6052 = vmatprep.subr.mxu0 0.0
        %6053 = vmatpush1.msra.mxu0 0.0
        %6054 = vmatprep.subr.mxu0 0.0
        %6055 = vmatpush1.msra.mxu0 0.0
        %6056 = vmatprep.subr.mxu0 0.0
        %6057 = vmatpush1.msra.mxu0 0.0
        %6058 = vmatprep.subr.mxu0 0.0
        %6059 = vmatpush1.msra.mxu0 0.0
        %6060 = vmatprep.subr.mxu0 0.0
        %6061 = vmatpush1.msra.mxu0 0.0
        %6062 = vmatprep.subr.mxu0 0.0
        %6063 = vmatpush1.msra.mxu0 0.0
        %6064 = vmatprep.subr.mxu0 0.0
        %6065 = vmatpush1.msra.mxu0 0.0
        %6066 = vmatprep.mubr.f32.mxu0 0.0
        %v6067 = vand.u32 %v5915, 4294901760
        %6068 = vmatmul.mubr.f32.gmra.mrb[0].mxu0 %v6067
        %v6069 = vpop.f32.mrb[0].mxu0
        %v6070 = vadd.f32 %v5990, %v6069
        %v6071 = vpop.f32.mrb[0].mxu0
        %6072 = vdwg.mxu0
        %6073 = vmatprep.subr.mxu0 0.0
        %v6074 = vsub.f32 %v384, %v384
        %6075 = vmatpush1.msra.mxu0 %v6074
        %6076 = vmatprep.subr.mxu0 0.0
        %v6077 = vand.u32 %v4091, 4294901760
        %v6078 = vsub.f32 %v4091, %v6077
        %6079 = vmatpush1.msra.mxu0 %v6078
        %6080 = vmatprep.subr.mxu0 0.0
        %6081 = vmatpush1.msra.mxu0 0.0
        %6082 = vmatprep.subr.mxu0 0.0
        %6083 = vmatpush1.msra.mxu0 0.0
        %6084 = vmatprep.subr.mxu0 0.0
        %6085 = vmatpush1.msra.mxu0 0.0
        %6086 = vmatprep.subr.mxu0 0.0
        %6087 = vmatpush1.msra.mxu0 0.0
        %6088 = vmatprep.subr.mxu0 0.0
        %6089 = vmatpush1.msra.mxu0 0.0
        %6090 = vmatprep.subr.mxu0 0.0
        %6091 = vmatpush1.msra.mxu0 0.0
        %6092 = vmatprep.subr.mxu0 0.0
        %6093 = vmatpush1.msra.mxu0 0.0
        %6094 = vmatprep.subr.mxu0 0.0
        %6095 = vmatpush1.msra.mxu0 0.0
        %6096 = vmatprep.subr.mxu0 0.0
        %6097 = vmatpush1.msra.mxu0 0.0
        %6098 = vmatprep.subr.mxu0 0.0
        %6099 = vmatpush1.msra.mxu0 0.0
        %6100 = vmatprep.subr.mxu0 0.0
        %6101 = vmatpush1.msra.mxu0 0.0
        %6102 = vmatprep.subr.mxu0 0.0
        %6103 = vmatpush1.msra.mxu0 0.0
        %6104 = vmatprep.subr.mxu0 0.0
        %6105 = vmatpush1.msra.mxu0 0.0
        %6106 = vmatprep.subr.mxu0 0.0
        %6107 = vmatpush1.msra.mxu0 0.0
        %6108 = vmatprep.subr.mxu0 0.0
        %6109 = vmatpush1.msra.mxu0 0.0
        %6110 = vmatprep.subr.mxu0 0.0
        %6111 = vmatpush1.msra.mxu0 0.0
        %6112 = vmatprep.subr.mxu0 0.0
        %6113 = vmatpush1.msra.mxu0 0.0
        %6114 = vmatprep.subr.mxu0 0.0
        %6115 = vmatpush1.msra.mxu0 0.0
        %6116 = vmatprep.subr.mxu0 0.0
        %6117 = vmatpush1.msra.mxu0 0.0
        %6118 = vmatprep.subr.mxu0 0.0
        %6119 = vmatpush1.msra.mxu0 0.0
        %6120 = vmatprep.subr.mxu0 0.0
        %6121 = vmatpush1.msra.mxu0 0.0
        %6122 = vmatprep.subr.mxu0 0.0
        %6123 = vmatpush1.msra.mxu0 0.0
        %6124 = vmatprep.subr.mxu0 0.0
        %6125 = vmatpush1.msra.mxu0 0.0
        %6126 = vmatprep.subr.mxu0 0.0
        %6127 = vmatpush1.msra.mxu0 0.0
        %6128 = vmatprep.subr.mxu0 0.0
        %6129 = vmatpush1.msra.mxu0 0.0
        %6130 = vmatprep.subr.mxu0 0.0
        %6131 = vmatpush1.msra.mxu0 0.0
        %6132 = vmatprep.subr.mxu0 0.0
        %6133 = vmatpush1.msra.mxu0 0.0
        %6134 = vmatprep.subr.mxu0 0.0
        %6135 = vmatpush1.msra.mxu0 0.0
        %6136 = vmatprep.subr.mxu0 0.0
        %6137 = vmatpush1.msra.mxu0 0.0
        %6138 = vmatprep.subr.mxu0 0.0
        %6139 = vmatpush1.msra.mxu0 0.0
        %6140 = vmatprep.mubr.f32.mxu0 0.0
        %v6141 = vand.u32 %v5915, 4294901760
        %v6142 = vsub.f32 %v5915, %v6141
        %6143 = vmatmul.mubr.f32.gmra.mrb[0].mxu0 %v6142
        %v6144 = vpop.f32.mrb[0].mxu0
        %v6145 = vadd.f32 %v6070, %v6144
        %v6146 = vpop.f32.mrb[0].mxu0
        %6147 = vdwg.mxu0
        %6148 = vmatprep.subr.mxu0 0.0
        %6149 = vmatpush1.msra.mxu0 %v384
        %6150 = vmatprep.subr.mxu0 0.0
        %v6151 = vand.u32 %v4091, 4294901760
        %6152 = vmatpush1.msra.mxu0 %v6151
        %6153 = vmatprep.subr.mxu0 0.0
        %6154 = vmatpush1.msra.mxu0 0.0
        %6155 = vmatprep.subr.mxu0 0.0
        %6156 = vmatpush1.msra.mxu0 0.0
        %6157 = vmatprep.subr.mxu0 0.0
        %6158 = vmatpush1.msra.mxu0 0.0
        %6159 = vmatprep.subr.mxu0 0.0
        %6160 = vmatpush1.msra.mxu0 0.0
        %6161 = vmatprep.subr.mxu0 0.0
        %6162 = vmatpush1.msra.mxu0 0.0
        %6163 = vmatprep.subr.mxu0 0.0
        %6164 = vmatpush1.msra.mxu0 0.0
        %6165 = vmatprep.subr.mxu0 0.0
        %6166 = vmatpush1.msra.mxu0 0.0
        %6167 = vmatprep.subr.mxu0 0.0
        %6168 = vmatpush1.msra.mxu0 0.0
        %6169 = vmatprep.subr.mxu0 0.0
        %6170 = vmatpush1.msra.mxu0 0.0
        %6171 = vmatprep.subr.mxu0 0.0
        %6172 = vmatpush1.msra.mxu0 0.0
        %6173 = vmatprep.subr.mxu0 0.0
        %6174 = vmatpush1.msra.mxu0 0.0
        %6175 = vmatprep.subr.mxu0 0.0
        %6176 = vmatpush1.msra.mxu0 0.0
        %6177 = vmatprep.subr.mxu0 0.0
        %6178 = vmatpush1.msra.mxu0 0.0
        %6179 = vmatprep.subr.mxu0 0.0
        %6180 = vmatpush1.msra.mxu0 0.0
        %6181 = vmatprep.subr.mxu0 0.0
        %6182 = vmatpush1.msra.mxu0 0.0
        %6183 = vmatprep.subr.mxu0 0.0
        %6184 = vmatpush1.msra.mxu0 0.0
        %6185 = vmatprep.subr.mxu0 0.0
        %6186 = vmatpush1.msra.mxu0 0.0
        %6187 = vmatprep.subr.mxu0 0.0
        %6188 = vmatpush1.msra.mxu0 0.0
        %6189 = vmatprep.subr.mxu0 0.0
        %6190 = vmatpush1.msra.mxu0 0.0
        %6191 = vmatprep.subr.mxu0 0.0
        %6192 = vmatpush1.msra.mxu0 0.0
        %6193 = vmatprep.subr.mxu0 0.0
        %6194 = vmatpush1.msra.mxu0 0.0
        %6195 = vmatprep.subr.mxu0 0.0
        %6196 = vmatpush1.msra.mxu0 0.0
        %6197 = vmatprep.subr.mxu0 0.0
        %6198 = vmatpush1.msra.mxu0 0.0
        %6199 = vmatprep.subr.mxu0 0.0
        %6200 = vmatpush1.msra.mxu0 0.0
        %6201 = vmatprep.subr.mxu0 0.0
        %6202 = vmatpush1.msra.mxu0 0.0
        %6203 = vmatprep.subr.mxu0 0.0
        %6204 = vmatpush1.msra.mxu0 0.0
        %6205 = vmatprep.subr.mxu0 0.0
        %6206 = vmatpush1.msra.mxu0 0.0
        %6207 = vmatprep.subr.mxu0 0.0
        %6208 = vmatpush1.msra.mxu0 0.0
        %6209 = vmatprep.subr.mxu0 0.0
        %6210 = vmatpush1.msra.mxu0 0.0
        %6211 = vmatprep.subr.mxu0 0.0
        %6212 = vmatpush1.msra.mxu0 0.0
        %6213 = vmatprep.mubr.f32.mxu0 0.0
        %v6214 = vand.u32 %v5915, 4294901760
        %v6215 = vsub.f32 %v5915, %v6214
        %v6216 = vand.u32 %v6215, 4294901760
        %6217 = vmatmul.mubr.f32.gmra.mrb[0].mxu0 %v6216
        %v6218 = vpop.f32.mrb[0].mxu0
        %v6219 = vadd.f32 %v6145, %v6218
        %v6220 = vpop.f32.mrb[0].mxu0
        %6221 = vdwg.mxu0
        %6222 = vmatprep.subr.mxu0 0.0
        %v6223 = vsub.f32 %v384, %v384
        %v6224 = vand.u32 %v6223, 4294901760
        %6225 = vmatpush1.msra.mxu0 %v6224
        %6226 = vmatprep.subr.mxu0 0.0
        %v6227 = vand.u32 %v4091, 4294901760
        %v6228 = vsub.f32 %v4091, %v6227
        %v6229 = vand.u32 %v6228, 4294901760
        %6230 = vmatpush1.msra.mxu0 %v6229
        %6231 = vmatprep.subr.mxu0 0.0
        %6232 = vmatpush1.msra.mxu0 0.0
        %6233 = vmatprep.subr.mxu0 0.0
        %6234 = vmatpush1.msra.mxu0 0.0
        %6235 = vmatprep.subr.mxu0 0.0
        %6236 = vmatpush1.msra.mxu0 0.0
        %6237 = vmatprep.subr.mxu0 0.0
        %6238 = vmatpush1.msra.mxu0 0.0
        %6239 = vmatprep.subr.mxu0 0.0
        %6240 = vmatpush1.msra.mxu0 0.0
        %6241 = vmatprep.subr.mxu0 0.0
        %6242 = vmatpush1.msra.mxu0 0.0
        %6243 = vmatprep.subr.mxu0 0.0
        %6244 = vmatpush1.msra.mxu0 0.0
        %6245 = vmatprep.subr.mxu0 0.0
        %6246 = vmatpush1.msra.mxu0 0.0
        %6247 = vmatprep.subr.mxu0 0.0
        %6248 = vmatpush1.msra.mxu0 0.0
        %6249 = vmatprep.subr.mxu0 0.0
        %6250 = vmatpush1.msra.mxu0 0.0
        %6251 = vmatprep.subr.mxu0 0.0
        %6252 = vmatpush1.msra.mxu0 0.0
        %6253 = vmatprep.subr.mxu0 0.0
        %6254 = vmatpush1.msra.mxu0 0.0
        %6255 = vmatprep.subr.mxu0 0.0
        %6256 = vmatpush1.msra.mxu0 0.0
        %6257 = vmatprep.subr.mxu0 0.0
        %6258 = vmatpush1.msra.mxu0 0.0
        %6259 = vmatprep.subr.mxu0 0.0
        %6260 = vmatpush1.msra.mxu0 0.0
        %6261 = vmatprep.subr.mxu0 0.0
        %6262 = vmatpush1.msra.mxu0 0.0
        %6263 = vmatprep.subr.mxu0 0.0
        %6264 = vmatpush1.msra.mxu0 0.0
        %6265 = vmatprep.subr.mxu0 0.0
        %6266 = vmatpush1.msra.mxu0 0.0
        %6267 = vmatprep.subr.mxu0 0.0
        %6268 = vmatpush1.msra.mxu0 0.0
        %6269 = vmatprep.subr.mxu0 0.0
        %6270 = vmatpush1.msra.mxu0 0.0
        %6271 = vmatprep.subr.mxu0 0.0
        %6272 = vmatpush1.msra.mxu0 0.0
        %6273 = vmatprep.subr.mxu0 0.0
        %6274 = vmatpush1.msra.mxu0 0.0
        %6275 = vmatprep.subr.mxu0 0.0
        %6276 = vmatpush1.msra.mxu0 0.0
        %6277 = vmatprep.subr.mxu0 0.0
        %6278 = vmatpush1.msra.mxu0 0.0
        %6279 = vmatprep.subr.mxu0 0.0
        %6280 = vmatpush1.msra.mxu0 0.0
        %6281 = vmatprep.subr.mxu0 0.0
        %6282 = vmatpush1.msra.mxu0 0.0
        %6283 = vmatprep.subr.mxu0 0.0
        %6284 = vmatpush1.msra.mxu0 0.0
        %6285 = vmatprep.subr.mxu0 0.0
        %6286 = vmatpush1.msra.mxu0 0.0
        %6287 = vmatprep.subr.mxu0 0.0
        %6288 = vmatpush1.msra.mxu0 0.0
        %6289 = vmatprep.subr.mxu0 0.0
        %6290 = vmatpush1.msra.mxu0 0.0
        %6291 = vmatprep.mubr.f32.mxu0 0.0
        %v6292 = vand.u32 %v5915, 4294901760
        %6293 = vmatmul.mubr.f32.gmra.mrb[0].mxu0 %v6292
        %v6294 = vpop.f32.mrb[0].mxu0
        %v6295 = vadd.f32 %v6219, %v6294
        %v6296 = vpop.f32.mrb[0].mxu0
        %6297 = vdwg.mxu0
        %6298 = vmatprep.subr.mxu0 0.0
        %6299 = vmatpush1.msra.mxu0 %v384
        %6300 = vmatprep.subr.mxu0 0.0
        %v6301 = vand.u32 %v4091, 4294901760
        %6302 = vmatpush1.msra.mxu0 %v6301
        %6303 = vmatprep.subr.mxu0 0.0
        %6304 = vmatpush1.msra.mxu0 0.0
        %6305 = vmatprep.subr.mxu0 0.0
        %6306 = vmatpush1.msra.mxu0 0.0
        %6307 = vmatprep.subr.mxu0 0.0
        %6308 = vmatpush1.msra.mxu0 0.0
        %6309 = vmatprep.subr.mxu0 0.0
        %6310 = vmatpush1.msra.mxu0 0.0
        %6311 = vmatprep.subr.mxu0 0.0
        %6312 = vmatpush1.msra.mxu0 0.0
        %6313 = vmatprep.subr.mxu0 0.0
        %6314 = vmatpush1.msra.mxu0 0.0
        %6315 = vmatprep.subr.mxu0 0.0
        %6316 = vmatpush1.msra.mxu0 0.0
        %6317 = vmatprep.subr.mxu0 0.0
        %6318 = vmatpush1.msra.mxu0 0.0
        %6319 = vmatprep.subr.mxu0 0.0
        %6320 = vmatpush1.msra.mxu0 0.0
        %6321 = vmatprep.subr.mxu0 0.0
        %6322 = vmatpush1.msra.mxu0 0.0
        %6323 = vmatprep.subr.mxu0 0.0
        %6324 = vmatpush1.msra.mxu0 0.0
        %6325 = vmatprep.subr.mxu0 0.0
        %6326 = vmatpush1.msra.mxu0 0.0
        %6327 = vmatprep.subr.mxu0 0.0
        %6328 = vmatpush1.msra.mxu0 0.0
        %6329 = vmatprep.subr.mxu0 0.0
        %6330 = vmatpush1.msra.mxu0 0.0
        %6331 = vmatprep.subr.mxu0 0.0
        %6332 = vmatpush1.msra.mxu0 0.0
        %6333 = vmatprep.subr.mxu0 0.0
        %6334 = vmatpush1.msra.mxu0 0.0
        %6335 = vmatprep.subr.mxu0 0.0
        %6336 = vmatpush1.msra.mxu0 0.0
        %6337 = vmatprep.subr.mxu0 0.0
        %6338 = vmatpush1.msra.mxu0 0.0
        %6339 = vmatprep.subr.mxu0 0.0
        %6340 = vmatpush1.msra.mxu0 0.0
        %6341 = vmatprep.subr.mxu0 0.0
        %6342 = vmatpush1.msra.mxu0 0.0
        %6343 = vmatprep.subr.mxu0 0.0
        %6344 = vmatpush1.msra.mxu0 0.0
        %6345 = vmatprep.subr.mxu0 0.0
        %6346 = vmatpush1.msra.mxu0 0.0
        %6347 = vmatprep.subr.mxu0 0.0
        %6348 = vmatpush1.msra.mxu0 0.0
        %6349 = vmatprep.subr.mxu0 0.0
        %6350 = vmatpush1.msra.mxu0 0.0
        %6351 = vmatprep.subr.mxu0 0.0
        %6352 = vmatpush1.msra.mxu0 0.0
        %6353 = vmatprep.subr.mxu0 0.0
        %6354 = vmatpush1.msra.mxu0 0.0
        %6355 = vmatprep.subr.mxu0 0.0
        %6356 = vmatpush1.msra.mxu0 0.0
        %6357 = vmatprep.subr.mxu0 0.0
        %6358 = vmatpush1.msra.mxu0 0.0
        %6359 = vmatprep.subr.mxu0 0.0
        %6360 = vmatpush1.msra.mxu0 0.0
        %6361 = vmatprep.subr.mxu0 0.0
        %6362 = vmatpush1.msra.mxu0 0.0
        %6363 = vmatprep.mubr.f32.mxu0 0.0
        %v6364 = vand.u32 %v5915, 4294901760
        %6365 = vmatmul.mubr.f32.gmra.mrb[0].mxu0 %v6364
        %v6366 = vpop.f32.mrb[0].mxu0
        %v6367 = vadd.f32 %v6295, %v6366
        %v6368 = vpop.f32.mrb[0].mxu0
        %6369 = vdwg.mxu0
        %v6371 = vsel %vm386, %v3160, 0
        %6373 = vmatprep.subr.mxu0 0.0
        %6374 = vmatpush1.msra.mxu0 %v384
        %6375 = vmatprep.subr.mxu0 0.0
        %v6376 = vand.u32 %v4091, 4294901760
        %6377 = vmatpush1.msra.mxu0 %v6376
        %6378 = vmatprep.subr.mxu0 0.0
        %6379 = vmatpush1.msra.mxu0 0.0
        %6380 = vmatprep.subr.mxu0 0.0
        %6381 = vmatpush1.msra.mxu0 0.0
        %6382 = vmatprep.subr.mxu0 0.0
        %6383 = vmatpush1.msra.mxu0 0.0
        %6384 = vmatprep.subr.mxu0 0.0
        %6385 = vmatpush1.msra.mxu0 0.0
        %6386 = vmatprep.subr.mxu0 0.0
        %6387 = vmatpush1.msra.mxu0 0.0
        %6388 = vmatprep.subr.mxu0 0.0
        %6389 = vmatpush1.msra.mxu0 0.0
        %6390 = vmatprep.subr.mxu0 0.0
        %6391 = vmatpush1.msra.mxu0 0.0
        %6392 = vmatprep.subr.mxu0 0.0
        %6393 = vmatpush1.msra.mxu0 0.0
        %6394 = vmatprep.subr.mxu0 0.0
        %6395 = vmatpush1.msra.mxu0 0.0
        %6396 = vmatprep.subr.mxu0 0.0
        %6397 = vmatpush1.msra.mxu0 0.0
        %6398 = vmatprep.subr.mxu0 0.0
        %6399 = vmatpush1.msra.mxu0 0.0
        %6400 = vmatprep.subr.mxu0 0.0
        %6401 = vmatpush1.msra.mxu0 0.0
        %6402 = vmatprep.subr.mxu0 0.0
        %6403 = vmatpush1.msra.mxu0 0.0
        %6404 = vmatprep.subr.mxu0 0.0
        %6405 = vmatpush1.msra.mxu0 0.0
        %6406 = vmatprep.subr.mxu0 0.0
        %6407 = vmatpush1.msra.mxu0 0.0
        %6408 = vmatprep.subr.mxu0 0.0
        %6409 = vmatpush1.msra.mxu0 0.0
        %6410 = vmatprep.subr.mxu0 0.0
        %6411 = vmatpush1.msra.mxu0 0.0
        %6412 = vmatprep.subr.mxu0 0.0
        %6413 = vmatpush1.msra.mxu0 0.0
        %6414 = vmatprep.subr.mxu0 0.0
        %6415 = vmatpush1.msra.mxu0 0.0
        %6416 = vmatprep.subr.mxu0 0.0
        %6417 = vmatpush1.msra.mxu0 0.0
        %6418 = vmatprep.subr.mxu0 0.0
        %6419 = vmatpush1.msra.mxu0 0.0
        %6420 = vmatprep.subr.mxu0 0.0
        %6421 = vmatpush1.msra.mxu0 0.0
        %6422 = vmatprep.subr.mxu0 0.0
        %6423 = vmatpush1.msra.mxu0 0.0
        %6424 = vmatprep.subr.mxu0 0.0
        %6425 = vmatpush1.msra.mxu0 0.0
        %6426 = vmatprep.subr.mxu0 0.0
        %6427 = vmatpush1.msra.mxu0 0.0
        %6428 = vmatprep.subr.mxu0 0.0
        %6429 = vmatpush1.msra.mxu0 0.0
        %6430 = vmatprep.subr.mxu0 0.0
        %6431 = vmatpush1.msra.mxu0 0.0
        %6432 = vmatprep.subr.mxu0 0.0
        %6433 = vmatpush1.msra.mxu0 0.0
        %6434 = vmatprep.subr.mxu0 0.0
        %6435 = vmatpush1.msra.mxu0 0.0
        %6436 = vmatprep.subr.mxu0 0.0
        %6437 = vmatpush1.msra.mxu0 0.0
        %6438 = vmatprep.mubr.f32.mxu0 0.0
        %v6439 = vand.u32 %v6371, 4294901760
        %v6440 = vsub.f32 %v6371, %v6439
        %v6441 = vand.u32 %v6440, 4294901760
        %v6442 = vsub.f32 %v6440, %v6441
        %v6443 = vand.u32 %v6442, 4294901760
        %6444 = vmatmul.mubr.f32.gmra.mrb[0].mxu0 %v6443
        %v6445 = vpop.f32.mrb[0].mxu0
        %v6446 = vadd.f32 0.0, %v6445
        %v6447 = vpop.f32.mrb[0].mxu0
        %6448 = vdwg.mxu0
        %6449 = vmatprep.subr.mxu0 0.0
        %v6450 = vsub.f32 %v384, %v384
        %v6451 = vand.u32 %v6450, 4294901760
        %v6452 = vsub.f32 %v6450, %v6451
        %v6453 = vand.u32 %v6452, 4294901760
        %6454 = vmatpush1.msra.mxu0 %v6453
        %6455 = vmatprep.subr.mxu0 0.0
        %v6456 = vand.u32 %v4091, 4294901760
        %v6457 = vsub.f32 %v4091, %v6456
        %v6458 = vand.u32 %v6457, 4294901760
        %v6459 = vsub.f32 %v6457, %v6458
        %v6460 = vand.u32 %v6459, 4294901760
        %6461 = vmatpush1.msra.mxu0 %v6460
        %6462 = vmatprep.subr.mxu0 0.0
        %6463 = vmatpush1.msra.mxu0 0.0
        %6464 = vmatprep.subr.mxu0 0.0
        %6465 = vmatpush1.msra.mxu0 0.0
        %6466 = vmatprep.subr.mxu0 0.0
        %6467 = vmatpush1.msra.mxu0 0.0
        %6468 = vmatprep.subr.mxu0 0.0
        %6469 = vmatpush1.msra.mxu0 0.0
        %6470 = vmatprep.subr.mxu0 0.0
        %6471 = vmatpush1.msra.mxu0 0.0
        %6472 = vmatprep.subr.mxu0 0.0
        %6473 = vmatpush1.msra.mxu0 0.0
        %6474 = vmatprep.subr.mxu0 0.0
        %6475 = vmatpush1.msra.mxu0 0.0
        %6476 = vmatprep.subr.mxu0 0.0
        %6477 = vmatpush1.msra.mxu0 0.0
        %6478 = vmatprep.subr.mxu0 0.0
        %6479 = vmatpush1.msra.mxu0 0.0
        %6480 = vmatprep.subr.mxu0 0.0
        %6481 = vmatpush1.msra.mxu0 0.0
        %6482 = vmatprep.subr.mxu0 0.0
        %6483 = vmatpush1.msra.mxu0 0.0
        %6484 = vmatprep.subr.mxu0 0.0
        %6485 = vmatpush1.msra.mxu0 0.0
        %6486 = vmatprep.subr.mxu0 0.0
        %6487 = vmatpush1.msra.mxu0 0.0
        %6488 = vmatprep.subr.mxu0 0.0
        %6489 = vmatpush1.msra.mxu0 0.0
        %6490 = vmatprep.subr.mxu0 0.0
        %6491 = vmatpush1.msra.mxu0 0.0
        %6492 = vmatprep.subr.mxu0 0.0
        %6493 = vmatpush1.msra.mxu0 0.0
        %6494 = vmatprep.subr.mxu0 0.0
        %6495 = vmatpush1.msra.mxu0 0.0
        %6496 = vmatprep.subr.mxu0 0.0
        %6497 = vmatpush1.msra.mxu0 0.0
        %6498 = vmatprep.subr.mxu0 0.0
        %6499 = vmatpush1.msra.mxu0 0.0
        %6500 = vmatprep.subr.mxu0 0.0
        %6501 = vmatpush1.msra.mxu0 0.0
        %6502 = vmatprep.subr.mxu0 0.0
        %6503 = vmatpush1.msra.mxu0 0.0
        %6504 = vmatprep.subr.mxu0 0.0
        %6505 = vmatpush1.msra.mxu0 0.0
        %6506 = vmatprep.subr.mxu0 0.0
        %6507 = vmatpush1.msra.mxu0 0.0
        %6508 = vmatprep.subr.mxu0 0.0
        %6509 = vmatpush1.msra.mxu0 0.0
        %6510 = vmatprep.subr.mxu0 0.0
        %6511 = vmatpush1.msra.mxu0 0.0
        %6512 = vmatprep.subr.mxu0 0.0
        %6513 = vmatpush1.msra.mxu0 0.0
        %6514 = vmatprep.subr.mxu0 0.0
        %6515 = vmatpush1.msra.mxu0 0.0
        %6516 = vmatprep.subr.mxu0 0.0
        %6517 = vmatpush1.msra.mxu0 0.0
        %6518 = vmatprep.subr.mxu0 0.0
        %6519 = vmatpush1.msra.mxu0 0.0
        %6520 = vmatprep.subr.mxu0 0.0
        %6521 = vmatpush1.msra.mxu0 0.0
        %6522 = vmatprep.mubr.f32.mxu0 0.0
        %v6523 = vand.u32 %v6371, 4294901760
        %6524 = vmatmul.mubr.f32.gmra.mrb[0].mxu0 %v6523
        %v6525 = vpop.f32.mrb[0].mxu0
        %v6526 = vadd.f32 %v6446, %v6525
        %v6527 = vpop.f32.mrb[0].mxu0
        %6528 = vdwg.mxu0
        %6529 = vmatprep.subr.mxu0 0.0
        %v6530 = vsub.f32 %v384, %v384
        %6531 = vmatpush1.msra.mxu0 %v6530
        %6532 = vmatprep.subr.mxu0 0.0
        %v6533 = vand.u32 %v4091, 4294901760
        %v6534 = vsub.f32 %v4091, %v6533
        %6535 = vmatpush1.msra.mxu0 %v6534
        %6536 = vmatprep.subr.mxu0 0.0
        %6537 = vmatpush1.msra.mxu0 0.0
        %6538 = vmatprep.subr.mxu0 0.0
        %6539 = vmatpush1.msra.mxu0 0.0
        %6540 = vmatprep.subr.mxu0 0.0
        %6541 = vmatpush1.msra.mxu0 0.0
        %6542 = vmatprep.subr.mxu0 0.0
        %6543 = vmatpush1.msra.mxu0 0.0
        %6544 = vmatprep.subr.mxu0 0.0
        %6545 = vmatpush1.msra.mxu0 0.0
        %6546 = vmatprep.subr.mxu0 0.0
        %6547 = vmatpush1.msra.mxu0 0.0
        %6548 = vmatprep.subr.mxu0 0.0
        %6549 = vmatpush1.msra.mxu0 0.0
        %6550 = vmatprep.subr.mxu0 0.0
        %6551 = vmatpush1.msra.mxu0 0.0
        %6552 = vmatprep.subr.mxu0 0.0
        %6553 = vmatpush1.msra.mxu0 0.0
        %6554 = vmatprep.subr.mxu0 0.0
        %6555 = vmatpush1.msra.mxu0 0.0
        %6556 = vmatprep.subr.mxu0 0.0
        %6557 = vmatpush1.msra.mxu0 0.0
        %6558 = vmatprep.subr.mxu0 0.0
        %6559 = vmatpush1.msra.mxu0 0.0
        %6560 = vmatprep.subr.mxu0 0.0
        %6561 = vmatpush1.msra.mxu0 0.0
        %6562 = vmatprep.subr.mxu0 0.0
        %6563 = vmatpush1.msra.mxu0 0.0
        %6564 = vmatprep.subr.mxu0 0.0
        %6565 = vmatpush1.msra.mxu0 0.0
        %6566 = vmatprep.subr.mxu0 0.0
        %6567 = vmatpush1.msra.mxu0 0.0
        %6568 = vmatprep.subr.mxu0 0.0
        %6569 = vmatpush1.msra.mxu0 0.0
        %6570 = vmatprep.subr.mxu0 0.0
        %6571 = vmatpush1.msra.mxu0 0.0
        %6572 = vmatprep.subr.mxu0 0.0
        %6573 = vmatpush1.msra.mxu0 0.0
        %6574 = vmatprep.subr.mxu0 0.0
        %6575 = vmatpush1.msra.mxu0 0.0
        %6576 = vmatprep.subr.mxu0 0.0
        %6577 = vmatpush1.msra.mxu0 0.0
        %6578 = vmatprep.subr.mxu0 0.0
        %6579 = vmatpush1.msra.mxu0 0.0
        %6580 = vmatprep.subr.mxu0 0.0
        %6581 = vmatpush1.msra.mxu0 0.0
        %6582 = vmatprep.subr.mxu0 0.0
        %6583 = vmatpush1.msra.mxu0 0.0
        %6584 = vmatprep.subr.mxu0 0.0
        %6585 = vmatpush1.msra.mxu0 0.0
        %6586 = vmatprep.subr.mxu0 0.0
        %6587 = vmatpush1.msra.mxu0 0.0
        %6588 = vmatprep.subr.mxu0 0.0
        %6589 = vmatpush1.msra.mxu0 0.0
        %6590 = vmatprep.subr.mxu0 0.0
        %6591 = vmatpush1.msra.mxu0 0.0
        %6592 = vmatprep.subr.mxu0 0.0
        %6593 = vmatpush1.msra.mxu0 0.0
        %6594 = vmatprep.subr.mxu0 0.0
        %6595 = vmatpush1.msra.mxu0 0.0
        %6596 = vmatprep.mubr.f32.mxu0 0.0
        %v6597 = vand.u32 %v6371, 4294901760
        %v6598 = vsub.f32 %v6371, %v6597
        %6599 = vmatmul.mubr.f32.gmra.mrb[0].mxu0 %v6598
        %v6600 = vpop.f32.mrb[0].mxu0
        %v6601 = vadd.f32 %v6526, %v6600
        %v6602 = vpop.f32.mrb[0].mxu0
        %6603 = vdwg.mxu0
        %6604 = vmatprep.subr.mxu0 0.0
        %6605 = vmatpush1.msra.mxu0 %v384
        %6606 = vmatprep.subr.mxu0 0.0
        %v6607 = vand.u32 %v4091, 4294901760
        %6608 = vmatpush1.msra.mxu0 %v6607
        %6609 = vmatprep.subr.mxu0 0.0
        %6610 = vmatpush1.msra.mxu0 0.0
        %6611 = vmatprep.subr.mxu0 0.0
        %6612 = vmatpush1.msra.mxu0 0.0
        %6613 = vmatprep.subr.mxu0 0.0
        %6614 = vmatpush1.msra.mxu0 0.0
        %6615 = vmatprep.subr.mxu0 0.0
        %6616 = vmatpush1.msra.mxu0 0.0
        %6617 = vmatprep.subr.mxu0 0.0
        %6618 = vmatpush1.msra.mxu0 0.0
        %6619 = vmatprep.subr.mxu0 0.0
        %6620 = vmatpush1.msra.mxu0 0.0
        %6621 = vmatprep.subr.mxu0 0.0
        %6622 = vmatpush1.msra.mxu0 0.0
        %6623 = vmatprep.subr.mxu0 0.0
        %6624 = vmatpush1.msra.mxu0 0.0
        %6625 = vmatprep.subr.mxu0 0.0
        %6626 = vmatpush1.msra.mxu0 0.0
        %6627 = vmatprep.subr.mxu0 0.0
        %6628 = vmatpush1.msra.mxu0 0.0
        %6629 = vmatprep.subr.mxu0 0.0
        %6630 = vmatpush1.msra.mxu0 0.0
        %6631 = vmatprep.subr.mxu0 0.0
        %6632 = vmatpush1.msra.mxu0 0.0
        %6633 = vmatprep.subr.mxu0 0.0
        %6634 = vmatpush1.msra.mxu0 0.0
        %6635 = vmatprep.subr.mxu0 0.0
        %6636 = vmatpush1.msra.mxu0 0.0
        %6637 = vmatprep.subr.mxu0 0.0
        %6638 = vmatpush1.msra.mxu0 0.0
        %6639 = vmatprep.subr.mxu0 0.0
        %6640 = vmatpush1.msra.mxu0 0.0
        %6641 = vmatprep.subr.mxu0 0.0
        %6642 = vmatpush1.msra.mxu0 0.0
        %6643 = vmatprep.subr.mxu0 0.0
        %6644 = vmatpush1.msra.mxu0 0.0
        %6645 = vmatprep.subr.mxu0 0.0
        %6646 = vmatpush1.msra.mxu0 0.0
        %6647 = vmatprep.subr.mxu0 0.0
        %6648 = vmatpush1.msra.mxu0 0.0
        %6649 = vmatprep.subr.mxu0 0.0
        %6650 = vmatpush1.msra.mxu0 0.0
        %6651 = vmatprep.subr.mxu0 0.0
        %6652 = vmatpush1.msra.mxu0 0.0
        %6653 = vmatprep.subr.mxu0 0.0
        %6654 = vmatpush1.msra.mxu0 0.0
        %6655 = vmatprep.subr.mxu0 0.0
        %6656 = vmatpush1.msra.mxu0 0.0
        %6657 = vmatprep.subr.mxu0 0.0
        %6658 = vmatpush1.msra.mxu0 0.0
        %6659 = vmatprep.subr.mxu0 0.0
        %6660 = vmatpush1.msra.mxu0 0.0
        %6661 = vmatprep.subr.mxu0 0.0
        %6662 = vmatpush1.msra.mxu0 0.0
        %6663 = vmatprep.subr.mxu0 0.0
        %6664 = vmatpush1.msra.mxu0 0.0
        %6665 = vmatprep.subr.mxu0 0.0
        %6666 = vmatpush1.msra.mxu0 0.0
        %6667 = vmatprep.subr.mxu0 0.0
        %6668 = vmatpush1.msra.mxu0 0.0
        %6669 = vmatprep.mubr.f32.mxu0 0.0
        %v6670 = vand.u32 %v6371, 4294901760
        %v6671 = vsub.f32 %v6371, %v6670
        %v6672 = vand.u32 %v6671, 4294901760
        %6673 = vmatmul.mubr.f32.gmra.mrb[0].mxu0 %v6672
        %v6674 = vpop.f32.mrb[0].mxu0
        %v6675 = vadd.f32 %v6601, %v6674
        %v6676 = vpop.f32.mrb[0].mxu0
        %6677 = vdwg.mxu0
        %6678 = vmatprep.subr.mxu0 0.0
        %v6679 = vsub.f32 %v384, %v384
        %v6680 = vand.u32 %v6679, 4294901760
        %6681 = vmatpush1.msra.mxu0 %v6680
        %6682 = vmatprep.subr.mxu0 0.0
        %v6683 = vand.u32 %v4091, 4294901760
        %v6684 = vsub.f32 %v4091, %v6683
        %v6685 = vand.u32 %v6684, 4294901760
        %6686 = vmatpush1.msra.mxu0 %v6685
        %6687 = vmatprep.subr.mxu0 0.0
        %6688 = vmatpush1.msra.mxu0 0.0
        %6689 = vmatprep.subr.mxu0 0.0
        %6690 = vmatpush1.msra.mxu0 0.0
        %6691 = vmatprep.subr.mxu0 0.0
        %6692 = vmatpush1.msra.mxu0 0.0
        %6693 = vmatprep.subr.mxu0 0.0
        %6694 = vmatpush1.msra.mxu0 0.0
        %6695 = vmatprep.subr.mxu0 0.0
        %6696 = vmatpush1.msra.mxu0 0.0
        %6697 = vmatprep.subr.mxu0 0.0
        %6698 = vmatpush1.msra.mxu0 0.0
        %6699 = vmatprep.subr.mxu0 0.0
        %6700 = vmatpush1.msra.mxu0 0.0
        %6701 = vmatprep.subr.mxu0 0.0
        %6702 = vmatpush1.msra.mxu0 0.0
        %6703 = vmatprep.subr.mxu0 0.0
        %6704 = vmatpush1.msra.mxu0 0.0
        %6705 = vmatprep.subr.mxu0 0.0
        %6706 = vmatpush1.msra.mxu0 0.0
        %6707 = vmatprep.subr.mxu0 0.0
        %6708 = vmatpush1.msra.mxu0 0.0
        %6709 = vmatprep.subr.mxu0 0.0
        %6710 = vmatpush1.msra.mxu0 0.0
        %6711 = vmatprep.subr.mxu0 0.0
        %6712 = vmatpush1.msra.mxu0 0.0
        %6713 = vmatprep.subr.mxu0 0.0
        %6714 = vmatpush1.msra.mxu0 0.0
        %6715 = vmatprep.subr.mxu0 0.0
        %6716 = vmatpush1.msra.mxu0 0.0
        %6717 = vmatprep.subr.mxu0 0.0
        %6718 = vmatpush1.msra.mxu0 0.0
        %6719 = vmatprep.subr.mxu0 0.0
        %6720 = vmatpush1.msra.mxu0 0.0
        %6721 = vmatprep.subr.mxu0 0.0
        %6722 = vmatpush1.msra.mxu0 0.0
        %6723 = vmatprep.subr.mxu0 0.0
        %6724 = vmatpush1.msra.mxu0 0.0
        %6725 = vmatprep.subr.mxu0 0.0
        %6726 = vmatpush1.msra.mxu0 0.0
        %6727 = vmatprep.subr.mxu0 0.0
        %6728 = vmatpush1.msra.mxu0 0.0
        %6729 = vmatprep.subr.mxu0 0.0
        %6730 = vmatpush1.msra.mxu0 0.0
        %6731 = vmatprep.subr.mxu0 0.0
        %6732 = vmatpush1.msra.mxu0 0.0
        %6733 = vmatprep.subr.mxu0 0.0
        %6734 = vmatpush1.msra.mxu0 0.0
        %6735 = vmatprep.subr.mxu0 0.0
        %6736 = vmatpush1.msra.mxu0 0.0
        %6737 = vmatprep.subr.mxu0 0.0
        %6738 = vmatpush1.msra.mxu0 0.0
        %6739 = vmatprep.subr.mxu0 0.0
        %6740 = vmatpush1.msra.mxu0 0.0
        %6741 = vmatprep.subr.mxu0 0.0
        %6742 = vmatpush1.msra.mxu0 0.0
        %6743 = vmatprep.subr.mxu0 0.0
        %6744 = vmatpush1.msra.mxu0 0.0
        %6745 = vmatprep.subr.mxu0 0.0
        %6746 = vmatpush1.msra.mxu0 0.0
        %6747 = vmatprep.mubr.f32.mxu0 0.0
        %v6748 = vand.u32 %v6371, 4294901760
        %6749 = vmatmul.mubr.f32.gmra.mrb[0].mxu0 %v6748
        %v6750 = vpop.f32.mrb[0].mxu0
        %v6751 = vadd.f32 %v6675, %v6750
        %v6752 = vpop.f32.mrb[0].mxu0
        %6753 = vdwg.mxu0
        %6754 = vmatprep.subr.mxu0 0.0
        %6755 = vmatpush1.msra.mxu0 %v384
        %6756 = vmatprep.subr.mxu0 0.0
        %v6757 = vand.u32 %v4091, 4294901760
        %6758 = vmatpush1.msra.mxu0 %v6757
        %6759 = vmatprep.subr.mxu0 0.0
        %6760 = vmatpush1.msra.mxu0 0.0
        %6761 = vmatprep.subr.mxu0 0.0
        %6762 = vmatpush1.msra.mxu0 0.0
        %6763 = vmatprep.subr.mxu0 0.0
        %6764 = vmatpush1.msra.mxu0 0.0
        %6765 = vmatprep.subr.mxu0 0.0
        %6766 = vmatpush1.msra.mxu0 0.0
        %6767 = vmatprep.subr.mxu0 0.0
        %6768 = vmatpush1.msra.mxu0 0.0
        %6769 = vmatprep.subr.mxu0 0.0
        %6770 = vmatpush1.msra.mxu0 0.0
        %6771 = vmatprep.subr.mxu0 0.0
        %6772 = vmatpush1.msra.mxu0 0.0
        %6773 = vmatprep.subr.mxu0 0.0
        %6774 = vmatpush1.msra.mxu0 0.0
        %6775 = vmatprep.subr.mxu0 0.0
        %6776 = vmatpush1.msra.mxu0 0.0
        %6777 = vmatprep.subr.mxu0 0.0
        %6778 = vmatpush1.msra.mxu0 0.0
        %6779 = vmatprep.subr.mxu0 0.0
        %6780 = vmatpush1.msra.mxu0 0.0
        %6781 = vmatprep.subr.mxu0 0.0
        %6782 = vmatpush1.msra.mxu0 0.0
        %6783 = vmatprep.subr.mxu0 0.0
        %6784 = vmatpush1.msra.mxu0 0.0
        %6785 = vmatprep.subr.mxu0 0.0
        %6786 = vmatpush1.msra.mxu0 0.0
        %6787 = vmatprep.subr.mxu0 0.0
        %6788 = vmatpush1.msra.mxu0 0.0
        %6789 = vmatprep.subr.mxu0 0.0
        %6790 = vmatpush1.msra.mxu0 0.0
        %6791 = vmatprep.subr.mxu0 0.0
        %6792 = vmatpush1.msra.mxu0 0.0
        %6793 = vmatprep.subr.mxu0 0.0
        %6794 = vmatpush1.msra.mxu0 0.0
        %6795 = vmatprep.subr.mxu0 0.0
        %6796 = vmatpush1.msra.mxu0 0.0
        %6797 = vmatprep.subr.mxu0 0.0
        %6798 = vmatpush1.msra.mxu0 0.0
        %6799 = vmatprep.subr.mxu0 0.0
        %6800 = vmatpush1.msra.mxu0 0.0
        %6801 = vmatprep.subr.mxu0 0.0
        %6802 = vmatpush1.msra.mxu0 0.0
        %6803 = vmatprep.subr.mxu0 0.0
        %6804 = vmatpush1.msra.mxu0 0.0
        %6805 = vmatprep.subr.mxu0 0.0
        %6806 = vmatpush1.msra.mxu0 0.0
        %6807 = vmatprep.subr.mxu0 0.0
        %6808 = vmatpush1.msra.mxu0 0.0
        %6809 = vmatprep.subr.mxu0 0.0
        %6810 = vmatpush1.msra.mxu0 0.0
        %6811 = vmatprep.subr.mxu0 0.0
        %6812 = vmatpush1.msra.mxu0 0.0
        %6813 = vmatprep.subr.mxu0 0.0
        %6814 = vmatpush1.msra.mxu0 0.0
        %6815 = vmatprep.subr.mxu0 0.0
        %6816 = vmatpush1.msra.mxu0 0.0
        %6817 = vmatprep.subr.mxu0 0.0
        %6818 = vmatpush1.msra.mxu0 0.0
        %6819 = vmatprep.mubr.f32.mxu0 0.0
        %v6820 = vand.u32 %v6371, 4294901760
        %6821 = vmatmul.mubr.f32.gmra.mrb[0].mxu0 %v6820
        %v6822 = vpop.f32.mrb[0].mxu0
        %v6823 = vadd.f32 %v6751, %v6822
        %v6824 = vpop.f32.mrb[0].mxu0
        %6825 = vdwg.mxu0
        %v6827 = vsel %vm386, %v3622, 0
        %6829 = vmatprep.subr.mxu0 0.0
        %6830 = vmatpush1.msra.mxu0 %v384
        %6831 = vmatprep.subr.mxu0 0.0
        %v6832 = vand.u32 %v4091, 4294901760
        %6833 = vmatpush1.msra.mxu0 %v6832
        %6834 = vmatprep.subr.mxu0 0.0
        %6835 = vmatpush1.msra.mxu0 0.0
        %6836 = vmatprep.subr.mxu0 0.0
        %6837 = vmatpush1.msra.mxu0 0.0
        %6838 = vmatprep.subr.mxu0 0.0
        %6839 = vmatpush1.msra.mxu0 0.0
        %6840 = vmatprep.subr.mxu0 0.0
        %6841 = vmatpush1.msra.mxu0 0.0
        %6842 = vmatprep.subr.mxu0 0.0
        %6843 = vmatpush1.msra.mxu0 0.0
        %6844 = vmatprep.subr.mxu0 0.0
        %6845 = vmatpush1.msra.mxu0 0.0
        %6846 = vmatprep.subr.mxu0 0.0
        %6847 = vmatpush1.msra.mxu0 0.0
        %6848 = vmatprep.subr.mxu0 0.0
        %6849 = vmatpush1.msra.mxu0 0.0
        %6850 = vmatprep.subr.mxu0 0.0
        %6851 = vmatpush1.msra.mxu0 0.0
        %6852 = vmatprep.subr.mxu0 0.0
        %6853 = vmatpush1.msra.mxu0 0.0
        %6854 = vmatprep.subr.mxu0 0.0
        %6855 = vmatpush1.msra.mxu0 0.0
        %6856 = vmatprep.subr.mxu0 0.0
        %6857 = vmatpush1.msra.mxu0 0.0
        %6858 = vmatprep.subr.mxu0 0.0
        %6859 = vmatpush1.msra.mxu0 0.0
        %6860 = vmatprep.subr.mxu0 0.0
        %6861 = vmatpush1.msra.mxu0 0.0
        %6862 = vmatprep.subr.mxu0 0.0
        %6863 = vmatpush1.msra.mxu0 0.0
        %6864 = vmatprep.subr.mxu0 0.0
        %6865 = vmatpush1.msra.mxu0 0.0
        %6866 = vmatprep.subr.mxu0 0.0
        %6867 = vmatpush1.msra.mxu0 0.0
        %6868 = vmatprep.subr.mxu0 0.0
        %6869 = vmatpush1.msra.mxu0 0.0
        %6870 = vmatprep.subr.mxu0 0.0
        %6871 = vmatpush1.msra.mxu0 0.0
        %6872 = vmatprep.subr.mxu0 0.0
        %6873 = vmatpush1.msra.mxu0 0.0
        %6874 = vmatprep.subr.mxu0 0.0
        %6875 = vmatpush1.msra.mxu0 0.0
        %6876 = vmatprep.subr.mxu0 0.0
        %6877 = vmatpush1.msra.mxu0 0.0
        %6878 = vmatprep.subr.mxu0 0.0
        %6879 = vmatpush1.msra.mxu0 0.0
        %6880 = vmatprep.subr.mxu0 0.0
        %6881 = vmatpush1.msra.mxu0 0.0
        %6882 = vmatprep.subr.mxu0 0.0
        %6883 = vmatpush1.msra.mxu0 0.0
        %6884 = vmatprep.subr.mxu0 0.0
        %6885 = vmatpush1.msra.mxu0 0.0
        %6886 = vmatprep.subr.mxu0 0.0
        %6887 = vmatpush1.msra.mxu0 0.0
        %6888 = vmatprep.subr.mxu0 0.0
        %6889 = vmatpush1.msra.mxu0 0.0
        %6890 = vmatprep.subr.mxu0 0.0
        %6891 = vmatpush1.msra.mxu0 0.0
        %6892 = vmatprep.subr.mxu0 0.0
        %6893 = vmatpush1.msra.mxu0 0.0
        %6894 = vmatprep.mubr.f32.mxu0 0.0
        %v6895 = vand.u32 %v6827, 4294901760
        %v6896 = vsub.f32 %v6827, %v6895
        %v6897 = vand.u32 %v6896, 4294901760
        %v6898 = vsub.f32 %v6896, %v6897
        %v6899 = vand.u32 %v6898, 4294901760
        %6900 = vmatmul.mubr.f32.gmra.mrb[0].mxu0 %v6899
        %v6901 = vpop.f32.mrb[0].mxu0
        %v6902 = vadd.f32 0.0, %v6901
        %v6903 = vpop.f32.mrb[0].mxu0
        %6904 = vdwg.mxu0
        %6905 = vmatprep.subr.mxu0 0.0
        %v6906 = vsub.f32 %v384, %v384
        %v6907 = vand.u32 %v6906, 4294901760
        %v6908 = vsub.f32 %v6906, %v6907
        %v6909 = vand.u32 %v6908, 4294901760
        %6910 = vmatpush1.msra.mxu0 %v6909
        %6911 = vmatprep.subr.mxu0 0.0
        %v6912 = vand.u32 %v4091, 4294901760
        %v6913 = vsub.f32 %v4091, %v6912
        %v6914 = vand.u32 %v6913, 4294901760
        %v6915 = vsub.f32 %v6913, %v6914
        %v6916 = vand.u32 %v6915, 4294901760
        %6917 = vmatpush1.msra.mxu0 %v6916
        %6918 = vmatprep.subr.mxu0 0.0
        %6919 = vmatpush1.msra.mxu0 0.0
        %6920 = vmatprep.subr.mxu0 0.0
        %6921 = vmatpush1.msra.mxu0 0.0
        %6922 = vmatprep.subr.mxu0 0.0
        %6923 = vmatpush1.msra.mxu0 0.0
        %6924 = vmatprep.subr.mxu0 0.0
        %6925 = vmatpush1.msra.mxu0 0.0
        %6926 = vmatprep.subr.mxu0 0.0
        %6927 = vmatpush1.msra.mxu0 0.0
        %6928 = vmatprep.subr.mxu0 0.0
        %6929 = vmatpush1.msra.mxu0 0.0
        %6930 = vmatprep.subr.mxu0 0.0
        %6931 = vmatpush1.msra.mxu0 0.0
        %6932 = vmatprep.subr.mxu0 0.0
        %6933 = vmatpush1.msra.mxu0 0.0
        %6934 = vmatprep.subr.mxu0 0.0
        %6935 = vmatpush1.msra.mxu0 0.0
        %6936 = vmatprep.subr.mxu0 0.0
        %6937 = vmatpush1.msra.mxu0 0.0
        %6938 = vmatprep.subr.mxu0 0.0
        %6939 = vmatpush1.msra.mxu0 0.0
        %6940 = vmatprep.subr.mxu0 0.0
        %6941 = vmatpush1.msra.mxu0 0.0
        %6942 = vmatprep.subr.mxu0 0.0
        %6943 = vmatpush1.msra.mxu0 0.0
        %6944 = vmatprep.subr.mxu0 0.0
        %6945 = vmatpush1.msra.mxu0 0.0
        %6946 = vmatprep.subr.mxu0 0.0
        %6947 = vmatpush1.msra.mxu0 0.0
        %6948 = vmatprep.subr.mxu0 0.0
        %6949 = vmatpush1.msra.mxu0 0.0
        %6950 = vmatprep.subr.mxu0 0.0
        %6951 = vmatpush1.msra.mxu0 0.0
        %6952 = vmatprep.subr.mxu0 0.0
        %6953 = vmatpush1.msra.mxu0 0.0
        %6954 = vmatprep.subr.mxu0 0.0
        %6955 = vmatpush1.msra.mxu0 0.0
        %6956 = vmatprep.subr.mxu0 0.0
        %6957 = vmatpush1.msra.mxu0 0.0
        %6958 = vmatprep.subr.mxu0 0.0
        %6959 = vmatpush1.msra.mxu0 0.0
        %6960 = vmatprep.subr.mxu0 0.0
        %6961 = vmatpush1.msra.mxu0 0.0
        %6962 = vmatprep.subr.mxu0 0.0
        %6963 = vmatpush1.msra.mxu0 0.0
        %6964 = vmatprep.subr.mxu0 0.0
        %6965 = vmatpush1.msra.mxu0 0.0
        %6966 = vmatprep.subr.mxu0 0.0
        %6967 = vmatpush1.msra.mxu0 0.0
        %6968 = vmatprep.subr.mxu0 0.0
        %6969 = vmatpush1.msra.mxu0 0.0
        %6970 = vmatprep.subr.mxu0 0.0
        %6971 = vmatpush1.msra.mxu0 0.0
        %6972 = vmatprep.subr.mxu0 0.0
        %6973 = vmatpush1.msra.mxu0 0.0
        %6974 = vmatprep.subr.mxu0 0.0
        %6975 = vmatpush1.msra.mxu0 0.0
        %6976 = vmatprep.subr.mxu0 0.0
        %6977 = vmatpush1.msra.mxu0 0.0
        %6978 = vmatprep.mubr.f32.mxu0 0.0
        %v6979 = vand.u32 %v6827, 4294901760
        %6980 = vmatmul.mubr.f32.gmra.mrb[0].mxu0 %v6979
        %v6981 = vpop.f32.mrb[0].mxu0
        %v6982 = vadd.f32 %v6902, %v6981
        %v6983 = vpop.f32.mrb[0].mxu0
        %6984 = vdwg.mxu0
        %6985 = vmatprep.subr.mxu0 0.0
        %v6986 = vsub.f32 %v384, %v384
        %6987 = vmatpush1.msra.mxu0 %v6986
        %6988 = vmatprep.subr.mxu0 0.0
        %v6989 = vand.u32 %v4091, 4294901760
        %v6990 = vsub.f32 %v4091, %v6989
        %6991 = vmatpush1.msra.mxu0 %v6990
        %6992 = vmatprep.subr.mxu0 0.0
        %6993 = vmatpush1.msra.mxu0 0.0
        %6994 = vmatprep.subr.mxu0 0.0
        %6995 = vmatpush1.msra.mxu0 0.0
        %6996 = vmatprep.subr.mxu0 0.0
        %6997 = vmatpush1.msra.mxu0 0.0
        %6998 = vmatprep.subr.mxu0 0.0
        %6999 = vmatpush1.msra.mxu0 0.0
        %7000 = vmatprep.subr.mxu0 0.0
        %7001 = vmatpush1.msra.mxu0 0.0
        %7002 = vmatprep.subr.mxu0 0.0
        %7003 = vmatpush1.msra.mxu0 0.0
        %7004 = vmatprep.subr.mxu0 0.0
        %7005 = vmatpush1.msra.mxu0 0.0
        %7006 = vmatprep.subr.mxu0 0.0
        %7007 = vmatpush1.msra.mxu0 0.0
        %7008 = vmatprep.subr.mxu0 0.0
        %7009 = vmatpush1.msra.mxu0 0.0
        %7010 = vmatprep.subr.mxu0 0.0
        %7011 = vmatpush1.msra.mxu0 0.0
        %7012 = vmatprep.subr.mxu0 0.0
        %7013 = vmatpush1.msra.mxu0 0.0
        %7014 = vmatprep.subr.mxu0 0.0
        %7015 = vmatpush1.msra.mxu0 0.0
        %7016 = vmatprep.subr.mxu0 0.0
        %7017 = vmatpush1.msra.mxu0 0.0
        %7018 = vmatprep.subr.mxu0 0.0
        %7019 = vmatpush1.msra.mxu0 0.0
        %7020 = vmatprep.subr.mxu0 0.0
        %7021 = vmatpush1.msra.mxu0 0.0
        %7022 = vmatprep.subr.mxu0 0.0
        %7023 = vmatpush1.msra.mxu0 0.0
        %7024 = vmatprep.subr.mxu0 0.0
        %7025 = vmatpush1.msra.mxu0 0.0
        %7026 = vmatprep.subr.mxu0 0.0
        %7027 = vmatpush1.msra.mxu0 0.0
        %7028 = vmatprep.subr.mxu0 0.0
        %7029 = vmatpush1.msra.mxu0 0.0
        %7030 = vmatprep.subr.mxu0 0.0
        %7031 = vmatpush1.msra.mxu0 0.0
        %7032 = vmatprep.subr.mxu0 0.0
        %7033 = vmatpush1.msra.mxu0 0.0
        %7034 = vmatprep.subr.mxu0 0.0
        %7035 = vmatpush1.msra.mxu0 0.0
        %7036 = vmatprep.subr.mxu0 0.0
        %7037 = vmatpush1.msra.mxu0 0.0
        %7038 = vmatprep.subr.mxu0 0.0
        %7039 = vmatpush1.msra.mxu0 0.0
        %7040 = vmatprep.subr.mxu0 0.0
        %7041 = vmatpush1.msra.mxu0 0.0
        %7042 = vmatprep.subr.mxu0 0.0
        %7043 = vmatpush1.msra.mxu0 0.0
        %7044 = vmatprep.subr.mxu0 0.0
        %7045 = vmatpush1.msra.mxu0 0.0
        %7046 = vmatprep.subr.mxu0 0.0
        %7047 = vmatpush1.msra.mxu0 0.0
        %7048 = vmatprep.subr.mxu0 0.0
        %7049 = vmatpush1.msra.mxu0 0.0
        %7050 = vmatprep.subr.mxu0 0.0
        %7051 = vmatpush1.msra.mxu0 0.0
        %7052 = vmatprep.mubr.f32.mxu0 0.0
        %v7053 = vand.u32 %v6827, 4294901760
        %v7054 = vsub.f32 %v6827, %v7053
        %7055 = vmatmul.mubr.f32.gmra.mrb[0].mxu0 %v7054
        %v7056 = vpop.f32.mrb[0].mxu0
        %v7057 = vadd.f32 %v6982, %v7056
        %v7058 = vpop.f32.mrb[0].mxu0
        %7059 = vdwg.mxu0
        %7060 = vmatprep.subr.mxu0 0.0
        %7061 = vmatpush1.msra.mxu0 %v384
        %7062 = vmatprep.subr.mxu0 0.0
        %v7063 = vand.u32 %v4091, 4294901760
        %7064 = vmatpush1.msra.mxu0 %v7063
        %7065 = vmatprep.subr.mxu0 0.0
        %7066 = vmatpush1.msra.mxu0 0.0
        %7067 = vmatprep.subr.mxu0 0.0
        %7068 = vmatpush1.msra.mxu0 0.0
        %7069 = vmatprep.subr.mxu0 0.0
        %7070 = vmatpush1.msra.mxu0 0.0
        %7071 = vmatprep.subr.mxu0 0.0
        %7072 = vmatpush1.msra.mxu0 0.0
        %7073 = vmatprep.subr.mxu0 0.0
        %7074 = vmatpush1.msra.mxu0 0.0
        %7075 = vmatprep.subr.mxu0 0.0
        %7076 = vmatpush1.msra.mxu0 0.0
        %7077 = vmatprep.subr.mxu0 0.0
        %7078 = vmatpush1.msra.mxu0 0.0
        %7079 = vmatprep.subr.mxu0 0.0
        %7080 = vmatpush1.msra.mxu0 0.0
        %7081 = vmatprep.subr.mxu0 0.0
        %7082 = vmatpush1.msra.mxu0 0.0
        %7083 = vmatprep.subr.mxu0 0.0
        %7084 = vmatpush1.msra.mxu0 0.0
        %7085 = vmatprep.subr.mxu0 0.0
        %7086 = vmatpush1.msra.mxu0 0.0
        %7087 = vmatprep.subr.mxu0 0.0
        %7088 = vmatpush1.msra.mxu0 0.0
        %7089 = vmatprep.subr.mxu0 0.0
        %7090 = vmatpush1.msra.mxu0 0.0
        %7091 = vmatprep.subr.mxu0 0.0
        %7092 = vmatpush1.msra.mxu0 0.0
        %7093 = vmatprep.subr.mxu0 0.0
        %7094 = vmatpush1.msra.mxu0 0.0
        %7095 = vmatprep.subr.mxu0 0.0
        %7096 = vmatpush1.msra.mxu0 0.0
        %7097 = vmatprep.subr.mxu0 0.0
        %7098 = vmatpush1.msra.mxu0 0.0
        %7099 = vmatprep.subr.mxu0 0.0
        %7100 = vmatpush1.msra.mxu0 0.0
        %7101 = vmatprep.subr.mxu0 0.0
        %7102 = vmatpush1.msra.mxu0 0.0
        %7103 = vmatprep.subr.mxu0 0.0
        %7104 = vmatpush1.msra.mxu0 0.0
        %7105 = vmatprep.subr.mxu0 0.0
        %7106 = vmatpush1.msra.mxu0 0.0
        %7107 = vmatprep.subr.mxu0 0.0
        %7108 = vmatpush1.msra.mxu0 0.0
        %7109 = vmatprep.subr.mxu0 0.0
        %7110 = vmatpush1.msra.mxu0 0.0
        %7111 = vmatprep.subr.mxu0 0.0
        %7112 = vmatpush1.msra.mxu0 0.0
        %7113 = vmatprep.subr.mxu0 0.0
        %7114 = vmatpush1.msra.mxu0 0.0
        %7115 = vmatprep.subr.mxu0 0.0
        %7116 = vmatpush1.msra.mxu0 0.0
        %7117 = vmatprep.subr.mxu0 0.0
        %7118 = vmatpush1.msra.mxu0 0.0
        %7119 = vmatprep.subr.mxu0 0.0
        %7120 = vmatpush1.msra.mxu0 0.0
        %7121 = vmatprep.subr.mxu0 0.0
        %7122 = vmatpush1.msra.mxu0 0.0
        %7123 = vmatprep.subr.mxu0 0.0
        %7124 = vmatpush1.msra.mxu0 0.0
        %7125 = vmatprep.mubr.f32.mxu0 0.0
        %v7126 = vand.u32 %v6827, 4294901760
        %v7127 = vsub.f32 %v6827, %v7126
        %v7128 = vand.u32 %v7127, 4294901760
        %7129 = vmatmul.mubr.f32.gmra.mrb[0].mxu0 %v7128
        %v7130 = vpop.f32.mrb[0].mxu0
        %v7131 = vadd.f32 %v7057, %v7130
        %v7132 = vpop.f32.mrb[0].mxu0
        %7133 = vdwg.mxu0
        %7134 = vmatprep.subr.mxu0 0.0
        %v7135 = vsub.f32 %v384, %v384
        %v7136 = vand.u32 %v7135, 4294901760
        %7137 = vmatpush1.msra.mxu0 %v7136
        %7138 = vmatprep.subr.mxu0 0.0
        %v7139 = vand.u32 %v4091, 4294901760
        %v7140 = vsub.f32 %v4091, %v7139
        %v7141 = vand.u32 %v7140, 4294901760
        %7142 = vmatpush1.msra.mxu0 %v7141
        %7143 = vmatprep.subr.mxu0 0.0
        %7144 = vmatpush1.msra.mxu0 0.0
        %7145 = vmatprep.subr.mxu0 0.0
        %7146 = vmatpush1.msra.mxu0 0.0
        %7147 = vmatprep.subr.mxu0 0.0
        %7148 = vmatpush1.msra.mxu0 0.0
        %7149 = vmatprep.subr.mxu0 0.0
        %7150 = vmatpush1.msra.mxu0 0.0
        %7151 = vmatprep.subr.mxu0 0.0
        %7152 = vmatpush1.msra.mxu0 0.0
        %7153 = vmatprep.subr.mxu0 0.0
        %7154 = vmatpush1.msra.mxu0 0.0
        %7155 = vmatprep.subr.mxu0 0.0
        %7156 = vmatpush1.msra.mxu0 0.0
        %7157 = vmatprep.subr.mxu0 0.0
        %7158 = vmatpush1.msra.mxu0 0.0
        %7159 = vmatprep.subr.mxu0 0.0
        %7160 = vmatpush1.msra.mxu0 0.0
        %7161 = vmatprep.subr.mxu0 0.0
        %7162 = vmatpush1.msra.mxu0 0.0
        %7163 = vmatprep.subr.mxu0 0.0
        %7164 = vmatpush1.msra.mxu0 0.0
        %7165 = vmatprep.subr.mxu0 0.0
        %7166 = vmatpush1.msra.mxu0 0.0
        %7167 = vmatprep.subr.mxu0 0.0
        %7168 = vmatpush1.msra.mxu0 0.0
        %7169 = vmatprep.subr.mxu0 0.0
        %7170 = vmatpush1.msra.mxu0 0.0
        %7171 = vmatprep.subr.mxu0 0.0
        %7172 = vmatpush1.msra.mxu0 0.0
        %7173 = vmatprep.subr.mxu0 0.0
        %7174 = vmatpush1.msra.mxu0 0.0
        %7175 = vmatprep.subr.mxu0 0.0
        %7176 = vmatpush1.msra.mxu0 0.0
        %7177 = vmatprep.subr.mxu0 0.0
        %7178 = vmatpush1.msra.mxu0 0.0
        %7179 = vmatprep.subr.mxu0 0.0
        %7180 = vmatpush1.msra.mxu0 0.0
        %7181 = vmatprep.subr.mxu0 0.0
        %7182 = vmatpush1.msra.mxu0 0.0
        %7183 = vmatprep.subr.mxu0 0.0
        %7184 = vmatpush1.msra.mxu0 0.0
        %7185 = vmatprep.subr.mxu0 0.0
        %7186 = vmatpush1.msra.mxu0 0.0
        %7187 = vmatprep.subr.mxu0 0.0
        %7188 = vmatpush1.msra.mxu0 0.0
        %7189 = vmatprep.subr.mxu0 0.0
        %7190 = vmatpush1.msra.mxu0 0.0
        %7191 = vmatprep.subr.mxu0 0.0
        %7192 = vmatpush1.msra.mxu0 0.0
        %7193 = vmatprep.subr.mxu0 0.0
        %7194 = vmatpush1.msra.mxu0 0.0
        %7195 = vmatprep.subr.mxu0 0.0
        %7196 = vmatpush1.msra.mxu0 0.0
        %7197 = vmatprep.subr.mxu0 0.0
        %7198 = vmatpush1.msra.mxu0 0.0
        %7199 = vmatprep.subr.mxu0 0.0
        %7200 = vmatpush1.msra.mxu0 0.0
        %7201 = vmatprep.subr.mxu0 0.0
        %7202 = vmatpush1.msra.mxu0 0.0
        %7203 = vmatprep.mubr.f32.mxu0 0.0
        %v7204 = vand.u32 %v6827, 4294901760
        %7205 = vmatmul.mubr.f32.gmra.mrb[0].mxu0 %v7204
        %v7206 = vpop.f32.mrb[0].mxu0
        %v7207 = vadd.f32 %v7131, %v7206
        %v7208 = vpop.f32.mrb[0].mxu0
        %7209 = vdwg.mxu0
        %7210 = vmatprep.subr.mxu0 0.0
        %7211 = vmatpush1.msra.mxu0 %v384
        %7212 = vmatprep.subr.mxu0 0.0
        %v7213 = vand.u32 %v4091, 4294901760
        %7214 = vmatpush1.msra.mxu0 %v7213
        %7215 = vmatprep.subr.mxu0 0.0
        %7216 = vmatpush1.msra.mxu0 0.0
        %7217 = vmatprep.subr.mxu0 0.0
        %7218 = vmatpush1.msra.mxu0 0.0
        %7219 = vmatprep.subr.mxu0 0.0
        %7220 = vmatpush1.msra.mxu0 0.0
        %7221 = vmatprep.subr.mxu0 0.0
        %7222 = vmatpush1.msra.mxu0 0.0
        %7223 = vmatprep.subr.mxu0 0.0
        %7224 = vmatpush1.msra.mxu0 0.0
        %7225 = vmatprep.subr.mxu0 0.0
        %7226 = vmatpush1.msra.mxu0 0.0
        %7227 = vmatprep.subr.mxu0 0.0
        %7228 = vmatpush1.msra.mxu0 0.0
        %7229 = vmatprep.subr.mxu0 0.0
        %7230 = vmatpush1.msra.mxu0 0.0
        %7231 = vmatprep.subr.mxu0 0.0
        %7232 = vmatpush1.msra.mxu0 0.0
        %7233 = vmatprep.subr.mxu0 0.0
        %7234 = vmatpush1.msra.mxu0 0.0
        %7235 = vmatprep.subr.mxu0 0.0
        %7236 = vmatpush1.msra.mxu0 0.0
        %7237 = vmatprep.subr.mxu0 0.0
        %7238 = vmatpush1.msra.mxu0 0.0
        %7239 = vmatprep.subr.mxu0 0.0
        %7240 = vmatpush1.msra.mxu0 0.0
        %7241 = vmatprep.subr.mxu0 0.0
        %7242 = vmatpush1.msra.mxu0 0.0
        %7243 = vmatprep.subr.mxu0 0.0
        %7244 = vmatpush1.msra.mxu0 0.0
        %7245 = vmatprep.subr.mxu0 0.0
        %7246 = vmatpush1.msra.mxu0 0.0
        %7247 = vmatprep.subr.mxu0 0.0
        %7248 = vmatpush1.msra.mxu0 0.0
        %7249 = vmatprep.subr.mxu0 0.0
        %7250 = vmatpush1.msra.mxu0 0.0
        %7251 = vmatprep.subr.mxu0 0.0
        %7252 = vmatpush1.msra.mxu0 0.0
        %7253 = vmatprep.subr.mxu0 0.0
        %7254 = vmatpush1.msra.mxu0 0.0
        %7255 = vmatprep.subr.mxu0 0.0
        %7256 = vmatpush1.msra.mxu0 0.0
        %7257 = vmatprep.subr.mxu0 0.0
        %7258 = vmatpush1.msra.mxu0 0.0
        %7259 = vmatprep.subr.mxu0 0.0
        %7260 = vmatpush1.msra.mxu0 0.0
        %7261 = vmatprep.subr.mxu0 0.0
        %7262 = vmatpush1.msra.mxu0 0.0
        %7263 = vmatprep.subr.mxu0 0.0
        %7264 = vmatpush1.msra.mxu0 0.0
        %7265 = vmatprep.subr.mxu0 0.0
        %7266 = vmatpush1.msra.mxu0 0.0
        %7267 = vmatprep.subr.mxu0 0.0
        %7268 = vmatpush1.msra.mxu0 0.0
        %7269 = vmatprep.subr.mxu0 0.0
        %7270 = vmatpush1.msra.mxu0 0.0
        %7271 = vmatprep.subr.mxu0 0.0
        %7272 = vmatpush1.msra.mxu0 0.0
        %7273 = vmatprep.subr.mxu0 0.0
        %7274 = vmatpush1.msra.mxu0 0.0
        %7275 = vmatprep.mubr.f32.mxu0 0.0
        %v7276 = vand.u32 %v6827, 4294901760
        %7277 = vmatmul.mubr.f32.gmra.mrb[0].mxu0 %v7276
        %v7278 = vpop.f32.mrb[0].mxu0
        %v7279 = vadd.f32 %v7207, %v7278
        %v7280 = vpop.f32.mrb[0].mxu0
        %7281 = vdwg.mxu0
        %v7283 = vsel %vm386, %v4084, 0
        %7285 = vmatprep.subr.mxu0 0.0
        %7286 = vmatpush1.msra.mxu0 %v384
        %7287 = vmatprep.subr.mxu0 0.0
        %v7288 = vand.u32 %v4091, 4294901760
        %7289 = vmatpush1.msra.mxu0 %v7288
        %7290 = vmatprep.subr.mxu0 0.0
        %7291 = vmatpush1.msra.mxu0 0.0
        %7292 = vmatprep.subr.mxu0 0.0
        %7293 = vmatpush1.msra.mxu0 0.0
        %7294 = vmatprep.subr.mxu0 0.0
        %7295 = vmatpush1.msra.mxu0 0.0
        %7296 = vmatprep.subr.mxu0 0.0
        %7297 = vmatpush1.msra.mxu0 0.0
        %7298 = vmatprep.subr.mxu0 0.0
        %7299 = vmatpush1.msra.mxu0 0.0
        %7300 = vmatprep.subr.mxu0 0.0
        %7301 = vmatpush1.msra.mxu0 0.0
        %7302 = vmatprep.subr.mxu0 0.0
        %7303 = vmatpush1.msra.mxu0 0.0
        %7304 = vmatprep.subr.mxu0 0.0
        %7305 = vmatpush1.msra.mxu0 0.0
        %7306 = vmatprep.subr.mxu0 0.0
        %7307 = vmatpush1.msra.mxu0 0.0
        %7308 = vmatprep.subr.mxu0 0.0
        %7309 = vmatpush1.msra.mxu0 0.0
        %7310 = vmatprep.subr.mxu0 0.0
        %7311 = vmatpush1.msra.mxu0 0.0
        %7312 = vmatprep.subr.mxu0 0.0
        %7313 = vmatpush1.msra.mxu0 0.0
        %7314 = vmatprep.subr.mxu0 0.0
        %7315 = vmatpush1.msra.mxu0 0.0
        %7316 = vmatprep.subr.mxu0 0.0
        %7317 = vmatpush1.msra.mxu0 0.0
        %7318 = vmatprep.subr.mxu0 0.0
        %7319 = vmatpush1.msra.mxu0 0.0
        %7320 = vmatprep.subr.mxu0 0.0
        %7321 = vmatpush1.msra.mxu0 0.0
        %7322 = vmatprep.subr.mxu0 0.0
        %7323 = vmatpush1.msra.mxu0 0.0
        %7324 = vmatprep.subr.mxu0 0.0
        %7325 = vmatpush1.msra.mxu0 0.0
        %7326 = vmatprep.subr.mxu0 0.0
        %7327 = vmatpush1.msra.mxu0 0.0
        %7328 = vmatprep.subr.mxu0 0.0
        %7329 = vmatpush1.msra.mxu0 0.0
        %7330 = vmatprep.subr.mxu0 0.0
        %7331 = vmatpush1.msra.mxu0 0.0
        %7332 = vmatprep.subr.mxu0 0.0
        %7333 = vmatpush1.msra.mxu0 0.0
        %7334 = vmatprep.subr.mxu0 0.0
        %7335 = vmatpush1.msra.mxu0 0.0
        %7336 = vmatprep.subr.mxu0 0.0
        %7337 = vmatpush1.msra.mxu0 0.0
        %7338 = vmatprep.subr.mxu0 0.0
        %7339 = vmatpush1.msra.mxu0 0.0
        %7340 = vmatprep.subr.mxu0 0.0
        %7341 = vmatpush1.msra.mxu0 0.0
        %7342 = vmatprep.subr.mxu0 0.0
        %7343 = vmatpush1.msra.mxu0 0.0
        %7344 = vmatprep.subr.mxu0 0.0
        %7345 = vmatpush1.msra.mxu0 0.0
        %7346 = vmatprep.subr.mxu0 0.0
        %7347 = vmatpush1.msra.mxu0 0.0
        %7348 = vmatprep.subr.mxu0 0.0
        %7349 = vmatpush1.msra.mxu0 0.0
        %7350 = vmatprep.mubr.f32.mxu0 0.0
        %v7351 = vand.u32 %v7283, 4294901760
        %v7352 = vsub.f32 %v7283, %v7351
        %v7353 = vand.u32 %v7352, 4294901760
        %v7354 = vsub.f32 %v7352, %v7353
        %v7355 = vand.u32 %v7354, 4294901760
        %7356 = vmatmul.mubr.f32.gmra.mrb[0].mxu0 %v7355
        %v7357 = vpop.f32.mrb[0].mxu0
        %v7358 = vadd.f32 0.0, %v7357
        %v7359 = vpop.f32.mrb[0].mxu0
        %7360 = vdwg.mxu0
        %7361 = vmatprep.subr.mxu0 0.0
        %v7362 = vsub.f32 %v384, %v384
        %v7363 = vand.u32 %v7362, 4294901760
        %v7364 = vsub.f32 %v7362, %v7363
        %v7365 = vand.u32 %v7364, 4294901760
        %7366 = vmatpush1.msra.mxu0 %v7365
        %7367 = vmatprep.subr.mxu0 0.0
        %v7368 = vand.u32 %v4091, 4294901760
        %v7369 = vsub.f32 %v4091, %v7368
        %v7370 = vand.u32 %v7369, 4294901760
        %v7371 = vsub.f32 %v7369, %v7370
        %v7372 = vand.u32 %v7371, 4294901760
        %7373 = vmatpush1.msra.mxu0 %v7372
        %7374 = vmatprep.subr.mxu0 0.0
        %7375 = vmatpush1.msra.mxu0 0.0
        %7376 = vmatprep.subr.mxu0 0.0
        %7377 = vmatpush1.msra.mxu0 0.0
        %7378 = vmatprep.subr.mxu0 0.0
        %7379 = vmatpush1.msra.mxu0 0.0
        %7380 = vmatprep.subr.mxu0 0.0
        %7381 = vmatpush1.msra.mxu0 0.0
        %7382 = vmatprep.subr.mxu0 0.0
        %7383 = vmatpush1.msra.mxu0 0.0
        %7384 = vmatprep.subr.mxu0 0.0
        %7385 = vmatpush1.msra.mxu0 0.0
        %7386 = vmatprep.subr.mxu0 0.0
        %7387 = vmatpush1.msra.mxu0 0.0
        %7388 = vmatprep.subr.mxu0 0.0
        %7389 = vmatpush1.msra.mxu0 0.0
        %7390 = vmatprep.subr.mxu0 0.0
        %7391 = vmatpush1.msra.mxu0 0.0
        %7392 = vmatprep.subr.mxu0 0.0
        %7393 = vmatpush1.msra.mxu0 0.0
        %7394 = vmatprep.subr.mxu0 0.0
        %7395 = vmatpush1.msra.mxu0 0.0
        %7396 = vmatprep.subr.mxu0 0.0
        %7397 = vmatpush1.msra.mxu0 0.0
        %7398 = vmatprep.subr.mxu0 0.0
        %7399 = vmatpush1.msra.mxu0 0.0
        %7400 = vmatprep.subr.mxu0 0.0
        %7401 = vmatpush1.msra.mxu0 0.0
        %7402 = vmatprep.subr.mxu0 0.0
        %7403 = vmatpush1.msra.mxu0 0.0
        %7404 = vmatprep.subr.mxu0 0.0
        %7405 = vmatpush1.msra.mxu0 0.0
        %7406 = vmatprep.subr.mxu0 0.0
        %7407 = vmatpush1.msra.mxu0 0.0
        %7408 = vmatprep.subr.mxu0 0.0
        %7409 = vmatpush1.msra.mxu0 0.0
        %7410 = vmatprep.subr.mxu0 0.0
        %7411 = vmatpush1.msra.mxu0 0.0
        %7412 = vmatprep.subr.mxu0 0.0
        %7413 = vmatpush1.msra.mxu0 0.0
        %7414 = vmatprep.subr.mxu0 0.0
        %7415 = vmatpush1.msra.mxu0 0.0
        %7416 = vmatprep.subr.mxu0 0.0
        %7417 = vmatpush1.msra.mxu0 0.0
        %7418 = vmatprep.subr.mxu0 0.0
        %7419 = vmatpush1.msra.mxu0 0.0
        %7420 = vmatprep.subr.mxu0 0.0
        %7421 = vmatpush1.msra.mxu0 0.0
        %7422 = vmatprep.subr.mxu0 0.0
        %7423 = vmatpush1.msra.mxu0 0.0
        %7424 = vmatprep.subr.mxu0 0.0
        %7425 = vmatpush1.msra.mxu0 0.0
        %7426 = vmatprep.subr.mxu0 0.0
        %7427 = vmatpush1.msra.mxu0 0.0
        %7428 = vmatprep.subr.mxu0 0.0
        %7429 = vmatpush1.msra.mxu0 0.0
        %7430 = vmatprep.subr.mxu0 0.0
        %7431 = vmatpush1.msra.mxu0 0.0
        %7432 = vmatprep.subr.mxu0 0.0
        %7433 = vmatpush1.msra.mxu0 0.0
        %7434 = vmatprep.mubr.f32.mxu0 0.0
        %v7435 = vand.u32 %v7283, 4294901760
        %7436 = vmatmul.mubr.f32.gmra.mrb[0].mxu0 %v7435
        %v7437 = vpop.f32.mrb[0].mxu0
        %v7438 = vadd.f32 %v7358, %v7437
        %v7439 = vpop.f32.mrb[0].mxu0
        %7440 = vdwg.mxu0
        %7441 = vmatprep.subr.mxu0 0.0
        %v7442 = vsub.f32 %v384, %v384
        %7443 = vmatpush1.msra.mxu0 %v7442
        %7444 = vmatprep.subr.mxu0 0.0
        %v7445 = vand.u32 %v4091, 4294901760
        %v7446 = vsub.f32 %v4091, %v7445
        %7447 = vmatpush1.msra.mxu0 %v7446
        %7448 = vmatprep.subr.mxu0 0.0
        %7449 = vmatpush1.msra.mxu0 0.0
        %7450 = vmatprep.subr.mxu0 0.0
        %7451 = vmatpush1.msra.mxu0 0.0
        %7452 = vmatprep.subr.mxu0 0.0
        %7453 = vmatpush1.msra.mxu0 0.0
        %7454 = vmatprep.subr.mxu0 0.0
        %7455 = vmatpush1.msra.mxu0 0.0
        %7456 = vmatprep.subr.mxu0 0.0
        %7457 = vmatpush1.msra.mxu0 0.0
        %7458 = vmatprep.subr.mxu0 0.0
        %7459 = vmatpush1.msra.mxu0 0.0
        %7460 = vmatprep.subr.mxu0 0.0
        %7461 = vmatpush1.msra.mxu0 0.0
        %7462 = vmatprep.subr.mxu0 0.0
        %7463 = vmatpush1.msra.mxu0 0.0
        %7464 = vmatprep.subr.mxu0 0.0
        %7465 = vmatpush1.msra.mxu0 0.0
        %7466 = vmatprep.subr.mxu0 0.0
        %7467 = vmatpush1.msra.mxu0 0.0
        %7468 = vmatprep.subr.mxu0 0.0
        %7469 = vmatpush1.msra.mxu0 0.0
        %7470 = vmatprep.subr.mxu0 0.0
        %7471 = vmatpush1.msra.mxu0 0.0
        %7472 = vmatprep.subr.mxu0 0.0
        %7473 = vmatpush1.msra.mxu0 0.0
        %7474 = vmatprep.subr.mxu0 0.0
        %7475 = vmatpush1.msra.mxu0 0.0
        %7476 = vmatprep.subr.mxu0 0.0
        %7477 = vmatpush1.msra.mxu0 0.0
        %7478 = vmatprep.subr.mxu0 0.0
        %7479 = vmatpush1.msra.mxu0 0.0
        %7480 = vmatprep.subr.mxu0 0.0
        %7481 = vmatpush1.msra.mxu0 0.0
        %7482 = vmatprep.subr.mxu0 0.0
        %7483 = vmatpush1.msra.mxu0 0.0
        %7484 = vmatprep.subr.mxu0 0.0
        %7485 = vmatpush1.msra.mxu0 0.0
        %7486 = vmatprep.subr.mxu0 0.0
        %7487 = vmatpush1.msra.mxu0 0.0
        %7488 = vmatprep.subr.mxu0 0.0
        %7489 = vmatpush1.msra.mxu0 0.0
        %7490 = vmatprep.subr.mxu0 0.0
        %7491 = vmatpush1.msra.mxu0 0.0
        %7492 = vmatprep.subr.mxu0 0.0
        %7493 = vmatpush1.msra.mxu0 0.0
        %7494 = vmatprep.subr.mxu0 0.0
        %7495 = vmatpush1.msra.mxu0 0.0
        %7496 = vmatprep.subr.mxu0 0.0
        %7497 = vmatpush1.msra.mxu0 0.0
        %7498 = vmatprep.subr.mxu0 0.0
        %7499 = vmatpush1.msra.mxu0 0.0
        %7500 = vmatprep.subr.mxu0 0.0
        %7501 = vmatpush1.msra.mxu0 0.0
        %7502 = vmatprep.subr.mxu0 0.0
        %7503 = vmatpush1.msra.mxu0 0.0
        %7504 = vmatprep.subr.mxu0 0.0
        %7505 = vmatpush1.msra.mxu0 0.0
        %7506 = vmatprep.subr.mxu0 0.0
        %7507 = vmatpush1.msra.mxu0 0.0
        %7508 = vmatprep.mubr.f32.mxu0 0.0
        %v7509 = vand.u32 %v7283, 4294901760
        %v7510 = vsub.f32 %v7283, %v7509
        %7511 = vmatmul.mubr.f32.gmra.mrb[0].mxu0 %v7510
        %v7512 = vpop.f32.mrb[0].mxu0
        %v7513 = vadd.f32 %v7438, %v7512
        %v7514 = vpop.f32.mrb[0].mxu0
        %7515 = vdwg.mxu0
        %7516 = vmatprep.subr.mxu0 0.0
        %7517 = vmatpush1.msra.mxu0 %v384
        %7518 = vmatprep.subr.mxu0 0.0
        %v7519 = vand.u32 %v4091, 4294901760
        %7520 = vmatpush1.msra.mxu0 %v7519
        %7521 = vmatprep.subr.mxu0 0.0
        %7522 = vmatpush1.msra.mxu0 0.0
        %7523 = vmatprep.subr.mxu0 0.0
        %7524 = vmatpush1.msra.mxu0 0.0
        %7525 = vmatprep.subr.mxu0 0.0
        %7526 = vmatpush1.msra.mxu0 0.0
        %7527 = vmatprep.subr.mxu0 0.0
        %7528 = vmatpush1.msra.mxu0 0.0
        %7529 = vmatprep.subr.mxu0 0.0
        %7530 = vmatpush1.msra.mxu0 0.0
        %7531 = vmatprep.subr.mxu0 0.0
        %7532 = vmatpush1.msra.mxu0 0.0
        %7533 = vmatprep.subr.mxu0 0.0
        %7534 = vmatpush1.msra.mxu0 0.0
        %7535 = vmatprep.subr.mxu0 0.0
        %7536 = vmatpush1.msra.mxu0 0.0
        %7537 = vmatprep.subr.mxu0 0.0
        %7538 = vmatpush1.msra.mxu0 0.0
        %7539 = vmatprep.subr.mxu0 0.0
        %7540 = vmatpush1.msra.mxu0 0.0
        %7541 = vmatprep.subr.mxu0 0.0
        %7542 = vmatpush1.msra.mxu0 0.0
        %7543 = vmatprep.subr.mxu0 0.0
        %7544 = vmatpush1.msra.mxu0 0.0
        %7545 = vmatprep.subr.mxu0 0.0
        %7546 = vmatpush1.msra.mxu0 0.0
        %7547 = vmatprep.subr.mxu0 0.0
        %7548 = vmatpush1.msra.mxu0 0.0
        %7549 = vmatprep.subr.mxu0 0.0
        %7550 = vmatpush1.msra.mxu0 0.0
        %7551 = vmatprep.subr.mxu0 0.0
        %7552 = vmatpush1.msra.mxu0 0.0
        %7553 = vmatprep.subr.mxu0 0.0
        %7554 = vmatpush1.msra.mxu0 0.0
        %7555 = vmatprep.subr.mxu0 0.0
        %7556 = vmatpush1.msra.mxu0 0.0
        %7557 = vmatprep.subr.mxu0 0.0
        %7558 = vmatpush1.msra.mxu0 0.0
        %7559 = vmatprep.subr.mxu0 0.0
        %7560 = vmatpush1.msra.mxu0 0.0
        %7561 = vmatprep.subr.mxu0 0.0
        %7562 = vmatpush1.msra.mxu0 0.0
        %7563 = vmatprep.subr.mxu0 0.0
        %7564 = vmatpush1.msra.mxu0 0.0
        %7565 = vmatprep.subr.mxu0 0.0
        %7566 = vmatpush1.msra.mxu0 0.0
        %7567 = vmatprep.subr.mxu0 0.0
        %7568 = vmatpush1.msra.mxu0 0.0
        %7569 = vmatprep.subr.mxu0 0.0
        %7570 = vmatpush1.msra.mxu0 0.0
        %7571 = vmatprep.subr.mxu0 0.0
        %7572 = vmatpush1.msra.mxu0 0.0
        %7573 = vmatprep.subr.mxu0 0.0
        %7574 = vmatpush1.msra.mxu0 0.0
        %7575 = vmatprep.subr.mxu0 0.0
        %7576 = vmatpush1.msra.mxu0 0.0
        %7577 = vmatprep.subr.mxu0 0.0
        %7578 = vmatpush1.msra.mxu0 0.0
        %7579 = vmatprep.subr.mxu0 0.0
        %7580 = vmatpush1.msra.mxu0 0.0
        %7581 = vmatprep.mubr.f32.mxu0 0.0
        %v7582 = vand.u32 %v7283, 4294901760
        %v7583 = vsub.f32 %v7283, %v7582
        %v7584 = vand.u32 %v7583, 4294901760
        %7585 = vmatmul.mubr.f32.gmra.mrb[0].mxu0 %v7584
        %v7586 = vpop.f32.mrb[0].mxu0
        %v7587 = vadd.f32 %v7513, %v7586
        %v7588 = vpop.f32.mrb[0].mxu0
        %7589 = vdwg.mxu0
        %7590 = vmatprep.subr.mxu0 0.0
        %v7591 = vsub.f32 %v384, %v384
        %v7592 = vand.u32 %v7591, 4294901760
        %7593 = vmatpush1.msra.mxu0 %v7592
        %7594 = vmatprep.subr.mxu0 0.0
        %v7595 = vand.u32 %v4091, 4294901760
        %v7596 = vsub.f32 %v4091, %v7595
        %v7597 = vand.u32 %v7596, 4294901760
        %7598 = vmatpush1.msra.mxu0 %v7597
        %7599 = vmatprep.subr.mxu0 0.0
        %7600 = vmatpush1.msra.mxu0 0.0
        %7601 = vmatprep.subr.mxu0 0.0
        %7602 = vmatpush1.msra.mxu0 0.0
        %7603 = vmatprep.subr.mxu0 0.0
        %7604 = vmatpush1.msra.mxu0 0.0
        %7605 = vmatprep.subr.mxu0 0.0
        %7606 = vmatpush1.msra.mxu0 0.0
        %7607 = vmatprep.subr.mxu0 0.0
        %7608 = vmatpush1.msra.mxu0 0.0
        %7609 = vmatprep.subr.mxu0 0.0
        %7610 = vmatpush1.msra.mxu0 0.0
        %7611 = vmatprep.subr.mxu0 0.0
        %7612 = vmatpush1.msra.mxu0 0.0
        %7613 = vmatprep.subr.mxu0 0.0
        %7614 = vmatpush1.msra.mxu0 0.0
        %7615 = vmatprep.subr.mxu0 0.0
        %7616 = vmatpush1.msra.mxu0 0.0
        %7617 = vmatprep.subr.mxu0 0.0
        %7618 = vmatpush1.msra.mxu0 0.0
        %7619 = vmatprep.subr.mxu0 0.0
        %7620 = vmatpush1.msra.mxu0 0.0
        %7621 = vmatprep.subr.mxu0 0.0
        %7622 = vmatpush1.msra.mxu0 0.0
        %7623 = vmatprep.subr.mxu0 0.0
        %7624 = vmatpush1.msra.mxu0 0.0
        %7625 = vmatprep.subr.mxu0 0.0
        %7626 = vmatpush1.msra.mxu0 0.0
        %7627 = vmatprep.subr.mxu0 0.0
        %7628 = vmatpush1.msra.mxu0 0.0
        %7629 = vmatprep.subr.mxu0 0.0
        %7630 = vmatpush1.msra.mxu0 0.0
        %7631 = vmatprep.subr.mxu0 0.0
        %7632 = vmatpush1.msra.mxu0 0.0
        %7633 = vmatprep.subr.mxu0 0.0
        %7634 = vmatpush1.msra.mxu0 0.0
        %7635 = vmatprep.subr.mxu0 0.0
        %7636 = vmatpush1.msra.mxu0 0.0
        %7637 = vmatprep.subr.mxu0 0.0
        %7638 = vmatpush1.msra.mxu0 0.0
        %7639 = vmatprep.subr.mxu0 0.0
        %7640 = vmatpush1.msra.mxu0 0.0
        %7641 = vmatprep.subr.mxu0 0.0
        %7642 = vmatpush1.msra.mxu0 0.0
        %7643 = vmatprep.subr.mxu0 0.0
        %7644 = vmatpush1.msra.mxu0 0.0
        %7645 = vmatprep.subr.mxu0 0.0
        %7646 = vmatpush1.msra.mxu0 0.0
        %7647 = vmatprep.subr.mxu0 0.0
        %7648 = vmatpush1.msra.mxu0 0.0
        %7649 = vmatprep.subr.mxu0 0.0
        %7650 = vmatpush1.msra.mxu0 0.0
        %7651 = vmatprep.subr.mxu0 0.0
        %7652 = vmatpush1.msra.mxu0 0.0
        %7653 = vmatprep.subr.mxu0 0.0
        %7654 = vmatpush1.msra.mxu0 0.0
        %7655 = vmatprep.subr.mxu0 0.0
        %7656 = vmatpush1.msra.mxu0 0.0
        %7657 = vmatprep.subr.mxu0 0.0
        %7658 = vmatpush1.msra.mxu0 0.0
        %7659 = vmatprep.mubr.f32.mxu0 0.0
        %v7660 = vand.u32 %v7283, 4294901760
        %7661 = vmatmul.mubr.f32.gmra.mrb[0].mxu0 %v7660
        %v7662 = vpop.f32.mrb[0].mxu0
        %v7663 = vadd.f32 %v7587, %v7662
        %v7664 = vpop.f32.mrb[0].mxu0
        %7665 = vdwg.mxu0
        %7666 = vmatprep.subr.mxu0 0.0
        %7667 = vmatpush1.msra.mxu0 %v384
        %7668 = vmatprep.subr.mxu0 0.0
        %v7669 = vand.u32 %v4091, 4294901760
        %7670 = vmatpush1.msra.mxu0 %v7669
        %7671 = vmatprep.subr.mxu0 0.0
        %7672 = vmatpush1.msra.mxu0 0.0
        %7673 = vmatprep.subr.mxu0 0.0
        %7674 = vmatpush1.msra.mxu0 0.0
        %7675 = vmatprep.subr.mxu0 0.0
        %7676 = vmatpush1.msra.mxu0 0.0
        %7677 = vmatprep.subr.mxu0 0.0
        %7678 = vmatpush1.msra.mxu0 0.0
        %7679 = vmatprep.subr.mxu0 0.0
        %7680 = vmatpush1.msra.mxu0 0.0
        %7681 = vmatprep.subr.mxu0 0.0
        %7682 = vmatpush1.msra.mxu0 0.0
        %7683 = vmatprep.subr.mxu0 0.0
        %7684 = vmatpush1.msra.mxu0 0.0
        %7685 = vmatprep.subr.mxu0 0.0
        %7686 = vmatpush1.msra.mxu0 0.0
        %7687 = vmatprep.subr.mxu0 0.0
        %7688 = vmatpush1.msra.mxu0 0.0
        %7689 = vmatprep.subr.mxu0 0.0
        %7690 = vmatpush1.msra.mxu0 0.0
        %7691 = vmatprep.subr.mxu0 0.0
        %7692 = vmatpush1.msra.mxu0 0.0
        %7693 = vmatprep.subr.mxu0 0.0
        %7694 = vmatpush1.msra.mxu0 0.0
        %7695 = vmatprep.subr.mxu0 0.0
        %7696 = vmatpush1.msra.mxu0 0.0
        %7697 = vmatprep.subr.mxu0 0.0
        %7698 = vmatpush1.msra.mxu0 0.0
        %7699 = vmatprep.subr.mxu0 0.0
        %7700 = vmatpush1.msra.mxu0 0.0
        %7701 = vmatprep.subr.mxu0 0.0
        %7702 = vmatpush1.msra.mxu0 0.0
        %7703 = vmatprep.subr.mxu0 0.0
        %7704 = vmatpush1.msra.mxu0 0.0
        %7705 = vmatprep.subr.mxu0 0.0
        %7706 = vmatpush1.msra.mxu0 0.0
        %7707 = vmatprep.subr.mxu0 0.0
        %7708 = vmatpush1.msra.mxu0 0.0
        %7709 = vmatprep.subr.mxu0 0.0
        %7710 = vmatpush1.msra.mxu0 0.0
        %7711 = vmatprep.subr.mxu0 0.0
        %7712 = vmatpush1.msra.mxu0 0.0
        %7713 = vmatprep.subr.mxu0 0.0
        %7714 = vmatpush1.msra.mxu0 0.0
        %7715 = vmatprep.subr.mxu0 0.0
        %7716 = vmatpush1.msra.mxu0 0.0
        %7717 = vmatprep.subr.mxu0 0.0
        %7718 = vmatpush1.msra.mxu0 0.0
        %7719 = vmatprep.subr.mxu0 0.0
        %7720 = vmatpush1.msra.mxu0 0.0
        %7721 = vmatprep.subr.mxu0 0.0
        %7722 = vmatpush1.msra.mxu0 0.0
        %7723 = vmatprep.subr.mxu0 0.0
        %7724 = vmatpush1.msra.mxu0 0.0
        %7725 = vmatprep.subr.mxu0 0.0
        %7726 = vmatpush1.msra.mxu0 0.0
        %7727 = vmatprep.subr.mxu0 0.0
        %7728 = vmatpush1.msra.mxu0 0.0
        %7729 = vmatprep.subr.mxu0 0.0
        %7730 = vmatpush1.msra.mxu0 0.0
        %7731 = vmatprep.mubr.f32.mxu0 0.0
        %v7732 = vand.u32 %v7283, 4294901760
        %7733 = vmatmul.mubr.f32.gmra.mrb[0].mxu0 %v7732
        %v7734 = vpop.f32.mrb[0].mxu0
        %v7735 = vadd.f32 %v7663, %v7734
        %v7736 = vpop.f32.mrb[0].mxu0
        %7737 = vdwg.mxu0
        %vm7738 = vcmask 64512
        %7739 = vst.msk [vmem:[%s163] sm:$0xff] %vm7738, %v4543
        %7740 = vst.msk [vmem:[%s163 + $0x8] sm:$0xff] %vm7738, %v4999
        %7741 = vst.msk [vmem:[%s163 + $0x10] sm:$0xff] %vm7738, %v5455
        %7742 = vst.msk [vmem:[%s163 + $0x18] sm:$0xff] %vm7738, %v5911
        %7743 = vst.msk [vmem:[%s163 + $0x20] sm:$0xff] %vm7738, %v6367
        %7744 = vst.msk [vmem:[%s163 + $0x28] sm:$0xff] %vm7738, %v6823
        %7745 = vst.msk [vmem:[%s163 + $0x30] sm:$0xff] %vm7738, %v7279
        %7746 = vst.msk [vmem:[%s163 + $0x38] sm:$0xff] %vm7738, %v7735
        %s7747 = smul.u32 8, %s19
        %p7748 = scmp.lt.s32.totalorder %s7747, 15
        %s7749 = scalar_select %p7748, %s7747, 15
        %p7750 = scmp.lt.s32.totalorder %s20, 0
        %s7751 = scalar_select %p7750, %s20, 0
        %s7752 = sadd.s32 %s7751, %s7749
        %s7753 = smul.addr %s7752, 8
        %s7754 = scalar_lea.vmem %s1, %s7753
        // Predicated region
        $region29: #{tpu_custom_call.1} parent=23 // pred_check
          %p7755 = pneg %p75
        $region30: #{tpu_custom_call.1} parent=23 // pred_check_branch
          %7757 = sbr.rel (%p7755) target = $region32
        $region31: #{tpu_custom_call.1} parent=23 // pred_region
          %s7758 = smul.u32 8, %s19
        $region32: #{tpu_custom_call.1} parent=23 // pred_fallthru
          _
      $region24: #{tpu_custom_call.1} parent=5 // pred_fallthru
        _
      %p7759 = scmp.le.s32.totalorder 2, %s10
      // Predicated region
      $region33: #{tpu_custom_call.1} parent=5 // pred_check
        %p7760 = pneg %p7759
      $region34: #{tpu_custom_call.1} parent=5 // pred_check_branch
        %7762 = sbr.rel (%p7760) target = $region36
      $region35: #{tpu_custom_call.1} parent=5 // pred_region
        %s7763 = ssub.s32 %s10, 2
        // Predicated region
        $region37: #{tpu_custom_call.1} parent=35 // pred_check
          %p7764 = pneg %p81
        $region38: #{tpu_custom_call.1} parent=35 // pred_check_branch
          %7766 = sbr.rel (%p7764) target = $region40
        $region39: #{tpu_custom_call.1} parent=35 // pred_region
          %s7767 = smul.u32 8, %s21
          %p7768 = scmp.lt.s32.totalorder %s7767, 15
          %s7769 = scalar_select %p7768, %s7767, 15
          %p7770 = scmp.lt.s32.totalorder %s22, 0
          %s7771 = scalar_select %p7770, %s22, 0
          %s7772 = sadd.s32 %s7771, %s7769
          %s7773 = smul.addr %s7772, 8
          %s7774 = scalar_lea.vmem %s1, %s7773
        $region40: #{tpu_custom_call.1} parent=35 // pred_fallthru
          _
      $region36: #{tpu_custom_call.1} parent=5 // pred_fallthru
        _
    $region6: #{tpu_custom_call.1} parent=1 // loop_footer
      %s14 = sadd.s32 1, %s10
    $region7: #{tpu_custom_call.1} parent=1 // loop_footer_branch
      %9 = sbr.rel target = $region3
    $region8: #{tpu_custom_call.1} parent=1 // loop_exit
      _
    %7775 = vsyncpa [#allocation3], 1
    %s7776 = scalar_lea.sflag [#allocation3], 1
    %7777 = vsyncpa %s7776, 1

</llo_original>
